<compile_context>
chip_gen: v5e
topology: v5e:2x2
jax: 0.10.0
libtpu: 0.0.40
codegen_flags: <defaults>
</compile_context>

<pallas_src>
import jax
import jax.numpy as jnp
from jax.experimental import pallas as pl
from jax.experimental.pallas import tpu as pltpu

_VMEM_LIMIT = 32 * 1024 * 1024  # explicit, safe on v5e/v6e/v7x


# ----------------------------------------------------------------------------
# Pallas kernels
# ----------------------------------------------------------------------------
def _make_conv_kernel(phases, acc_rows, kk, wg, wo, ho, pool):
    """Fused Conv2d(3x3, pad=1) + BN(eval) + ReLU (+ 2x2/2 max-pool) per image.

    x_ref : (1, GR, K)  bf16  host-prepared flattened (grouped) padded activation
    w_ref : (T*K, Cout) bf16  tap-major / channel-minor weights, BN scale folded
    s_ref : (1, Cout)   f32   folded conv-bias + BN shift
    o_ref : (1, out_rows, Cout) bf16
    hbuf  : (acc_rows, Cout) f32 VMEM scratch (used only when pooling)

    `phases` is a static plan: one entry per output-column parity, each a list
    of (row_offset_into_x, row_offset_into_w) taps.  Every access below is a
    contiguous 2-D slice; the whole conv is 2-D matmuls + elementwise ops.
    """

    def kernel(x_ref, w_ref, s_ref, o_ref, hbuf):
        ys = []
        for taps in phases:
            acc = None
            for (row_off, w_off) in taps:
                lhs = x_ref[0, row_off:row_off + acc_rows, :]          # (rows, K)
                rhs = w_ref[w_off:w_off + kk, :]                       # (K, Cout)
                d = jnp.dot(lhs, rhs, preferred_element_type=jnp.float32)
                acc = d if acc is None else acc + d
            ys.append(jnp.maximum(acc + s_ref[...], 0.0))              # bias + ReLU

        if pool:
            # horizontal (column) pool = max over the two column phases
            hmax = jnp.maximum(ys[0], ys[1]) if len(ys) == 2 else ys[0]
            hbuf[...] = hmax
            # vertical (row) pool: contiguous row-pair maxes, junk cols dropped
            for r in range(ho):
                top = hbuf[(2 * r) * wg:(2 * r) * wg + wo, :]
                bot = hbuf[(2 * r + 1) * wg:(2 * r + 1) * wg + wo, :]
                o_ref[0, r * wo:(r + 1) * wo, :] = (
                    jnp.maximum(top, bot).astype(o_ref.dtype))
        else:
            o_ref[0] = ys[0].astype(o_ref.dtype)

    return kernel


def _conv_layer(x_gk, w_mat, shift, *, phases, acc_rows, kk, wg, wo, ho, pool,
                out_rows):
    n, gr, k = x_gk.shape
    cout = w_mat.shape[1]
    kernel = _make_conv_kernel(phases, acc_rows, kk, wg, wo, ho, pool)
    return pl.pallas_call(
        kernel,
        out_shape=jax.ShapeDtypeStruct((n, out_rows, cout), jnp.bfloat16),
        grid=(n,),
        in_specs=[
            pl.BlockSpec((1, gr, k), lambda i: (i, 0, 0)),
            pl.BlockSpec(w_mat.shape, lambda i: (0, 0)),
            pl.BlockSpec((1, cout), lambda i: (0, 0)),
        ],
        out_specs=pl.BlockSpec((1, out_rows, cout), lambda i: (i, 0, 0)),
        scratch_shapes=[pltpu.VMEM((acc_rows, cout), jnp.float32)],
        compiler_params=pltpu.CompilerParams(
            dimension_semantics=("parallel",),
            vmem_limit_bytes=_VMEM_LIMIT),
    )(x_gk, w_mat, shift)


def _fc_kernel(x_ref, w1_ref, b1_ref, w2_ref, b2_ref, o_ref):
    """Fused fc1 + bias + ReLU + (Dropout eval-identity) + fc2 + bias."""
    h = jnp.dot(x_ref[...], w1_ref[...],
                preferred_element_type=jnp.float32) + b1_ref[...]
    h = jnp.maximum(h, 0.0).astype(jnp.bfloat16)
    y = jnp.dot(h, w2_ref[...],
                preferred_element_type=jnp.float32) + b2_ref[...]
    o_ref[...] = y


def _fc_layers(xf, w1, b1, w2, b2):
    n, k = xf.shape
    tm = n if n <= 128 else 128
    h1 = w1.shape[1]
    no = w2.shape[1]
    return pl.pallas_call(
        _fc_kernel,
        out_shape=jax.ShapeDtypeStruct((n, no), jnp.float32),
        grid=(pl.cdiv(n, tm),),
        in_specs=[
            pl.BlockSpec((tm, k), lambda i: (i, 0)),
            pl.BlockSpec((k, h1), lambda i: (0, 0)),
            pl.BlockSpec((1, h1), lambda i: (0, 0)),
            pl.BlockSpec((h1, no), lambda i: (0, 0)),
            pl.BlockSpec((1, no), lambda i: (0, 0)),
        ],
        out_specs=pl.BlockSpec((tm, no), lambda i: (i, 0)),
        compiler_params=pltpu.CompilerParams(
            dimension_semantics=("parallel",),
            vmem_limit_bytes=_VMEM_LIMIT),
    )(xf, w1, b1, w2, b2)


# ----------------------------------------------------------------------------
# Static per-layer "plans" (all offsets are compile-time constants)
# ----------------------------------------------------------------------------
# conv1: host im2col (Cin=1), two column phases, no junk columns.
_CONV1 = dict(phases=(((0, 0),), ((392, 0),)),
              acc_rows=392, kk=9, wg=14, wo=14, ho=14, pool=True, out_rows=196)


def _conv2_phases():
    # padded grouped input: 2 column-parity groups of (17 rows x 8 cols),
    # flattened; group g starts at row g*136.
    out = []
    for b in range(2):                       # output column phase
        taps = []
        for dy in range(3):
            for dx in range(3):
                g = (b + dx) % 2
                taps.append((g * 136 + dy * 8 + (b + dx) // 2,
                             (dy * 3 + dx) * 32))
        out.append(tuple(taps))
    return tuple(out)


_CONV2 = dict(phases=_conv2_phases(),
              acc_rows=112, kk=32, wg=8, wo=7, ho=7, pool=True, out_rows=49)

# conv3: no pool; plain "wide row" layout (padded 10x9 spatial, flattened);
# output rows r = h*9 + w  (w=7,8 are junk and get zero fc1 weights).
_CONV3 = dict(phases=(tuple((dy * 9 + dx, (dy * 3 + dx) * 64)
                            for dy in range(3) for dx in range(3)),),
              acc_rows=63, kk=64, wg=0, wo=0, ho=0, pool=False, out_rows=63)


# ----------------------------------------------------------------------------
# Host-side (tiny) data/parameter preparation
# ----------------------------------------------------------------------------
def _prep_conv1_input(x_nchw):
    """(N,1,28,28) -> (N, 2*28*14, 9): per-column-phase im2col (Cin=1)."""
    n = x_nchw.shape[0]
    x = x_nchw.reshape(n, 28, 28).astype(jnp.float32)
    xp = jnp.pad(x, ((0, 0), (1, 1), (1, 1)))                    # (n,30,30)
    cols = []
    for dy in range(3):
        for dx in range(3):
            win = xp[:, dy:dy + 28, dx:dx + 28]                  # (n,28,28)
            cols.append(jnp.stack([win[:, :, 0::2], win[:, :, 1::2]], axis=1))
    p = jnp.stack(cols, axis=-1)                                 # (n,2,28,14,9)
    return p.reshape(n, 2 * 28 * 14, 9).astype(jnp.bfloat16)


def _prep_conv2_input(y1):
    """pooled1 (N,196,32) -> padded, column-parity grouped, flattened (N,272,32)."""
    n = y1.shape[0]
    a = y1.reshape(n, 14, 14, 32)
    ap = jnp.pad(a, ((0, 0), (1, 2), (1, 1), (0, 0)))            # (n,17,16,32)
    g = jnp.stack([ap[:, :, 0::2, :], ap[:, :, 1::2, :]], axis=1)  # (n,2,17,8,32)
    return g.reshape(n, 2 * 17 * 8, 32)


def _prep_conv3_input(y2):
    """pooled2 (N,49,64) -> padded (10x9) spatial, flattened (N,90,64)."""
    n = y2.shape[0]
    a = y2.reshape(n, 7, 7, 64)
    ap = jnp.pad(a, ((0, 0), (1, 2), (1, 1), (0, 0)))            # (n,10,9,64)
    return ap.reshape(n, 90, 64)


def prepare_params(params, eps=1e-5):
    """One-time host transform: fold BN into weights, pre-permute fc1, cast bf16."""

    def fold(conv, bn):
        w, b = conv                                   # w: (Cout, Cin, 3, 3)
        gamma, beta, mean, var = bn
        cout, cin = w.shape[0], w.shape[1]
        scale = gamma / jnp.sqrt(var + eps)
        wm = jnp.transpose(w, (2, 3, 1, 0)).reshape(9 * cin, cout)
        wm = (wm * scale[None, :]).astype(jnp.bfloat16)
        sh = (beta - mean * scale + b * scale).reshape(1, cout).astype(jnp.float32)
        return wm, sh

    w1, b1 = params["fc1"]                            # (128, 3136), (128,)
    w2, b2 = params["fc2"]                            # (9, 128), (9,)
    # torch flatten order is (C,H,W); permute to (H, W_wide, C) with zero rows
    # at the wide-layout junk columns w=7,8 so conv3's output is consumed as-is.
    w1p = jnp.transpose(w1.reshape(128, 64, 7, 7), (0, 2, 3, 1))  # (128,7,7,64)
    w1p = jnp.pad(w1p, ((0, 0), (0, 0), (0, 2), (0, 0)))          # (128,7,9,64)
    w1p = w1p.reshape(128, 63 * 64).T.astype(jnp.bfloat16)        # (4032,128)

    return {
        "conv1": fold(params["conv1"], params["bn1"]),
        "conv2": fold(params["conv2"], params["bn2"]),
        "conv3": fold(params["conv3"], params["bn3"]),
        "fc1": (w1p, b1.reshape(1, 128).astype(jnp.float32)),
        "fc2": (w2.T.astype(jnp.bfloat16), b2.reshape(1, 9).astype(jnp.float32)),
    }


# ----------------------------------------------------------------------------
# Forward pass
# ----------------------------------------------------------------------------
def sudoku_cnn_forward(x_nchw, prepped):
    n = x_nchw.shape[0]
    w1c, s1 = prepped["conv1"]
    w2c, s2 = prepped["conv2"]
    w3c, s3 = prepped["conv3"]
    fw1, fb1 = prepped["fc1"]
    fw2, fb2 = prepped["fc2"]

    x1 = _prep_conv1_input(x_nchw)                    # (n, 784, 9)   bf16
    y1 = _conv_layer(x1, w1c, s1, **_CONV1)           # (n, 196, 32)  pooled
    x2 = _prep_conv2_input(y1)                        # (n, 272, 32)
    y2 = _conv_layer(x2, w2c, s2, **_CONV2)           # (n, 49, 64)   pooled
    x3 = _prep_conv3_input(y2)                        # (n, 90, 64)
    y3 = _conv_layer(x3, w3c, s3, **_CONV3)           # (n, 63, 64)   wide
    xf = y3.reshape(n, 63 * 64)                       # free reshape
    # Dropout(0.5): identity in eval/inference mode.
    return _fc_layers(xf, fw1, fb1, fw2, fb2)         # (n, 9) f32


# ----------------------------------------------------------------------------
# Deterministic synthetic parameters (shapes match the PyTorch module)
# ----------------------------------------------------------------------------
def init_params(key):
    ks = jax.random.split(key, 22)

    def nrm(k, shape, s=0.05):
        return s * jax.random.normal(k, shape, dtype=jnp.float32)

    def bn(k0, k1, k2, k3, c):
        gamma = 1.0 + nrm(k0, (c,), 0.02)
        beta = nrm(k1, (c,), 0.02)
        mean = nrm(k2, (c,), 0.01)
        var = 1.0 + jnp.abs(nrm(k3, (c,), 0.01))
        return (gamma, beta, mean, var)

    return {
        "conv1": (nrm(ks[0], (32, 1, 3, 3)), nrm(ks[1], (32,))),
        "bn1": bn(ks[2], ks[3], ks[4], ks[5], 32),
        "conv2": (nrm(ks[6], (64, 32, 3, 3)), nrm(ks[7], (64,))),
        "bn2": bn(ks[8], ks[9], ks[10], ks[11], 64),
        "conv3": (nrm(ks[12], (64, 64, 3, 3)), nrm(ks[13], (64,))),
        "bn3": bn(ks[14], ks[15], ks[16], ks[17], 64),
        "fc1": (nrm(ks[18], (128, 64 * 7 * 7)), nrm(ks[19], (128,))),
        "fc2": (nrm(ks[20], (9, 128)), nrm(ks[21], (9,))),
    }


if __name__ == "__main__":
    key = jax.random.PRNGKey(0)
    pkey, xkey = jax.random.split(key)
    params = init_params(pkey)
    prepped = prepare_params(params)          # one-time host weight transform

    # Module requires 28x28 single-channel input (fc1 expects 64*7*7 features).
    x = jax.random.normal(xkey, (2, 1, 28, 28), dtype=jnp.float32)

    fwd = jax.jit(lambda inp: sudoku_cnn_forward(inp, prepped))
    out = jax.block_until_ready(fwd(x))

    assert out.shape == (2, 9), out.shape
    assert bool(jnp.all(jnp.isfinite(out)))
    print("KERNEL_OK")
</pallas_src>

<mosaic_0001>
module attributes {stable_mosaic.version = 11 : i64} {
  func.func @kernel(%arg0: i32, %arg1: memref<1x784x9xbf16, #tpu.memory_space<vmem>>, %arg2: memref<9x32xbf16, #tpu.memory_space<vmem>>, %arg3: memref<1x32xf32, #tpu.memory_space<vmem>>, %arg4: memref<1x196x32xbf16, #tpu.memory_space<vmem>>, %arg5: memref<392x32xf32, #tpu.memory_space<vmem>>) attributes {dimension_semantics = [#tpu.dimension_semantics<parallel>], iteration_bounds = array<i64: 2>, scalar_prefetch = 0 : i64, scratch_operands = 1 : i64, tpu.core_type = #tpu.core_type<tc>, window_params = [{transform_indices = @transform_0, window_bounds = array<i64: 1, 784, 9>}, {pipeline_mode = #tpu.pipeline_mode<synchronous>, transform_indices = @transform_1, window_bounds = array<i64: 9, 32>}, {pipeline_mode = #tpu.pipeline_mode<synchronous>, transform_indices = @transform_2, window_bounds = array<i64: 1, 32>}, {transform_indices = @transform_3, window_bounds = array<i64: 1, 196, 32>}]} {
    %c0 = arith.constant 0 : index
    %c0_0 = arith.constant 0 : index
    %c0_1 = arith.constant 0 : index
    %0 = vector.load %arg1[%c0, %c0_0, %c0_1] : memref<1x784x9xbf16, #tpu.memory_space<vmem>>, vector<1x392x9xbf16>
    %1 = vector.shape_cast %0 : vector<1x392x9xbf16> to vector<392x9xbf16>
    %c0_2 = arith.constant 0 : index
    %c0_3 = arith.constant 0 : index
    %2 = vector.load %arg2[%c0_2, %c0_3] : memref<9x32xbf16, #tpu.memory_space<vmem>>, vector<9x32xbf16>
    %cst = arith.constant dense<0.000000e+00> : vector<392x32xf32>
    %3 = tpu.matmul %1, %2, %cst {dimension_numbers = #tpu.dot_dimension_numbers<[1], [0], [0], [1], [0, 0, 1, 1], [], []>} : vector<392x9xbf16>, vector<9x32xbf16>, vector<392x32xf32> -> vector<392x32xf32>
    %c0_4 = arith.constant 0 : index
    %c0_5 = arith.constant 0 : index
    %4 = vector.load %arg3[%c0_4, %c0_5] : memref<1x32xf32, #tpu.memory_space<vmem>>, vector<1x32xf32>
    %5 = vector.broadcast %4 : vector<1x32xf32> to vector<392x32xf32>
    %6 = arith.addf %3, %5 : vector<392x32xf32>
    %cst_6 = arith.constant 0.000000e+00 : f32
    %7 = vector.broadcast %cst_6 : f32 to vector<392x32xf32>
    %8 = arith.maximumf %6, %7 : vector<392x32xf32>
    %c0_7 = arith.constant 0 : index
    %c392 = arith.constant 392 : index
    %c0_8 = arith.constant 0 : index
    %9 = vector.load %arg1[%c0_7, %c392, %c0_8] : memref<1x784x9xbf16, #tpu.memory_space<vmem>>, vector<1x392x9xbf16>
    %10 = vector.shape_cast %9 : vector<1x392x9xbf16> to vector<392x9xbf16>
    %c0_9 = arith.constant 0 : index
    %c0_10 = arith.constant 0 : index
    %11 = vector.load %arg2[%c0_9, %c0_10] : memref<9x32xbf16, #tpu.memory_space<vmem>>, vector<9x32xbf16>
    %cst_11 = arith.constant dense<0.000000e+00> : vector<392x32xf32>
    %12 = tpu.matmul %10, %11, %cst_11 {dimension_numbers = #tpu.dot_dimension_numbers<[1], [0], [0], [1], [0, 0, 1, 1], [], []>} : vector<392x9xbf16>, vector<9x32xbf16>, vector<392x32xf32> -> vector<392x32xf32>
    %c0_12 = arith.constant 0 : index
    %c0_13 = arith.constant 0 : index
    %13 = vector.load %arg3[%c0_12, %c0_13] : memref<1x32xf32, #tpu.memory_space<vmem>>, vector<1x32xf32>
    %14 = vector.broadcast %13 : vector<1x32xf32> to vector<392x32xf32>
    %15 = arith.addf %12, %14 : vector<392x32xf32>
    %cst_14 = arith.constant 0.000000e+00 : f32
    %16 = vector.broadcast %cst_14 : f32 to vector<392x32xf32>
    %17 = arith.maximumf %15, %16 : vector<392x32xf32>
    %18 = arith.maximumf %8, %17 : vector<392x32xf32>
    %c0_15 = arith.constant 0 : index
    %c0_16 = arith.constant 0 : index
    %19 = vector.load %arg5[%c0_15, %c0_16] : memref<392x32xf32, #tpu.memory_space<vmem>>, vector<392x32xf32>
    tpu.vector_store %arg5[%c0_15, %c0_16], %18 {strides = array<i32>} : memref<392x32xf32, #tpu.memory_space<vmem>>, vector<392x32xf32>,
    %c0_17 = arith.constant 0 : index
    %c0_18 = arith.constant 0 : index
    %20 = vector.load %arg5[%c0_17, %c0_18] : memref<392x32xf32, #tpu.memory_space<vmem>>, vector<14x32xf32>
    %c14 = arith.constant 14 : index
    %c0_19 = arith.constant 0 : index
    %21 = vector.load %arg5[%c14, %c0_19] : memref<392x32xf32, #tpu.memory_space<vmem>>, vector<14x32xf32>
    %22 = arith.maximumf %20, %21 : vector<14x32xf32>
    %23 = arith.truncf %22 : vector<14x32xf32> to vector<14x32xbf16>
    %c0_20 = arith.constant 0 : index
    %c0_21 = arith.constant 0 : index
    %c0_22 = arith.constant 0 : index
    %24 = vector.load %arg4[%c0_20, %c0_21, %c0_22] : memref<1x196x32xbf16, #tpu.memory_space<vmem>>, vector<1x14x32xbf16>
    %25 = vector.shape_cast %24 : vector<1x14x32xbf16> to vector<14x32xbf16>
    %26 = vector.shape_cast %23 : vector<14x32xbf16> to vector<1x14x32xbf16>
    tpu.vector_store %arg4[%c0_20, %c0_21, %c0_22], %26 {strides = array<i32>} : memref<1x196x32xbf16, #tpu.memory_space<vmem>>, vector<1x14x32xbf16>,
    %c28 = arith.constant 28 : index
    %c0_23 = arith.constant 0 : index
    %27 = vector.load %arg5[%c28, %c0_23] : memref<392x32xf32, #tpu.memory_space<vmem>>, vector<14x32xf32>
    %c42 = arith.constant 42 : index
    %c0_24 = arith.constant 0 : index
    %28 = vector.load %arg5[%c42, %c0_24] : memref<392x32xf32, #tpu.memory_space<vmem>>, vector<14x32xf32>
    %29 = arith.maximumf %27, %28 : vector<14x32xf32>
    %30 = arith.truncf %29 : vector<14x32xf32> to vector<14x32xbf16>
    %c0_25 = arith.constant 0 : index
    %c14_26 = arith.constant 14 : index
    %c0_27 = arith.constant 0 : index
    %31 = vector.load %arg4[%c0_25, %c14_26, %c0_27] : memref<1x196x32xbf16, #tpu.memory_space<vmem>>, vector<1x14x32xbf16>
    %32 = vector.shape_cast %31 : vector<1x14x32xbf16> to vector<14x32xbf16>
    %33 = vector.shape_cast %30 : vector<14x32xbf16> to vector<1x14x32xbf16>
    tpu.vector_store %arg4[%c0_25, %c14_26, %c0_27], %33 {strides = array<i32>} : memref<1x196x32xbf16, #tpu.memory_space<vmem>>, vector<1x14x32xbf16>,
    %c56 = arith.constant 56 : index
    %c0_28 = arith.constant 0 : index
    %34 = vector.load %arg5[%c56, %c0_28] : memref<392x32xf32, #tpu.memory_space<vmem>>, vector<14x32xf32>
    %c70 = arith.constant 70 : index
    %c0_29 = arith.constant 0 : index
    %35 = vector.load %arg5[%c70, %c0_29] : memref<392x32xf32, #tpu.memory_space<vmem>>, vector<14x32xf32>
    %36 = arith.maximumf %34, %35 : vector<14x32xf32>
    %37 = arith.truncf %36 : vector<14x32xf32> to vector<14x32xbf16>
    %c0_30 = arith.constant 0 : index
    %c28_31 = arith.constant 28 : index
    %c0_32 = arith.constant 0 : index
    %38 = vector.load %arg4[%c0_30, %c28_31, %c0_32] : memref<1x196x32xbf16, #tpu.memory_space<vmem>>, vector<1x14x32xbf16>
    %39 = vector.shape_cast %38 : vector<1x14x32xbf16> to vector<14x32xbf16>
    %40 = vector.shape_cast %37 : vector<14x32xbf16> to vector<1x14x32xbf16>
    tpu.vector_store %arg4[%c0_30, %c28_31, %c0_32], %40 {strides = array<i32>} : memref<1x196x32xbf16, #tpu.memory_space<vmem>>, vector<1x14x32xbf16>,
    %c84 = arith.constant 84 : index
    %c0_33 = arith.constant 0 : index
    %41 = vector.load %arg5[%c84, %c0_33] : memref<392x32xf32, #tpu.memory_space<vmem>>, vector<14x32xf32>
    %c98 = arith.constant 98 : index
    %c0_34 = arith.constant 0 : index
    %42 = vector.load %arg5[%c98, %c0_34] : memref<392x32xf32, #tpu.memory_space<vmem>>, vector<14x32xf32>
    %43 = arith.maximumf %41, %42 : vector<14x32xf32>
    %44 = arith.truncf %43 : vector<14x32xf32> to vector<14x32xbf16>
    %c0_35 = arith.constant 0 : index
    %c42_36 = arith.constant 42 : index
    %c0_37 = arith.constant 0 : index
    %45 = vector.load %arg4[%c0_35, %c42_36, %c0_37] : memref<1x196x32xbf16, #tpu.memory_space<vmem>>, vector<1x14x32xbf16>
    %46 = vector.shape_cast %45 : vector<1x14x32xbf16> to vector<14x32xbf16>
    %47 = vector.shape_cast %44 : vector<14x32xbf16> to vector<1x14x32xbf16>
    tpu.vector_store %arg4[%c0_35, %c42_36, %c0_37], %47 {strides = array<i32>} : memref<1x196x32xbf16, #tpu.memory_space<vmem>>, vector<1x14x32xbf16>,
    %c112 = arith.constant 112 : index
    %c0_38 = arith.constant 0 : index
    %48 = vector.load %arg5[%c112, %c0_38] : memref<392x32xf32, #tpu.memory_space<vmem>>, vector<14x32xf32>
    %c126 = arith.constant 126 : index
    %c0_39 = arith.constant 0 : index
    %49 = vector.load %arg5[%c126, %c0_39] : memref<392x32xf32, #tpu.memory_space<vmem>>, vector<14x32xf32>
    %50 = arith.maximumf %48, %49 : vector<14x32xf32>
    %51 = arith.truncf %50 : vector<14x32xf32> to vector<14x32xbf16>
    %c0_40 = arith.constant 0 : index
    %c56_41 = arith.constant 56 : index
    %c0_42 = arith.constant 0 : index
    %52 = vector.load %arg4[%c0_40, %c56_41, %c0_42] : memref<1x196x32xbf16, #tpu.memory_space<vmem>>, vector<1x14x32xbf16>
    %53 = vector.shape_cast %52 : vector<1x14x32xbf16> to vector<14x32xbf16>
    %54 = vector.shape_cast %51 : vector<14x32xbf16> to vector<1x14x32xbf16>
    tpu.vector_store %arg4[%c0_40, %c56_41, %c0_42], %54 {strides = array<i32>} : memref<1x196x32xbf16, #tpu.memory_space<vmem>>, vector<1x14x32xbf16>,
    %c140 = arith.constant 140 : index
    %c0_43 = arith.constant 0 : index
    %55 = vector.load %arg5[%c140, %c0_43] : memref<392x32xf32, #tpu.memory_space<vmem>>, vector<14x32xf32>
    %c154 = arith.constant 154 : index
    %c0_44 = arith.constant 0 : index
    %56 = vector.load %arg5[%c154, %c0_44] : memref<392x32xf32, #tpu.memory_space<vmem>>, vector<14x32xf32>
    %57 = arith.maximumf %55, %56 : vector<14x32xf32>
    %58 = arith.truncf %57 : vector<14x32xf32> to vector<14x32xbf16>
    %c0_45 = arith.constant 0 : index
    %c70_46 = arith.constant 70 : index
    %c0_47 = arith.constant 0 : index
    %59 = vector.load %arg4[%c0_45, %c70_46, %c0_47] : memref<1x196x32xbf16, #tpu.memory_space<vmem>>, vector<1x14x32xbf16>
    %60 = vector.shape_cast %59 : vector<1x14x32xbf16> to vector<14x32xbf16>
    %61 = vector.shape_cast %58 : vector<14x32xbf16> to vector<1x14x32xbf16>
    tpu.vector_store %arg4[%c0_45, %c70_46, %c0_47], %61 {strides = array<i32>} : memref<1x196x32xbf16, #tpu.memory_space<vmem>>, vector<1x14x32xbf16>,
    %c168 = arith.constant 168 : index
    %c0_48 = arith.constant 0 : index
    %62 = vector.load %arg5[%c168, %c0_48] : memref<392x32xf32, #tpu.memory_space<vmem>>, vector<14x32xf32>
    %c182 = arith.constant 182 : index
    %c0_49 = arith.constant 0 : index
    %63 = vector.load %arg5[%c182, %c0_49] : memref<392x32xf32, #tpu.memory_space<vmem>>, vector<14x32xf32>
    %64 = arith.maximumf %62, %63 : vector<14x32xf32>
    %65 = arith.truncf %64 : vector<14x32xf32> to vector<14x32xbf16>
    %c0_50 = arith.constant 0 : index
    %c84_51 = arith.constant 84 : index
    %c0_52 = arith.constant 0 : index
    %66 = vector.load %arg4[%c0_50, %c84_51, %c0_52] : memref<1x196x32xbf16, #tpu.memory_space<vmem>>, vector<1x14x32xbf16>
    %67 = vector.shape_cast %66 : vector<1x14x32xbf16> to vector<14x32xbf16>
    %68 = vector.shape_cast %65 : vector<14x32xbf16> to vector<1x14x32xbf16>
    tpu.vector_store %arg4[%c0_50, %c84_51, %c0_52], %68 {strides = array<i32>} : memref<1x196x32xbf16, #tpu.memory_space<vmem>>, vector<1x14x32xbf16>,
    %c196 = arith.constant 196 : index
    %c0_53 = arith.constant 0 : index
    %69 = vector.load %arg5[%c196, %c0_53] : memref<392x32xf32, #tpu.memory_space<vmem>>, vector<14x32xf32>
    %c210 = arith.constant 210 : index
    %c0_54 = arith.constant 0 : index
    %70 = vector.load %arg5[%c210, %c0_54] : memref<392x32xf32, #tpu.memory_space<vmem>>, vector<14x32xf32>
    %71 = arith.maximumf %69, %70 : vector<14x32xf32>
    %72 = arith.truncf %71 : vector<14x32xf32> to vector<14x32xbf16>
    %c0_55 = arith.constant 0 : index
    %c98_56 = arith.constant 98 : index
    %c0_57 = arith.constant 0 : index
    %73 = vector.load %arg4[%c0_55, %c98_56, %c0_57] : memref<1x196x32xbf16, #tpu.memory_space<vmem>>, vector<1x14x32xbf16>
    %74 = vector.shape_cast %73 : vector<1x14x32xbf16> to vector<14x32xbf16>
    %75 = vector.shape_cast %72 : vector<14x32xbf16> to vector<1x14x32xbf16>
    tpu.vector_store %arg4[%c0_55, %c98_56, %c0_57], %75 {strides = array<i32>} : memref<1x196x32xbf16, #tpu.memory_space<vmem>>, vector<1x14x32xbf16>,
    %c224 = arith.constant 224 : index
    %c0_58 = arith.constant 0 : index
    %76 = vector.load %arg5[%c224, %c0_58] : memref<392x32xf32, #tpu.memory_space<vmem>>, vector<14x32xf32>
    %c238 = arith.constant 238 : index
    %c0_59 = arith.constant 0 : index
    %77 = vector.load %arg5[%c238, %c0_59] : memref<392x32xf32, #tpu.memory_space<vmem>>, vector<14x32xf32>
    %78 = arith.maximumf %76, %77 : vector<14x32xf32>
    %79 = arith.truncf %78 : vector<14x32xf32> to vector<14x32xbf16>
    %c0_60 = arith.constant 0 : index
    %c112_61 = arith.constant 112 : index
    %c0_62 = arith.constant 0 : index
    %80 = vector.load %arg4[%c0_60, %c112_61, %c0_62] : memref<1x196x32xbf16, #tpu.memory_space<vmem>>, vector<1x14x32xbf16>
    %81 = vector.shape_cast %80 : vector<1x14x32xbf16> to vector<14x32xbf16>
    %82 = vector.shape_cast %79 : vector<14x32xbf16> to vector<1x14x32xbf16>
    tpu.vector_store %arg4[%c0_60, %c112_61, %c0_62], %82 {strides = array<i32>} : memref<1x196x32xbf16, #tpu.memory_space<vmem>>, vector<1x14x32xbf16>,
    %c252 = arith.constant 252 : index
    %c0_63 = arith.constant 0 : index
    %83 = vector.load %arg5[%c252, %c0_63] : memref<392x32xf32, #tpu.memory_space<vmem>>, vector<14x32xf32>
    %c266 = arith.constant 266 : index
    %c0_64 = arith.constant 0 : index
    %84 = vector.load %arg5[%c266, %c0_64] : memref<392x32xf32, #tpu.memory_space<vmem>>, vector<14x32xf32>
    %85 = arith.maximumf %83, %84 : vector<14x32xf32>
    %86 = arith.truncf %85 : vector<14x32xf32> to vector<14x32xbf16>
    %c0_65 = arith.constant 0 : index
    %c126_66 = arith.constant 126 : index
    %c0_67 = arith.constant 0 : index
    %87 = vector.load %arg4[%c0_65, %c126_66, %c0_67] : memref<1x196x32xbf16, #tpu.memory_space<vmem>>, vector<1x14x32xbf16>
    %88 = vector.shape_cast %87 : vector<1x14x32xbf16> to vector<14x32xbf16>
    %89 = vector.shape_cast %86 : vector<14x32xbf16> to vector<1x14x32xbf16>
    tpu.vector_store %arg4[%c0_65, %c126_66, %c0_67], %89 {strides = array<i32>} : memref<1x196x32xbf16, #tpu.memory_space<vmem>>, vector<1x14x32xbf16>,
    %c280 = arith.constant 280 : index
    %c0_68 = arith.constant 0 : index
    %90 = vector.load %arg5[%c280, %c0_68] : memref<392x32xf32, #tpu.memory_space<vmem>>, vector<14x32xf32>
    %c294 = arith.constant 294 : index
    %c0_69 = arith.constant 0 : index
    %91 = vector.load %arg5[%c294, %c0_69] : memref<392x32xf32, #tpu.memory_space<vmem>>, vector<14x32xf32>
    %92 = arith.maximumf %90, %91 : vector<14x32xf32>
    %93 = arith.truncf %92 : vector<14x32xf32> to vector<14x32xbf16>
    %c0_70 = arith.constant 0 : index
    %c140_71 = arith.constant 140 : index
    %c0_72 = arith.constant 0 : index
    %94 = vector.load %arg4[%c0_70, %c140_71, %c0_72] : memref<1x196x32xbf16, #tpu.memory_space<vmem>>, vector<1x14x32xbf16>
    %95 = vector.shape_cast %94 : vector<1x14x32xbf16> to vector<14x32xbf16>
    %96 = vector.shape_cast %93 : vector<14x32xbf16> to vector<1x14x32xbf16>
    tpu.vector_store %arg4[%c0_70, %c140_71, %c0_72], %96 {strides = array<i32>} : memref<1x196x32xbf16, #tpu.memory_space<vmem>>, vector<1x14x32xbf16>,
    %c308 = arith.constant 308 : index
    %c0_73 = arith.constant 0 : index
    %97 = vector.load %arg5[%c308, %c0_73] : memref<392x32xf32, #tpu.memory_space<vmem>>, vector<14x32xf32>
    %c322 = arith.constant 322 : index
    %c0_74 = arith.constant 0 : index
    %98 = vector.load %arg5[%c322, %c0_74] : memref<392x32xf32, #tpu.memory_space<vmem>>, vector<14x32xf32>
    %99 = arith.maximumf %97, %98 : vector<14x32xf32>
    %100 = arith.truncf %99 : vector<14x32xf32> to vector<14x32xbf16>
    %c0_75 = arith.constant 0 : index
    %c154_76 = arith.constant 154 : index
    %c0_77 = arith.constant 0 : index
    %101 = vector.load %arg4[%c0_75, %c154_76, %c0_77] : memref<1x196x32xbf16, #tpu.memory_space<vmem>>, vector<1x14x32xbf16>
    %102 = vector.shape_cast %101 : vector<1x14x32xbf16> to vector<14x32xbf16>
    %103 = vector.shape_cast %100 : vector<14x32xbf16> to vector<1x14x32xbf16>
    tpu.vector_store %arg4[%c0_75, %c154_76, %c0_77], %103 {strides = array<i32>} : memref<1x196x32xbf16, #tpu.memory_space<vmem>>, vector<1x14x32xbf16>,
    %c336 = arith.constant 336 : index
    %c0_78 = arith.constant 0 : index
    %104 = vector.load %arg5[%c336, %c0_78] : memref<392x32xf32, #tpu.memory_space<vmem>>, vector<14x32xf32>
    %c350 = arith.constant 350 : index
    %c0_79 = arith.constant 0 : index
    %105 = vector.load %arg5[%c350, %c0_79] : memref<392x32xf32, #tpu.memory_space<vmem>>, vector<14x32xf32>
    %106 = arith.maximumf %104, %105 : vector<14x32xf32>
    %107 = arith.truncf %106 : vector<14x32xf32> to vector<14x32xbf16>
    %c0_80 = arith.constant 0 : index
    %c168_81 = arith.constant 168 : index
    %c0_82 = arith.constant 0 : index
    %108 = vector.load %arg4[%c0_80, %c168_81, %c0_82] : memref<1x196x32xbf16, #tpu.memory_space<vmem>>, vector<1x14x32xbf16>
    %109 = vector.shape_cast %108 : vector<1x14x32xbf16> to vector<14x32xbf16>
    %110 = vector.shape_cast %107 : vector<14x32xbf16> to vector<1x14x32xbf16>
    tpu.vector_store %arg4[%c0_80, %c168_81, %c0_82], %110 {strides = array<i32>} : memref<1x196x32xbf16, #tpu.memory_space<vmem>>, vector<1x14x32xbf16>,
    %c364 = arith.constant 364 : index
    %c0_83 = arith.constant 0 : index
    %111 = vector.load %arg5[%c364, %c0_83] : memref<392x32xf32, #tpu.memory_space<vmem>>, vector<14x32xf32>
    %c378 = arith.constant 378 : index
    %c0_84 = arith.constant 0 : index
    %112 = vector.load %arg5[%c378, %c0_84] : memref<392x32xf32, #tpu.memory_space<vmem>>, vector<14x32xf32>
    %113 = arith.maximumf %111, %112 : vector<14x32xf32>
    %114 = arith.truncf %113 : vector<14x32xf32> to vector<14x32xbf16>
    %c0_85 = arith.constant 0 : index
    %c182_86 = arith.constant 182 : index
    %c0_87 = arith.constant 0 : index
    %115 = vector.load %arg4[%c0_85, %c182_86, %c0_87] : memref<1x196x32xbf16, #tpu.memory_space<vmem>>, vector<1x14x32xbf16>
    %116 = vector.shape_cast %115 : vector<1x14x32xbf16> to vector<14x32xbf16>
    %117 = vector.shape_cast %114 : vector<14x32xbf16> to vector<1x14x32xbf16>
    tpu.vector_store %arg4[%c0_85, %c182_86, %c0_87], %117 {strides = array<i32>} : memref<1x196x32xbf16, #tpu.memory_space<vmem>>, vector<1x14x32xbf16>,
    return
  }
  func.func @transform_0(%arg0: i32) -> (i32, i32, i32) {
    %c0_i32 = arith.constant 0 : i32
    %c0_i32_0 = arith.constant 0 : i32
    %c0_i32_1 = arith.constant 0 : i32
    return %arg0, %c0_i32, %c0_i32_0 : i32, i32, i32
  }
  func.func @transform_1(%arg0: i32) -> (i32, i32) {
    %c0_i32 = arith.constant 0 : i32
    %c0_i32_0 = arith.constant 0 : i32
    %c0_i32_1 = arith.constant 0 : i32
    return %c0_i32, %c0_i32_0 : i32, i32
  }
  func.func @transform_2(%arg0: i32) -> (i32, i32) {
    %c0_i32 = arith.constant 0 : i32
    %c0_i32_0 = arith.constant 0 : i32
    %c0_i32_1 = arith.constant 0 : i32
    return %c0_i32, %c0_i32_0 : i32, i32
  }
  func.func @transform_3(%arg0: i32) -> (i32, i32, i32) {
    %c0_i32 = arith.constant 0 : i32
    %c0_i32_0 = arith.constant 0 : i32
    %c0_i32_1 = arith.constant 0 : i32
    return %arg0, %c0_i32, %c0_i32_0 : i32, i32, i32
  }
}

module attributes {stable_mosaic.version = 11 : i64} {
  func.func @kernel(%arg0: i32, %arg1: memref<1x272x32xbf16, #tpu.memory_space<vmem>>, %arg2: memref<288x64xbf16, #tpu.memory_space<vmem>>, %arg3: memref<1x64xf32, #tpu.memory_space<vmem>>, %arg4: memref<1x49x64xbf16, #tpu.memory_space<vmem>>, %arg5: memref<112x64xf32, #tpu.memory_space<vmem>>) attributes {dimension_semantics = [#tpu.dimension_semantics<parallel>], iteration_bounds = array<i64: 2>, scalar_prefetch = 0 : i64, scratch_operands = 1 : i64, tpu.core_type = #tpu.core_type<tc>, window_params = [{transform_indices = @transform_0, window_bounds = array<i64: 1, 272, 32>}, {pipeline_mode = #tpu.pipeline_mode<synchronous>, transform_indices = @transform_1, window_bounds = array<i64: 288, 64>}, {pipeline_mode = #tpu.pipeline_mode<synchronous>, transform_indices = @transform_2, window_bounds = array<i64: 1, 64>}, {transform_indices = @transform_3, window_bounds = array<i64: 1, 49, 64>}]} {
    %c0 = arith.constant 0 : index
    %c0_0 = arith.constant 0 : index
    %c0_1 = arith.constant 0 : index
    %0 = vector.load %arg1[%c0, %c0_0, %c0_1] : memref<1x272x32xbf16, #tpu.memory_space<vmem>>, vector<1x112x32xbf16>
    %1 = vector.shape_cast %0 : vector<1x112x32xbf16> to vector<112x32xbf16>
    %c0_2 = arith.constant 0 : index
    %c0_3 = arith.constant 0 : index
    %2 = vector.load %arg2[%c0_2, %c0_3] : memref<288x64xbf16, #tpu.memory_space<vmem>>, vector<32x64xbf16>
    %cst = arith.constant dense<0.000000e+00> : vector<112x64xf32>
    %3 = tpu.matmul %1, %2, %cst {dimension_numbers = #tpu.dot_dimension_numbers<[1], [0], [0], [1], [0, 0, 1, 1], [], []>} : vector<112x32xbf16>, vector<32x64xbf16>, vector<112x64xf32> -> vector<112x64xf32>
    %c0_4 = arith.constant 0 : index
    %c136 = arith.constant 136 : index
    %c0_5 = arith.constant 0 : index
    %4 = vector.load %arg1[%c0_4, %c136, %c0_5] : memref<1x272x32xbf16, #tpu.memory_space<vmem>>, vector<1x112x32xbf16>
    %5 = vector.shape_cast %4 : vector<1x112x32xbf16> to vector<112x32xbf16>
    %c32 = arith.constant 32 : index
    %c0_6 = arith.constant 0 : index
    %6 = vector.load %arg2[%c32, %c0_6] : memref<288x64xbf16, #tpu.memory_space<vmem>>, vector<32x64xbf16>
    %cst_7 = arith.constant dense<0.000000e+00> : vector<112x64xf32>
    %7 = tpu.matmul %5, %6, %cst_7 {dimension_numbers = #tpu.dot_dimension_numbers<[1], [0], [0], [1], [0, 0, 1, 1], [], []>} : vector<112x32xbf16>, vector<32x64xbf16>, vector<112x64xf32> -> vector<112x64xf32>
    %8 = arith.addf %3, %7 : vector<112x64xf32>
    %c0_8 = arith.constant 0 : index
    %c1 = arith.constant 1 : index
    %c0_9 = arith.constant 0 : index
    %9 = vector.load %arg1[%c0_8, %c1, %c0_9] : memref<1x272x32xbf16, #tpu.memory_space<vmem>>, vector<1x112x32xbf16>
    %10 = vector.shape_cast %9 : vector<1x112x32xbf16> to vector<112x32xbf16>
    %c64 = arith.constant 64 : index
    %c0_10 = arith.constant 0 : index
    %11 = vector.load %arg2[%c64, %c0_10] : memref<288x64xbf16, #tpu.memory_space<vmem>>, vector<32x64xbf16>
    %cst_11 = arith.constant dense<0.000000e+00> : vector<112x64xf32>
    %12 = tpu.matmul %10, %11, %cst_11 {dimension_numbers = #tpu.dot_dimension_numbers<[1], [0], [0], [1], [0, 0, 1, 1], [], []>} : vector<112x32xbf16>, vector<32x64xbf16>, vector<112x64xf32> -> vector<112x64xf32>
    %13 = arith.addf %8, %12 : vector<112x64xf32>
    %c0_12 = arith.constant 0 : index
    %c8 = arith.constant 8 : index
    %c0_13 = arith.constant 0 : index
    %14 = vector.load %arg1[%c0_12, %c8, %c0_13] : memref<1x272x32xbf16, #tpu.memory_space<vmem>>, vector<1x112x32xbf16>
    %15 = vector.shape_cast %14 : vector<1x112x32xbf16> to vector<112x32xbf16>
    %c96 = arith.constant 96 : index
    %c0_14 = arith.constant 0 : index
    %16 = vector.load %arg2[%c96, %c0_14] : memref<288x64xbf16, #tpu.memory_space<vmem>>, vector<32x64xbf16>
    %cst_15 = arith.constant dense<0.000000e+00> : vector<112x64xf32>
    %17 = tpu.matmul %15, %16, %cst_15 {dimension_numbers = #tpu.dot_dimension_numbers<[1], [0], [0], [1], [0, 0, 1, 1], [], []>} : vector<112x32xbf16>, vector<32x64xbf16>, vector<112x64xf32> -> vector<112x64xf32>
    %18 = arith.addf %13, %17 : vector<112x64xf32>
    %c0_16 = arith.constant 0 : index
    %c144 = arith.constant 144 : index
    %c0_17 = arith.constant 0 : index
    %19 = vector.load %arg1[%c0_16, %c144, %c0_17] : memref<1x272x32xbf16, #tpu.memory_space<vmem>>, vector<1x112x32xbf16>
    %20 = vector.shape_cast %19 : vector<1x112x32xbf16> to vector<112x32xbf16>
    %c128 = arith.constant 128 : index
    %c0_18 = arith.constant 0 : index
    %21 = vector.load %arg2[%c128, %c0_18] : memref<288x64xbf16, #tpu.memory_space<vmem>>, vector<32x64xbf16>
    %cst_19 = arith.constant dense<0.000000e+00> : vector<112x64xf32>
    %22 = tpu.matmul %20, %21, %cst_19 {dimension_numbers = #tpu.dot_dimension_numbers<[1], [0], [0], [1], [0, 0, 1, 1], [], []>} : vector<112x32xbf16>, vector<32x64xbf16>, vector<112x64xf32> -> vector<112x64xf32>
    %23 = arith.addf %18, %22 : vector<112x64xf32>
    %c0_20 = arith.constant 0 : index
    %c9 = arith.constant 9 : index
    %c0_21 = arith.constant 0 : index
    %24 = vector.load %arg1[%c0_20, %c9, %c0_21] : memref<1x272x32xbf16, #tpu.memory_space<vmem>>, vector<1x112x32xbf16>
    %25 = vector.shape_cast %24 : vector<1x112x32xbf16> to vector<112x32xbf16>
    %c160 = arith.constant 160 : index
    %c0_22 = arith.constant 0 : index
    %26 = vector.load %arg2[%c160, %c0_22] : memref<288x64xbf16, #tpu.memory_space<vmem>>, vector<32x64xbf16>
    %cst_23 = arith.constant dense<0.000000e+00> : vector<112x64xf32>
    %27 = tpu.matmul %25, %26, %cst_23 {dimension_numbers = #tpu.dot_dimension_numbers<[1], [0], [0], [1], [0, 0, 1, 1], [], []>} : vector<112x32xbf16>, vector<32x64xbf16>, vector<112x64xf32> -> vector<112x64xf32>
    %28 = arith.addf %23, %27 : vector<112x64xf32>
    %c0_24 = arith.constant 0 : index
    %c16 = arith.constant 16 : index
    %c0_25 = arith.constant 0 : index
    %29 = vector.load %arg1[%c0_24, %c16, %c0_25] : memref<1x272x32xbf16, #tpu.memory_space<vmem>>, vector<1x112x32xbf16>
    %30 = vector.shape_cast %29 : vector<1x112x32xbf16> to vector<112x32xbf16>
    %c192 = arith.constant 192 : index
    %c0_26 = arith.constant 0 : index
    %31 = vector.load %arg2[%c192, %c0_26] : memref<288x64xbf16, #tpu.memory_space<vmem>>, vector<32x64xbf16>
    %cst_27 = arith.constant dense<0.000000e+00> : vector<112x64xf32>
    %32 = tpu.matmul %30, %31, %cst_27 {dimension_numbers = #tpu.dot_dimension_numbers<[1], [0], [0], [1], [0, 0, 1, 1], [], []>} : vector<112x32xbf16>, vector<32x64xbf16>, vector<112x64xf32> -> vector<112x64xf32>
    %33 = arith.addf %28, %32 : vector<112x64xf32>
    %c0_28 = arith.constant 0 : index
    %c152 = arith.constant 152 : index
    %c0_29 = arith.constant 0 : index
    %34 = vector.load %arg1[%c0_28, %c152, %c0_29] : memref<1x272x32xbf16, #tpu.memory_space<vmem>>, vector<1x112x32xbf16>
    %35 = vector.shape_cast %34 : vector<1x112x32xbf16> to vector<112x32xbf16>
    %c224 = arith.constant 224 : index
    %c0_30 = arith.constant 0 : index
    %36 = vector.load %arg2[%c224, %c0_30] : memref<288x64xbf16, #tpu.memory_space<vmem>>, vector<32x64xbf16>
    %cst_31 = arith.constant dense<0.000000e+00> : vector<112x64xf32>
    %37 = tpu.matmul %35, %36, %cst_31 {dimension_numbers = #tpu.dot_dimension_numbers<[1], [0], [0], [1], [0, 0, 1, 1], [], []>} : vector<112x32xbf16>, vector<32x64xbf16>, vector<112x64xf32> -> vector<112x64xf32>
    %38 = arith.addf %33, %37 : vector<112x64xf32>
    %c0_32 = arith.constant 0 : index
    %c17 = arith.constant 17 : index
    %c0_33 = arith.constant 0 : index
    %39 = vector.load %arg1[%c0_32, %c17, %c0_33] : memref<1x272x32xbf16, #tpu.memory_space<vmem>>, vector<1x112x32xbf16>
    %40 = vector.shape_cast %39 : vector<1x112x32xbf16> to vector<112x32xbf16>
    %c256 = arith.constant 256 : index
    %c0_34 = arith.constant 0 : index
    %41 = vector.load %arg2[%c256, %c0_34] : memref<288x64xbf16, #tpu.memory_space<vmem>>, vector<32x64xbf16>
    %cst_35 = arith.constant dense<0.000000e+00> : vector<112x64xf32>
    %42 = tpu.matmul %40, %41, %cst_35 {dimension_numbers = #tpu.dot_dimension_numbers<[1], [0], [0], [1], [0, 0, 1, 1], [], []>} : vector<112x32xbf16>, vector<32x64xbf16>, vector<112x64xf32> -> vector<112x64xf32>
    %43 = arith.addf %38, %42 : vector<112x64xf32>
    %c0_36 = arith.constant 0 : index
    %c0_37 = arith.constant 0 : index
    %44 = vector.load %arg3[%c0_36, %c0_37] : memref<1x64xf32, #tpu.memory_space<vmem>>, vector<1x64xf32>
    %45 = vector.broadcast %44 : vector<1x64xf32> to vector<112x64xf32>
    %46 = arith.addf %43, %45 : vector<112x64xf32>
    %cst_38 = arith.constant 0.000000e+00 : f32
    %47 = vector.broadcast %cst_38 : f32 to vector<112x64xf32>
    %48 = arith.maximumf %46, %47 : vector<112x64xf32>
    %c0_39 = arith.constant 0 : index
    %c136_40 = arith.constant 136 : index
    %c0_41 = arith.constant 0 : index
    %49 = vector.load %arg1[%c0_39, %c136_40, %c0_41] : memref<1x272x32xbf16, #tpu.memory_space<vmem>>, vector<1x112x32xbf16>
    %50 = vector.shape_cast %49 : vector<1x112x32xbf16> to vector<112x32xbf16>
    %c0_42 = arith.constant 0 : index
    %c0_43 = arith.constant 0 : index
    %51 = vector.load %arg2[%c0_42, %c0_43] : memref<288x64xbf16, #tpu.memory_space<vmem>>, vector<32x64xbf16>
    %cst_44 = arith.constant dense<0.000000e+00> : vector<112x64xf32>
    %52 = tpu.matmul %50, %51, %cst_44 {dimension_numbers = #tpu.dot_dimension_numbers<[1], [0], [0], [1], [0, 0, 1, 1], [], []>} : vector<112x32xbf16>, vector<32x64xbf16>, vector<112x64xf32> -> vector<112x64xf32>
    %c0_45 = arith.constant 0 : index
    %c1_46 = arith.constant 1 : index
    %c0_47 = arith.constant 0 : index
    %53 = vector.load %arg1[%c0_45, %c1_46, %c0_47] : memref<1x272x32xbf16, #tpu.memory_space<vmem>>, vector<1x112x32xbf16>
    %54 = vector.shape_cast %53 : vector<1x112x32xbf16> to vector<112x32xbf16>
    %c32_48 = arith.constant 32 : index
    %c0_49 = arith.constant 0 : index
    %55 = vector.load %arg2[%c32_48, %c0_49] : memref<288x64xbf16, #tpu.memory_space<vmem>>, vector<32x64xbf16>
    %cst_50 = arith.constant dense<0.000000e+00> : vector<112x64xf32>
    %56 = tpu.matmul %54, %55, %cst_50 {dimension_numbers = #tpu.dot_dimension_numbers<[1], [0], [0], [1], [0, 0, 1, 1], [], []>} : vector<112x32xbf16>, vector<32x64xbf16>, vector<112x64xf32> -> vector<112x64xf32>
    %57 = arith.addf %52, %56 : vector<112x64xf32>
    %c0_51 = arith.constant 0 : index
    %c137 = arith.constant 137 : index
    %c0_52 = arith.constant 0 : index
    %58 = vector.load %arg1[%c0_51, %c137, %c0_52] : memref<1x272x32xbf16, #tpu.memory_space<vmem>>, vector<1x112x32xbf16>
    %59 = vector.shape_cast %58 : vector<1x112x32xbf16> to vector<112x32xbf16>
    %c64_53 = arith.constant 64 : index
    %c0_54 = arith.constant 0 : index
    %60 = vector.load %arg2[%c64_53, %c0_54] : memref<288x64xbf16, #tpu.memory_space<vmem>>, vector<32x64xbf16>
    %cst_55 = arith.constant dense<0.000000e+00> : vector<112x64xf32>
    %61 = tpu.matmul %59, %60, %cst_55 {dimension_numbers = #tpu.dot_dimension_numbers<[1], [0], [0], [1], [0, 0, 1, 1], [], []>} : vector<112x32xbf16>, vector<32x64xbf16>, vector<112x64xf32> -> vector<112x64xf32>
    %62 = arith.addf %57, %61 : vector<112x64xf32>
    %c0_56 = arith.constant 0 : index
    %c144_57 = arith.constant 144 : index
    %c0_58 = arith.constant 0 : index
    %63 = vector.load %arg1[%c0_56, %c144_57, %c0_58] : memref<1x272x32xbf16, #tpu.memory_space<vmem>>, vector<1x112x32xbf16>
    %64 = vector.shape_cast %63 : vector<1x112x32xbf16> to vector<112x32xbf16>
    %c96_59 = arith.constant 96 : index
    %c0_60 = arith.constant 0 : index
    %65 = vector.load %arg2[%c96_59, %c0_60] : memref<288x64xbf16, #tpu.memory_space<vmem>>, vector<32x64xbf16>
    %cst_61 = arith.constant dense<0.000000e+00> : vector<112x64xf32>
    %66 = tpu.matmul %64, %65, %cst_61 {dimension_numbers = #tpu.dot_dimension_numbers<[1], [0], [0], [1], [0, 0, 1, 1], [], []>} : vector<112x32xbf16>, vector<32x64xbf16>, vector<112x64xf32> -> vector<112x64xf32>
    %67 = arith.addf %62, %66 : vector<112x64xf32>
    %c0_62 = arith.constant 0 : index
    %c9_63 = arith.constant 9 : index
    %c0_64 = arith.constant 0 : index
    %68 = vector.load %arg1[%c0_62, %c9_63, %c0_64] : memref<1x272x32xbf16, #tpu.memory_space<vmem>>, vector<1x112x32xbf16>
    %69 = vector.shape_cast %68 : vector<1x112x32xbf16> to vector<112x32xbf16>
    %c128_65 = arith.constant 128 : index
    %c0_66 = arith.constant 0 : index
    %70 = vector.load %arg2[%c128_65, %c0_66] : memref<288x64xbf16, #tpu.memory_space<vmem>>, vector<32x64xbf16>
    %cst_67 = arith.constant dense<0.000000e+00> : vector<112x64xf32>
    %71 = tpu.matmul %69, %70, %cst_67 {dimension_numbers = #tpu.dot_dimension_numbers<[1], [0], [0], [1], [0, 0, 1, 1], [], []>} : vector<112x32xbf16>, vector<32x64xbf16>, vector<112x64xf32> -> vector<112x64xf32>
    %72 = arith.addf %67, %71 : vector<112x64xf32>
    %c0_68 = arith.constant 0 : index
    %c145 = arith.constant 145 : index
    %c0_69 = arith.constant 0 : index
    %73 = vector.load %arg1[%c0_68, %c145, %c0_69] : memref<1x272x32xbf16, #tpu.memory_space<vmem>>, vector<1x112x32xbf16>
    %74 = vector.shape_cast %73 : vector<1x112x32xbf16> to vector<112x32xbf16>
    %c160_70 = arith.constant 160 : index
    %c0_71 = arith.constant 0 : index
    %75 = vector.load %arg2[%c160_70, %c0_71] : memref<288x64xbf16, #tpu.memory_space<vmem>>, vector<32x64xbf16>
    %cst_72 = arith.constant dense<0.000000e+00> : vector<112x64xf32>
    %76 = tpu.matmul %74, %75, %cst_72 {dimension_numbers = #tpu.dot_dimension_numbers<[1], [0], [0], [1], [0, 0, 1, 1], [], []>} : vector<112x32xbf16>, vector<32x64xbf16>, vector<112x64xf32> -> vector<112x64xf32>
    %77 = arith.addf %72, %76 : vector<112x64xf32>
    %c0_73 = arith.constant 0 : index
    %c152_74 = arith.constant 152 : index
    %c0_75 = arith.constant 0 : index
    %78 = vector.load %arg1[%c0_73, %c152_74, %c0_75] : memref<1x272x32xbf16, #tpu.memory_space<vmem>>, vector<1x112x32xbf16>
    %79 = vector.shape_cast %78 : vector<1x112x32xbf16> to vector<112x32xbf16>
    %c192_76 = arith.constant 192 : index
    %c0_77 = arith.constant 0 : index
    %80 = vector.load %arg2[%c192_76, %c0_77] : memref<288x64xbf16, #tpu.memory_space<vmem>>, vector<32x64xbf16>
    %cst_78 = arith.constant dense<0.000000e+00> : vector<112x64xf32>
    %81 = tpu.matmul %79, %80, %cst_78 {dimension_numbers = #tpu.dot_dimension_numbers<[1], [0], [0], [1], [0, 0, 1, 1], [], []>} : vector<112x32xbf16>, vector<32x64xbf16>, vector<112x64xf32> -> vector<112x64xf32>
    %82 = arith.addf %77, %81 : vector<112x64xf32>
    %c0_79 = arith.constant 0 : index
    %c17_80 = arith.constant 17 : index
    %c0_81 = arith.constant 0 : index
    %83 = vector.load %arg1[%c0_79, %c17_80, %c0_81] : memref<1x272x32xbf16, #tpu.memory_space<vmem>>, vector<1x112x32xbf16>
    %84 = vector.shape_cast %83 : vector<1x112x32xbf16> to vector<112x32xbf16>
    %c224_82 = arith.constant 224 : index
    %c0_83 = arith.constant 0 : index
    %85 = vector.load %arg2[%c224_82, %c0_83] : memref<288x64xbf16, #tpu.memory_space<vmem>>, vector<32x64xbf16>
    %cst_84 = arith.constant dense<0.000000e+00> : vector<112x64xf32>
    %86 = tpu.matmul %84, %85, %cst_84 {dimension_numbers = #tpu.dot_dimension_numbers<[1], [0], [0], [1], [0, 0, 1, 1], [], []>} : vector<112x32xbf16>, vector<32x64xbf16>, vector<112x64xf32> -> vector<112x64xf32>
    %87 = arith.addf %82, %86 : vector<112x64xf32>
    %c0_85 = arith.constant 0 : index
    %c153 = arith.constant 153 : index
    %c0_86 = arith.constant 0 : index
    %88 = vector.load %arg1[%c0_85, %c153, %c0_86] : memref<1x272x32xbf16, #tpu.memory_space<vmem>>, vector<1x112x32xbf16>
    %89 = vector.shape_cast %88 : vector<1x112x32xbf16> to vector<112x32xbf16>
    %c256_87 = arith.constant 256 : index
    %c0_88 = arith.constant 0 : index
    %90 = vector.load %arg2[%c256_87, %c0_88] : memref<288x64xbf16, #tpu.memory_space<vmem>>, vector<32x64xbf16>
    %cst_89 = arith.constant dense<0.000000e+00> : vector<112x64xf32>
    %91 = tpu.matmul %89, %90, %cst_89 {dimension_numbers = #tpu.dot_dimension_numbers<[1], [0], [0], [1], [0, 0, 1, 1], [], []>} : vector<112x32xbf16>, vector<32x64xbf16>, vector<112x64xf32> -> vector<112x64xf32>
    %92 = arith.addf %87, %91 : vector<112x64xf32>
    %c0_90 = arith.constant 0 : index
    %c0_91 = arith.constant 0 : index
    %93 = vector.load %arg3[%c0_90, %c0_91] : memref<1x64xf32, #tpu.memory_space<vmem>>, vector<1x64xf32>
    %94 = vector.broadcast %93 : vector<1x64xf32> to vector<112x64xf32>
    %95 = arith.addf %92, %94 : vector<112x64xf32>
    %cst_92 = arith.constant 0.000000e+00 : f32
    %96 = vector.broadcast %cst_92 : f32 to vector<112x64xf32>
    %97 = arith.maximumf %95, %96 : vector<112x64xf32>
    %98 = arith.maximumf %48, %97 : vector<112x64xf32>
    %c0_93 = arith.constant 0 : index
    %c0_94 = arith.constant 0 : index
    %99 = vector.load %arg5[%c0_93, %c0_94] : memref<112x64xf32, #tpu.memory_space<vmem>>, vector<112x64xf32>
    tpu.vector_store %arg5[%c0_93, %c0_94], %98 {strides = array<i32>} : memref<112x64xf32, #tpu.memory_space<vmem>>, vector<112x64xf32>,
    %c0_95 = arith.constant 0 : index
    %c0_96 = arith.constant 0 : index
    %100 = vector.load %arg5[%c0_95, %c0_96] : memref<112x64xf32, #tpu.memory_space<vmem>>, vector<7x64xf32>
    %c8_97 = arith.constant 8 : index
    %c0_98 = arith.constant 0 : index
    %101 = vector.load %arg5[%c8_97, %c0_98] : memref<112x64xf32, #tpu.memory_space<vmem>>, vector<7x64xf32>
    %102 = arith.maximumf %100, %101 : vector<7x64xf32>
    %103 = arith.truncf %102 : vector<7x64xf32> to vector<7x64xbf16>
    %c0_99 = arith.constant 0 : index
    %c0_100 = arith.constant 0 : index
    %c0_101 = arith.constant 0 : index
    %104 = vector.load %arg4[%c0_99, %c0_100, %c0_101] : memref<1x49x64xbf16, #tpu.memory_space<vmem>>, vector<1x7x64xbf16>
    %105 = vector.shape_cast %104 : vector<1x7x64xbf16> to vector<7x64xbf16>
    %106 = vector.shape_cast %103 : vector<7x64xbf16> to vector<1x7x64xbf16>
    tpu.vector_store %arg4[%c0_99, %c0_100, %c0_101], %106 {strides = array<i32>} : memref<1x49x64xbf16, #tpu.memory_space<vmem>>, vector<1x7x64xbf16>,
    %c16_102 = arith.constant 16 : index
    %c0_103 = arith.constant 0 : index
    %107 = vector.load %arg5[%c16_102, %c0_103] : memref<112x64xf32, #tpu.memory_space<vmem>>, vector<7x64xf32>
    %c24 = arith.constant 24 : index
    %c0_104 = arith.constant 0 : index
    %108 = vector.load %arg5[%c24, %c0_104] : memref<112x64xf32, #tpu.memory_space<vmem>>, vector<7x64xf32>
    %109 = arith.maximumf %107, %108 : vector<7x64xf32>
    %110 = arith.truncf %109 : vector<7x64xf32> to vector<7x64xbf16>
    %c0_105 = arith.constant 0 : index
    %c7 = arith.constant 7 : index
    %c0_106 = arith.constant 0 : index
    %111 = vector.load %arg4[%c0_105, %c7, %c0_106] : memref<1x49x64xbf16, #tpu.memory_space<vmem>>, vector<1x7x64xbf16>
    %112 = vector.shape_cast %111 : vector<1x7x64xbf16> to vector<7x64xbf16>
    %113 = vector.shape_cast %110 : vector<7x64xbf16> to vector<1x7x64xbf16>
    tpu.vector_store %arg4[%c0_105, %c7, %c0_106], %113 {strides = array<i32>} : memref<1x49x64xbf16, #tpu.memory_space<vmem>>, vector<1x7x64xbf16>,
    %c32_107 = arith.constant 32 : index
    %c0_108 = arith.constant 0 : index
    %114 = vector.load %arg5[%c32_107, %c0_108] : memref<112x64xf32, #tpu.memory_space<vmem>>, vector<7x64xf32>
    %c40 = arith.constant 40 : index
    %c0_109 = arith.constant 0 : index
    %115 = vector.load %arg5[%c40, %c0_109] : memref<112x64xf32, #tpu.memory_space<vmem>>, vector<7x64xf32>
    %116 = arith.maximumf %114, %115 : vector<7x64xf32>
    %117 = arith.truncf %116 : vector<7x64xf32> to vector<7x64xbf16>
    %c0_110 = arith.constant 0 : index
    %c14 = arith.constant 14 : index
    %c0_111 = arith.constant 0 : index
    %118 = vector.load %arg4[%c0_110, %c14, %c0_111] : memref<1x49x64xbf16, #tpu.memory_space<vmem>>, vector<1x7x64xbf16>
    %119 = vector.shape_cast %118 : vector<1x7x64xbf16> to vector<7x64xbf16>
    %120 = vector.shape_cast %117 : vector<7x64xbf16> to vector<1x7x64xbf16>
    tpu.vector_store %arg4[%c0_110, %c14, %c0_111], %120 {strides = array<i32>} : memref<1x49x64xbf16, #tpu.memory_space<vmem>>, vector<1x7x64xbf16>,
    %c48 = arith.constant 48 : index
    %c0_112 = arith.constant 0 : index
    %121 = vector.load %arg5[%c48, %c0_112] : memref<112x64xf32, #tpu.memory_space<vmem>>, vector<7x64xf32>
    %c56 = arith.constant 56 : index
    %c0_113 = arith.constant 0 : index
    %122 = vector.load %arg5[%c56, %c0_113] : memref<112x64xf32, #tpu.memory_space<vmem>>, vector<7x64xf32>
    %123 = arith.maximumf %121, %122 : vector<7x64xf32>
    %124 = arith.truncf %123 : vector<7x64xf32> to vector<7x64xbf16>
    %c0_114 = arith.constant 0 : index
    %c21 = arith.constant 21 : index
    %c0_115 = arith.constant 0 : index
    %125 = vector.load %arg4[%c0_114, %c21, %c0_115] : memref<1x49x64xbf16, #tpu.memory_space<vmem>>, vector<1x7x64xbf16>
    %126 = vector.shape_cast %125 : vector<1x7x64xbf16> to vector<7x64xbf16>
    %127 = vector.shape_cast %124 : vector<7x64xbf16> to vector<1x7x64xbf16>
    tpu.vector_store %arg4[%c0_114, %c21, %c0_115], %127 {strides = array<i32>} : memref<1x49x64xbf16, #tpu.memory_space<vmem>>, vector<1x7x64xbf16>,
    %c64_116 = arith.constant 64 : index
    %c0_117 = arith.constant 0 : index
    %128 = vector.load %arg5[%c64_116, %c0_117] : memref<112x64xf32, #tpu.memory_space<vmem>>, vector<7x64xf32>
    %c72 = arith.constant 72 : index
    %c0_118 = arith.constant 0 : index
    %129 = vector.load %arg5[%c72, %c0_118] : memref<112x64xf32, #tpu.memory_space<vmem>>, vector<7x64xf32>
    %130 = arith.maximumf %128, %129 : vector<7x64xf32>
    %131 = arith.truncf %130 : vector<7x64xf32> to vector<7x64xbf16>
    %c0_119 = arith.constant 0 : index
    %c28 = arith.constant 28 : index
    %c0_120 = arith.constant 0 : index
    %132 = vector.load %arg4[%c0_119, %c28, %c0_120] : memref<1x49x64xbf16, #tpu.memory_space<vmem>>, vector<1x7x64xbf16>
    %133 = vector.shape_cast %132 : vector<1x7x64xbf16> to vector<7x64xbf16>
    %134 = vector.shape_cast %131 : vector<7x64xbf16> to vector<1x7x64xbf16>
    tpu.vector_store %arg4[%c0_119, %c28, %c0_120], %134 {strides = array<i32>} : memref<1x49x64xbf16, #tpu.memory_space<vmem>>, vector<1x7x64xbf16>,
    %c80 = arith.constant 80 : index
    %c0_121 = arith.constant 0 : index
    %135 = vector.load %arg5[%c80, %c0_121] : memref<112x64xf32, #tpu.memory_space<vmem>>, vector<7x64xf32>
    %c88 = arith.constant 88 : index
    %c0_122 = arith.constant 0 : index
    %136 = vector.load %arg5[%c88, %c0_122] : memref<112x64xf32, #tpu.memory_space<vmem>>, vector<7x64xf32>
    %137 = arith.maximumf %135, %136 : vector<7x64xf32>
    %138 = arith.truncf %137 : vector<7x64xf32> to vector<7x64xbf16>
    %c0_123 = arith.constant 0 : index
    %c35 = arith.constant 35 : index
    %c0_124 = arith.constant 0 : index
    %139 = vector.load %arg4[%c0_123, %c35, %c0_124] : memref<1x49x64xbf16, #tpu.memory_space<vmem>>, vector<1x7x64xbf16>
    %140 = vector.shape_cast %139 : vector<1x7x64xbf16> to vector<7x64xbf16>
    %141 = vector.shape_cast %138 : vector<7x64xbf16> to vector<1x7x64xbf16>
    tpu.vector_store %arg4[%c0_123, %c35, %c0_124], %141 {strides = array<i32>} : memref<1x49x64xbf16, #tpu.memory_space<vmem>>, vector<1x7x64xbf16>,
    %c96_125 = arith.constant 96 : index
    %c0_126 = arith.constant 0 : index
    %142 = vector.load %arg5[%c96_125, %c0_126] : memref<112x64xf32, #tpu.memory_space<vmem>>, vector<7x64xf32>
    %c104 = arith.constant 104 : index
    %c0_127 = arith.constant 0 : index
    %143 = vector.load %arg5[%c104, %c0_127] : memref<112x64xf32, #tpu.memory_space<vmem>>, vector<7x64xf32>
    %144 = arith.maximumf %142, %143 : vector<7x64xf32>
    %145 = arith.truncf %144 : vector<7x64xf32> to vector<7x64xbf16>
    %c0_128 = arith.constant 0 : index
    %c42 = arith.constant 42 : index
    %c0_129 = arith.constant 0 : index
    %146 = vector.load %arg4[%c0_128, %c42, %c0_129] : memref<1x49x64xbf16, #tpu.memory_space<vmem>>, vector<1x7x64xbf16>
    %147 = vector.shape_cast %146 : vector<1x7x64xbf16> to vector<7x64xbf16>
    %148 = vector.shape_cast %145 : vector<7x64xbf16> to vector<1x7x64xbf16>
    tpu.vector_store %arg4[%c0_128, %c42, %c0_129], %148 {strides = array<i32>} : memref<1x49x64xbf16, #tpu.memory_space<vmem>>, vector<1x7x64xbf16>,
    return
  }
  func.func @transform_0(%arg0: i32) -> (i32, i32, i32) {
    %c0_i32 = arith.constant 0 : i32
    %c0_i32_0 = arith.constant 0 : i32
    %c0_i32_1 = arith.constant 0 : i32
    return %arg0, %c0_i32, %c0_i32_0 : i32, i32, i32
  }
  func.func @transform_1(%arg0: i32) -> (i32, i32) {
    %c0_i32 = arith.constant 0 : i32
    %c0_i32_0 = arith.constant 0 : i32
    %c0_i32_1 = arith.constant 0 : i32
    return %c0_i32, %c0_i32_0 : i32, i32
  }
  func.func @transform_2(%arg0: i32) -> (i32, i32) {
    %c0_i32 = arith.constant 0 : i32
    %c0_i32_0 = arith.constant 0 : i32
    %c0_i32_1 = arith.constant 0 : i32
    return %c0_i32, %c0_i32_0 : i32, i32
  }
  func.func @transform_3(%arg0: i32) -> (i32, i32, i32) {
    %c0_i32 = arith.constant 0 : i32
    %c0_i32_0 = arith.constant 0 : i32
    %c0_i32_1 = arith.constant 0 : i32
    return %arg0, %c0_i32, %c0_i32_0 : i32, i32, i32
  }
}

module attributes {stable_mosaic.version = 11 : i64} {
  func.func @kernel(%arg0: i32, %arg1: memref<1x90x64xbf16, #tpu.memory_space<vmem>>, %arg2: memref<576x64xbf16, #tpu.memory_space<vmem>>, %arg3: memref<1x64xf32, #tpu.memory_space<vmem>>, %arg4: memref<1x63x64xbf16, #tpu.memory_space<vmem>>, %arg5: memref<63x64xf32, #tpu.memory_space<vmem>>) attributes {dimension_semantics = [#tpu.dimension_semantics<parallel>], iteration_bounds = array<i64: 2>, scalar_prefetch = 0 : i64, scratch_operands = 1 : i64, tpu.core_type = #tpu.core_type<tc>, window_params = [{transform_indices = @transform_0, window_bounds = array<i64: 1, 90, 64>}, {pipeline_mode = #tpu.pipeline_mode<synchronous>, transform_indices = @transform_1, window_bounds = array<i64: 576, 64>}, {pipeline_mode = #tpu.pipeline_mode<synchronous>, transform_indices = @transform_2, window_bounds = array<i64: 1, 64>}, {transform_indices = @transform_3, window_bounds = array<i64: 1, 63, 64>}]} {
    %c0 = arith.constant 0 : index
    %c0_0 = arith.constant 0 : index
    %c0_1 = arith.constant 0 : index
    %0 = vector.load %arg1[%c0, %c0_0, %c0_1] : memref<1x90x64xbf16, #tpu.memory_space<vmem>>, vector<1x63x64xbf16>
    %1 = vector.shape_cast %0 : vector<1x63x64xbf16> to vector<63x64xbf16>
    %c0_2 = arith.constant 0 : index
    %c0_3 = arith.constant 0 : index
    %2 = vector.load %arg2[%c0_2, %c0_3] : memref<576x64xbf16, #tpu.memory_space<vmem>>, vector<64x64xbf16>
    %cst = arith.constant dense<0.000000e+00> : vector<63x64xf32>
    %3 = tpu.matmul %1, %2, %cst {dimension_numbers = #tpu.dot_dimension_numbers<[1], [0], [0], [1], [0, 0, 1, 1], [], []>} : vector<63x64xbf16>, vector<64x64xbf16>, vector<63x64xf32> -> vector<63x64xf32>
    %c0_4 = arith.constant 0 : index
    %c1 = arith.constant 1 : index
    %c0_5 = arith.constant 0 : index
    %4 = vector.load %arg1[%c0_4, %c1, %c0_5] : memref<1x90x64xbf16, #tpu.memory_space<vmem>>, vector<1x63x64xbf16>
    %5 = vector.shape_cast %4 : vector<1x63x64xbf16> to vector<63x64xbf16>
    %c64 = arith.constant 64 : index
    %c0_6 = arith.constant 0 : index
    %6 = vector.load %arg2[%c64, %c0_6] : memref<576x64xbf16, #tpu.memory_space<vmem>>, vector<64x64xbf16>
    %cst_7 = arith.constant dense<0.000000e+00> : vector<63x64xf32>
    %7 = tpu.matmul %5, %6, %cst_7 {dimension_numbers = #tpu.dot_dimension_numbers<[1], [0], [0], [1], [0, 0, 1, 1], [], []>} : vector<63x64xbf16>, vector<64x64xbf16>, vector<63x64xf32> -> vector<63x64xf32>
    %8 = arith.addf %3, %7 : vector<63x64xf32>
    %c0_8 = arith.constant 0 : index
    %c2 = arith.constant 2 : index
    %c0_9 = arith.constant 0 : index
    %9 = vector.load %arg1[%c0_8, %c2, %c0_9] : memref<1x90x64xbf16, #tpu.memory_space<vmem>>, vector<1x63x64xbf16>
    %10 = vector.shape_cast %9 : vector<1x63x64xbf16> to vector<63x64xbf16>
    %c128 = arith.constant 128 : index
    %c0_10 = arith.constant 0 : index
    %11 = vector.load %arg2[%c128, %c0_10] : memref<576x64xbf16, #tpu.memory_space<vmem>>, vector<64x64xbf16>
    %cst_11 = arith.constant dense<0.000000e+00> : vector<63x64xf32>
    %12 = tpu.matmul %10, %11, %cst_11 {dimension_numbers = #tpu.dot_dimension_numbers<[1], [0], [0], [1], [0, 0, 1, 1], [], []>} : vector<63x64xbf16>, vector<64x64xbf16>, vector<63x64xf32> -> vector<63x64xf32>
    %13 = arith.addf %8, %12 : vector<63x64xf32>
    %c0_12 = arith.constant 0 : index
    %c9 = arith.constant 9 : index
    %c0_13 = arith.constant 0 : index
    %14 = vector.load %arg1[%c0_12, %c9, %c0_13] : memref<1x90x64xbf16, #tpu.memory_space<vmem>>, vector<1x63x64xbf16>
    %15 = vector.shape_cast %14 : vector<1x63x64xbf16> to vector<63x64xbf16>
    %c192 = arith.constant 192 : index
    %c0_14 = arith.constant 0 : index
    %16 = vector.load %arg2[%c192, %c0_14] : memref<576x64xbf16, #tpu.memory_space<vmem>>, vector<64x64xbf16>
    %cst_15 = arith.constant dense<0.000000e+00> : vector<63x64xf32>
    %17 = tpu.matmul %15, %16, %cst_15 {dimension_numbers = #tpu.dot_dimension_numbers<[1], [0], [0], [1], [0, 0, 1, 1], [], []>} : vector<63x64xbf16>, vector<64x64xbf16>, vector<63x64xf32> -> vector<63x64xf32>
    %18 = arith.addf %13, %17 : vector<63x64xf32>
    %c0_16 = arith.constant 0 : index
    %c10 = arith.constant 10 : index
    %c0_17 = arith.constant 0 : index
    %19 = vector.load %arg1[%c0_16, %c10, %c0_17] : memref<1x90x64xbf16, #tpu.memory_space<vmem>>, vector<1x63x64xbf16>
    %20 = vector.shape_cast %19 : vector<1x63x64xbf16> to vector<63x64xbf16>
    %c256 = arith.constant 256 : index
    %c0_18 = arith.constant 0 : index
    %21 = vector.load %arg2[%c256, %c0_18] : memref<576x64xbf16, #tpu.memory_space<vmem>>, vector<64x64xbf16>
    %cst_19 = arith.constant dense<0.000000e+00> : vector<63x64xf32>
    %22 = tpu.matmul %20, %21, %cst_19 {dimension_numbers = #tpu.dot_dimension_numbers<[1], [0], [0], [1], [0, 0, 1, 1], [], []>} : vector<63x64xbf16>, vector<64x64xbf16>, vector<63x64xf32> -> vector<63x64xf32>
    %23 = arith.addf %18, %22 : vector<63x64xf32>
    %c0_20 = arith.constant 0 : index
    %c11 = arith.constant 11 : index
    %c0_21 = arith.constant 0 : index
    %24 = vector.load %arg1[%c0_20, %c11, %c0_21] : memref<1x90x64xbf16, #tpu.memory_space<vmem>>, vector<1x63x64xbf16>
    %25 = vector.shape_cast %24 : vector<1x63x64xbf16> to vector<63x64xbf16>
    %c320 = arith.constant 320 : index
    %c0_22 = arith.constant 0 : index
    %26 = vector.load %arg2[%c320, %c0_22] : memref<576x64xbf16, #tpu.memory_space<vmem>>, vector<64x64xbf16>
    %cst_23 = arith.constant dense<0.000000e+00> : vector<63x64xf32>
    %27 = tpu.matmul %25, %26, %cst_23 {dimension_numbers = #tpu.dot_dimension_numbers<[1], [0], [0], [1], [0, 0, 1, 1], [], []>} : vector<63x64xbf16>, vector<64x64xbf16>, vector<63x64xf32> -> vector<63x64xf32>
    %28 = arith.addf %23, %27 : vector<63x64xf32>
    %c0_24 = arith.constant 0 : index
    %c18 = arith.constant 18 : index
    %c0_25 = arith.constant 0 : index
    %29 = vector.load %arg1[%c0_24, %c18, %c0_25] : memref<1x90x64xbf16, #tpu.memory_space<vmem>>, vector<1x63x64xbf16>
    %30 = vector.shape_cast %29 : vector<1x63x64xbf16> to vector<63x64xbf16>
    %c384 = arith.constant 384 : index
    %c0_26 = arith.constant 0 : index
    %31 = vector.load %arg2[%c384, %c0_26] : memref<576x64xbf16, #tpu.memory_space<vmem>>, vector<64x64xbf16>
    %cst_27 = arith.constant dense<0.000000e+00> : vector<63x64xf32>
    %32 = tpu.matmul %30, %31, %cst_27 {dimension_numbers = #tpu.dot_dimension_numbers<[1], [0], [0], [1], [0, 0, 1, 1], [], []>} : vector<63x64xbf16>, vector<64x64xbf16>, vector<63x64xf32> -> vector<63x64xf32>
    %33 = arith.addf %28, %32 : vector<63x64xf32>
    %c0_28 = arith.constant 0 : index
    %c19 = arith.constant 19 : index
    %c0_29 = arith.constant 0 : index
    %34 = vector.load %arg1[%c0_28, %c19, %c0_29] : memref<1x90x64xbf16, #tpu.memory_space<vmem>>, vector<1x63x64xbf16>
    %35 = vector.shape_cast %34 : vector<1x63x64xbf16> to vector<63x64xbf16>
    %c448 = arith.constant 448 : index
    %c0_30 = arith.constant 0 : index
    %36 = vector.load %arg2[%c448, %c0_30] : memref<576x64xbf16, #tpu.memory_space<vmem>>, vector<64x64xbf16>
    %cst_31 = arith.constant dense<0.000000e+00> : vector<63x64xf32>
    %37 = tpu.matmul %35, %36, %cst_31 {dimension_numbers = #tpu.dot_dimension_numbers<[1], [0], [0], [1], [0, 0, 1, 1], [], []>} : vector<63x64xbf16>, vector<64x64xbf16>, vector<63x64xf32> -> vector<63x64xf32>
    %38 = arith.addf %33, %37 : vector<63x64xf32>
    %c0_32 = arith.constant 0 : index
    %c20 = arith.constant 20 : index
    %c0_33 = arith.constant 0 : index
    %39 = vector.load %arg1[%c0_32, %c20, %c0_33] : memref<1x90x64xbf16, #tpu.memory_space<vmem>>, vector<1x63x64xbf16>
    %40 = vector.shape_cast %39 : vector<1x63x64xbf16> to vector<63x64xbf16>
    %c512 = arith.constant 512 : index
    %c0_34 = arith.constant 0 : index
    %41 = vector.load %arg2[%c512, %c0_34] : memref<576x64xbf16, #tpu.memory_space<vmem>>, vector<64x64xbf16>
    %cst_35 = arith.constant dense<0.000000e+00> : vector<63x64xf32>
    %42 = tpu.matmul %40, %41, %cst_35 {dimension_numbers = #tpu.dot_dimension_numbers<[1], [0], [0], [1], [0, 0, 1, 1], [], []>} : vector<63x64xbf16>, vector<64x64xbf16>, vector<63x64xf32> -> vector<63x64xf32>
    %43 = arith.addf %38, %42 : vector<63x64xf32>
    %c0_36 = arith.constant 0 : index
    %c0_37 = arith.constant 0 : index
    %44 = vector.load %arg3[%c0_36, %c0_37] : memref<1x64xf32, #tpu.memory_space<vmem>>, vector<1x64xf32>
    %45 = vector.broadcast %44 : vector<1x64xf32> to vector<63x64xf32>
    %46 = arith.addf %43, %45 : vector<63x64xf32>
    %cst_38 = arith.constant 0.000000e+00 : f32
    %47 = vector.broadcast %cst_38 : f32 to vector<63x64xf32>
    %48 = arith.maximumf %46, %47 : vector<63x64xf32>
    %49 = arith.truncf %48 : vector<63x64xf32> to vector<63x64xbf16>
    %c0_39 = arith.constant 0 : index
    %c0_40 = arith.constant 0 : index
    %c0_41 = arith.constant 0 : index
    %50 = vector.load %arg4[%c0_39, %c0_40, %c0_41] : memref<1x63x64xbf16, #tpu.memory_space<vmem>>, vector<1x63x64xbf16>
    %51 = vector.shape_cast %50 : vector<1x63x64xbf16> to vector<63x64xbf16>
    %52 = vector.shape_cast %49 : vector<63x64xbf16> to vector<1x63x64xbf16>
    tpu.vector_store %arg4[%c0_39, %c0_40, %c0_41], %52 {strides = array<i32>} : memref<1x63x64xbf16, #tpu.memory_space<vmem>>, vector<1x63x64xbf16>,
    return
  }
  func.func @transform_0(%arg0: i32) -> (i32, i32, i32) {
    %c0_i32 = arith.constant 0 : i32
    %c0_i32_0 = arith.constant 0 : i32
    %c0_i32_1 = arith.constant 0 : i32
    return %arg0, %c0_i32, %c0_i32_0 : i32, i32, i32
  }
  func.func @transform_1(%arg0: i32) -> (i32, i32) {
    %c0_i32 = arith.constant 0 : i32
    %c0_i32_0 = arith.constant 0 : i32
    %c0_i32_1 = arith.constant 0 : i32
    return %c0_i32, %c0_i32_0 : i32, i32
  }
  func.func @transform_2(%arg0: i32) -> (i32, i32) {
    %c0_i32 = arith.constant 0 : i32
    %c0_i32_0 = arith.constant 0 : i32
    %c0_i32_1 = arith.constant 0 : i32
    return %c0_i32, %c0_i32_0 : i32, i32
  }
  func.func @transform_3(%arg0: i32) -> (i32, i32, i32) {
    %c0_i32 = arith.constant 0 : i32
    %c0_i32_0 = arith.constant 0 : i32
    %c0_i32_1 = arith.constant 0 : i32
    return %arg0, %c0_i32, %c0_i32_0 : i32, i32, i32
  }
}

module attributes {stable_mosaic.version = 11 : i64} {
  func.func @_fc_kernel(%arg0: i32, %arg1: memref<2x4032xbf16, #tpu.memory_space<vmem>>, %arg2: memref<4032x128xbf16, #tpu.memory_space<vmem>>, %arg3: memref<1x128xf32, #tpu.memory_space<vmem>>, %arg4: memref<128x9xbf16, #tpu.memory_space<vmem>>, %arg5: memref<1x9xf32, #tpu.memory_space<vmem>>, %arg6: memref<2x9xf32, #tpu.memory_space<vmem>>) attributes {dimension_semantics = [#tpu.dimension_semantics<parallel>], iteration_bounds = array<i64: 1>, scalar_prefetch = 0 : i64, scratch_operands = 0 : i64, tpu.core_type = #tpu.core_type<tc>, window_params = [{transform_indices = @transform_0, window_bounds = array<i64: 2, 4032>}, {pipeline_mode = #tpu.pipeline_mode<synchronous>, transform_indices = @transform_1, window_bounds = array<i64: 4032, 128>}, {pipeline_mode = #tpu.pipeline_mode<synchronous>, transform_indices = @transform_2, window_bounds = array<i64: 1, 128>}, {pipeline_mode = #tpu.pipeline_mode<synchronous>, transform_indices = @transform_3, window_bounds = array<i64: 128, 9>}, {pipeline_mode = #tpu.pipeline_mode<synchronous>, transform_indices = @transform_4, window_bounds = array<i64: 1, 9>}, {transform_indices = @transform_5, window_bounds = array<i64: 2, 9>}]} {
    %c0 = arith.constant 0 : index
    %c0_0 = arith.constant 0 : index
    %0 = vector.load %arg1[%c0, %c0_0] : memref<2x4032xbf16, #tpu.memory_space<vmem>>, vector<2x4032xbf16>
    %c0_1 = arith.constant 0 : index
    %c0_2 = arith.constant 0 : index
    %1 = vector.load %arg2[%c0_1, %c0_2] : memref<4032x128xbf16, #tpu.memory_space<vmem>>, vector<4032x128xbf16>
    %cst = arith.constant dense<0.000000e+00> : vector<2x128xf32>
    %2 = tpu.matmul %0, %1, %cst {dimension_numbers = #tpu.dot_dimension_numbers<[1], [0], [0], [1], [0, 0, 1, 1], [], []>} : vector<2x4032xbf16>, vector<4032x128xbf16>, vector<2x128xf32> -> vector<2x128xf32>
    %c0_3 = arith.constant 0 : index
    %c0_4 = arith.constant 0 : index
    %3 = vector.load %arg3[%c0_3, %c0_4] : memref<1x128xf32, #tpu.memory_space<vmem>>, vector<1x128xf32>
    %4 = vector.broadcast %3 : vector<1x128xf32> to vector<2x128xf32>
    %5 = arith.addf %2, %4 : vector<2x128xf32>
    %cst_5 = arith.constant 0.000000e+00 : f32
    %6 = vector.broadcast %cst_5 : f32 to vector<2x128xf32>
    %7 = arith.maximumf %5, %6 : vector<2x128xf32>
    %8 = arith.truncf %7 : vector<2x128xf32> to vector<2x128xbf16>
    %c0_6 = arith.constant 0 : index
    %c0_7 = arith.constant 0 : index
    %9 = vector.load %arg4[%c0_6, %c0_7] : memref<128x9xbf16, #tpu.memory_space<vmem>>, vector<128x9xbf16>
    %cst_8 = arith.constant dense<0.000000e+00> : vector<2x9xf32>
    %10 = tpu.matmul %8, %9, %cst_8 {dimension_numbers = #tpu.dot_dimension_numbers<[1], [0], [0], [1], [0, 0, 1, 1], [], []>} : vector<2x128xbf16>, vector<128x9xbf16>, vector<2x9xf32> -> vector<2x9xf32>
    %c0_9 = arith.constant 0 : index
    %c0_10 = arith.constant 0 : index
    %11 = vector.load %arg5[%c0_9, %c0_10] : memref<1x9xf32, #tpu.memory_space<vmem>>, vector<1x9xf32>
    %12 = vector.broadcast %11 : vector<1x9xf32> to vector<2x9xf32>
    %13 = arith.addf %10, %12 : vector<2x9xf32>
    %c0_11 = arith.constant 0 : index
    %c0_12 = arith.constant 0 : index
    %14 = vector.load %arg6[%c0_11, %c0_12] : memref<2x9xf32, #tpu.memory_space<vmem>>, vector<2x9xf32>
    tpu.vector_store %arg6[%c0_11, %c0_12], %13 {strides = array<i32>} : memref<2x9xf32, #tpu.memory_space<vmem>>, vector<2x9xf32>,
    return
  }
  func.func @transform_0(%arg0: i32) -> (i32, i32) {
    %c0_i32 = arith.constant 0 : i32
    %c0_i32_0 = arith.constant 0 : i32
    return %arg0, %c0_i32 : i32, i32
  }
  func.func @transform_1(%arg0: i32) -> (i32, i32) {
    %c0_i32 = arith.constant 0 : i32
    %c0_i32_0 = arith.constant 0 : i32
    %c0_i32_1 = arith.constant 0 : i32
    return %c0_i32, %c0_i32_0 : i32, i32
  }
  func.func @transform_2(%arg0: i32) -> (i32, i32) {
    %c0_i32 = arith.constant 0 : i32
    %c0_i32_0 = arith.constant 0 : i32
    %c0_i32_1 = arith.constant 0 : i32
    return %c0_i32, %c0_i32_0 : i32, i32
  }
  func.func @transform_3(%arg0: i32) -> (i32, i32) {
    %c0_i32 = arith.constant 0 : i32
    %c0_i32_0 = arith.constant 0 : i32
    %c0_i32_1 = arith.constant 0 : i32
    return %c0_i32, %c0_i32_0 : i32, i32
  }
  func.func @transform_4(%arg0: i32) -> (i32, i32) {
    %c0_i32 = arith.constant 0 : i32
    %c0_i32_0 = arith.constant 0 : i32
    %c0_i32_1 = arith.constant 0 : i32
    return %c0_i32, %c0_i32_0 : i32, i32
  }
  func.func @transform_5(%arg0: i32) -> (i32, i32) {
    %c0_i32 = arith.constant 0 : i32
    %c0_i32_0 = arith.constant 0 : i32
    return %arg0, %c0_i32 : i32, i32
  }
}

</mosaic_0001>

<llo_original>
// kernel: _lambda_.4
$region0: #{_lambda_.4}
  #allocation0 [shape = 'u32[]', space=smem, size = 0x4, offset = 0x4, fixed_abs, tag = 'smem constant byte address 0x4 - core index']
  #allocation1 [shape = 'u32[72,128]{1,0:T(1,128)}', space=vmem, size = 0x9000, scoped, tag = 'internal scratch']
  #allocation2 [shape = 'f32[392,32]{1,0:T(8,128)}', space=vmem, size = 0x31000, scoped, tag = 'scratch operand']
  %s0 = inlined_call_operand.vmem [shape: bf16[2,784,9], index: 0, kind: input, shape index: {}]
  %s1 = inlined_call_operand.vmem [shape: bf16[9,32], index: 1, kind: input, shape index: {}]
  %s2 = inlined_call_operand.vmem [shape: f32[1,32], index: 2, kind: input, shape index: {}]
  %s3 = inlined_call_operand.vmem [shape: bf16[2,196,32], index: 3, kind: output, shape index: {}]
  %s4 = sld [smem:[#allocation0]]
  $region45: #{_lambda_.4} parent=0
    _
  %s6 = ssub.s32 1, %s4
  %s7 = scalar_select 0, %s6, %s4
  loop: start=0, step=1, limit=4
  $region2: #{_lambda_.4} parent=0 // loop_pre_header
    _
  $region3: #{_lambda_.4} parent=0 // loop_header
    %s9 = sphi 0, %s13
    %p10 = scmp.ge.s32.totalorder %s9, 4
    %s19 = sphi 0, %s21
    %s22 = sphi 0, %s19
    %s23 = sphi 0, %s22
    %s39 = sphi 0, %s23
    %s43 = sphi 0, %s43
    %s45 = sphi 0, %s43
    %s46 = sphi 0, %s45
    %s60 = sphi 0, %s46
    %s64 = sphi 0, %s64
    %s66 = sphi 0, %s64
    %s67 = sphi 0, %s66
    %s81 = sphi 0, %s67
    %s87 = sphi 0, %s89
    %s90 = sphi 0, %s87
    %s91 = sphi 0, %s90
    %s107 = sphi 0, %s91
  $region4: #{_lambda_.4} parent=0 // loop_header_branch
    %12 = sbr.rel (%p10) target = $region8
  $region5: #{_lambda_.4} parent=0 // loop_body
    %s14 = ssub.s32 %s9, 1
    %s15 = ssub.s32 %s9, 2
    %s16 = sadd.s32 %s9, 1
    %s17 = ssub.s32 %s9, %s16
    %p18 = scmp.eq.s32.totalorder %s17, 0
    %s20 = sadd.s32 %s19, 1
    %s21 = scalar_select %p18, %s19, %s20
    %p24 = pneg %p18
    %p25 = scmp.eq.s32.totalorder %s9, 1
    %p26 = por %p24, %p25
    %p27 = scmp.ne.s32.totalorder %s19, %s22
    %p28 = scmp.eq.s32.totalorder %s9, 0
    %p29 = por %p27, %p28
    %p30 = scmp.ne.s32.totalorder %s19, %s22
    %p31 = scmp.eq.s32.totalorder %s14, 1
    %p32 = por %p30, %p31
    %p33 = scmp.ne.s32.totalorder %s22, %s23
    %p34 = scmp.eq.s32.totalorder %s14, 0
    %p35 = por %p33, %p34
    %p36 = scmp.ne.s32.totalorder %s22, %s23
    %p37 = scmp.eq.s32.totalorder %s15, 1
    %p38 = por %p36, %p37
    %p40 = scmp.ne.s32.totalorder %s23, %s39
    %p41 = scmp.eq.s32.totalorder %s15, 0
    %p42 = por %p40, %p41
    %s44 = sadd.s32 %s43, 1
    %p47 = scmp.eq.s32.totalorder %s9, 1
    %p48 = scmp.ne.s32.totalorder %s43, %s45
    %p49 = scmp.eq.s32.totalorder %s9, 0
    %p50 = por %p48, %p49
    %p51 = scmp.ne.s32.totalorder %s43, %s45
    %p52 = scmp.eq.s32.totalorder %s14, 1
    %p53 = por %p51, %p52
    %p54 = scmp.ne.s32.totalorder %s45, %s46
    %p55 = scmp.eq.s32.totalorder %s14, 0
    %p56 = por %p54, %p55
    %p57 = scmp.ne.s32.totalorder %s45, %s46
    %p58 = scmp.eq.s32.totalorder %s15, 1
    %p59 = por %p57, %p58
    %p61 = scmp.ne.s32.totalorder %s46, %s60
    %p62 = scmp.eq.s32.totalorder %s15, 0
    %p63 = por %p61, %p62
    %s65 = sadd.s32 %s64, 1
    %p68 = scmp.eq.s32.totalorder %s9, 1
    %p69 = scmp.ne.s32.totalorder %s64, %s66
    %p70 = scmp.eq.s32.totalorder %s9, 0
    %p71 = por %p69, %p70
    %p72 = scmp.ne.s32.totalorder %s64, %s66
    %p73 = scmp.eq.s32.totalorder %s14, 1
    %p74 = por %p72, %p73
    %p75 = scmp.ne.s32.totalorder %s66, %s67
    %p76 = scmp.eq.s32.totalorder %s14, 0
    %p77 = por %p75, %p76
    %p78 = scmp.ne.s32.totalorder %s66, %s67
    %p79 = scmp.eq.s32.totalorder %s15, 1
    %p80 = por %p78, %p79
    %p82 = scmp.ne.s32.totalorder %s67, %s81
    %p83 = scmp.eq.s32.totalorder %s15, 0
    %p84 = por %p82, %p83
    %s85 = ssub.s32 %s9, %s16
    %p86 = scmp.eq.s32.totalorder %s85, 0
    %s88 = sadd.s32 %s87, 1
    %s89 = scalar_select %p86, %s87, %s88
    %p92 = pneg %p86
    %p93 = scmp.eq.s32.totalorder %s9, 1
    %p94 = por %p92, %p93
    %p95 = scmp.ne.s32.totalorder %s87, %s90
    %p96 = scmp.eq.s32.totalorder %s9, 0
    %p97 = por %p95, %p96
    %p98 = scmp.ne.s32.totalorder %s87, %s90
    %p99 = scmp.eq.s32.totalorder %s14, 1
    %p100 = por %p98, %p99
    %p101 = scmp.ne.s32.totalorder %s90, %s91
    %p102 = scmp.eq.s32.totalorder %s14, 0
    %p103 = por %p101, %p102
    %p104 = scmp.ne.s32.totalorder %s90, %s91
    %p105 = scmp.eq.s32.totalorder %s15, 1
    %p106 = por %p104, %p105
    %p108 = scmp.ne.s32.totalorder %s91, %s107
    %p109 = scmp.eq.s32.totalorder %s15, 0
    %p110 = por %p108, %p109
    %p111 = scmp.le.s32.totalorder 1, %s9
    %p112 = scmp.lt.s32.totalorder %s9, 3
    %p113 = pnand %p111, %p112
    %p114 = pneg %p113
    // Predicated region
    $region9: #{_lambda_.4} parent=5 // pred_check
      _
    $region10: #{_lambda_.4} parent=5 // pred_check_branch
      %116 = sbr.rel (%p113) target = $region12
    $region11: #{_lambda_.4} parent=5 // pred_region
      %s117 = ssub.s32 %s9, 1
      // Predicated region
      $region13: #{_lambda_.4} parent=11 // pred_check
        %p118 = pneg %p56
      $region14: #{_lambda_.4} parent=11 // pred_check_branch
        %120 = sbr.rel (%p118) target = $region16
      $region15: #{_lambda_.4} parent=11 // pred_region
        _
      $region16: #{_lambda_.4} parent=11 // pred_fallthru
        _
      // Predicated region
      $region17: #{_lambda_.4} parent=11 // pred_check
        %p121 = pneg %p77
      $region18: #{_lambda_.4} parent=11 // pred_check_branch
        %123 = sbr.rel (%p121) target = $region20
      $region19: #{_lambda_.4} parent=11 // pred_region
        _
      $region20: #{_lambda_.4} parent=11 // pred_fallthru
        _
    $region12: #{_lambda_.4} parent=5 // pred_fallthru
      _
    %p124 = scmp.lt.s32.totalorder %s9, 2
    // Predicated region
    $region21: #{_lambda_.4} parent=5 // pred_check
      %p125 = pneg %p124
    $region22: #{_lambda_.4} parent=5 // pred_check_branch
      %127 = sbr.rel (%p125) target = $region24
    $region23: #{_lambda_.4} parent=5 // pred_region
      // Predicated region
      $region25: #{_lambda_.4} parent=23 // pred_check
        %p128 = pneg %p29
      $region26: #{_lambda_.4} parent=23 // pred_check_branch
        %130 = sbr.rel (%p128) target = $region28
      $region27: #{_lambda_.4} parent=23 // pred_region
        %p131 = scmp.lt.s32.totalorder %s9, 1
        %s132 = scalar_select %p131, %s9, 1
        %s133 = smul.addr %s132, 98
        %s134 = smul.addr %s133, 4
        %s135 = scalar_lea.vmem %s0, %s134
      $region28: #{_lambda_.4} parent=23 // pred_fallthru
        _
    $region24: #{_lambda_.4} parent=5 // pred_fallthru
      _
    %p136 = scmp.le.s32.totalorder 1, %s9
    %p137 = scmp.lt.s32.totalorder %s9, 3
    %p138 = pnand %p136, %p137
    %p139 = pneg %p138
    // Predicated region
    $region29: #{_lambda_.4} parent=5 // pred_check
      _
    $region30: #{_lambda_.4} parent=5 // pred_check_branch
      %141 = sbr.rel (%p138) target = $region32
    $region31: #{_lambda_.4} parent=5 // pred_region
      %s142 = ssub.s32 %s9, 1
      %p143 = scmp.lt.s32.totalorder %s14, 1
      %s144 = scalar_select %p143, %s14, 1
      %s145 = smul.addr %s144, 98
      %s146 = smul.addr %s145, 4
      %s147 = scalar_lea.vmem %s0, %s146
      %p148 = pneg %p35
      %p149 = pneg %p32
      %p150 = pneg %p56
      %p151 = pneg %p53
      %p152 = pneg %p77
      %p153 = pneg %p74
      %p154 = pneg %p103
      %p155 = pneg %p100
      %p156 = scmp.lt.s32.totalorder %s14, 1
      %s157 = scalar_select %p156, %s14, 1
      %s158 = smul.addr %s157, 25
      %s159 = smul.addr %s158, 4
      %s160 = scalar_lea.vmem %s3, %s159
      %p161 = scmp.lt.s32.totalorder %s14, 1
      %s162 = scalar_select %p161, %s14, 1
      %s163 = smul.addr %s162, 98
      %s164 = smul.addr %s163, 4
      %s165 = scalar_lea.vmem %s0, %s164
      %p166 = scmp.lt.s32.totalorder %s14, 1
      %s167 = scalar_select %p166, %s14, 1
      %s168 = smul.addr %s167, 25
      %s169 = smul.addr %s168, 4
      %s170 = scalar_lea.vmem %s3, %s169
      %v172 = vld [vmem:[%s165] sm:$0xf]
      %v173 = vld [vmem:[%s165 + $0x4] sm:$0xf]
      %v174 = vld [vmem:[%s165 + $0x8] sm:$0xf]
      %v175 = vld [vmem:[%s165 + $0xc] sm:$0xf]
      %v176 = vld [vmem:[%s165 + $0x10] sm:$0xf]
      %v177 = vld [vmem:[%s165 + $0x14] sm:$0xf]
      %v178 = vld [vmem:[%s165 + $0x18] sm:$0xf]
      %v179 = vld [vmem:[%s165 + $0x1c] sm:$0xf]
      %v180 = vld [vmem:[%s165 + $0x20] sm:$0xf]
      %v181 = vld [vmem:[%s165 + $0x24] sm:$0xf]
      %v182 = vld [vmem:[%s165 + $0x28] sm:$0xf]
      %v183 = vld [vmem:[%s165 + $0x2c] sm:$0xf]
      %v184 = vld [vmem:[%s165 + $0x30] sm:$0xf]
      %v185 = vld [vmem:[%s165 + $0x34] sm:$0xf]
      %v186 = vld [vmem:[%s165 + $0x38] sm:$0xf]
      %v187 = vld [vmem:[%s165 + $0x3c] sm:$0xf]
      %v188 = vld [vmem:[%s165 + $0x40] sm:$0xf]
      %v189 = vld [vmem:[%s165 + $0x44] sm:$0xf]
      %v190 = vld [vmem:[%s165 + $0x48] sm:$0xf]
      %v191 = vld [vmem:[%s165 + $0x4c] sm:$0xf]
      %v192 = vld [vmem:[%s165 + $0x50] sm:$0xf]
      %v193 = vld [vmem:[%s165 + $0x54] sm:$0xf]
      %v194 = vld [vmem:[%s165 + $0x58] sm:$0xf]
      %v195 = vld [vmem:[%s165 + $0x5c] sm:$0xf]
      %v196 = vld [vmem:[%s165 + $0x60] sm:$0xf]
      %v197 = vld [vmem:[%s165 + $0x64] sm:$0xf]
      %v198 = vld [vmem:[%s165 + $0x68] sm:$0xf]
      %v199 = vld [vmem:[%s165 + $0x6c] sm:$0xf]
      %v200 = vld [vmem:[%s165 + $0x70] sm:$0xf]
      %v201 = vld [vmem:[%s165 + $0x74] sm:$0xf]
      %v202 = vld [vmem:[%s165 + $0x78] sm:$0xf]
      %v203 = vld [vmem:[%s165 + $0x7c] sm:$0xf]
      %v204 = vld [vmem:[%s165 + $0x80] sm:$0xf]
      %v205 = vld [vmem:[%s165 + $0x84] sm:$0xf]
      %v206 = vld [vmem:[%s165 + $0x88] sm:$0xf]
      %v207 = vld [vmem:[%s165 + $0x8c] sm:$0xf]
      %v208 = vld [vmem:[%s165 + $0x90] sm:$0xf]
      %v209 = vld [vmem:[%s165 + $0x94] sm:$0xf]
      %v210 = vld [vmem:[%s165 + $0x98] sm:$0xf]
      %v211 = vld [vmem:[%s165 + $0x9c] sm:$0xf]
      %v212 = vld [vmem:[%s165 + $0xa0] sm:$0xf]
      %v213 = vld [vmem:[%s165 + $0xa4] sm:$0xf]
      %v214 = vld [vmem:[%s165 + $0xa8] sm:$0xf]
      %v215 = vld [vmem:[%s165 + $0xac] sm:$0xf]
      %v216 = vld [vmem:[%s165 + $0xb0] sm:$0xf]
      %v217 = vld [vmem:[%s165 + $0xb4] sm:$0xf]
      %v218 = vld [vmem:[%s165 + $0xb8] sm:$0xf]
      %v219 = vld [vmem:[%s165 + $0xbc] sm:$0xf]
      %v220 = vld [vmem:[%s165 + $0xc0] sm:$0xf]
      %v221 = vld [vmem:[%s1] sm:$0xf]
      %v222 = vld [vmem:[%s1 + $0x4] sm:$0x1]
      %v223 = vld [vmem:[%s2] sm:$0x1]
      %v225 = vperm.slane %v223, 0
      %v276 = vunpack.c.l.b16 %v172
      %v277 = vunpack.c.l.b16 %v173
      %v278 = vunpack.c.l.b16 %v174
      %v279 = vunpack.c.l.b16 %v175
      %v280 = vunpack.c.l.b16 %v176
      %v281 = vunpack.c.l.b16 %v177
      %v282 = vunpack.c.l.b16 %v178
      %v283 = vunpack.c.l.b16 %v179
      %v284 = vunpack.c.l.b16 %v180
      %v285 = vunpack.c.l.b16 %v181
      %v286 = vunpack.c.l.b16 %v182
      %v287 = vunpack.c.l.b16 %v183
      %v288 = vunpack.c.l.b16 %v184
      %v289 = vunpack.c.l.b16 %v185
      %v290 = vunpack.c.l.b16 %v186
      %v291 = vunpack.c.l.b16 %v187
      %v292 = vunpack.c.l.b16 %v188
      %v293 = vunpack.c.l.b16 %v189
      %v294 = vunpack.c.l.b16 %v190
      %v295 = vunpack.c.l.b16 %v191
      %v296 = vunpack.c.l.b16 %v192
      %v297 = vunpack.c.l.b16 %v193
      %v298 = vunpack.c.l.b16 %v194
      %v299 = vunpack.c.l.b16 %v195
      %v300 = vunpack.c.l.b16 %v196
      %v301 = vunpack.c.l.b16 %v197
      %v302 = vunpack.c.l.b16 %v198
      %v303 = vunpack.c.l.b16 %v199
      %v304 = vunpack.c.l.b16 %v200
      %v305 = vunpack.c.l.b16 %v201
      %v306 = vunpack.c.l.b16 %v202
      %v307 = vunpack.c.l.b16 %v203
      %v308 = vunpack.c.l.b16 %v204
      %v309 = vunpack.c.l.b16 %v205
      %v310 = vunpack.c.l.b16 %v206
      %v311 = vunpack.c.l.b16 %v207
      %v312 = vunpack.c.l.b16 %v208
      %v313 = vunpack.c.l.b16 %v209
      %v314 = vunpack.c.l.b16 %v210
      %v315 = vunpack.c.l.b16 %v211
      %v316 = vunpack.c.l.b16 %v212
      %v317 = vunpack.c.l.b16 %v213
      %v318 = vunpack.c.l.b16 %v214
      %v319 = vunpack.c.l.b16 %v215
      %v320 = vunpack.c.l.b16 %v216
      %v321 = vunpack.c.l.b16 %v217
      %v322 = vunpack.c.l.b16 %v218
      %v323 = vunpack.c.l.b16 %v219
      %v324 = vunpack.c.l.b16 %v220
      %v325 = vpack.c.b16 %v277, %v276
      %v326 = vpack.c.b16 %v279, %v278
      %v327 = vpack.c.b16 %v281, %v280
      %v328 = vpack.c.b16 %v283, %v282
      %v329 = vpack.c.b16 %v285, %v284
      %v330 = vpack.c.b16 %v287, %v286
      %v331 = vpack.c.b16 %v289, %v288
      %v332 = vpack.c.b16 %v291, %v290
      %v333 = vpack.c.b16 %v293, %v292
      %v334 = vpack.c.b16 %v295, %v294
      %v335 = vpack.c.b16 %v297, %v296
      %v336 = vpack.c.b16 %v299, %v298
      %v337 = vpack.c.b16 %v301, %v300
      %v338 = vpack.c.b16 %v303, %v302
      %v339 = vpack.c.b16 %v305, %v304
      %v340 = vpack.c.b16 %v307, %v306
      %v341 = vpack.c.b16 %v309, %v308
      %v342 = vpack.c.b16 %v311, %v310
      %v343 = vpack.c.b16 %v313, %v312
      %v344 = vpack.c.b16 %v315, %v314
      %v345 = vpack.c.b16 %v317, %v316
      %v346 = vpack.c.b16 %v319, %v318
      %v347 = vpack.c.b16 %v321, %v320
      %v348 = vpack.c.b16 %v323, %v322
      %v349 = vpack.c.b16 %v324, %v324
      %v352 = vunpack.c.l.b16 %v221
      %v353 = vunpack.c.l.b16 %v222
      %v354 = vpack.c.b16 %v353, %v352
      %vm355 = vcmask 72704
      %v357 = vsel %vm355, %v325, 0
      %v360 = vsel %vm355, %v326, 0
      %v363 = vsel %vm355, %v327, 0
      %v366 = vsel %vm355, %v328, 0
      %v369 = vsel %vm355, %v329, 0
      %v372 = vsel %vm355, %v330, 0
      %v375 = vsel %vm355, %v331, 0
      %v378 = vsel %vm355, %v332, 0
      %v381 = vsel %vm355, %v333, 0
      %v384 = vsel %vm355, %v334, 0
      %v387 = vsel %vm355, %v335, 0
      %v390 = vsel %vm355, %v336, 0
      %v393 = vsel %vm355, %v337, 0
      %v396 = vsel %vm355, %v338, 0
      %v399 = vsel %vm355, %v339, 0
      %v402 = vsel %vm355, %v340, 0
      %v405 = vsel %vm355, %v341, 0
      %v408 = vsel %vm355, %v342, 0
      %v411 = vsel %vm355, %v343, 0
      %v414 = vsel %vm355, %v344, 0
      %v417 = vsel %vm355, %v345, 0
      %v420 = vsel %vm355, %v346, 0
      %v423 = vsel %vm355, %v347, 0
      %v426 = vsel %vm355, %v348, 0
      %v429 = vsel %vm355, %v349, 0
      %vm431 = vcmask 1043456
      %vm432 = vcmask 1044480
      %v433 = vsel %vm431, 4294967295, 65535
      %v434 = vsel %vm432, %v433, 0
      %v436 = vand.u32 %v354, %v434
      %438 = vmatpush.bf16.msra.mxu0 0
      %439 = vmatpush.bf16.msra.mxu0 0
      %440 = vmatpush.bf16.msra.mxu0 0
      %441 = vmatpush.bf16.msra.mxu0 0
      %442 = vmatpush.bf16.msra.mxu0 0
      %443 = vmatpush.bf16.msra.mxu0 0
      %444 = vmatpush.bf16.msra.mxu0 0
      %445 = vmatpush.bf16.msra.mxu0 %v436
      %446 = vmatmul.bf16.gmra.mxu0 %v357
      %v447 = vpop.f32.mrf.mxu0
      %v448 = vadd.f32 %v225, %v447
      %v449 = vpop.f32.mrf.mxu0
      %v450 = vadd.f32 %v225, %v449
      %451 = vmatmul.bf16.gmra.mxu0 %v360
      %v452 = vpop.f32.mrf.mxu0
      %v453 = vadd.f32 %v225, %v452
      %v454 = vpop.f32.mrf.mxu0
      %v455 = vadd.f32 %v225, %v454
      %456 = vmatmul.bf16.gmra.mxu0 %v363
      %v457 = vpop.f32.mrf.mxu0
      %v458 = vadd.f32 %v225, %v457
      %v459 = vpop.f32.mrf.mxu0
      %v460 = vadd.f32 %v225, %v459
      %461 = vmatmul.bf16.gmra.mxu0 %v366
      %v462 = vpop.f32.mrf.mxu0
      %v463 = vadd.f32 %v225, %v462
      %v464 = vpop.f32.mrf.mxu0
      %v465 = vadd.f32 %v225, %v464
      %466 = vmatmul.bf16.gmra.mxu0 %v369
      %v467 = vpop.f32.mrf.mxu0
      %v468 = vadd.f32 %v225, %v467
      %v469 = vpop.f32.mrf.mxu0
      %v470 = vadd.f32 %v225, %v469
      %471 = vmatmul.bf16.gmra.mxu0 %v372
      %v472 = vpop.f32.mrf.mxu0
      %v473 = vadd.f32 %v225, %v472
      %v474 = vpop.f32.mrf.mxu0
      %v475 = vadd.f32 %v225, %v474
      %476 = vmatmul.bf16.gmra.mxu0 %v375
      %v477 = vpop.f32.mrf.mxu0
      %v478 = vadd.f32 %v225, %v477
      %v479 = vpop.f32.mrf.mxu0
      %v480 = vadd.f32 %v225, %v479
      %481 = vmatmul.bf16.gmra.mxu0 %v378
      %v482 = vpop.f32.mrf.mxu0
      %v483 = vadd.f32 %v225, %v482
      %v484 = vpop.f32.mrf.mxu0
      %v485 = vadd.f32 %v225, %v484
      %486 = vmatmul.bf16.gmra.mxu0 %v381
      %v487 = vpop.f32.mrf.mxu0
      %v488 = vadd.f32 %v225, %v487
      %v489 = vpop.f32.mrf.mxu0
      %v490 = vadd.f32 %v225, %v489
      %491 = vmatmul.bf16.gmra.mxu0 %v384
      %v492 = vpop.f32.mrf.mxu0
      %v493 = vadd.f32 %v225, %v492
      %v494 = vpop.f32.mrf.mxu0
      %v495 = vadd.f32 %v225, %v494
      %496 = vmatmul.bf16.gmra.mxu0 %v387
      %v497 = vpop.f32.mrf.mxu0
      %v498 = vadd.f32 %v225, %v497
      %v499 = vpop.f32.mrf.mxu0
      %v500 = vadd.f32 %v225, %v499
      %501 = vmatmul.bf16.gmra.mxu0 %v390
      %v502 = vpop.f32.mrf.mxu0
      %v503 = vadd.f32 %v225, %v502
      %v504 = vpop.f32.mrf.mxu0
      %v505 = vadd.f32 %v225, %v504
      %506 = vmatmul.bf16.gmra.mxu0 %v393
      %v507 = vpop.f32.mrf.mxu0
      %v508 = vadd.f32 %v225, %v507
      %v509 = vpop.f32.mrf.mxu0
      %v510 = vadd.f32 %v225, %v509
      %511 = vmatmul.bf16.gmra.mxu0 %v396
      %v512 = vpop.f32.mrf.mxu0
      %v513 = vadd.f32 %v225, %v512
      %v514 = vpop.f32.mrf.mxu0
      %v515 = vadd.f32 %v225, %v514
      %516 = vmatmul.bf16.gmra.mxu0 %v399
      %v517 = vpop.f32.mrf.mxu0
      %v518 = vadd.f32 %v225, %v517
      %v519 = vpop.f32.mrf.mxu0
      %v520 = vadd.f32 %v225, %v519
      %521 = vmatmul.bf16.gmra.mxu0 %v402
      %v522 = vpop.f32.mrf.mxu0
      %v523 = vadd.f32 %v225, %v522
      %v524 = vpop.f32.mrf.mxu0
      %v525 = vadd.f32 %v225, %v524
      %526 = vmatmul.bf16.gmra.mxu0 %v405
      %v527 = vpop.f32.mrf.mxu0
      %v528 = vadd.f32 %v225, %v527
      %v529 = vpop.f32.mrf.mxu0
      %v530 = vadd.f32 %v225, %v529
      %531 = vmatmul.bf16.gmra.mxu0 %v408
      %v532 = vpop.f32.mrf.mxu0
      %v533 = vadd.f32 %v225, %v532
      %v534 = vpop.f32.mrf.mxu0
      %v535 = vadd.f32 %v225, %v534
      %536 = vmatmul.bf16.gmra.mxu0 %v411
      %v537 = vpop.f32.mrf.mxu0
      %v538 = vadd.f32 %v225, %v537
      %v539 = vpop.f32.mrf.mxu0
      %v540 = vadd.f32 %v225, %v539
      %541 = vmatmul.bf16.gmra.mxu0 %v414
      %v542 = vpop.f32.mrf.mxu0
      %v543 = vadd.f32 %v225, %v542
      %v544 = vpop.f32.mrf.mxu0
      %v545 = vadd.f32 %v225, %v544
      %546 = vmatmul.bf16.gmra.mxu0 %v417
      %v547 = vpop.f32.mrf.mxu0
      %v548 = vadd.f32 %v225, %v547
      %v549 = vpop.f32.mrf.mxu0
      %v550 = vadd.f32 %v225, %v549
      %551 = vmatmul.bf16.gmra.mxu0 %v420
      %v552 = vpop.f32.mrf.mxu0
      %v553 = vadd.f32 %v225, %v552
      %v554 = vpop.f32.mrf.mxu0
      %v555 = vadd.f32 %v225, %v554
      %556 = vmatmul.bf16.gmra.mxu0 %v423
      %v557 = vpop.f32.mrf.mxu0
      %v558 = vadd.f32 %v225, %v557
      %v559 = vpop.f32.mrf.mxu0
      %v560 = vadd.f32 %v225, %v559
      %561 = vmatmul.bf16.gmra.mxu0 %v426
      %v562 = vpop.f32.mrf.mxu0
      %v563 = vadd.f32 %v225, %v562
      %v564 = vpop.f32.mrf.mxu0
      %v565 = vadd.f32 %v225, %v564
      %566 = vmatmul.bf16.gmra.mxu0 %v429
      %v567 = vpop.f32.mrf.mxu0
      %v568 = vadd.f32 %v225, %v567
      %v569 = vpop.f32.mrf.mxu0
      %570 = vdwg.mxu0
      %v571 = vmax.f32 %v448, 0.0
      %v572 = vmax.f32 %v450, 0.0
      %v573 = vmax.f32 %v453, 0.0
      %v574 = vmax.f32 %v455, 0.0
      %v575 = vmax.f32 %v458, 0.0
      %v576 = vmax.f32 %v460, 0.0
      %v577 = vmax.f32 %v463, 0.0
      %v578 = vmax.f32 %v465, 0.0
      %v579 = vmax.f32 %v468, 0.0
      %v580 = vmax.f32 %v470, 0.0
      %v581 = vmax.f32 %v473, 0.0
      %v582 = vmax.f32 %v475, 0.0
      %v583 = vmax.f32 %v478, 0.0
      %v584 = vmax.f32 %v480, 0.0
      %v585 = vmax.f32 %v483, 0.0
      %v586 = vmax.f32 %v485, 0.0
      %v587 = vmax.f32 %v488, 0.0
      %v588 = vmax.f32 %v490, 0.0
      %v589 = vmax.f32 %v493, 0.0
      %v590 = vmax.f32 %v495, 0.0
      %v591 = vmax.f32 %v498, 0.0
      %v592 = vmax.f32 %v500, 0.0
      %v593 = vmax.f32 %v503, 0.0
      %v594 = vmax.f32 %v505, 0.0
      %v595 = vmax.f32 %v508, 0.0
      %v596 = vmax.f32 %v510, 0.0
      %v597 = vmax.f32 %v513, 0.0
      %v598 = vmax.f32 %v515, 0.0
      %v599 = vmax.f32 %v518, 0.0
      %v600 = vmax.f32 %v520, 0.0
      %v601 = vmax.f32 %v523, 0.0
      %v602 = vmax.f32 %v525, 0.0
      %v603 = vmax.f32 %v528, 0.0
      %v604 = vmax.f32 %v530, 0.0
      %v605 = vmax.f32 %v533, 0.0
      %v606 = vmax.f32 %v535, 0.0
      %v607 = vmax.f32 %v538, 0.0
      %v608 = vmax.f32 %v540, 0.0
      %v609 = vmax.f32 %v543, 0.0
      %v610 = vmax.f32 %v545, 0.0
      %v611 = vmax.f32 %v548, 0.0
      %v612 = vmax.f32 %v550, 0.0
      %v613 = vmax.f32 %v553, 0.0
      %v614 = vmax.f32 %v555, 0.0
      %v615 = vmax.f32 %v558, 0.0
      %v616 = vmax.f32 %v560, 0.0
      %v617 = vmax.f32 %v563, 0.0
      %v618 = vmax.f32 %v565, 0.0
      %v619 = vmax.f32 %v568, 0.0
      %v620 = vld [vmem:[%s165 + $0xc4] sm:$0xf]
      %v621 = vld [vmem:[%s165 + $0xc8] sm:$0xf]
      %v622 = vld [vmem:[%s165 + $0xcc] sm:$0xf]
      %v623 = vld [vmem:[%s165 + $0xd0] sm:$0xf]
      %v624 = vld [vmem:[%s165 + $0xd4] sm:$0xf]
      %v625 = vld [vmem:[%s165 + $0xd8] sm:$0xf]
      %v626 = vld [vmem:[%s165 + $0xdc] sm:$0xf]
      %v627 = vld [vmem:[%s165 + $0xe0] sm:$0xf]
      %v628 = vld [vmem:[%s165 + $0xe4] sm:$0xf]
      %v629 = vld [vmem:[%s165 + $0xe8] sm:$0xf]
      %v630 = vld [vmem:[%s165 + $0xec] sm:$0xf]
      %v631 = vld [vmem:[%s165 + $0xf0] sm:$0xf]
      %v632 = vld [vmem:[%s165 + $0xf4] sm:$0xf]
      %v633 = vld [vmem:[%s165 + $0xf8] sm:$0xf]
      %v634 = vld [vmem:[%s165 + $0xfc] sm:$0xf]
      %v635 = vld [vmem:[%s165 + $0x100] sm:$0xf]
      %v636 = vld [vmem:[%s165 + $0x104] sm:$0xf]
      %v637 = vld [vmem:[%s165 + $0x108] sm:$0xf]
      %v638 = vld [vmem:[%s165 + $0x10c] sm:$0xf]
      %v639 = vld [vmem:[%s165 + $0x110] sm:$0xf]
      %v640 = vld [vmem:[%s165 + $0x114] sm:$0xf]
      %v641 = vld [vmem:[%s165 + $0x118] sm:$0xf]
      %v642 = vld [vmem:[%s165 + $0x11c] sm:$0xf]
      %v643 = vld [vmem:[%s165 + $0x120] sm:$0xf]
      %v644 = vld [vmem:[%s165 + $0x124] sm:$0xf]
      %v645 = vld [vmem:[%s165 + $0x128] sm:$0xf]
      %v646 = vld [vmem:[%s165 + $0x12c] sm:$0xf]
      %v647 = vld [vmem:[%s165 + $0x130] sm:$0xf]
      %v648 = vld [vmem:[%s165 + $0x134] sm:$0xf]
      %v649 = vld [vmem:[%s165 + $0x138] sm:$0xf]
      %v650 = vld [vmem:[%s165 + $0x13c] sm:$0xf]
      %v651 = vld [vmem:[%s165 + $0x140] sm:$0xf]
      %v652 = vld [vmem:[%s165 + $0x144] sm:$0xf]
      %v653 = vld [vmem:[%s165 + $0x148] sm:$0xf]
      %v654 = vld [vmem:[%s165 + $0x14c] sm:$0xf]
      %v655 = vld [vmem:[%s165 + $0x150] sm:$0xf]
      %v656 = vld [vmem:[%s165 + $0x154] sm:$0xf]
      %v657 = vld [vmem:[%s165 + $0x158] sm:$0xf]
      %v658 = vld [vmem:[%s165 + $0x15c] sm:$0xf]
      %v659 = vld [vmem:[%s165 + $0x160] sm:$0xf]
      %v660 = vld [vmem:[%s165 + $0x164] sm:$0xf]
      %v661 = vld [vmem:[%s165 + $0x168] sm:$0xf]
      %v662 = vld [vmem:[%s165 + $0x16c] sm:$0xf]
      %v663 = vld [vmem:[%s165 + $0x170] sm:$0xf]
      %v664 = vld [vmem:[%s165 + $0x174] sm:$0xf]
      %v665 = vld [vmem:[%s165 + $0x178] sm:$0xf]
      %v666 = vld [vmem:[%s165 + $0x17c] sm:$0xf]
      %v667 = vld [vmem:[%s165 + $0x180] sm:$0xf]
      %v668 = vld [vmem:[%s165 + $0x184] sm:$0xf]
      %v718 = vunpack.c.l.b16 %v620
      %v719 = vunpack.c.l.b16 %v621
      %v720 = vunpack.c.l.b16 %v622
      %v721 = vunpack.c.l.b16 %v623
      %v722 = vunpack.c.l.b16 %v624
      %v723 = vunpack.c.l.b16 %v625
      %v724 = vunpack.c.l.b16 %v626
      %v725 = vunpack.c.l.b16 %v627
      %v726 = vunpack.c.l.b16 %v628
      %v727 = vunpack.c.l.b16 %v629
      %v728 = vunpack.c.l.b16 %v630
      %v729 = vunpack.c.l.b16 %v631
      %v730 = vunpack.c.l.b16 %v632
      %v731 = vunpack.c.l.b16 %v633
      %v732 = vunpack.c.l.b16 %v634
      %v733 = vunpack.c.l.b16 %v635
      %v734 = vunpack.c.l.b16 %v636
      %v735 = vunpack.c.l.b16 %v637
      %v736 = vunpack.c.l.b16 %v638
      %v737 = vunpack.c.l.b16 %v639
      %v738 = vunpack.c.l.b16 %v640
      %v739 = vunpack.c.l.b16 %v641
      %v740 = vunpack.c.l.b16 %v642
      %v741 = vunpack.c.l.b16 %v643
      %v742 = vunpack.c.l.b16 %v644
      %v743 = vunpack.c.l.b16 %v645
      %v744 = vunpack.c.l.b16 %v646
      %v745 = vunpack.c.l.b16 %v647
      %v746 = vunpack.c.l.b16 %v648
      %v747 = vunpack.c.l.b16 %v649
      %v748 = vunpack.c.l.b16 %v650
      %v749 = vunpack.c.l.b16 %v651
      %v750 = vunpack.c.l.b16 %v652
      %v751 = vunpack.c.l.b16 %v653
      %v752 = vunpack.c.l.b16 %v654
      %v753 = vunpack.c.l.b16 %v655
      %v754 = vunpack.c.l.b16 %v656
      %v755 = vunpack.c.l.b16 %v657
      %v756 = vunpack.c.l.b16 %v658
      %v757 = vunpack.c.l.b16 %v659
      %v758 = vunpack.c.l.b16 %v660
      %v759 = vunpack.c.l.b16 %v661
      %v760 = vunpack.c.l.b16 %v662
      %v761 = vunpack.c.l.b16 %v663
      %v762 = vunpack.c.l.b16 %v664
      %v763 = vunpack.c.l.b16 %v665
      %v764 = vunpack.c.l.b16 %v666
      %v765 = vunpack.c.l.b16 %v667
      %v766 = vunpack.c.l.b16 %v668
      %v767 = vpack.c.b16 %v719, %v718
      %v768 = vpack.c.b16 %v721, %v720
      %v769 = vpack.c.b16 %v723, %v722
      %v770 = vpack.c.b16 %v725, %v724
      %v771 = vpack.c.b16 %v727, %v726
      %v772 = vpack.c.b16 %v729, %v728
      %v773 = vpack.c.b16 %v731, %v730
      %v774 = vpack.c.b16 %v733, %v732
      %v775 = vpack.c.b16 %v735, %v734
      %v776 = vpack.c.b16 %v737, %v736
      %v777 = vpack.c.b16 %v739, %v738
      %v778 = vpack.c.b16 %v741, %v740
      %v779 = vpack.c.b16 %v743, %v742
      %v780 = vpack.c.b16 %v745, %v744
      %v781 = vpack.c.b16 %v747, %v746
      %v782 = vpack.c.b16 %v749, %v748
      %v783 = vpack.c.b16 %v751, %v750
      %v784 = vpack.c.b16 %v753, %v752
      %v785 = vpack.c.b16 %v755, %v754
      %v786 = vpack.c.b16 %v757, %v756
      %v787 = vpack.c.b16 %v759, %v758
      %v788 = vpack.c.b16 %v761, %v760
      %v789 = vpack.c.b16 %v763, %v762
      %v790 = vpack.c.b16 %v765, %v764
      %v791 = vpack.c.b16 %v766, %v766
      %v793 = vsel %vm355, %v767, 0
      %v796 = vsel %vm355, %v768, 0
      %v799 = vsel %vm355, %v769, 0
      %v802 = vsel %vm355, %v770, 0
      %v805 = vsel %vm355, %v771, 0
      %v808 = vsel %vm355, %v772, 0
      %v811 = vsel %vm355, %v773, 0
      %v814 = vsel %vm355, %v774, 0
      %v817 = vsel %vm355, %v775, 0
      %v820 = vsel %vm355, %v776, 0
      %v823 = vsel %vm355, %v777, 0
      %v826 = vsel %vm355, %v778, 0
      %v829 = vsel %vm355, %v779, 0
      %v832 = vsel %vm355, %v780, 0
      %v835 = vsel %vm355, %v781, 0
      %v838 = vsel %vm355, %v782, 0
      %v841 = vsel %vm355, %v783, 0
      %v844 = vsel %vm355, %v784, 0
      %v847 = vsel %vm355, %v785, 0
      %v850 = vsel %vm355, %v786, 0
      %v853 = vsel %vm355, %v787, 0
      %v856 = vsel %vm355, %v788, 0
      %v859 = vsel %vm355, %v789, 0
      %v862 = vsel %vm355, %v790, 0
      %v865 = vsel %vm355, %v791, 0
      %867 = vmatpush.bf16.msra.mxu0 0
      %868 = vmatpush.bf16.msra.mxu0 0
      %869 = vmatpush.bf16.msra.mxu0 0
      %870 = vmatpush.bf16.msra.mxu0 0
      %871 = vmatpush.bf16.msra.mxu0 0
      %872 = vmatpush.bf16.msra.mxu0 0
      %873 = vmatpush.bf16.msra.mxu0 0
      %874 = vmatpush.bf16.msra.mxu0 %v436
      %875 = vmatmul.bf16.gmra.mxu0 %v793
      %v876 = vpop.f32.mrf.mxu0
      %v877 = vadd.f32 %v225, %v876
      %v878 = vpop.f32.mrf.mxu0
      %v879 = vadd.f32 %v225, %v878
      %880 = vmatmul.bf16.gmra.mxu0 %v796
      %v881 = vpop.f32.mrf.mxu0
      %v882 = vadd.f32 %v225, %v881
      %v883 = vpop.f32.mrf.mxu0
      %v884 = vadd.f32 %v225, %v883
      %885 = vmatmul.bf16.gmra.mxu0 %v799
      %v886 = vpop.f32.mrf.mxu0
      %v887 = vadd.f32 %v225, %v886
      %v888 = vpop.f32.mrf.mxu0
      %v889 = vadd.f32 %v225, %v888
      %890 = vmatmul.bf16.gmra.mxu0 %v802
      %v891 = vpop.f32.mrf.mxu0
      %v892 = vadd.f32 %v225, %v891
      %v893 = vpop.f32.mrf.mxu0
      %v894 = vadd.f32 %v225, %v893
      %895 = vmatmul.bf16.gmra.mxu0 %v805
      %v896 = vpop.f32.mrf.mxu0
      %v897 = vadd.f32 %v225, %v896
      %v898 = vpop.f32.mrf.mxu0
      %v899 = vadd.f32 %v225, %v898
      %900 = vmatmul.bf16.gmra.mxu0 %v808
      %v901 = vpop.f32.mrf.mxu0
      %v902 = vadd.f32 %v225, %v901
      %v903 = vpop.f32.mrf.mxu0
      %v904 = vadd.f32 %v225, %v903
      %905 = vmatmul.bf16.gmra.mxu0 %v811
      %v906 = vpop.f32.mrf.mxu0
      %v907 = vadd.f32 %v225, %v906
      %v908 = vpop.f32.mrf.mxu0
      %v909 = vadd.f32 %v225, %v908
      %910 = vmatmul.bf16.gmra.mxu0 %v814
      %v911 = vpop.f32.mrf.mxu0
      %v912 = vadd.f32 %v225, %v911
      %v913 = vpop.f32.mrf.mxu0
      %v914 = vadd.f32 %v225, %v913
      %915 = vmatmul.bf16.gmra.mxu0 %v817
      %v916 = vpop.f32.mrf.mxu0
      %v917 = vadd.f32 %v225, %v916
      %v918 = vpop.f32.mrf.mxu0
      %v919 = vadd.f32 %v225, %v918
      %920 = vmatmul.bf16.gmra.mxu0 %v820
      %v921 = vpop.f32.mrf.mxu0
      %v922 = vadd.f32 %v225, %v921
      %v923 = vpop.f32.mrf.mxu0
      %v924 = vadd.f32 %v225, %v923
      %925 = vmatmul.bf16.gmra.mxu0 %v823
      %v926 = vpop.f32.mrf.mxu0
      %v927 = vadd.f32 %v225, %v926
      %v928 = vpop.f32.mrf.mxu0
      %v929 = vadd.f32 %v225, %v928
      %930 = vmatmul.bf16.gmra.mxu0 %v826
      %v931 = vpop.f32.mrf.mxu0
      %v932 = vadd.f32 %v225, %v931
      %v933 = vpop.f32.mrf.mxu0
      %v934 = vadd.f32 %v225, %v933
      %935 = vmatmul.bf16.gmra.mxu0 %v829
      %v936 = vpop.f32.mrf.mxu0
      %v937 = vadd.f32 %v225, %v936
      %v938 = vpop.f32.mrf.mxu0
      %v939 = vadd.f32 %v225, %v938
      %940 = vmatmul.bf16.gmra.mxu0 %v832
      %v941 = vpop.f32.mrf.mxu0
      %v942 = vadd.f32 %v225, %v941
      %v943 = vpop.f32.mrf.mxu0
      %v944 = vadd.f32 %v225, %v943
      %945 = vmatmul.bf16.gmra.mxu0 %v835
      %v946 = vpop.f32.mrf.mxu0
      %v947 = vadd.f32 %v225, %v946
      %v948 = vpop.f32.mrf.mxu0
      %v949 = vadd.f32 %v225, %v948
      %950 = vmatmul.bf16.gmra.mxu0 %v838
      %v951 = vpop.f32.mrf.mxu0
      %v952 = vadd.f32 %v225, %v951
      %v953 = vpop.f32.mrf.mxu0
      %v954 = vadd.f32 %v225, %v953
      %955 = vmatmul.bf16.gmra.mxu0 %v841
      %v956 = vpop.f32.mrf.mxu0
      %v957 = vadd.f32 %v225, %v956
      %v958 = vpop.f32.mrf.mxu0
      %v959 = vadd.f32 %v225, %v958
      %960 = vmatmul.bf16.gmra.mxu0 %v844
      %v961 = vpop.f32.mrf.mxu0
      %v962 = vadd.f32 %v225, %v961
      %v963 = vpop.f32.mrf.mxu0
      %v964 = vadd.f32 %v225, %v963
      %965 = vmatmul.bf16.gmra.mxu0 %v847
      %v966 = vpop.f32.mrf.mxu0
      %v967 = vadd.f32 %v225, %v966
      %v968 = vpop.f32.mrf.mxu0
      %v969 = vadd.f32 %v225, %v968
      %970 = vmatmul.bf16.gmra.mxu0 %v850
      %v971 = vpop.f32.mrf.mxu0
      %v972 = vadd.f32 %v225, %v971
      %v973 = vpop.f32.mrf.mxu0
      %v974 = vadd.f32 %v225, %v973
      %975 = vmatmul.bf16.gmra.mxu0 %v853
      %v976 = vpop.f32.mrf.mxu0
      %v977 = vadd.f32 %v225, %v976
      %v978 = vpop.f32.mrf.mxu0
      %v979 = vadd.f32 %v225, %v978
      %980 = vmatmul.bf16.gmra.mxu0 %v856
      %v981 = vpop.f32.mrf.mxu0
      %v982 = vadd.f32 %v225, %v981
      %v983 = vpop.f32.mrf.mxu0
      %v984 = vadd.f32 %v225, %v983
      %985 = vmatmul.bf16.gmra.mxu0 %v859
      %v986 = vpop.f32.mrf.mxu0
      %v987 = vadd.f32 %v225, %v986
      %v988 = vpop.f32.mrf.mxu0
      %v989 = vadd.f32 %v225, %v988
      %990 = vmatmul.bf16.gmra.mxu0 %v862
      %v991 = vpop.f32.mrf.mxu0
      %v992 = vadd.f32 %v225, %v991
      %v993 = vpop.f32.mrf.mxu0
      %v994 = vadd.f32 %v225, %v993
      %995 = vmatmul.bf16.gmra.mxu0 %v865
      %v996 = vpop.f32.mrf.mxu0
      %v997 = vadd.f32 %v225, %v996
      %v998 = vpop.f32.mrf.mxu0
      %999 = vdwg.mxu0
      %v1000 = vmax.f32 %v877, 0.0
      %v1001 = vmax.f32 %v879, 0.0
      %v1002 = vmax.f32 %v882, 0.0
      %v1003 = vmax.f32 %v884, 0.0
      %v1004 = vmax.f32 %v887, 0.0
      %v1005 = vmax.f32 %v889, 0.0
      %v1006 = vmax.f32 %v892, 0.0
      %v1007 = vmax.f32 %v894, 0.0
      %v1008 = vmax.f32 %v897, 0.0
      %v1009 = vmax.f32 %v899, 0.0
      %v1010 = vmax.f32 %v902, 0.0
      %v1011 = vmax.f32 %v904, 0.0
      %v1012 = vmax.f32 %v907, 0.0
      %v1013 = vmax.f32 %v909, 0.0
      %v1014 = vmax.f32 %v912, 0.0
      %v1015 = vmax.f32 %v914, 0.0
      %v1016 = vmax.f32 %v917, 0.0
      %v1017 = vmax.f32 %v919, 0.0
      %v1018 = vmax.f32 %v922, 0.0
      %v1019 = vmax.f32 %v924, 0.0
      %v1020 = vmax.f32 %v927, 0.0
      %v1021 = vmax.f32 %v929, 0.0
      %v1022 = vmax.f32 %v932, 0.0
      %v1023 = vmax.f32 %v934, 0.0
      %v1024 = vmax.f32 %v937, 0.0
      %v1025 = vmax.f32 %v939, 0.0
      %v1026 = vmax.f32 %v942, 0.0
      %v1027 = vmax.f32 %v944, 0.0
      %v1028 = vmax.f32 %v947, 0.0
      %v1029 = vmax.f32 %v949, 0.0
      %v1030 = vmax.f32 %v952, 0.0
      %v1031 = vmax.f32 %v954, 0.0
      %v1032 = vmax.f32 %v957, 0.0
      %v1033 = vmax.f32 %v959, 0.0
      %v1034 = vmax.f32 %v962, 0.0
      %v1035 = vmax.f32 %v964, 0.0
      %v1036 = vmax.f32 %v967, 0.0
      %v1037 = vmax.f32 %v969, 0.0
      %v1038 = vmax.f32 %v972, 0.0
      %v1039 = vmax.f32 %v974, 0.0
      %v1040 = vmax.f32 %v977, 0.0
      %v1041 = vmax.f32 %v979, 0.0
      %v1042 = vmax.f32 %v982, 0.0
      %v1043 = vmax.f32 %v984, 0.0
      %v1044 = vmax.f32 %v987, 0.0
      %v1045 = vmax.f32 %v989, 0.0
      %v1046 = vmax.f32 %v992, 0.0
      %v1047 = vmax.f32 %v994, 0.0
      %v1048 = vmax.f32 %v997, 0.0
      %v1049 = vmax.f32 %v571, %v1000
      %v1050 = vmax.f32 %v572, %v1001
      %v1051 = vmax.f32 %v573, %v1002
      %v1052 = vmax.f32 %v574, %v1003
      %v1053 = vmax.f32 %v575, %v1004
      %v1054 = vmax.f32 %v576, %v1005
      %v1055 = vmax.f32 %v577, %v1006
      %v1056 = vmax.f32 %v578, %v1007
      %v1057 = vmax.f32 %v579, %v1008
      %v1058 = vmax.f32 %v580, %v1009
      %v1059 = vmax.f32 %v581, %v1010
      %v1060 = vmax.f32 %v582, %v1011
      %v1061 = vmax.f32 %v583, %v1012
      %v1062 = vmax.f32 %v584, %v1013
      %v1063 = vmax.f32 %v585, %v1014
      %v1064 = vmax.f32 %v586, %v1015
      %v1065 = vmax.f32 %v587, %v1016
      %v1066 = vmax.f32 %v588, %v1017
      %v1067 = vmax.f32 %v589, %v1018
      %v1068 = vmax.f32 %v590, %v1019
      %v1069 = vmax.f32 %v591, %v1020
      %v1070 = vmax.f32 %v592, %v1021
      %v1071 = vmax.f32 %v593, %v1022
      %v1072 = vmax.f32 %v594, %v1023
      %v1073 = vmax.f32 %v595, %v1024
      %v1074 = vmax.f32 %v596, %v1025
      %v1075 = vmax.f32 %v597, %v1026
      %v1076 = vmax.f32 %v598, %v1027
      %v1077 = vmax.f32 %v599, %v1028
      %v1078 = vmax.f32 %v600, %v1029
      %v1079 = vmax.f32 %v601, %v1030
      %v1080 = vmax.f32 %v602, %v1031
      %v1081 = vmax.f32 %v603, %v1032
      %v1082 = vmax.f32 %v604, %v1033
      %v1083 = vmax.f32 %v605, %v1034
      %v1084 = vmax.f32 %v606, %v1035
      %v1085 = vmax.f32 %v607, %v1036
      %v1086 = vmax.f32 %v608, %v1037
      %v1087 = vmax.f32 %v609, %v1038
      %v1088 = vmax.f32 %v610, %v1039
      %v1089 = vmax.f32 %v611, %v1040
      %v1090 = vmax.f32 %v612, %v1041
      %v1091 = vmax.f32 %v613, %v1042
      %v1092 = vmax.f32 %v614, %v1043
      %v1093 = vmax.f32 %v615, %v1044
      %v1094 = vmax.f32 %v616, %v1045
      %v1095 = vmax.f32 %v617, %v1046
      %v1096 = vmax.f32 %v618, %v1047
      %v1097 = vmax.f32 %v619, %v1048
      %vm1098 = vcmask 261120
      %1099 = vst.msk [vmem:[#allocation2] sm:$0xff] %vm1098, %v1049
      %1100 = vst.msk [vmem:[#allocation2 + $0x8] sm:$0xff] %vm1098, %v1050
      %1101 = vst.msk [vmem:[#allocation2 + $0x10] sm:$0xff] %vm1098, %v1051
      %1102 = vst.msk [vmem:[#allocation2 + $0x18] sm:$0xff] %vm1098, %v1052
      %1103 = vst.msk [vmem:[#allocation2 + $0x20] sm:$0xff] %vm1098, %v1053
      %1104 = vst.msk [vmem:[#allocation2 + $0x28] sm:$0xff] %vm1098, %v1054
      %1105 = vst.msk [vmem:[#allocation2 + $0x30] sm:$0xff] %vm1098, %v1055
      %1106 = vst.msk [vmem:[#allocation2 + $0x38] sm:$0xff] %vm1098, %v1056
      %1107 = vst.msk [vmem:[#allocation2 + $0x40] sm:$0xff] %vm1098, %v1057
      %1108 = vst.msk [vmem:[#allocation2 + $0x48] sm:$0xff] %vm1098, %v1058
      %1109 = vst.msk [vmem:[#allocation2 + $0x50] sm:$0xff] %vm1098, %v1059
      %1110 = vst.msk [vmem:[#allocation2 + $0x58] sm:$0xff] %vm1098, %v1060
      %1111 = vst.msk [vmem:[#allocation2 + $0x60] sm:$0xff] %vm1098, %v1061
      %1112 = vst.msk [vmem:[#allocation2 + $0x68] sm:$0xff] %vm1098, %v1062
      %1113 = vst.msk [vmem:[#allocation2 + $0x70] sm:$0xff] %vm1098, %v1063
      %1114 = vst.msk [vmem:[#allocation2 + $0x78] sm:$0xff] %vm1098, %v1064
      %1115 = vst.msk [vmem:[#allocation2 + $0x80] sm:$0xff] %vm1098, %v1065
      %1116 = vst.msk [vmem:[#allocation2 + $0x88] sm:$0xff] %vm1098, %v1066
      %1117 = vst.msk [vmem:[#allocation2 + $0x90] sm:$0xff] %vm1098, %v1067
      %1118 = vst.msk [vmem:[#allocation2 + $0x98] sm:$0xff] %vm1098, %v1068
      %1119 = vst.msk [vmem:[#allocation2 + $0xa0] sm:$0xff] %vm1098, %v1069
      %1120 = vst.msk [vmem:[#allocation2 + $0xa8] sm:$0xff] %vm1098, %v1070
      %1121 = vst.msk [vmem:[#allocation2 + $0xb0] sm:$0xff] %vm1098, %v1071
      %1122 = vst.msk [vmem:[#allocation2 + $0xb8] sm:$0xff] %vm1098, %v1072
      %1123 = vst.msk [vmem:[#allocation2 + $0xc0] sm:$0xff] %vm1098, %v1073
      %1124 = vst.msk [vmem:[#allocation2 + $0xc8] sm:$0xff] %vm1098, %v1074
      %1125 = vst.msk [vmem:[#allocation2 + $0xd0] sm:$0xff] %vm1098, %v1075
      %1126 = vst.msk [vmem:[#allocation2 + $0xd8] sm:$0xff] %vm1098, %v1076
      %1127 = vst.msk [vmem:[#allocation2 + $0xe0] sm:$0xff] %vm1098, %v1077
      %1128 = vst.msk [vmem:[#allocation2 + $0xe8] sm:$0xff] %vm1098, %v1078
      %1129 = vst.msk [vmem:[#allocation2 + $0xf0] sm:$0xff] %vm1098, %v1079
      %1130 = vst.msk [vmem:[#allocation2 + $0xf8] sm:$0xff] %vm1098, %v1080
      %1131 = vst.msk [vmem:[#allocation2 + $0x100] sm:$0xff] %vm1098, %v1081
      %1132 = vst.msk [vmem:[#allocation2 + $0x108] sm:$0xff] %vm1098, %v1082
      %1133 = vst.msk [vmem:[#allocation2 + $0x110] sm:$0xff] %vm1098, %v1083
      %1134 = vst.msk [vmem:[#allocation2 + $0x118] sm:$0xff] %vm1098, %v1084
      %1135 = vst.msk [vmem:[#allocation2 + $0x120] sm:$0xff] %vm1098, %v1085
      %1136 = vst.msk [vmem:[#allocation2 + $0x128] sm:$0xff] %vm1098, %v1086
      %1137 = vst.msk [vmem:[#allocation2 + $0x130] sm:$0xff] %vm1098, %v1087
      %1138 = vst.msk [vmem:[#allocation2 + $0x138] sm:$0xff] %vm1098, %v1088
      %1139 = vst.msk [vmem:[#allocation2 + $0x140] sm:$0xff] %vm1098, %v1089
      %1140 = vst.msk [vmem:[#allocation2 + $0x148] sm:$0xff] %vm1098, %v1090
      %1141 = vst.msk [vmem:[#allocation2 + $0x150] sm:$0xff] %vm1098, %v1091
      %1142 = vst.msk [vmem:[#allocation2 + $0x158] sm:$0xff] %vm1098, %v1092
      %1143 = vst.msk [vmem:[#allocation2 + $0x160] sm:$0xff] %vm1098, %v1093
      %1144 = vst.msk [vmem:[#allocation2 + $0x168] sm:$0xff] %vm1098, %v1094
      %1145 = vst.msk [vmem:[#allocation2 + $0x170] sm:$0xff] %vm1098, %v1095
      %1146 = vst.msk [vmem:[#allocation2 + $0x178] sm:$0xff] %vm1098, %v1096
      %1147 = vst.msk [vmem:[#allocation2 + $0x180] sm:$0xff] %vm1098, %v1097
      %v1148 = vld [vmem:[#allocation2] sm:$0xff]
      %v1149 = vld [vmem:[#allocation2 + $0x8] sm:$0x3f]
      %v1150 = vld [vmem:[#allocation2 + $0xe] sm:$0xff]
      %v1151 = vld [vmem:[#allocation2 + $0x16] sm:$0x3f]
      %v1152 = vmax.f32 %v1148, %v1150
      %v1153 = vmax.f32 %v1149, %v1151
      %v1154 = vpack.c.bf16 %v1152, %v1152
      %v1155 = vpack.c.bf16 %v1153, %v1153
      %vm1156 = vcmask 257024
      %1157 = vst.msk [vmem:[%s170] sm:$0xf] %vm1156, %v1154
      %vm1158 = vcmask 256000
      %1159 = vst.msk [vmem:[%s170 + $0x4] sm:$0x7] %vm1158, %v1155
      %v1160 = vld [vmem:[#allocation2 + $0x1c] sm:$0xff]
      %v1161 = vld [vmem:[#allocation2 + $0x24] sm:$0x3f]
      %v1162 = vld [vmem:[#allocation2 + $0x2a] sm:$0xff]
      %v1163 = vld [vmem:[#allocation2 + $0x32] sm:$0x3f]
      %v1164 = vmax.f32 %v1160, %v1162
      %v1165 = vmax.f32 %v1161, %v1163
      %v1166 = vpack.c.bf16 %v1164, %v1164
      %v1167 = vpack.c.bf16 %v1165, %v1165
      %vm1170 = vcmask 1042432
      %vm1171 = vcmask 1046532
      %vm1172 = vmor %vm1170, %vm1171
      %v1173 = vrot.slane %v1166, 5
      %v1174 = vrot.slane %v1173, 4
      %v1175 = vrot.slane %v1167, 5
      %v1176 = vsel %vm1172, %v1174, %v1175
      %v1177 = vrot.slane %v1175, 4
      %vm1181 = vcmask 257027
      %1182 = vst.msk [vmem:[%s170 + $0x4] sm:$0x8] %vm1181, %v1173
      %1183 = vst.msk [vmem:[%s170 + $0x8] sm:$0xf] %vm1156, %v1176
      %vm1184 = vcmask 254976
      %1185 = vst.msk [vmem:[%s170 + $0xc] sm:$0x3] %vm1184, %v1177
      %v1186 = vld [vmem:[#allocation2 + $0x38] sm:$0xff]
      %v1187 = vld [vmem:[#allocation2 + $0x40] sm:$0x3f]
      %v1188 = vld [vmem:[#allocation2 + $0x46] sm:$0xff]
      %v1189 = vld [vmem:[#allocation2 + $0x4e] sm:$0x3f]
      %v1190 = vmax.f32 %v1186, %v1188
      %v1191 = vmax.f32 %v1187, %v1189
      %v1192 = vpack.c.bf16 %v1190, %v1190
      %v1193 = vpack.c.bf16 %v1191, %v1191
      %vm1196 = vcmask 1041408
      %vm1197 = vcmask 1045508
      %vm1198 = vmor %vm1196, %vm1197
      %v1199 = vrot.slane %v1192, 6
      %v1200 = vrot.slane %v1199, 4
      %v1201 = vrot.slane %v1193, 6
      %v1202 = vsel %vm1198, %v1200, %v1201
      %v1203 = vrot.slane %v1201, 4
      %vm1207 = vcmask 257026
      %1208 = vst.msk [vmem:[%s170 + $0xc] sm:$0xc] %vm1207, %v1199
      %1209 = vst.msk [vmem:[%s170 + $0x10] sm:$0xf] %vm1156, %v1202
      %vm1210 = vcmask 253952
      %1211 = vst.msk [vmem:[%s170 + $0x14] sm:$0x1] %vm1210, %v1203
      %v1212 = vld [vmem:[#allocation2 + $0x54] sm:$0xff]
      %v1213 = vld [vmem:[#allocation2 + $0x5c] sm:$0x3f]
      %v1214 = vld [vmem:[#allocation2 + $0x62] sm:$0xff]
      %v1215 = vld [vmem:[#allocation2 + $0x6a] sm:$0x3f]
      %v1216 = vmax.f32 %v1212, %v1214
      %v1217 = vmax.f32 %v1213, %v1215
      %v1218 = vpack.c.bf16 %v1216, %v1216
      %v1219 = vpack.c.bf16 %v1217, %v1217
      %vm1222 = vcmask 1040384
      %vm1223 = vcmask 1044484
      %vm1224 = vmor %vm1222, %vm1223
      %v1225 = vrot.slane %v1218, 7
      %v1226 = vrot.slane %v1225, 4
      %v1227 = vrot.slane %v1219, 7
      %v1228 = vsel %vm1224, %v1226, %v1227
      %vm1231 = vcmask 257025
      %1232 = vst.msk [vmem:[%s170 + $0x14] sm:$0xe] %vm1231, %v1225
      %1233 = vst.msk [vmem:[%s170 + $0x18] sm:$0xf] %vm1156, %v1228
      %v1234 = vld [vmem:[#allocation2 + $0x70] sm:$0xff]
      %v1235 = vld [vmem:[#allocation2 + $0x78] sm:$0x3f]
      %v1236 = vld [vmem:[#allocation2 + $0x7e] sm:$0xff]
      %v1237 = vld [vmem:[#allocation2 + $0x86] sm:$0x3f]
      %v1238 = vmax.f32 %v1234, %v1236
      %v1239 = vmax.f32 %v1235, %v1237
      %v1240 = vpack.c.bf16 %v1238, %v1238
      %v1241 = vpack.c.bf16 %v1239, %v1239
      %1242 = vst.msk [vmem:[%s170 + $0x1c] sm:$0xf] %vm1156, %v1240
      %1243 = vst.msk [vmem:[%s170 + $0x20] sm:$0x7] %vm1158, %v1241
      %v1244 = vld [vmem:[#allocation2 + $0x8c] sm:$0xff]
      %v1245 = vld [vmem:[#allocation2 + $0x94] sm:$0x3f]
      %v1246 = vld [vmem:[#allocation2 + $0x9a] sm:$0xff]
      %v1247 = vld [vmem:[#allocation2 + $0xa2] sm:$0x3f]
      %v1248 = vmax.f32 %v1244, %v1246
      %v1249 = vmax.f32 %v1245, %v1247
      %v1250 = vpack.c.bf16 %v1248, %v1248
      %v1251 = vpack.c.bf16 %v1249, %v1249
      %v1254 = vrot.slane %v1250, 5
      %v1255 = vrot.slane %v1254, 4
      %v1256 = vrot.slane %v1251, 5
      %v1257 = vsel %vm1172, %v1255, %v1256
      %v1258 = vrot.slane %v1256, 4
      %1262 = vst.msk [vmem:[%s170 + $0x20] sm:$0x8] %vm1181, %v1254
      %1263 = vst.msk [vmem:[%s170 + $0x24] sm:$0xf] %vm1156, %v1257
      %1264 = vst.msk [vmem:[%s170 + $0x28] sm:$0x3] %vm1184, %v1258
      %v1265 = vld [vmem:[#allocation2 + $0xa8] sm:$0xff]
      %v1266 = vld [vmem:[#allocation2 + $0xb0] sm:$0x3f]
      %v1267 = vld [vmem:[#allocation2 + $0xb6] sm:$0xff]
      %v1268 = vld [vmem:[#allocation2 + $0xbe] sm:$0x3f]
      %v1269 = vmax.f32 %v1265, %v1267
      %v1270 = vmax.f32 %v1266, %v1268
      %v1271 = vpack.c.bf16 %v1269, %v1269
      %v1272 = vpack.c.bf16 %v1270, %v1270
      %v1275 = vrot.slane %v1271, 6
      %v1276 = vrot.slane %v1275, 4
      %v1277 = vrot.slane %v1272, 6
      %v1278 = vsel %vm1198, %v1276, %v1277
      %v1279 = vrot.slane %v1277, 4
      %1283 = vst.msk [vmem:[%s170 + $0x28] sm:$0xc] %vm1207, %v1275
      %1284 = vst.msk [vmem:[%s170 + $0x2c] sm:$0xf] %vm1156, %v1278
      %1285 = vst.msk [vmem:[%s170 + $0x30] sm:$0x1] %vm1210, %v1279
      %v1286 = vld [vmem:[#allocation2 + $0xc4] sm:$0xff]
      %v1287 = vld [vmem:[#allocation2 + $0xcc] sm:$0x3f]
      %v1288 = vld [vmem:[#allocation2 + $0xd2] sm:$0xff]
      %v1289 = vld [vmem:[#allocation2 + $0xda] sm:$0x3f]
      %v1290 = vmax.f32 %v1286, %v1288
      %v1291 = vmax.f32 %v1287, %v1289
      %v1292 = vpack.c.bf16 %v1290, %v1290
      %v1293 = vpack.c.bf16 %v1291, %v1291
      %v1296 = vrot.slane %v1292, 7
      %v1297 = vrot.slane %v1296, 4
      %v1298 = vrot.slane %v1293, 7
      %v1299 = vsel %vm1224, %v1297, %v1298
      %1302 = vst.msk [vmem:[%s170 + $0x30] sm:$0xe] %vm1231, %v1296
      %1303 = vst.msk [vmem:[%s170 + $0x34] sm:$0xf] %vm1156, %v1299
      %v1304 = vld [vmem:[#allocation2 + $0xe0] sm:$0xff]
      %v1305 = vld [vmem:[#allocation2 + $0xe8] sm:$0x3f]
      %v1306 = vld [vmem:[#allocation2 + $0xee] sm:$0xff]
      %v1307 = vld [vmem:[#allocation2 + $0xf6] sm:$0x3f]
      %v1308 = vmax.f32 %v1304, %v1306
      %v1309 = vmax.f32 %v1305, %v1307
      %v1310 = vpack.c.bf16 %v1308, %v1308
      %v1311 = vpack.c.bf16 %v1309, %v1309
      %1312 = vst.msk [vmem:[%s170 + $0x38] sm:$0xf] %vm1156, %v1310
      %1313 = vst.msk [vmem:[%s170 + $0x3c] sm:$0x7] %vm1158, %v1311
      %v1314 = vld [vmem:[#allocation2 + $0xfc] sm:$0xff]
      %v1315 = vld [vmem:[#allocation2 + $0x104] sm:$0x3f]
      %v1316 = vld [vmem:[#allocation2 + $0x10a] sm:$0xff]
      %v1317 = vld [vmem:[#allocation2 + $0x112] sm:$0x3f]
      %v1318 = vmax.f32 %v1314, %v1316
      %v1319 = vmax.f32 %v1315, %v1317
      %v1320 = vpack.c.bf16 %v1318, %v1318
      %v1321 = vpack.c.bf16 %v1319, %v1319
      %v1324 = vrot.slane %v1320, 5
      %v1325 = vrot.slane %v1324, 4
      %v1326 = vrot.slane %v1321, 5
      %v1327 = vsel %vm1172, %v1325, %v1326
      %v1328 = vrot.slane %v1326, 4
      %1332 = vst.msk [vmem:[%s170 + $0x3c] sm:$0x8] %vm1181, %v1324
      %1333 = vst.msk [vmem:[%s170 + $0x40] sm:$0xf] %vm1156, %v1327
      %1334 = vst.msk [vmem:[%s170 + $0x44] sm:$0x3] %vm1184, %v1328
      %v1335 = vld [vmem:[#allocation2 + $0x118] sm:$0xff]
      %v1336 = vld [vmem:[#allocation2 + $0x120] sm:$0x3f]
      %v1337 = vld [vmem:[#allocation2 + $0x126] sm:$0xff]
      %v1338 = vld [vmem:[#allocation2 + $0x12e] sm:$0x3f]
      %v1339 = vmax.f32 %v1335, %v1337
      %v1340 = vmax.f32 %v1336, %v1338
      %v1341 = vpack.c.bf16 %v1339, %v1339
      %v1342 = vpack.c.bf16 %v1340, %v1340
      %v1345 = vrot.slane %v1341, 6
      %v1346 = vrot.slane %v1345, 4
      %v1347 = vrot.slane %v1342, 6
      %v1348 = vsel %vm1198, %v1346, %v1347
      %v1349 = vrot.slane %v1347, 4
      %1353 = vst.msk [vmem:[%s170 + $0x44] sm:$0xc] %vm1207, %v1345
      %1354 = vst.msk [vmem:[%s170 + $0x48] sm:$0xf] %vm1156, %v1348
      %1355 = vst.msk [vmem:[%s170 + $0x4c] sm:$0x1] %vm1210, %v1349
      %v1356 = vld [vmem:[#allocation2 + $0x134] sm:$0xff]
      %v1357 = vld [vmem:[#allocation2 + $0x13c] sm:$0x3f]
      %v1358 = vld [vmem:[#allocation2 + $0x142] sm:$0xff]
      %v1359 = vld [vmem:[#allocation2 + $0x14a] sm:$0x3f]
      %v1360 = vmax.f32 %v1356, %v1358
      %v1361 = vmax.f32 %v1357, %v1359
      %v1362 = vpack.c.bf16 %v1360, %v1360
      %v1363 = vpack.c.bf16 %v1361, %v1361
      %v1366 = vrot.slane %v1362, 7
      %v1367 = vrot.slane %v1366, 4
      %v1368 = vrot.slane %v1363, 7
      %v1369 = vsel %vm1224, %v1367, %v1368
      %1372 = vst.msk [vmem:[%s170 + $0x4c] sm:$0xe] %vm1231, %v1366
      %1373 = vst.msk [vmem:[%s170 + $0x50] sm:$0xf] %vm1156, %v1369
      %v1374 = vld [vmem:[#allocation2 + $0x150] sm:$0xff]
      %v1375 = vld [vmem:[#allocation2 + $0x158] sm:$0x3f]
      %v1376 = vld [vmem:[#allocation2 + $0x15e] sm:$0xff]
      %v1377 = vld [vmem:[#allocation2 + $0x166] sm:$0x3f]
      %v1378 = vmax.f32 %v1374, %v1376
      %v1379 = vmax.f32 %v1375, %v1377
      %v1380 = vpack.c.bf16 %v1378, %v1378
      %v1381 = vpack.c.bf16 %v1379, %v1379
      %1382 = vst.msk [vmem:[%s170 + $0x54] sm:$0xf] %vm1156, %v1380
      %1383 = vst.msk [vmem:[%s170 + $0x58] sm:$0x7] %vm1158, %v1381
      %v1384 = vld [vmem:[#allocation2 + $0x16c] sm:$0xff]
      %v1385 = vld [vmem:[#allocation2 + $0x174] sm:$0x3f]
      %v1386 = vld [vmem:[#allocation2 + $0x17a] sm:$0xff]
      %v1387 = vld [vmem:[#allocation2 + $0x182] sm:$0x3f]
      %v1388 = vmax.f32 %v1384, %v1386
      %v1389 = vmax.f32 %v1385, %v1387
      %v1390 = vpack.c.bf16 %v1388, %v1388
      %v1391 = vpack.c.bf16 %v1389, %v1389
      %v1394 = vrot.slane %v1390, 5
      %v1395 = vrot.slane %v1394, 4
      %v1396 = vrot.slane %v1391, 5
      %v1397 = vsel %vm1172, %v1395, %v1396
      %v1398 = vrot.slane %v1396, 4
      %1402 = vst.msk [vmem:[%s170 + $0x58] sm:$0x8] %vm1181, %v1394
      %1403 = vst.msk [vmem:[%s170 + $0x5c] sm:$0xf] %vm1156, %v1397
      %1404 = vst.msk [vmem:[%s170 + $0x60] sm:$0x3] %vm1184, %v1398
      %p1405 = scmp.lt.s32.totalorder %s14, 1
      %s1406 = scalar_select %p1405, %s14, 1
      %s1407 = smul.addr %s1406, 25
      %s1408 = smul.addr %s1407, 4
      %s1409 = scalar_lea.vmem %s3, %s1408
      // Predicated region
      $region33: #{_lambda_.4} parent=31 // pred_check
        %p1410 = pneg %p100
      $region34: #{_lambda_.4} parent=31 // pred_check_branch
        %1412 = sbr.rel (%p1410) target = $region36
      $region35: #{_lambda_.4} parent=31 // pred_region
        _
      $region36: #{_lambda_.4} parent=31 // pred_fallthru
        _
    $region32: #{_lambda_.4} parent=5 // pred_fallthru
      _
    %p1413 = scmp.le.s32.totalorder 2, %s9
    // Predicated region
    $region37: #{_lambda_.4} parent=5 // pred_check
      %p1414 = pneg %p1413
    $region38: #{_lambda_.4} parent=5 // pred_check_branch
      %1416 = sbr.rel (%p1414) target = $region40
    $region39: #{_lambda_.4} parent=5 // pred_region
      %s1417 = ssub.s32 %s9, 2
      // Predicated region
      $region41: #{_lambda_.4} parent=39 // pred_check
        %p1418 = pneg %p106
      $region42: #{_lambda_.4} parent=39 // pred_check_branch
        %1420 = sbr.rel (%p1418) target = $region44
      $region43: #{_lambda_.4} parent=39 // pred_region
        %p1421 = scmp.lt.s32.totalorder %s15, 1
        %s1422 = scalar_select %p1421, %s15, 1
        %s1423 = smul.addr %s1422, 25
        %s1424 = smul.addr %s1423, 4
        %s1425 = scalar_lea.vmem %s3, %s1424
      $region44: #{_lambda_.4} parent=39 // pred_fallthru
        _
    $region40: #{_lambda_.4} parent=5 // pred_fallthru
      _
  $region6: #{_lambda_.4} parent=0 // loop_footer
    %s13 = sadd.s32 1, %s9
  $region7: #{_lambda_.4} parent=0 // loop_footer_branch
    %8 = sbr.rel target = $region3
  $region8: #{_lambda_.4} parent=0 // loop_exit
    _

// kernel: _lambda_.6
$region0: #{_lambda_.6}
  #allocation0 [shape = 'u32[]', space=smem, size = 0x4, offset = 0x4, fixed_abs, tag = 'smem constant byte address 0x4 - core index']
  #allocation1 [shape = 'u32[72,128]{1,0:T(1,128)}', space=vmem, size = 0x9000, scoped, tag = 'internal scratch']
  #allocation2 [shape = 'f32[63,64]{1,0:T(8,128)}', space=vmem, size = 0x8000, scoped, tag = 'scratch operand']
  %s0 = inlined_call_operand.vmem [shape: bf16[2,90,64], index: 0, kind: input, shape index: {}]
  %s1 = inlined_call_operand.vmem [shape: bf16[576,64], index: 1, kind: input, shape index: {}]
  %s2 = inlined_call_operand.vmem [shape: f32[1,64], index: 2, kind: input, shape index: {}]
  %s3 = inlined_call_operand.vmem [shape: bf16[2,63,64], index: 3, kind: output, shape index: {}]
  %s4 = sld [smem:[#allocation0]]
  $region45: #{_lambda_.6} parent=0
    _
  %s6 = ssub.s32 1, %s4
  %s7 = scalar_select 0, %s6, %s4
  loop: start=0, step=1, limit=4
  $region2: #{_lambda_.6} parent=0 // loop_pre_header
    _
  $region3: #{_lambda_.6} parent=0 // loop_header
    %s9 = sphi 0, %s13
    %p10 = scmp.ge.s32.totalorder %s9, 4
    %s19 = sphi 0, %s21
    %s22 = sphi 0, %s19
    %s23 = sphi 0, %s22
    %s39 = sphi 0, %s23
    %s43 = sphi 0, %s43
    %s45 = sphi 0, %s43
    %s46 = sphi 0, %s45
    %s60 = sphi 0, %s46
    %s64 = sphi 0, %s64
    %s66 = sphi 0, %s64
    %s67 = sphi 0, %s66
    %s81 = sphi 0, %s67
    %s87 = sphi 0, %s89
    %s90 = sphi 0, %s87
    %s91 = sphi 0, %s90
    %s107 = sphi 0, %s91
  $region4: #{_lambda_.6} parent=0 // loop_header_branch
    %12 = sbr.rel (%p10) target = $region8
  $region5: #{_lambda_.6} parent=0 // loop_body
    %s14 = ssub.s32 %s9, 1
    %s15 = ssub.s32 %s9, 2
    %s16 = sadd.s32 %s9, 1
    %s17 = ssub.s32 %s9, %s16
    %p18 = scmp.eq.s32.totalorder %s17, 0
    %s20 = sadd.s32 %s19, 1
    %s21 = scalar_select %p18, %s19, %s20
    %p24 = pneg %p18
    %p25 = scmp.eq.s32.totalorder %s9, 1
    %p26 = por %p24, %p25
    %p27 = scmp.ne.s32.totalorder %s19, %s22
    %p28 = scmp.eq.s32.totalorder %s9, 0
    %p29 = por %p27, %p28
    %p30 = scmp.ne.s32.totalorder %s19, %s22
    %p31 = scmp.eq.s32.totalorder %s14, 1
    %p32 = por %p30, %p31
    %p33 = scmp.ne.s32.totalorder %s22, %s23
    %p34 = scmp.eq.s32.totalorder %s14, 0
    %p35 = por %p33, %p34
    %p36 = scmp.ne.s32.totalorder %s22, %s23
    %p37 = scmp.eq.s32.totalorder %s15, 1
    %p38 = por %p36, %p37
    %p40 = scmp.ne.s32.totalorder %s23, %s39
    %p41 = scmp.eq.s32.totalorder %s15, 0
    %p42 = por %p40, %p41
    %s44 = sadd.s32 %s43, 1
    %p47 = scmp.eq.s32.totalorder %s9, 1
    %p48 = scmp.ne.s32.totalorder %s43, %s45
    %p49 = scmp.eq.s32.totalorder %s9, 0
    %p50 = por %p48, %p49
    %p51 = scmp.ne.s32.totalorder %s43, %s45
    %p52 = scmp.eq.s32.totalorder %s14, 1
    %p53 = por %p51, %p52
    %p54 = scmp.ne.s32.totalorder %s45, %s46
    %p55 = scmp.eq.s32.totalorder %s14, 0
    %p56 = por %p54, %p55
    %p57 = scmp.ne.s32.totalorder %s45, %s46
    %p58 = scmp.eq.s32.totalorder %s15, 1
    %p59 = por %p57, %p58
    %p61 = scmp.ne.s32.totalorder %s46, %s60
    %p62 = scmp.eq.s32.totalorder %s15, 0
    %p63 = por %p61, %p62
    %s65 = sadd.s32 %s64, 1
    %p68 = scmp.eq.s32.totalorder %s9, 1
    %p69 = scmp.ne.s32.totalorder %s64, %s66
    %p70 = scmp.eq.s32.totalorder %s9, 0
    %p71 = por %p69, %p70
    %p72 = scmp.ne.s32.totalorder %s64, %s66
    %p73 = scmp.eq.s32.totalorder %s14, 1
    %p74 = por %p72, %p73
    %p75 = scmp.ne.s32.totalorder %s66, %s67
    %p76 = scmp.eq.s32.totalorder %s14, 0
    %p77 = por %p75, %p76
    %p78 = scmp.ne.s32.totalorder %s66, %s67
    %p79 = scmp.eq.s32.totalorder %s15, 1
    %p80 = por %p78, %p79
    %p82 = scmp.ne.s32.totalorder %s67, %s81
    %p83 = scmp.eq.s32.totalorder %s15, 0
    %p84 = por %p82, %p83
    %s85 = ssub.s32 %s9, %s16
    %p86 = scmp.eq.s32.totalorder %s85, 0
    %s88 = sadd.s32 %s87, 1
    %s89 = scalar_select %p86, %s87, %s88
    %p92 = pneg %p86
    %p93 = scmp.eq.s32.totalorder %s9, 1
    %p94 = por %p92, %p93
    %p95 = scmp.ne.s32.totalorder %s87, %s90
    %p96 = scmp.eq.s32.totalorder %s9, 0
    %p97 = por %p95, %p96
    %p98 = scmp.ne.s32.totalorder %s87, %s90
    %p99 = scmp.eq.s32.totalorder %s14, 1
    %p100 = por %p98, %p99
    %p101 = scmp.ne.s32.totalorder %s90, %s91
    %p102 = scmp.eq.s32.totalorder %s14, 0
    %p103 = por %p101, %p102
    %p104 = scmp.ne.s32.totalorder %s90, %s91
    %p105 = scmp.eq.s32.totalorder %s15, 1
    %p106 = por %p104, %p105
    %p108 = scmp.ne.s32.totalorder %s91, %s107
    %p109 = scmp.eq.s32.totalorder %s15, 0
    %p110 = por %p108, %p109
    %p111 = scmp.le.s32.totalorder 1, %s9
    %p112 = scmp.lt.s32.totalorder %s9, 3
    %p113 = pnand %p111, %p112
    %p114 = pneg %p113
    // Predicated region
    $region9: #{_lambda_.6} parent=5 // pred_check
      _
    $region10: #{_lambda_.6} parent=5 // pred_check_branch
      %116 = sbr.rel (%p113) target = $region12
    $region11: #{_lambda_.6} parent=5 // pred_region
      %s117 = ssub.s32 %s9, 1
      // Predicated region
      $region13: #{_lambda_.6} parent=11 // pred_check
        %p118 = pneg %p56
      $region14: #{_lambda_.6} parent=11 // pred_check_branch
        %120 = sbr.rel (%p118) target = $region16
      $region15: #{_lambda_.6} parent=11 // pred_region
        _
      $region16: #{_lambda_.6} parent=11 // pred_fallthru
        _
      // Predicated region
      $region17: #{_lambda_.6} parent=11 // pred_check
        %p121 = pneg %p77
      $region18: #{_lambda_.6} parent=11 // pred_check_branch
        %123 = sbr.rel (%p121) target = $region20
      $region19: #{_lambda_.6} parent=11 // pred_region
        _
      $region20: #{_lambda_.6} parent=11 // pred_fallthru
        _
    $region12: #{_lambda_.6} parent=5 // pred_fallthru
      _
    %p124 = scmp.lt.s32.totalorder %s9, 2
    // Predicated region
    $region21: #{_lambda_.6} parent=5 // pred_check
      %p125 = pneg %p124
    $region22: #{_lambda_.6} parent=5 // pred_check_branch
      %127 = sbr.rel (%p125) target = $region24
    $region23: #{_lambda_.6} parent=5 // pred_region
      // Predicated region
      $region25: #{_lambda_.6} parent=23 // pred_check
        %p128 = pneg %p29
      $region26: #{_lambda_.6} parent=23 // pred_check_branch
        %130 = sbr.rel (%p128) target = $region28
      $region27: #{_lambda_.6} parent=23 // pred_region
        %p131 = scmp.lt.s32.totalorder %s9, 1
        %s132 = scalar_select %p131, %s9, 1
        %s133 = smul.addr %s132, 12
        %s134 = smul.addr %s133, 4
        %s135 = scalar_lea.vmem %s0, %s134
      $region28: #{_lambda_.6} parent=23 // pred_fallthru
        _
    $region24: #{_lambda_.6} parent=5 // pred_fallthru
      _
    %p136 = scmp.le.s32.totalorder 1, %s9
    %p137 = scmp.lt.s32.totalorder %s9, 3
    %p138 = pnand %p136, %p137
    %p139 = pneg %p138
    // Predicated region
    $region29: #{_lambda_.6} parent=5 // pred_check
      _
    $region30: #{_lambda_.6} parent=5 // pred_check_branch
      %141 = sbr.rel (%p138) target = $region32
    $region31: #{_lambda_.6} parent=5 // pred_region
      %s142 = ssub.s32 %s9, 1
      %p143 = scmp.lt.s32.totalorder %s14, 1
      %s144 = scalar_select %p143, %s14, 1
      %s145 = smul.addr %s144, 12
      %s146 = smul.addr %s145, 4
      %s147 = scalar_lea.vmem %s0, %s146
      %p148 = pneg %p35
      %p149 = pneg %p32
      %p150 = pneg %p56
      %p151 = pneg %p53
      %p152 = pneg %p77
      %p153 = pneg %p74
      %p154 = pneg %p103
      %p155 = pneg %p100
      %p156 = scmp.lt.s32.totalorder %s14, 1
      %s157 = scalar_select %p156, %s14, 1
      %s158 = smul.addr %s157, 8
      %s159 = smul.addr %s158, 4
      %s160 = scalar_lea.vmem %s3, %s159
      %p161 = scmp.lt.s32.totalorder %s14, 1
      %s162 = scalar_select %p161, %s14, 1
      %s163 = smul.addr %s162, 12
      %s164 = smul.addr %s163, 4
      %s165 = scalar_lea.vmem %s0, %s164
      %p166 = scmp.lt.s32.totalorder %s14, 1
      %s167 = scalar_select %p166, %s14, 1
      %s168 = smul.addr %s167, 8
      %s169 = smul.addr %s168, 4
      %s170 = scalar_lea.vmem %s3, %s169
      %v172 = vld [vmem:[%s165] sm:$0xf]
      %v173 = vld [vmem:[%s165 + $0x4] sm:$0xf]
      %v174 = vld [vmem:[%s165 + $0x8] sm:$0xf]
      %v175 = vld [vmem:[%s165 + $0xc] sm:$0xf]
      %v176 = vld [vmem:[%s165 + $0x10] sm:$0xf]
      %v177 = vld [vmem:[%s165 + $0x14] sm:$0xf]
      %v178 = vld [vmem:[%s165 + $0x18] sm:$0xf]
      %v179 = vld [vmem:[%s165 + $0x1c] sm:$0xf]
      %v180 = vld [vmem:[%s1] sm:$0xf]
      %v181 = vld [vmem:[%s1 + $0x4] sm:$0xf]
      %v182 = vld [vmem:[%s1 + $0x8] sm:$0xf]
      %v183 = vld [vmem:[%s1 + $0xc] sm:$0xf]
      %v184 = vld [vmem:[%s1 + $0x10] sm:$0xf]
      %v185 = vld [vmem:[%s1 + $0x14] sm:$0xf]
      %v186 = vld [vmem:[%s1 + $0x18] sm:$0xf]
      %v187 = vld [vmem:[%s1 + $0x1c] sm:$0xf]
      %v188 = vld [vmem:[%s1 + $0x20] sm:$0xf]
      %v189 = vld [vmem:[%s1 + $0x24] sm:$0xf]
      %v190 = vld [vmem:[%s1 + $0x28] sm:$0xf]
      %v191 = vld [vmem:[%s1 + $0x2c] sm:$0xf]
      %v192 = vld [vmem:[%s1 + $0x30] sm:$0xf]
      %v193 = vld [vmem:[%s1 + $0x34] sm:$0xf]
      %v194 = vld [vmem:[%s1 + $0x38] sm:$0xf]
      %v195 = vld [vmem:[%s1 + $0x3c] sm:$0xf]
      %v204 = vunpack.c.l.b16 %v172
      %v205 = vunpack.c.l.b16 %v173
      %v206 = vunpack.c.l.b16 %v174
      %v207 = vunpack.c.l.b16 %v175
      %v208 = vunpack.c.l.b16 %v176
      %v209 = vunpack.c.l.b16 %v177
      %v210 = vunpack.c.l.b16 %v178
      %v211 = vunpack.c.l.b16 %v179
      %v212 = vpack.c.b16 %v205, %v204
      %v213 = vpack.c.b16 %v207, %v206
      %v214 = vpack.c.b16 %v209, %v208
      %v215 = vpack.c.b16 %v211, %v210
      %vm216 = vsmask.f32 7424
      %v218 = vshrl.u32 %v212, 16
      %v220 = vshll.u32 %v212, 16
      %v222 = vrot.slane %v220, 1
      %v223 = vor.u32 %v218, %v222
      %v225 = vshll.u32 %v213, 16
      %v227 = vrot.slane %v225, 1
      %v228 = vsel %vm216, %v223, %v227
      %v229 = vshrl.u32 %v213, 16
      %v231 = vor.u32 %v229, %v227
      %v233 = vshll.u32 %v214, 16
      %v235 = vrot.slane %v233, 1
      %v236 = vsel %vm216, %v231, %v235
      %v237 = vshrl.u32 %v214, 16
      %v239 = vor.u32 %v237, %v235
      %v241 = vshll.u32 %v215, 16
      %v243 = vrot.slane %v241, 1
      %v244 = vsel %vm216, %v239, %v243
      %v245 = vshrl.u32 %v215, 16
      %v247 = vor.u32 %v245, %v243
      %v256 = vunpack.c.l.b16 %v188
      %v257 = vunpack.c.l.b16 %v189
      %v258 = vunpack.c.l.b16 %v190
      %v259 = vunpack.c.l.b16 %v191
      %v260 = vunpack.c.l.b16 %v192
      %v261 = vunpack.c.l.b16 %v193
      %v262 = vunpack.c.l.b16 %v194
      %v263 = vunpack.c.l.b16 %v195
      %v264 = vpack.c.b16 %v257, %v256
      %v265 = vpack.c.b16 %v259, %v258
      %v266 = vpack.c.b16 %v261, %v260
      %v267 = vpack.c.b16 %v263, %v262
      %vm272 = vcmask 523264
      %v274 = vsel %vm272, %v228, 0
      %v277 = vsel %vm272, %v236, 0
      %v280 = vsel %vm272, %v244, 0
      %v283 = vsel %vm272, %v247, 0
      %285 = vmatpush.bf16.msra.mxu0 0
      %286 = vmatpush.bf16.msra.mxu0 0
      %287 = vmatpush.bf16.msra.mxu0 0
      %288 = vmatpush.bf16.msra.mxu0 0
      %289 = vmatpush.bf16.msra.mxu0 %v267
      %290 = vmatpush.bf16.msra.mxu0 %v266
      %291 = vmatpush.bf16.msra.mxu0 %v265
      %292 = vmatpush.bf16.msra.mxu0 %v264
      %293 = vmatmul.bf16.gmra.mxu0 %v274
      %v294 = vpop.f32.mrf.mxu0
      %v295 = vadd.f32 0.0, %v294
      %v296 = vpop.f32.mrf.mxu0
      %v297 = vadd.f32 0.0, %v296
      %298 = vmatmul.bf16.gmra.mxu0 %v277
      %v299 = vpop.f32.mrf.mxu0
      %v300 = vadd.f32 0.0, %v299
      %v301 = vpop.f32.mrf.mxu0
      %v302 = vadd.f32 0.0, %v301
      %303 = vmatmul.bf16.gmra.mxu0 %v280
      %v304 = vpop.f32.mrf.mxu0
      %v305 = vadd.f32 0.0, %v304
      %v306 = vpop.f32.mrf.mxu0
      %v307 = vadd.f32 0.0, %v306
      %308 = vmatmul.bf16.gmra.mxu0 %v283
      %v309 = vpop.f32.mrf.mxu0
      %v310 = vadd.f32 0.0, %v309
      %v311 = vpop.f32.mrf.mxu0
      %v312 = vadd.f32 0.0, %v311
      %313 = vdwg.mxu0
      %v322 = vunpack.c.l.b16 %v180
      %v323 = vunpack.c.l.b16 %v181
      %v324 = vunpack.c.l.b16 %v182
      %v325 = vunpack.c.l.b16 %v183
      %v326 = vunpack.c.l.b16 %v184
      %v327 = vunpack.c.l.b16 %v185
      %v328 = vunpack.c.l.b16 %v186
      %v329 = vunpack.c.l.b16 %v187
      %v330 = vpack.c.b16 %v323, %v322
      %v331 = vpack.c.b16 %v325, %v324
      %v332 = vpack.c.b16 %v327, %v326
      %v333 = vpack.c.b16 %v329, %v328
      %v338 = vsel %vm272, %v212, 0
      %v340 = vsel %vm272, %v213, 0
      %v342 = vsel %vm272, %v214, 0
      %v344 = vsel %vm272, %v215, 0
      %346 = vmatpush.bf16.msra.mxu0 0
      %347 = vmatpush.bf16.msra.mxu0 0
      %348 = vmatpush.bf16.msra.mxu0 0
      %349 = vmatpush.bf16.msra.mxu0 0
      %350 = vmatpush.bf16.msra.mxu0 %v333
      %351 = vmatpush.bf16.msra.mxu0 %v332
      %352 = vmatpush.bf16.msra.mxu0 %v331
      %353 = vmatpush.bf16.msra.mxu0 %v330
      %354 = vmatmul.bf16.gmra.mxu0 %v338
      %v355 = vpop.f32.mrf.mxu0
      %v356 = vadd.f32 %v295, %v355
      %v357 = vpop.f32.mrf.mxu0
      %v358 = vadd.f32 %v297, %v357
      %359 = vmatmul.bf16.gmra.mxu0 %v340
      %v360 = vpop.f32.mrf.mxu0
      %v361 = vadd.f32 %v300, %v360
      %v362 = vpop.f32.mrf.mxu0
      %v363 = vadd.f32 %v302, %v362
      %364 = vmatmul.bf16.gmra.mxu0 %v342
      %v365 = vpop.f32.mrf.mxu0
      %v366 = vadd.f32 %v305, %v365
      %v367 = vpop.f32.mrf.mxu0
      %v368 = vadd.f32 %v307, %v367
      %369 = vmatmul.bf16.gmra.mxu0 %v344
      %v370 = vpop.f32.mrf.mxu0
      %v371 = vadd.f32 %v310, %v370
      %v372 = vpop.f32.mrf.mxu0
      %v373 = vadd.f32 %v312, %v372
      %374 = vdwg.mxu0
      %v375 = vld [vmem:[%s165] sm:$0xe]
      %v376 = vld [vmem:[%s165 + $0x4] sm:$0xf]
      %v377 = vld [vmem:[%s165 + $0x8] sm:$0xf]
      %v378 = vld [vmem:[%s165 + $0xc] sm:$0xf]
      %v379 = vld [vmem:[%s165 + $0x10] sm:$0xf]
      %v380 = vld [vmem:[%s165 + $0x14] sm:$0xf]
      %v381 = vld [vmem:[%s165 + $0x18] sm:$0xf]
      %v382 = vld [vmem:[%s165 + $0x1c] sm:$0xf]
      %v383 = vld [vmem:[%s165 + $0x20] sm:$0x1]
      %v384 = vld [vmem:[%s1 + $0x40] sm:$0xf]
      %v385 = vld [vmem:[%s1 + $0x44] sm:$0xf]
      %v386 = vld [vmem:[%s1 + $0x48] sm:$0xf]
      %v387 = vld [vmem:[%s1 + $0x4c] sm:$0xf]
      %v388 = vld [vmem:[%s1 + $0x50] sm:$0xf]
      %v389 = vld [vmem:[%s1 + $0x54] sm:$0xf]
      %v390 = vld [vmem:[%s1 + $0x58] sm:$0xf]
      %v391 = vld [vmem:[%s1 + $0x5c] sm:$0xf]
      %v401 = vunpack.c.l.b16 %v375
      %v402 = vunpack.c.l.b16 %v376
      %v403 = vunpack.c.l.b16 %v377
      %v404 = vunpack.c.l.b16 %v378
      %v405 = vunpack.c.l.b16 %v379
      %v406 = vunpack.c.l.b16 %v380
      %v407 = vunpack.c.l.b16 %v381
      %v408 = vunpack.c.l.b16 %v382
      %v409 = vunpack.c.l.b16 %v383
      %v410 = vpack.c.b16 %v402, %v401
      %v411 = vpack.c.b16 %v404, %v403
      %v412 = vpack.c.b16 %v406, %v405
      %v413 = vpack.c.b16 %v408, %v407
      %v414 = vpack.c.b16 %v409, %v409
      %vm415 = vcmask 1046528
      %v416 = vrot.slane %v410, 1
      %v417 = vrot.slane %v411, 1
      %v418 = vsel %vm415, %v416, %v417
      %v419 = vrot.slane %v412, 1
      %v420 = vsel %vm415, %v417, %v419
      %v421 = vrot.slane %v413, 1
      %v422 = vsel %vm415, %v419, %v421
      %v423 = vrot.slane %v414, 1
      %v424 = vsel %vm415, %v421, %v423
      %v433 = vunpack.c.l.b16 %v384
      %v434 = vunpack.c.l.b16 %v385
      %v435 = vunpack.c.l.b16 %v386
      %v436 = vunpack.c.l.b16 %v387
      %v437 = vunpack.c.l.b16 %v388
      %v438 = vunpack.c.l.b16 %v389
      %v439 = vunpack.c.l.b16 %v390
      %v440 = vunpack.c.l.b16 %v391
      %v441 = vpack.c.b16 %v434, %v433
      %v442 = vpack.c.b16 %v436, %v435
      %v443 = vpack.c.b16 %v438, %v437
      %v444 = vpack.c.b16 %v440, %v439
      %v450 = vsel %vm272, %v418, 0
      %v453 = vsel %vm272, %v420, 0
      %v456 = vsel %vm272, %v422, 0
      %v459 = vsel %vm272, %v424, 0
      %461 = vmatpush.bf16.msra.mxu0 0
      %462 = vmatpush.bf16.msra.mxu0 0
      %463 = vmatpush.bf16.msra.mxu0 0
      %464 = vmatpush.bf16.msra.mxu0 0
      %465 = vmatpush.bf16.msra.mxu0 %v444
      %466 = vmatpush.bf16.msra.mxu0 %v443
      %467 = vmatpush.bf16.msra.mxu0 %v442
      %468 = vmatpush.bf16.msra.mxu0 %v441
      %469 = vmatmul.bf16.gmra.mxu0 %v450
      %v470 = vpop.f32.mrf.mxu0
      %v471 = vadd.f32 0.0, %v470
      %v472 = vpop.f32.mrf.mxu0
      %v473 = vadd.f32 0.0, %v472
      %474 = vmatmul.bf16.gmra.mxu0 %v453
      %v475 = vpop.f32.mrf.mxu0
      %v476 = vadd.f32 0.0, %v475
      %v477 = vpop.f32.mrf.mxu0
      %v478 = vadd.f32 0.0, %v477
      %479 = vmatmul.bf16.gmra.mxu0 %v456
      %v480 = vpop.f32.mrf.mxu0
      %v481 = vadd.f32 0.0, %v480
      %v482 = vpop.f32.mrf.mxu0
      %v483 = vadd.f32 0.0, %v482
      %484 = vmatmul.bf16.gmra.mxu0 %v459
      %v485 = vpop.f32.mrf.mxu0
      %v486 = vadd.f32 0.0, %v485
      %v487 = vpop.f32.mrf.mxu0
      %v488 = vadd.f32 0.0, %v487
      %489 = vdwg.mxu0
      %v490 = vadd.f32 %v356, %v471
      %v491 = vadd.f32 %v358, %v473
      %v492 = vadd.f32 %v361, %v476
      %v493 = vadd.f32 %v363, %v478
      %v494 = vadd.f32 %v366, %v481
      %v495 = vadd.f32 %v368, %v483
      %v496 = vadd.f32 %v371, %v486
      %v497 = vadd.f32 %v373, %v488
      %v498 = vld [vmem:[%s165 + $0x20] sm:$0xf]
      %v499 = vld [vmem:[%s1 + $0x60] sm:$0xf]
      %v500 = vld [vmem:[%s1 + $0x64] sm:$0xf]
      %v501 = vld [vmem:[%s1 + $0x68] sm:$0xf]
      %v502 = vld [vmem:[%s1 + $0x6c] sm:$0xf]
      %v503 = vld [vmem:[%s1 + $0x70] sm:$0xf]
      %v504 = vld [vmem:[%s1 + $0x74] sm:$0xf]
      %v505 = vld [vmem:[%s1 + $0x78] sm:$0xf]
      %v506 = vld [vmem:[%s1 + $0x7c] sm:$0xf]
      %v508 = vunpack.c.l.b16 %v498
      %v509 = vpack.c.b16 %v403, %v402
      %v510 = vpack.c.b16 %v405, %v404
      %v511 = vpack.c.b16 %v407, %v406
      %v512 = vpack.c.b16 %v508, %v408
      %v514 = vshrl.u32 %v509, 16
      %v516 = vshll.u32 %v509, 16
      %v518 = vrot.slane %v516, 1
      %v519 = vor.u32 %v514, %v518
      %v521 = vshll.u32 %v510, 16
      %v523 = vrot.slane %v521, 1
      %v524 = vsel %vm216, %v519, %v523
      %v525 = vshrl.u32 %v510, 16
      %v527 = vor.u32 %v525, %v523
      %v529 = vshll.u32 %v511, 16
      %v531 = vrot.slane %v529, 1
      %v532 = vsel %vm216, %v527, %v531
      %v533 = vshrl.u32 %v511, 16
      %v535 = vor.u32 %v533, %v531
      %v537 = vshll.u32 %v512, 16
      %v539 = vrot.slane %v537, 1
      %v540 = vsel %vm216, %v535, %v539
      %v541 = vshrl.u32 %v512, 16
      %v543 = vor.u32 %v541, %v539
      %v552 = vunpack.c.l.b16 %v499
      %v553 = vunpack.c.l.b16 %v500
      %v554 = vunpack.c.l.b16 %v501
      %v555 = vunpack.c.l.b16 %v502
      %v556 = vunpack.c.l.b16 %v503
      %v557 = vunpack.c.l.b16 %v504
      %v558 = vunpack.c.l.b16 %v505
      %v559 = vunpack.c.l.b16 %v506
      %v560 = vpack.c.b16 %v553, %v552
      %v561 = vpack.c.b16 %v555, %v554
      %v562 = vpack.c.b16 %v557, %v556
      %v563 = vpack.c.b16 %v559, %v558
      %v569 = vsel %vm272, %v524, 0
      %v572 = vsel %vm272, %v532, 0
      %v575 = vsel %vm272, %v540, 0
      %v578 = vsel %vm272, %v543, 0
      %580 = vmatpush.bf16.msra.mxu0 0
      %581 = vmatpush.bf16.msra.mxu0 0
      %582 = vmatpush.bf16.msra.mxu0 0
      %583 = vmatpush.bf16.msra.mxu0 0
      %584 = vmatpush.bf16.msra.mxu0 %v563
      %585 = vmatpush.bf16.msra.mxu0 %v562
      %586 = vmatpush.bf16.msra.mxu0 %v561
      %587 = vmatpush.bf16.msra.mxu0 %v560
      %588 = vmatmul.bf16.gmra.mxu0 %v569
      %v589 = vpop.f32.mrf.mxu0
      %v590 = vadd.f32 0.0, %v589
      %v591 = vpop.f32.mrf.mxu0
      %v592 = vadd.f32 0.0, %v591
      %593 = vmatmul.bf16.gmra.mxu0 %v572
      %v594 = vpop.f32.mrf.mxu0
      %v595 = vadd.f32 0.0, %v594
      %v596 = vpop.f32.mrf.mxu0
      %v597 = vadd.f32 0.0, %v596
      %598 = vmatmul.bf16.gmra.mxu0 %v575
      %v599 = vpop.f32.mrf.mxu0
      %v600 = vadd.f32 0.0, %v599
      %v601 = vpop.f32.mrf.mxu0
      %v602 = vadd.f32 0.0, %v601
      %603 = vmatmul.bf16.gmra.mxu0 %v578
      %v604 = vpop.f32.mrf.mxu0
      %v605 = vadd.f32 0.0, %v604
      %v606 = vpop.f32.mrf.mxu0
      %v607 = vadd.f32 0.0, %v606
      %608 = vdwg.mxu0
      %v609 = vadd.f32 %v490, %v590
      %v610 = vadd.f32 %v491, %v592
      %v611 = vadd.f32 %v492, %v595
      %v612 = vadd.f32 %v493, %v597
      %v613 = vadd.f32 %v494, %v600
      %v614 = vadd.f32 %v495, %v602
      %v615 = vadd.f32 %v496, %v605
      %v616 = vadd.f32 %v497, %v607
      %v617 = vld [vmem:[%s165 + $0x4] sm:$0xe]
      %v618 = vld [vmem:[%s165 + $0x8] sm:$0xf]
      %v619 = vld [vmem:[%s165 + $0xc] sm:$0xf]
      %v620 = vld [vmem:[%s165 + $0x10] sm:$0xf]
      %v621 = vld [vmem:[%s165 + $0x14] sm:$0xf]
      %v622 = vld [vmem:[%s165 + $0x18] sm:$0xf]
      %v623 = vld [vmem:[%s165 + $0x1c] sm:$0xf]
      %v624 = vld [vmem:[%s165 + $0x20] sm:$0xf]
      %v625 = vld [vmem:[%s165 + $0x24] sm:$0x1]
      %v626 = vld [vmem:[%s1 + $0x80] sm:$0xf]
      %v627 = vld [vmem:[%s1 + $0x84] sm:$0xf]
      %v628 = vld [vmem:[%s1 + $0x88] sm:$0xf]
      %v629 = vld [vmem:[%s1 + $0x8c] sm:$0xf]
      %v630 = vld [vmem:[%s1 + $0x90] sm:$0xf]
      %v631 = vld [vmem:[%s1 + $0x94] sm:$0xf]
      %v632 = vld [vmem:[%s1 + $0x98] sm:$0xf]
      %v633 = vld [vmem:[%s1 + $0x9c] sm:$0xf]
      %v643 = vunpack.c.l.b16 %v617
      %v644 = vunpack.c.l.b16 %v618
      %v645 = vunpack.c.l.b16 %v619
      %v646 = vunpack.c.l.b16 %v620
      %v647 = vunpack.c.l.b16 %v621
      %v648 = vunpack.c.l.b16 %v622
      %v649 = vunpack.c.l.b16 %v623
      %v650 = vunpack.c.l.b16 %v624
      %v651 = vunpack.c.l.b16 %v625
      %v652 = vpack.c.b16 %v644, %v643
      %v653 = vpack.c.b16 %v646, %v645
      %v654 = vpack.c.b16 %v648, %v647
      %v655 = vpack.c.b16 %v650, %v649
      %v656 = vpack.c.b16 %v651, %v651
      %v657 = vrot.slane %v652, 1
      %v658 = vrot.slane %v653, 1
      %v659 = vsel %vm415, %v657, %v658
      %v660 = vrot.slane %v654, 1
      %v661 = vsel %vm415, %v658, %v660
      %v662 = vrot.slane %v655, 1
      %v663 = vsel %vm415, %v660, %v662
      %v664 = vrot.slane %v656, 1
      %v665 = vsel %vm415, %v662, %v664
      %v674 = vunpack.c.l.b16 %v626
      %v675 = vunpack.c.l.b16 %v627
      %v676 = vunpack.c.l.b16 %v628
      %v677 = vunpack.c.l.b16 %v629
      %v678 = vunpack.c.l.b16 %v630
      %v679 = vunpack.c.l.b16 %v631
      %v680 = vunpack.c.l.b16 %v632
      %v681 = vunpack.c.l.b16 %v633
      %v682 = vpack.c.b16 %v675, %v674
      %v683 = vpack.c.b16 %v677, %v676
      %v684 = vpack.c.b16 %v679, %v678
      %v685 = vpack.c.b16 %v681, %v680
      %v691 = vsel %vm272, %v659, 0
      %v694 = vsel %vm272, %v661, 0
      %v697 = vsel %vm272, %v663, 0
      %v700 = vsel %vm272, %v665, 0
      %702 = vmatpush.bf16.msra.mxu0 0
      %703 = vmatpush.bf16.msra.mxu0 0
      %704 = vmatpush.bf16.msra.mxu0 0
      %705 = vmatpush.bf16.msra.mxu0 0
      %706 = vmatpush.bf16.msra.mxu0 %v685
      %707 = vmatpush.bf16.msra.mxu0 %v684
      %708 = vmatpush.bf16.msra.mxu0 %v683
      %709 = vmatpush.bf16.msra.mxu0 %v682
      %710 = vmatmul.bf16.gmra.mxu0 %v691
      %v711 = vpop.f32.mrf.mxu0
      %v712 = vadd.f32 0.0, %v711
      %v713 = vpop.f32.mrf.mxu0
      %v714 = vadd.f32 0.0, %v713
      %715 = vmatmul.bf16.gmra.mxu0 %v694
      %v716 = vpop.f32.mrf.mxu0
      %v717 = vadd.f32 0.0, %v716
      %v718 = vpop.f32.mrf.mxu0
      %v719 = vadd.f32 0.0, %v718
      %720 = vmatmul.bf16.gmra.mxu0 %v697
      %v721 = vpop.f32.mrf.mxu0
      %v722 = vadd.f32 0.0, %v721
      %v723 = vpop.f32.mrf.mxu0
      %v724 = vadd.f32 0.0, %v723
      %725 = vmatmul.bf16.gmra.mxu0 %v700
      %v726 = vpop.f32.mrf.mxu0
      %v727 = vadd.f32 0.0, %v726
      %v728 = vpop.f32.mrf.mxu0
      %v729 = vadd.f32 0.0, %v728
      %730 = vdwg.mxu0
      %v731 = vadd.f32 %v609, %v712
      %v732 = vadd.f32 %v610, %v714
      %v733 = vadd.f32 %v611, %v717
      %v734 = vadd.f32 %v612, %v719
      %v735 = vadd.f32 %v613, %v722
      %v736 = vadd.f32 %v614, %v724
      %v737 = vadd.f32 %v615, %v727
      %v738 = vadd.f32 %v616, %v729
      %v739 = vld [vmem:[%s1 + $0xa0] sm:$0xf]
      %v740 = vld [vmem:[%s1 + $0xa4] sm:$0xf]
      %v741 = vld [vmem:[%s1 + $0xa8] sm:$0xf]
      %v742 = vld [vmem:[%s1 + $0xac] sm:$0xf]
      %v743 = vld [vmem:[%s1 + $0xb0] sm:$0xf]
      %v744 = vld [vmem:[%s1 + $0xb4] sm:$0xf]
      %v745 = vld [vmem:[%s1 + $0xb8] sm:$0xf]
      %v746 = vld [vmem:[%s1 + $0xbc] sm:$0xf]
      %vm747 = vsmask.f32 6400
      %v749 = vshrl.u32 %v652, 16
      %v751 = vrot.slane %v749, 1
      %v752 = vshll.u32 %v652, 16
      %v754 = vrot.slane %v752, 2
      %v755 = vor.u32 %v751, %v754
      %v757 = vshrl.u32 %v653, 16
      %v759 = vrot.slane %v757, 1
      %v760 = vshll.u32 %v653, 16
      %v762 = vrot.slane %v760, 2
      %v763 = vor.u32 %v759, %v762
      %v764 = vsel %vm747, %v755, %v763
      %v766 = vshrl.u32 %v654, 16
      %v768 = vrot.slane %v766, 1
      %v769 = vshll.u32 %v654, 16
      %v771 = vrot.slane %v769, 2
      %v772 = vor.u32 %v768, %v771
      %v773 = vsel %vm747, %v763, %v772
      %v775 = vshrl.u32 %v655, 16
      %v777 = vrot.slane %v775, 1
      %v778 = vshll.u32 %v655, 16
      %v780 = vrot.slane %v778, 2
      %v781 = vor.u32 %v777, %v780
      %v782 = vsel %vm747, %v772, %v781
      %v784 = vshrl.u32 %v656, 16
      %v786 = vrot.slane %v784, 1
      %v787 = vshll.u32 %v656, 16
      %v789 = vrot.slane %v787, 2
      %v790 = vor.u32 %v786, %v789
      %v791 = vsel %vm747, %v781, %v790
      %v800 = vunpack.c.l.b16 %v739
      %v801 = vunpack.c.l.b16 %v740
      %v802 = vunpack.c.l.b16 %v741
      %v803 = vunpack.c.l.b16 %v742
      %v804 = vunpack.c.l.b16 %v743
      %v805 = vunpack.c.l.b16 %v744
      %v806 = vunpack.c.l.b16 %v745
      %v807 = vunpack.c.l.b16 %v746
      %v808 = vpack.c.b16 %v801, %v800
      %v809 = vpack.c.b16 %v803, %v802
      %v810 = vpack.c.b16 %v805, %v804
      %v811 = vpack.c.b16 %v807, %v806
      %v817 = vsel %vm272, %v764, 0
      %v820 = vsel %vm272, %v773, 0
      %v823 = vsel %vm272, %v782, 0
      %v826 = vsel %vm272, %v791, 0
      %828 = vmatpush.bf16.msra.mxu0 0
      %829 = vmatpush.bf16.msra.mxu0 0
      %830 = vmatpush.bf16.msra.mxu0 0
      %831 = vmatpush.bf16.msra.mxu0 0
      %832 = vmatpush.bf16.msra.mxu0 %v811
      %833 = vmatpush.bf16.msra.mxu0 %v810
      %834 = vmatpush.bf16.msra.mxu0 %v809
      %835 = vmatpush.bf16.msra.mxu0 %v808
      %836 = vmatmul.bf16.gmra.mxu0 %v817
      %v837 = vpop.f32.mrf.mxu0
      %v838 = vadd.f32 0.0, %v837
      %v839 = vpop.f32.mrf.mxu0
      %v840 = vadd.f32 0.0, %v839
      %841 = vmatmul.bf16.gmra.mxu0 %v820
      %v842 = vpop.f32.mrf.mxu0
      %v843 = vadd.f32 0.0, %v842
      %v844 = vpop.f32.mrf.mxu0
      %v845 = vadd.f32 0.0, %v844
      %846 = vmatmul.bf16.gmra.mxu0 %v823
      %v847 = vpop.f32.mrf.mxu0
      %v848 = vadd.f32 0.0, %v847
      %v849 = vpop.f32.mrf.mxu0
      %v850 = vadd.f32 0.0, %v849
      %851 = vmatmul.bf16.gmra.mxu0 %v826
      %v852 = vpop.f32.mrf.mxu0
      %v853 = vadd.f32 0.0, %v852
      %v854 = vpop.f32.mrf.mxu0
      %v855 = vadd.f32 0.0, %v854
      %856 = vdwg.mxu0
      %v857 = vadd.f32 %v731, %v838
      %v858 = vadd.f32 %v732, %v840
      %v859 = vadd.f32 %v733, %v843
      %v860 = vadd.f32 %v734, %v845
      %v861 = vadd.f32 %v735, %v848
      %v862 = vadd.f32 %v736, %v850
      %v863 = vadd.f32 %v737, %v853
      %v864 = vadd.f32 %v738, %v855
      %v865 = vld [vmem:[%s165 + $0x8] sm:$0xe]
      %v866 = vld [vmem:[%s165 + $0xc] sm:$0xf]
      %v867 = vld [vmem:[%s165 + $0x10] sm:$0xf]
      %v868 = vld [vmem:[%s165 + $0x14] sm:$0xf]
      %v869 = vld [vmem:[%s165 + $0x18] sm:$0xf]
      %v870 = vld [vmem:[%s165 + $0x1c] sm:$0xf]
      %v871 = vld [vmem:[%s165 + $0x20] sm:$0xf]
      %v872 = vld [vmem:[%s165 + $0x24] sm:$0xf]
      %v873 = vld [vmem:[%s165 + $0x28] sm:$0x1]
      %v874 = vld [vmem:[%s1 + $0xc0] sm:$0xf]
      %v875 = vld [vmem:[%s1 + $0xc4] sm:$0xf]
      %v876 = vld [vmem:[%s1 + $0xc8] sm:$0xf]
      %v877 = vld [vmem:[%s1 + $0xcc] sm:$0xf]
      %v878 = vld [vmem:[%s1 + $0xd0] sm:$0xf]
      %v879 = vld [vmem:[%s1 + $0xd4] sm:$0xf]
      %v880 = vld [vmem:[%s1 + $0xd8] sm:$0xf]
      %v881 = vld [vmem:[%s1 + $0xdc] sm:$0xf]
      %v891 = vunpack.c.l.b16 %v865
      %v892 = vunpack.c.l.b16 %v866
      %v893 = vunpack.c.l.b16 %v867
      %v894 = vunpack.c.l.b16 %v868
      %v895 = vunpack.c.l.b16 %v869
      %v896 = vunpack.c.l.b16 %v870
      %v897 = vunpack.c.l.b16 %v871
      %v898 = vunpack.c.l.b16 %v872
      %v899 = vunpack.c.l.b16 %v873
      %v900 = vpack.c.b16 %v892, %v891
      %v901 = vpack.c.b16 %v894, %v893
      %v902 = vpack.c.b16 %v896, %v895
      %v903 = vpack.c.b16 %v898, %v897
      %v904 = vpack.c.b16 %v899, %v899
      %v905 = vrot.slane %v900, 1
      %v906 = vrot.slane %v901, 1
      %v907 = vsel %vm415, %v905, %v906
      %v908 = vrot.slane %v902, 1
      %v909 = vsel %vm415, %v906, %v908
      %v910 = vrot.slane %v903, 1
      %v911 = vsel %vm415, %v908, %v910
      %v912 = vrot.slane %v904, 1
      %v913 = vsel %vm415, %v910, %v912
      %v922 = vunpack.c.l.b16 %v874
      %v923 = vunpack.c.l.b16 %v875
      %v924 = vunpack.c.l.b16 %v876
      %v925 = vunpack.c.l.b16 %v877
      %v926 = vunpack.c.l.b16 %v878
      %v927 = vunpack.c.l.b16 %v879
      %v928 = vunpack.c.l.b16 %v880
      %v929 = vunpack.c.l.b16 %v881
      %v930 = vpack.c.b16 %v923, %v922
      %v931 = vpack.c.b16 %v925, %v924
      %v932 = vpack.c.b16 %v927, %v926
      %v933 = vpack.c.b16 %v929, %v928
      %v939 = vsel %vm272, %v907, 0
      %v942 = vsel %vm272, %v909, 0
      %v945 = vsel %vm272, %v911, 0
      %v948 = vsel %vm272, %v913, 0
      %950 = vmatpush.bf16.msra.mxu0 0
      %951 = vmatpush.bf16.msra.mxu0 0
      %952 = vmatpush.bf16.msra.mxu0 0
      %953 = vmatpush.bf16.msra.mxu0 0
      %954 = vmatpush.bf16.msra.mxu0 %v933
      %955 = vmatpush.bf16.msra.mxu0 %v932
      %956 = vmatpush.bf16.msra.mxu0 %v931
      %957 = vmatpush.bf16.msra.mxu0 %v930
      %958 = vmatmul.bf16.gmra.mxu0 %v939
      %v959 = vpop.f32.mrf.mxu0
      %v960 = vadd.f32 0.0, %v959
      %v961 = vpop.f32.mrf.mxu0
      %v962 = vadd.f32 0.0, %v961
      %963 = vmatmul.bf16.gmra.mxu0 %v942
      %v964 = vpop.f32.mrf.mxu0
      %v965 = vadd.f32 0.0, %v964
      %v966 = vpop.f32.mrf.mxu0
      %v967 = vadd.f32 0.0, %v966
      %968 = vmatmul.bf16.gmra.mxu0 %v945
      %v969 = vpop.f32.mrf.mxu0
      %v970 = vadd.f32 0.0, %v969
      %v971 = vpop.f32.mrf.mxu0
      %v972 = vadd.f32 0.0, %v971
      %973 = vmatmul.bf16.gmra.mxu0 %v948
      %v974 = vpop.f32.mrf.mxu0
      %v975 = vadd.f32 0.0, %v974
      %v976 = vpop.f32.mrf.mxu0
      %v977 = vadd.f32 0.0, %v976
      %978 = vdwg.mxu0
      %v979 = vadd.f32 %v857, %v960
      %v980 = vadd.f32 %v858, %v962
      %v981 = vadd.f32 %v859, %v965
      %v982 = vadd.f32 %v860, %v967
      %v983 = vadd.f32 %v861, %v970
      %v984 = vadd.f32 %v862, %v972
      %v985 = vadd.f32 %v863, %v975
      %v986 = vadd.f32 %v864, %v977
      %v987 = vld [vmem:[%s1 + $0xe0] sm:$0xf]
      %v988 = vld [vmem:[%s1 + $0xe4] sm:$0xf]
      %v989 = vld [vmem:[%s1 + $0xe8] sm:$0xf]
      %v990 = vld [vmem:[%s1 + $0xec] sm:$0xf]
      %v991 = vld [vmem:[%s1 + $0xf0] sm:$0xf]
      %v992 = vld [vmem:[%s1 + $0xf4] sm:$0xf]
      %v993 = vld [vmem:[%s1 + $0xf8] sm:$0xf]
      %v994 = vld [vmem:[%s1 + $0xfc] sm:$0xf]
      %v996 = vshrl.u32 %v900, 16
      %v998 = vrot.slane %v996, 1
      %v999 = vshll.u32 %v900, 16
      %v1001 = vrot.slane %v999, 2
      %v1002 = vor.u32 %v998, %v1001
      %v1004 = vshrl.u32 %v901, 16
      %v1006 = vrot.slane %v1004, 1
      %v1007 = vshll.u32 %v901, 16
      %v1009 = vrot.slane %v1007, 2
      %v1010 = vor.u32 %v1006, %v1009
      %v1011 = vsel %vm747, %v1002, %v1010
      %v1013 = vshrl.u32 %v902, 16
      %v1015 = vrot.slane %v1013, 1
      %v1016 = vshll.u32 %v902, 16
      %v1018 = vrot.slane %v1016, 2
      %v1019 = vor.u32 %v1015, %v1018
      %v1020 = vsel %vm747, %v1010, %v1019
      %v1022 = vshrl.u32 %v903, 16
      %v1024 = vrot.slane %v1022, 1
      %v1025 = vshll.u32 %v903, 16
      %v1027 = vrot.slane %v1025, 2
      %v1028 = vor.u32 %v1024, %v1027
      %v1029 = vsel %vm747, %v1019, %v1028
      %v1031 = vshrl.u32 %v904, 16
      %v1033 = vrot.slane %v1031, 1
      %v1034 = vshll.u32 %v904, 16
      %v1036 = vrot.slane %v1034, 2
      %v1037 = vor.u32 %v1033, %v1036
      %v1038 = vsel %vm747, %v1028, %v1037
      %v1047 = vunpack.c.l.b16 %v987
      %v1048 = vunpack.c.l.b16 %v988
      %v1049 = vunpack.c.l.b16 %v989
      %v1050 = vunpack.c.l.b16 %v990
      %v1051 = vunpack.c.l.b16 %v991
      %v1052 = vunpack.c.l.b16 %v992
      %v1053 = vunpack.c.l.b16 %v993
      %v1054 = vunpack.c.l.b16 %v994
      %v1055 = vpack.c.b16 %v1048, %v1047
      %v1056 = vpack.c.b16 %v1050, %v1049
      %v1057 = vpack.c.b16 %v1052, %v1051
      %v1058 = vpack.c.b16 %v1054, %v1053
      %v1064 = vsel %vm272, %v1011, 0
      %v1067 = vsel %vm272, %v1020, 0
      %v1070 = vsel %vm272, %v1029, 0
      %v1073 = vsel %vm272, %v1038, 0
      %1075 = vmatpush.bf16.msra.mxu0 0
      %1076 = vmatpush.bf16.msra.mxu0 0
      %1077 = vmatpush.bf16.msra.mxu0 0
      %1078 = vmatpush.bf16.msra.mxu0 0
      %1079 = vmatpush.bf16.msra.mxu0 %v1058
      %1080 = vmatpush.bf16.msra.mxu0 %v1057
      %1081 = vmatpush.bf16.msra.mxu0 %v1056
      %1082 = vmatpush.bf16.msra.mxu0 %v1055
      %1083 = vmatmul.bf16.gmra.mxu0 %v1064
      %v1084 = vpop.f32.mrf.mxu0
      %v1085 = vadd.f32 0.0, %v1084
      %v1086 = vpop.f32.mrf.mxu0
      %v1087 = vadd.f32 0.0, %v1086
      %1088 = vmatmul.bf16.gmra.mxu0 %v1067
      %v1089 = vpop.f32.mrf.mxu0
      %v1090 = vadd.f32 0.0, %v1089
      %v1091 = vpop.f32.mrf.mxu0
      %v1092 = vadd.f32 0.0, %v1091
      %1093 = vmatmul.bf16.gmra.mxu0 %v1070
      %v1094 = vpop.f32.mrf.mxu0
      %v1095 = vadd.f32 0.0, %v1094
      %v1096 = vpop.f32.mrf.mxu0
      %v1097 = vadd.f32 0.0, %v1096
      %1098 = vmatmul.bf16.gmra.mxu0 %v1073
      %v1099 = vpop.f32.mrf.mxu0
      %v1100 = vadd.f32 0.0, %v1099
      %v1101 = vpop.f32.mrf.mxu0
      %v1102 = vadd.f32 0.0, %v1101
      %1103 = vdwg.mxu0
      %v1104 = vadd.f32 %v979, %v1085
      %v1105 = vadd.f32 %v980, %v1087
      %v1106 = vadd.f32 %v981, %v1090
      %v1107 = vadd.f32 %v982, %v1092
      %v1108 = vadd.f32 %v983, %v1095
      %v1109 = vadd.f32 %v984, %v1097
      %v1110 = vadd.f32 %v985, %v1100
      %v1111 = vadd.f32 %v986, %v1102
      %v1112 = vld [vmem:[%s165 + $0x8] sm:$0xc]
      %v1113 = vld [vmem:[%s165 + $0x28] sm:$0x3]
      %v1114 = vld [vmem:[%s1 + $0x100] sm:$0xf]
      %v1115 = vld [vmem:[%s1 + $0x104] sm:$0xf]
      %v1116 = vld [vmem:[%s1 + $0x108] sm:$0xf]
      %v1117 = vld [vmem:[%s1 + $0x10c] sm:$0xf]
      %v1118 = vld [vmem:[%s1 + $0x110] sm:$0xf]
      %v1119 = vld [vmem:[%s1 + $0x114] sm:$0xf]
      %v1120 = vld [vmem:[%s1 + $0x118] sm:$0xf]
      %v1121 = vld [vmem:[%s1 + $0x11c] sm:$0xf]
      %v1124 = vunpack.c.l.b16 %v1112
      %v1125 = vunpack.c.l.b16 %v1113
      %v1126 = vpack.c.b16 %v892, %v1124
      %v1127 = vpack.c.b16 %v1125, %v1125
      %vm1128 = vcmask 1045504
      %v1129 = vrot.slane %v1126, 2
      %v1130 = vrot.slane %v901, 2
      %v1131 = vsel %vm1128, %v1129, %v1130
      %v1132 = vrot.slane %v902, 2
      %v1133 = vsel %vm1128, %v1130, %v1132
      %v1134 = vrot.slane %v903, 2
      %v1135 = vsel %vm1128, %v1132, %v1134
      %v1136 = vrot.slane %v1127, 2
      %v1137 = vsel %vm1128, %v1134, %v1136
      %v1146 = vunpack.c.l.b16 %v1114
      %v1147 = vunpack.c.l.b16 %v1115
      %v1148 = vunpack.c.l.b16 %v1116
      %v1149 = vunpack.c.l.b16 %v1117
      %v1150 = vunpack.c.l.b16 %v1118
      %v1151 = vunpack.c.l.b16 %v1119
      %v1152 = vunpack.c.l.b16 %v1120
      %v1153 = vunpack.c.l.b16 %v1121
      %v1154 = vpack.c.b16 %v1147, %v1146
      %v1155 = vpack.c.b16 %v1149, %v1148
      %v1156 = vpack.c.b16 %v1151, %v1150
      %v1157 = vpack.c.b16 %v1153, %v1152
      %v1163 = vsel %vm272, %v1131, 0
      %v1166 = vsel %vm272, %v1133, 0
      %v1169 = vsel %vm272, %v1135, 0
      %v1172 = vsel %vm272, %v1137, 0
      %1174 = vmatpush.bf16.msra.mxu0 0
      %1175 = vmatpush.bf16.msra.mxu0 0
      %1176 = vmatpush.bf16.msra.mxu0 0
      %1177 = vmatpush.bf16.msra.mxu0 0
      %1178 = vmatpush.bf16.msra.mxu0 %v1157
      %1179 = vmatpush.bf16.msra.mxu0 %v1156
      %1180 = vmatpush.bf16.msra.mxu0 %v1155
      %1181 = vmatpush.bf16.msra.mxu0 %v1154
      %1182 = vmatmul.bf16.gmra.mxu0 %v1163
      %v1183 = vpop.f32.mrf.mxu0
      %v1184 = vadd.f32 0.0, %v1183
      %v1185 = vpop.f32.mrf.mxu0
      %v1186 = vadd.f32 0.0, %v1185
      %1187 = vmatmul.bf16.gmra.mxu0 %v1166
      %v1188 = vpop.f32.mrf.mxu0
      %v1189 = vadd.f32 0.0, %v1188
      %v1190 = vpop.f32.mrf.mxu0
      %v1191 = vadd.f32 0.0, %v1190
      %1192 = vmatmul.bf16.gmra.mxu0 %v1169
      %v1193 = vpop.f32.mrf.mxu0
      %v1194 = vadd.f32 0.0, %v1193
      %v1195 = vpop.f32.mrf.mxu0
      %v1196 = vadd.f32 0.0, %v1195
      %1197 = vmatmul.bf16.gmra.mxu0 %v1172
      %v1198 = vpop.f32.mrf.mxu0
      %v1199 = vadd.f32 0.0, %v1198
      %v1200 = vpop.f32.mrf.mxu0
      %v1201 = vadd.f32 0.0, %v1200
      %1202 = vdwg.mxu0
      %v1203 = vadd.f32 %v1104, %v1184
      %v1204 = vadd.f32 %v1105, %v1186
      %v1205 = vadd.f32 %v1106, %v1189
      %v1206 = vadd.f32 %v1107, %v1191
      %v1207 = vadd.f32 %v1108, %v1194
      %v1208 = vadd.f32 %v1109, %v1196
      %v1209 = vadd.f32 %v1110, %v1199
      %v1210 = vadd.f32 %v1111, %v1201
      %v1211 = vld [vmem:[%s2] sm:$0x1]
      %v1213 = vperm.slane %v1211, 0
      %v1215 = vadd.f32 %v1203, %v1213
      %v1216 = vadd.f32 %v1204, %v1213
      %v1217 = vadd.f32 %v1205, %v1213
      %v1218 = vadd.f32 %v1206, %v1213
      %v1219 = vadd.f32 %v1207, %v1213
      %v1220 = vadd.f32 %v1208, %v1213
      %v1221 = vadd.f32 %v1209, %v1213
      %v1222 = vadd.f32 %v1210, %v1213
      %v1223 = vmax.f32 %v1215, 0.0
      %v1224 = vmax.f32 %v1216, 0.0
      %v1225 = vmax.f32 %v1217, 0.0
      %v1226 = vmax.f32 %v1218, 0.0
      %v1227 = vmax.f32 %v1219, 0.0
      %v1228 = vmax.f32 %v1220, 0.0
      %v1229 = vmax.f32 %v1221, 0.0
      %v1230 = vmax.f32 %v1222, 0.0
      %v1231 = vpack.c.bf16 %v1223, %v1223
      %v1232 = vpack.c.bf16 %v1224, %v1224
      %v1233 = vpack.c.bf16 %v1225, %v1225
      %v1234 = vpack.c.bf16 %v1226, %v1226
      %v1235 = vpack.c.bf16 %v1227, %v1227
      %v1236 = vpack.c.bf16 %v1228, %v1228
      %v1237 = vpack.c.bf16 %v1229, %v1229
      %v1238 = vpack.c.bf16 %v1230, %v1230
      %vm1239 = vcmask 519168
      %1240 = vst.msk [vmem:[%s170] sm:$0xf] %vm1239, %v1231
      %1241 = vst.msk [vmem:[%s170 + $0x4] sm:$0xf] %vm1239, %v1232
      %1242 = vst.msk [vmem:[%s170 + $0x8] sm:$0xf] %vm1239, %v1233
      %1243 = vst.msk [vmem:[%s170 + $0xc] sm:$0xf] %vm1239, %v1234
      %1244 = vst.msk [vmem:[%s170 + $0x10] sm:$0xf] %vm1239, %v1235
      %1245 = vst.msk [vmem:[%s170 + $0x14] sm:$0xf] %vm1239, %v1236
      %1246 = vst.msk [vmem:[%s170 + $0x18] sm:$0xf] %vm1239, %v1237
      %vm1247 = vcmask 519168
      %vm1248 = vsmask.f32 3328
      %vm1249 = vmand %vm1247, %vm1248
      %v1250 = vld [vmem:[%s170 + $0x1c] sm:$0xf]
      %v1251 = vsel %vm1249, %v1238, %v1250
      %1252 = vst [vmem:[%s170 + $0x1c] sm:$0xf] %v1251
      %p1253 = scmp.lt.s32.totalorder %s14, 1
      %s1254 = scalar_select %p1253, %s14, 1
      %s1255 = smul.addr %s1254, 8
      %s1256 = smul.addr %s1255, 4
      %s1257 = scalar_lea.vmem %s3, %s1256
      // Predicated region
      $region33: #{_lambda_.6} parent=31 // pred_check
        %p1258 = pneg %p100
      $region34: #{_lambda_.6} parent=31 // pred_check_branch
        %1260 = sbr.rel (%p1258) target = $region36
      $region35: #{_lambda_.6} parent=31 // pred_region
        _
      $region36: #{_lambda_.6} parent=31 // pred_fallthru
        _
    $region32: #{_lambda_.6} parent=5 // pred_fallthru
      _
    %p1261 = scmp.le.s32.totalorder 2, %s9
    // Predicated region
    $region37: #{_lambda_.6} parent=5 // pred_check
      %p1262 = pneg %p1261
    $region38: #{_lambda_.6} parent=5 // pred_check_branch
      %1264 = sbr.rel (%p1262) target = $region40
    $region39: #{_lambda_.6} parent=5 // pred_region
      %s1265 = ssub.s32 %s9, 2
      // Predicated region
      $region41: #{_lambda_.6} parent=39 // pred_check
        %p1266 = pneg %p106
      $region42: #{_lambda_.6} parent=39 // pred_check_branch
        %1268 = sbr.rel (%p1266) target = $region44
      $region43: #{_lambda_.6} parent=39 // pred_region
        %p1269 = scmp.lt.s32.totalorder %s15, 1
        %s1270 = scalar_select %p1269, %s15, 1
        %s1271 = smul.addr %s1270, 8
        %s1272 = smul.addr %s1271, 4
        %s1273 = scalar_lea.vmem %s3, %s1272
      $region44: #{_lambda_.6} parent=39 // pred_fallthru
        _
    $region40: #{_lambda_.6} parent=5 // pred_fallthru
      _
  $region6: #{_lambda_.6} parent=0 // loop_footer
    %s13 = sadd.s32 1, %s9
  $region7: #{_lambda_.6} parent=0 // loop_footer_branch
    %8 = sbr.rel target = $region3
  $region8: #{_lambda_.6} parent=0 // loop_exit
    _

// kernel: _lambda_.5
$region0: #{_lambda_.5}
  #allocation0 [shape = 'u32[]', space=smem, size = 0x4, offset = 0x4, fixed_abs, tag = 'smem constant byte address 0x4 - core index']
  #allocation1 [shape = 'u32[72,128]{1,0:T(1,128)}', space=vmem, size = 0x9000, scoped, tag = 'internal scratch']
  #allocation2 [shape = 'f32[112,64]{1,0:T(8,128)}', space=vmem, size = 0xe000, scoped, tag = 'scratch operand']
  %s0 = inlined_call_operand.vmem [shape: bf16[2,272,32], index: 0, kind: input, shape index: {}]
  %s1 = inlined_call_operand.vmem [shape: bf16[288,64], index: 1, kind: input, shape index: {}]
  %s2 = inlined_call_operand.vmem [shape: f32[1,64], index: 2, kind: input, shape index: {}]
  %s3 = inlined_call_operand.vmem [shape: bf16[2,49,64], index: 3, kind: output, shape index: {}]
  %s4 = sld [smem:[#allocation0]]
  $region45: #{_lambda_.5} parent=0
    _
  %s6 = ssub.s32 1, %s4
  %s7 = scalar_select 0, %s6, %s4
  loop: start=0, step=1, limit=4
  $region2: #{_lambda_.5} parent=0 // loop_pre_header
    _
  $region3: #{_lambda_.5} parent=0 // loop_header
    %s9 = sphi 0, %s13
    %p10 = scmp.ge.s32.totalorder %s9, 4
    %s19 = sphi 0, %s21
    %s22 = sphi 0, %s19
    %s23 = sphi 0, %s22
    %s39 = sphi 0, %s23
    %s43 = sphi 0, %s43
    %s45 = sphi 0, %s43
    %s46 = sphi 0, %s45
    %s60 = sphi 0, %s46
    %s64 = sphi 0, %s64
    %s66 = sphi 0, %s64
    %s67 = sphi 0, %s66
    %s81 = sphi 0, %s67
    %s87 = sphi 0, %s89
    %s90 = sphi 0, %s87
    %s91 = sphi 0, %s90
    %s107 = sphi 0, %s91
  $region4: #{_lambda_.5} parent=0 // loop_header_branch
    %12 = sbr.rel (%p10) target = $region8
  $region5: #{_lambda_.5} parent=0 // loop_body
    %s14 = ssub.s32 %s9, 1
    %s15 = ssub.s32 %s9, 2
    %s16 = sadd.s32 %s9, 1
    %s17 = ssub.s32 %s9, %s16
    %p18 = scmp.eq.s32.totalorder %s17, 0
    %s20 = sadd.s32 %s19, 1
    %s21 = scalar_select %p18, %s19, %s20
    %p24 = pneg %p18
    %p25 = scmp.eq.s32.totalorder %s9, 1
    %p26 = por %p24, %p25
    %p27 = scmp.ne.s32.totalorder %s19, %s22
    %p28 = scmp.eq.s32.totalorder %s9, 0
    %p29 = por %p27, %p28
    %p30 = scmp.ne.s32.totalorder %s19, %s22
    %p31 = scmp.eq.s32.totalorder %s14, 1
    %p32 = por %p30, %p31
    %p33 = scmp.ne.s32.totalorder %s22, %s23
    %p34 = scmp.eq.s32.totalorder %s14, 0
    %p35 = por %p33, %p34
    %p36 = scmp.ne.s32.totalorder %s22, %s23
    %p37 = scmp.eq.s32.totalorder %s15, 1
    %p38 = por %p36, %p37
    %p40 = scmp.ne.s32.totalorder %s23, %s39
    %p41 = scmp.eq.s32.totalorder %s15, 0
    %p42 = por %p40, %p41
    %s44 = sadd.s32 %s43, 1
    %p47 = scmp.eq.s32.totalorder %s9, 1
    %p48 = scmp.ne.s32.totalorder %s43, %s45
    %p49 = scmp.eq.s32.totalorder %s9, 0
    %p50 = por %p48, %p49
    %p51 = scmp.ne.s32.totalorder %s43, %s45
    %p52 = scmp.eq.s32.totalorder %s14, 1
    %p53 = por %p51, %p52
    %p54 = scmp.ne.s32.totalorder %s45, %s46
    %p55 = scmp.eq.s32.totalorder %s14, 0
    %p56 = por %p54, %p55
    %p57 = scmp.ne.s32.totalorder %s45, %s46
    %p58 = scmp.eq.s32.totalorder %s15, 1
    %p59 = por %p57, %p58
    %p61 = scmp.ne.s32.totalorder %s46, %s60
    %p62 = scmp.eq.s32.totalorder %s15, 0
    %p63 = por %p61, %p62
    %s65 = sadd.s32 %s64, 1
    %p68 = scmp.eq.s32.totalorder %s9, 1
    %p69 = scmp.ne.s32.totalorder %s64, %s66
    %p70 = scmp.eq.s32.totalorder %s9, 0
    %p71 = por %p69, %p70
    %p72 = scmp.ne.s32.totalorder %s64, %s66
    %p73 = scmp.eq.s32.totalorder %s14, 1
    %p74 = por %p72, %p73
    %p75 = scmp.ne.s32.totalorder %s66, %s67
    %p76 = scmp.eq.s32.totalorder %s14, 0
    %p77 = por %p75, %p76
    %p78 = scmp.ne.s32.totalorder %s66, %s67
    %p79 = scmp.eq.s32.totalorder %s15, 1
    %p80 = por %p78, %p79
    %p82 = scmp.ne.s32.totalorder %s67, %s81
    %p83 = scmp.eq.s32.totalorder %s15, 0
    %p84 = por %p82, %p83
    %s85 = ssub.s32 %s9, %s16
    %p86 = scmp.eq.s32.totalorder %s85, 0
    %s88 = sadd.s32 %s87, 1
    %s89 = scalar_select %p86, %s87, %s88
    %p92 = pneg %p86
    %p93 = scmp.eq.s32.totalorder %s9, 1
    %p94 = por %p92, %p93
    %p95 = scmp.ne.s32.totalorder %s87, %s90
    %p96 = scmp.eq.s32.totalorder %s9, 0
    %p97 = por %p95, %p96
    %p98 = scmp.ne.s32.totalorder %s87, %s90
    %p99 = scmp.eq.s32.totalorder %s14, 1
    %p100 = por %p98, %p99
    %p101 = scmp.ne.s32.totalorder %s90, %s91
    %p102 = scmp.eq.s32.totalorder %s14, 0
    %p103 = por %p101, %p102
    %p104 = scmp.ne.s32.totalorder %s90, %s91
    %p105 = scmp.eq.s32.totalorder %s15, 1
    %p106 = por %p104, %p105
    %p108 = scmp.ne.s32.totalorder %s91, %s107
    %p109 = scmp.eq.s32.totalorder %s15, 0
    %p110 = por %p108, %p109
    %p111 = scmp.le.s32.totalorder 1, %s9
    %p112 = scmp.lt.s32.totalorder %s9, 3
    %p113 = pnand %p111, %p112
    %p114 = pneg %p113
    // Predicated region
    $region9: #{_lambda_.5} parent=5 // pred_check
      _
    $region10: #{_lambda_.5} parent=5 // pred_check_branch
      %116 = sbr.rel (%p113) target = $region12
    $region11: #{_lambda_.5} parent=5 // pred_region
      %s117 = ssub.s32 %s9, 1
      // Predicated region
      $region13: #{_lambda_.5} parent=11 // pred_check
        %p118 = pneg %p56
      $region14: #{_lambda_.5} parent=11 // pred_check_branch
        %120 = sbr.rel (%p118) target = $region16
      $region15: #{_lambda_.5} parent=11 // pred_region
        _
      $region16: #{_lambda_.5} parent=11 // pred_fallthru
        _
      // Predicated region
      $region17: #{_lambda_.5} parent=11 // pred_check
        %p121 = pneg %p77
      $region18: #{_lambda_.5} parent=11 // pred_check_branch
        %123 = sbr.rel (%p121) target = $region20
      $region19: #{_lambda_.5} parent=11 // pred_region
        _
      $region20: #{_lambda_.5} parent=11 // pred_fallthru
        _
    $region12: #{_lambda_.5} parent=5 // pred_fallthru
      _
    %p124 = scmp.lt.s32.totalorder %s9, 2
    // Predicated region
    $region21: #{_lambda_.5} parent=5 // pred_check
      %p125 = pneg %p124
    $region22: #{_lambda_.5} parent=5 // pred_check_branch
      %127 = sbr.rel (%p125) target = $region24
    $region23: #{_lambda_.5} parent=5 // pred_region
      // Predicated region
      $region25: #{_lambda_.5} parent=23 // pred_check
        %p128 = pneg %p29
      $region26: #{_lambda_.5} parent=23 // pred_check_branch
        %130 = sbr.rel (%p128) target = $region28
      $region27: #{_lambda_.5} parent=23 // pred_region
        %p131 = scmp.lt.s32.totalorder %s9, 1
        %s132 = scalar_select %p131, %s9, 1
        %s133 = smul.addr %s132, 34
        %s134 = smul.addr %s133, 4
        %s135 = scalar_lea.vmem %s0, %s134
      $region28: #{_lambda_.5} parent=23 // pred_fallthru
        _
    $region24: #{_lambda_.5} parent=5 // pred_fallthru
      _
    %p136 = scmp.le.s32.totalorder 1, %s9
    %p137 = scmp.lt.s32.totalorder %s9, 3
    %p138 = pnand %p136, %p137
    %p139 = pneg %p138
    // Predicated region
    $region29: #{_lambda_.5} parent=5 // pred_check
      _
    $region30: #{_lambda_.5} parent=5 // pred_check_branch
      %141 = sbr.rel (%p138) target = $region32
    $region31: #{_lambda_.5} parent=5 // pred_region
      %s142 = ssub.s32 %s9, 1
      %p143 = scmp.lt.s32.totalorder %s14, 1
      %s144 = scalar_select %p143, %s14, 1
      %s145 = smul.addr %s144, 34
      %s146 = smul.addr %s145, 4
      %s147 = scalar_lea.vmem %s0, %s146
      %p148 = pneg %p35
      %p149 = pneg %p32
      %p150 = pneg %p56
      %p151 = pneg %p53
      %p152 = pneg %p77
      %p153 = pneg %p74
      %p154 = pneg %p103
      %p155 = pneg %p100
      %p156 = scmp.lt.s32.totalorder %s14, 1
      %s157 = scalar_select %p156, %s14, 1
      %s158 = smul.addr %s157, 7
      %s159 = smul.addr %s158, 4
      %s160 = scalar_lea.vmem %s3, %s159
      %p161 = scmp.lt.s32.totalorder %s14, 1
      %s162 = scalar_select %p161, %s14, 1
      %s163 = smul.addr %s162, 34
      %s164 = smul.addr %s163, 4
      %s165 = scalar_lea.vmem %s0, %s164
      %p166 = scmp.lt.s32.totalorder %s14, 1
      %s167 = scalar_select %p166, %s14, 1
      %s168 = smul.addr %s167, 7
      %s169 = smul.addr %s168, 4
      %s170 = scalar_lea.vmem %s3, %s169
      %v172 = vld [vmem:[%s165] sm:$0xf]
      %v173 = vld [vmem:[%s165 + $0x4] sm:$0xf]
      %v174 = vld [vmem:[%s165 + $0x8] sm:$0xf]
      %v175 = vld [vmem:[%s165 + $0xc] sm:$0xf]
      %v176 = vld [vmem:[%s165 + $0x10] sm:$0xf]
      %v177 = vld [vmem:[%s165 + $0x14] sm:$0xf]
      %v178 = vld [vmem:[%s165 + $0x18] sm:$0xf]
      %v179 = vld [vmem:[%s165 + $0x1c] sm:$0xf]
      %v180 = vld [vmem:[%s165 + $0x20] sm:$0xf]
      %v181 = vld [vmem:[%s165 + $0x24] sm:$0xf]
      %v182 = vld [vmem:[%s165 + $0x28] sm:$0xf]
      %v183 = vld [vmem:[%s165 + $0x2c] sm:$0xf]
      %v184 = vld [vmem:[%s165 + $0x30] sm:$0xf]
      %v185 = vld [vmem:[%s165 + $0x34] sm:$0xf]
      %v186 = vld [vmem:[%s1] sm:$0xf]
      %v187 = vld [vmem:[%s1 + $0x4] sm:$0xf]
      %v188 = vld [vmem:[%s1 + $0x8] sm:$0xf]
      %v189 = vld [vmem:[%s1 + $0xc] sm:$0xf]
      %v190 = vld [vmem:[%s165 + $0x44] sm:$0xf]
      %v191 = vld [vmem:[%s165 + $0x48] sm:$0xf]
      %v192 = vld [vmem:[%s165 + $0x4c] sm:$0xf]
      %v193 = vld [vmem:[%s165 + $0x50] sm:$0xf]
      %v194 = vld [vmem:[%s165 + $0x54] sm:$0xf]
      %v195 = vld [vmem:[%s165 + $0x58] sm:$0xf]
      %v196 = vld [vmem:[%s165 + $0x5c] sm:$0xf]
      %v197 = vld [vmem:[%s165 + $0x60] sm:$0xf]
      %v198 = vld [vmem:[%s165 + $0x64] sm:$0xf]
      %v199 = vld [vmem:[%s165 + $0x68] sm:$0xf]
      %v200 = vld [vmem:[%s165 + $0x6c] sm:$0xf]
      %v201 = vld [vmem:[%s165 + $0x70] sm:$0xf]
      %v202 = vld [vmem:[%s165 + $0x74] sm:$0xf]
      %v203 = vld [vmem:[%s165 + $0x78] sm:$0xf]
      %v204 = vld [vmem:[%s1 + $0x10] sm:$0xf]
      %v205 = vld [vmem:[%s1 + $0x14] sm:$0xf]
      %v206 = vld [vmem:[%s1 + $0x18] sm:$0xf]
      %v207 = vld [vmem:[%s1 + $0x1c] sm:$0xf]
      %v222 = vunpack.c.l.b16 %v190
      %v223 = vunpack.c.l.b16 %v191
      %v224 = vunpack.c.l.b16 %v192
      %v225 = vunpack.c.l.b16 %v193
      %v226 = vunpack.c.l.b16 %v194
      %v227 = vunpack.c.l.b16 %v195
      %v228 = vunpack.c.l.b16 %v196
      %v229 = vunpack.c.l.b16 %v197
      %v230 = vunpack.c.l.b16 %v198
      %v231 = vunpack.c.l.b16 %v199
      %v232 = vunpack.c.l.b16 %v200
      %v233 = vunpack.c.l.b16 %v201
      %v234 = vunpack.c.l.b16 %v202
      %v235 = vunpack.c.l.b16 %v203
      %v236 = vpack.c.b16 %v223, %v222
      %v237 = vpack.c.b16 %v225, %v224
      %v238 = vpack.c.b16 %v227, %v226
      %v239 = vpack.c.b16 %v229, %v228
      %v240 = vpack.c.b16 %v231, %v230
      %v241 = vpack.c.b16 %v233, %v232
      %v242 = vpack.c.b16 %v235, %v234
      %v247 = vunpack.c.l.b16 %v204
      %v248 = vunpack.c.l.b16 %v205
      %v249 = vunpack.c.l.b16 %v206
      %v250 = vunpack.c.l.b16 %v207
      %v251 = vpack.c.b16 %v248, %v247
      %v252 = vpack.c.b16 %v250, %v249
      %vm255 = vcmask 261120
      %v257 = vsel %vm255, %v236, 0
      %v260 = vsel %vm255, %v237, 0
      %v263 = vsel %vm255, %v238, 0
      %v266 = vsel %vm255, %v239, 0
      %v269 = vsel %vm255, %v240, 0
      %v272 = vsel %vm255, %v241, 0
      %v275 = vsel %vm255, %v242, 0
      %277 = vmatpush.bf16.msra.mxu0 0
      %278 = vmatpush.bf16.msra.mxu0 0
      %279 = vmatpush.bf16.msra.mxu0 0
      %280 = vmatpush.bf16.msra.mxu0 0
      %281 = vmatpush.bf16.msra.mxu0 0
      %282 = vmatpush.bf16.msra.mxu0 0
      %283 = vmatpush.bf16.msra.mxu0 %v252
      %284 = vmatpush.bf16.msra.mxu0 %v251
      %285 = vmatmul.bf16.gmra.mxu0 %v257
      %v286 = vpop.f32.mrf.mxu0
      %v287 = vadd.f32 0.0, %v286
      %v288 = vpop.f32.mrf.mxu0
      %v289 = vadd.f32 0.0, %v288
      %290 = vmatmul.bf16.gmra.mxu0 %v260
      %v291 = vpop.f32.mrf.mxu0
      %v292 = vadd.f32 0.0, %v291
      %v293 = vpop.f32.mrf.mxu0
      %v294 = vadd.f32 0.0, %v293
      %295 = vmatmul.bf16.gmra.mxu0 %v263
      %v296 = vpop.f32.mrf.mxu0
      %v297 = vadd.f32 0.0, %v296
      %v298 = vpop.f32.mrf.mxu0
      %v299 = vadd.f32 0.0, %v298
      %300 = vmatmul.bf16.gmra.mxu0 %v266
      %v301 = vpop.f32.mrf.mxu0
      %v302 = vadd.f32 0.0, %v301
      %v303 = vpop.f32.mrf.mxu0
      %v304 = vadd.f32 0.0, %v303
      %305 = vmatmul.bf16.gmra.mxu0 %v269
      %v306 = vpop.f32.mrf.mxu0
      %v307 = vadd.f32 0.0, %v306
      %v308 = vpop.f32.mrf.mxu0
      %v309 = vadd.f32 0.0, %v308
      %310 = vmatmul.bf16.gmra.mxu0 %v272
      %v311 = vpop.f32.mrf.mxu0
      %v312 = vadd.f32 0.0, %v311
      %v313 = vpop.f32.mrf.mxu0
      %v314 = vadd.f32 0.0, %v313
      %315 = vmatmul.bf16.gmra.mxu0 %v275
      %v316 = vpop.f32.mrf.mxu0
      %v317 = vadd.f32 0.0, %v316
      %v318 = vpop.f32.mrf.mxu0
      %v319 = vadd.f32 0.0, %v318
      %320 = vdwg.mxu0
      %v335 = vunpack.c.l.b16 %v172
      %v336 = vunpack.c.l.b16 %v173
      %v337 = vunpack.c.l.b16 %v174
      %v338 = vunpack.c.l.b16 %v175
      %v339 = vunpack.c.l.b16 %v176
      %v340 = vunpack.c.l.b16 %v177
      %v341 = vunpack.c.l.b16 %v178
      %v342 = vunpack.c.l.b16 %v179
      %v343 = vunpack.c.l.b16 %v180
      %v344 = vunpack.c.l.b16 %v181
      %v345 = vunpack.c.l.b16 %v182
      %v346 = vunpack.c.l.b16 %v183
      %v347 = vunpack.c.l.b16 %v184
      %v348 = vunpack.c.l.b16 %v185
      %v349 = vpack.c.b16 %v336, %v335
      %v350 = vpack.c.b16 %v338, %v337
      %v351 = vpack.c.b16 %v340, %v339
      %v352 = vpack.c.b16 %v342, %v341
      %v353 = vpack.c.b16 %v344, %v343
      %v354 = vpack.c.b16 %v346, %v345
      %v355 = vpack.c.b16 %v348, %v347
      %v360 = vunpack.c.l.b16 %v186
      %v361 = vunpack.c.l.b16 %v187
      %v362 = vunpack.c.l.b16 %v188
      %v363 = vunpack.c.l.b16 %v189
      %v364 = vpack.c.b16 %v361, %v360
      %v365 = vpack.c.b16 %v363, %v362
      %v369 = vsel %vm255, %v349, 0
      %v372 = vsel %vm255, %v350, 0
      %v375 = vsel %vm255, %v351, 0
      %v378 = vsel %vm255, %v352, 0
      %v381 = vsel %vm255, %v353, 0
      %v384 = vsel %vm255, %v354, 0
      %v387 = vsel %vm255, %v355, 0
      %389 = vmatpush.bf16.msra.mxu0 0
      %390 = vmatpush.bf16.msra.mxu0 0
      %391 = vmatpush.bf16.msra.mxu0 0
      %392 = vmatpush.bf16.msra.mxu0 0
      %393 = vmatpush.bf16.msra.mxu0 0
      %394 = vmatpush.bf16.msra.mxu0 0
      %395 = vmatpush.bf16.msra.mxu0 %v365
      %396 = vmatpush.bf16.msra.mxu0 %v364
      %397 = vmatmul.bf16.gmra.mxu0 %v369
      %v398 = vpop.f32.mrf.mxu0
      %v399 = vadd.f32 %v287, %v398
      %v400 = vpop.f32.mrf.mxu0
      %v401 = vadd.f32 %v289, %v400
      %402 = vmatmul.bf16.gmra.mxu0 %v372
      %v403 = vpop.f32.mrf.mxu0
      %v404 = vadd.f32 %v292, %v403
      %v405 = vpop.f32.mrf.mxu0
      %v406 = vadd.f32 %v294, %v405
      %407 = vmatmul.bf16.gmra.mxu0 %v375
      %v408 = vpop.f32.mrf.mxu0
      %v409 = vadd.f32 %v297, %v408
      %v410 = vpop.f32.mrf.mxu0
      %v411 = vadd.f32 %v299, %v410
      %412 = vmatmul.bf16.gmra.mxu0 %v378
      %v413 = vpop.f32.mrf.mxu0
      %v414 = vadd.f32 %v302, %v413
      %v415 = vpop.f32.mrf.mxu0
      %v416 = vadd.f32 %v304, %v415
      %417 = vmatmul.bf16.gmra.mxu0 %v381
      %v418 = vpop.f32.mrf.mxu0
      %v419 = vadd.f32 %v307, %v418
      %v420 = vpop.f32.mrf.mxu0
      %v421 = vadd.f32 %v309, %v420
      %422 = vmatmul.bf16.gmra.mxu0 %v384
      %v423 = vpop.f32.mrf.mxu0
      %v424 = vadd.f32 %v312, %v423
      %v425 = vpop.f32.mrf.mxu0
      %v426 = vadd.f32 %v314, %v425
      %427 = vmatmul.bf16.gmra.mxu0 %v387
      %v428 = vpop.f32.mrf.mxu0
      %v429 = vadd.f32 %v317, %v428
      %v430 = vpop.f32.mrf.mxu0
      %v431 = vadd.f32 %v319, %v430
      %432 = vdwg.mxu0
      %v433 = vld [vmem:[%s165] sm:$0xf]
      %v434 = vld [vmem:[%s165 + $0x4] sm:$0xf]
      %v435 = vld [vmem:[%s165 + $0x8] sm:$0xf]
      %v436 = vld [vmem:[%s165 + $0xc] sm:$0xf]
      %v437 = vld [vmem:[%s165 + $0x10] sm:$0xf]
      %v438 = vld [vmem:[%s165 + $0x14] sm:$0xf]
      %v439 = vld [vmem:[%s165 + $0x18] sm:$0xf]
      %v440 = vld [vmem:[%s165 + $0x1c] sm:$0xf]
      %v441 = vld [vmem:[%s165 + $0x20] sm:$0xf]
      %v442 = vld [vmem:[%s165 + $0x24] sm:$0xf]
      %v443 = vld [vmem:[%s165 + $0x28] sm:$0xf]
      %v444 = vld [vmem:[%s165 + $0x2c] sm:$0xf]
      %v445 = vld [vmem:[%s165 + $0x30] sm:$0xf]
      %v446 = vld [vmem:[%s165 + $0x34] sm:$0xf]
      %v447 = vld [vmem:[%s165 + $0x38] sm:$0x1]
      %v448 = vld [vmem:[%s1 + $0x20] sm:$0xf]
      %v449 = vld [vmem:[%s1 + $0x24] sm:$0xf]
      %v450 = vld [vmem:[%s1 + $0x28] sm:$0xf]
      %v451 = vld [vmem:[%s1 + $0x2c] sm:$0xf]
      %v467 = vunpack.c.l.b16 %v433
      %v468 = vunpack.c.l.b16 %v434
      %v469 = vunpack.c.l.b16 %v435
      %v470 = vunpack.c.l.b16 %v436
      %v471 = vunpack.c.l.b16 %v437
      %v472 = vunpack.c.l.b16 %v438
      %v473 = vunpack.c.l.b16 %v439
      %v474 = vunpack.c.l.b16 %v440
      %v475 = vunpack.c.l.b16 %v441
      %v476 = vunpack.c.l.b16 %v442
      %v477 = vunpack.c.l.b16 %v443
      %v478 = vunpack.c.l.b16 %v444
      %v479 = vunpack.c.l.b16 %v445
      %v480 = vunpack.c.l.b16 %v446
      %v481 = vunpack.c.l.b16 %v447
      %v482 = vpack.c.b16 %v468, %v467
      %v483 = vpack.c.b16 %v470, %v469
      %v484 = vpack.c.b16 %v472, %v471
      %v485 = vpack.c.b16 %v474, %v473
      %v486 = vpack.c.b16 %v476, %v475
      %v487 = vpack.c.b16 %v478, %v477
      %v488 = vpack.c.b16 %v480, %v479
      %v489 = vpack.c.b16 %v481, %v481
      %vm490 = vsmask.f32 7424
      %v492 = vshrl.u32 %v482, 16
      %v494 = vshll.u32 %v482, 16
      %v496 = vrot.slane %v494, 1
      %v497 = vor.u32 %v492, %v496
      %v499 = vshll.u32 %v483, 16
      %v501 = vrot.slane %v499, 1
      %v502 = vsel %vm490, %v497, %v501
      %v503 = vshrl.u32 %v483, 16
      %v505 = vor.u32 %v503, %v501
      %v507 = vshll.u32 %v484, 16
      %v509 = vrot.slane %v507, 1
      %v510 = vsel %vm490, %v505, %v509
      %v511 = vshrl.u32 %v484, 16
      %v513 = vor.u32 %v511, %v509
      %v515 = vshll.u32 %v485, 16
      %v517 = vrot.slane %v515, 1
      %v518 = vsel %vm490, %v513, %v517
      %v519 = vshrl.u32 %v485, 16
      %v521 = vor.u32 %v519, %v517
      %v523 = vshll.u32 %v486, 16
      %v525 = vrot.slane %v523, 1
      %v526 = vsel %vm490, %v521, %v525
      %v527 = vshrl.u32 %v486, 16
      %v529 = vor.u32 %v527, %v525
      %v531 = vshll.u32 %v487, 16
      %v533 = vrot.slane %v531, 1
      %v534 = vsel %vm490, %v529, %v533
      %v535 = vshrl.u32 %v487, 16
      %v537 = vor.u32 %v535, %v533
      %v539 = vshll.u32 %v488, 16
      %v541 = vrot.slane %v539, 1
      %v542 = vsel %vm490, %v537, %v541
      %v543 = vshrl.u32 %v488, 16
      %v545 = vor.u32 %v543, %v541
      %v547 = vshll.u32 %v489, 16
      %v549 = vrot.slane %v547, 1
      %v550 = vsel %vm490, %v545, %v549
      %v555 = vunpack.c.l.b16 %v448
      %v556 = vunpack.c.l.b16 %v449
      %v557 = vunpack.c.l.b16 %v450
      %v558 = vunpack.c.l.b16 %v451
      %v559 = vpack.c.b16 %v556, %v555
      %v560 = vpack.c.b16 %v558, %v557
      %v564 = vsel %vm255, %v502, 0
      %v567 = vsel %vm255, %v510, 0
      %v570 = vsel %vm255, %v518, 0
      %v573 = vsel %vm255, %v526, 0
      %v576 = vsel %vm255, %v534, 0
      %v579 = vsel %vm255, %v542, 0
      %v582 = vsel %vm255, %v550, 0
      %584 = vmatpush.bf16.msra.mxu0 0
      %585 = vmatpush.bf16.msra.mxu0 0
      %586 = vmatpush.bf16.msra.mxu0 0
      %587 = vmatpush.bf16.msra.mxu0 0
      %588 = vmatpush.bf16.msra.mxu0 0
      %589 = vmatpush.bf16.msra.mxu0 0
      %590 = vmatpush.bf16.msra.mxu0 %v560
      %591 = vmatpush.bf16.msra.mxu0 %v559
      %592 = vmatmul.bf16.gmra.mxu0 %v564
      %v593 = vpop.f32.mrf.mxu0
      %v594 = vadd.f32 0.0, %v593
      %v595 = vpop.f32.mrf.mxu0
      %v596 = vadd.f32 0.0, %v595
      %597 = vmatmul.bf16.gmra.mxu0 %v567
      %v598 = vpop.f32.mrf.mxu0
      %v599 = vadd.f32 0.0, %v598
      %v600 = vpop.f32.mrf.mxu0
      %v601 = vadd.f32 0.0, %v600
      %602 = vmatmul.bf16.gmra.mxu0 %v570
      %v603 = vpop.f32.mrf.mxu0
      %v604 = vadd.f32 0.0, %v603
      %v605 = vpop.f32.mrf.mxu0
      %v606 = vadd.f32 0.0, %v605
      %607 = vmatmul.bf16.gmra.mxu0 %v573
      %v608 = vpop.f32.mrf.mxu0
      %v609 = vadd.f32 0.0, %v608
      %v610 = vpop.f32.mrf.mxu0
      %v611 = vadd.f32 0.0, %v610
      %612 = vmatmul.bf16.gmra.mxu0 %v576
      %v613 = vpop.f32.mrf.mxu0
      %v614 = vadd.f32 0.0, %v613
      %v615 = vpop.f32.mrf.mxu0
      %v616 = vadd.f32 0.0, %v615
      %617 = vmatmul.bf16.gmra.mxu0 %v579
      %v618 = vpop.f32.mrf.mxu0
      %v619 = vadd.f32 0.0, %v618
      %v620 = vpop.f32.mrf.mxu0
      %v621 = vadd.f32 0.0, %v620
      %622 = vmatmul.bf16.gmra.mxu0 %v582
      %v623 = vpop.f32.mrf.mxu0
      %v624 = vadd.f32 0.0, %v623
      %v625 = vpop.f32.mrf.mxu0
      %v626 = vadd.f32 0.0, %v625
      %627 = vdwg.mxu0
      %v628 = vadd.f32 %v399, %v594
      %v629 = vadd.f32 %v401, %v596
      %v630 = vadd.f32 %v404, %v599
      %v631 = vadd.f32 %v406, %v601
      %v632 = vadd.f32 %v409, %v604
      %v633 = vadd.f32 %v411, %v606
      %v634 = vadd.f32 %v414, %v609
      %v635 = vadd.f32 %v416, %v611
      %v636 = vadd.f32 %v419, %v614
      %v637 = vadd.f32 %v421, %v616
      %v638 = vadd.f32 %v424, %v619
      %v639 = vadd.f32 %v426, %v621
      %v640 = vadd.f32 %v429, %v624
      %v641 = vadd.f32 %v431, %v626
      %v642 = vld [vmem:[%s165 + $0x38] sm:$0xf]
      %v643 = vld [vmem:[%s1 + $0x30] sm:$0xf]
      %v644 = vld [vmem:[%s1 + $0x34] sm:$0xf]
      %v645 = vld [vmem:[%s1 + $0x38] sm:$0xf]
      %v646 = vld [vmem:[%s1 + $0x3c] sm:$0xf]
      %v648 = vunpack.c.l.b16 %v642
      %v649 = vpack.c.b16 %v469, %v468
      %v650 = vpack.c.b16 %v471, %v470
      %v651 = vpack.c.b16 %v473, %v472
      %v652 = vpack.c.b16 %v475, %v474
      %v653 = vpack.c.b16 %v477, %v476
      %v654 = vpack.c.b16 %v479, %v478
      %v655 = vpack.c.b16 %v648, %v480
      %v660 = vunpack.c.l.b16 %v643
      %v661 = vunpack.c.l.b16 %v644
      %v662 = vunpack.c.l.b16 %v645
      %v663 = vunpack.c.l.b16 %v646
      %v664 = vpack.c.b16 %v661, %v660
      %v665 = vpack.c.b16 %v663, %v662
      %v669 = vsel %vm255, %v649, 0
      %v672 = vsel %vm255, %v650, 0
      %v675 = vsel %vm255, %v651, 0
      %v678 = vsel %vm255, %v652, 0
      %v681 = vsel %vm255, %v653, 0
      %v684 = vsel %vm255, %v654, 0
      %v687 = vsel %vm255, %v655, 0
      %689 = vmatpush.bf16.msra.mxu0 0
      %690 = vmatpush.bf16.msra.mxu0 0
      %691 = vmatpush.bf16.msra.mxu0 0
      %692 = vmatpush.bf16.msra.mxu0 0
      %693 = vmatpush.bf16.msra.mxu0 0
      %694 = vmatpush.bf16.msra.mxu0 0
      %695 = vmatpush.bf16.msra.mxu0 %v665
      %696 = vmatpush.bf16.msra.mxu0 %v664
      %697 = vmatmul.bf16.gmra.mxu0 %v669
      %v698 = vpop.f32.mrf.mxu0
      %v699 = vadd.f32 0.0, %v698
      %v700 = vpop.f32.mrf.mxu0
      %v701 = vadd.f32 0.0, %v700
      %702 = vmatmul.bf16.gmra.mxu0 %v672
      %v703 = vpop.f32.mrf.mxu0
      %v704 = vadd.f32 0.0, %v703
      %v705 = vpop.f32.mrf.mxu0
      %v706 = vadd.f32 0.0, %v705
      %707 = vmatmul.bf16.gmra.mxu0 %v675
      %v708 = vpop.f32.mrf.mxu0
      %v709 = vadd.f32 0.0, %v708
      %v710 = vpop.f32.mrf.mxu0
      %v711 = vadd.f32 0.0, %v710
      %712 = vmatmul.bf16.gmra.mxu0 %v678
      %v713 = vpop.f32.mrf.mxu0
      %v714 = vadd.f32 0.0, %v713
      %v715 = vpop.f32.mrf.mxu0
      %v716 = vadd.f32 0.0, %v715
      %717 = vmatmul.bf16.gmra.mxu0 %v681
      %v718 = vpop.f32.mrf.mxu0
      %v719 = vadd.f32 0.0, %v718
      %v720 = vpop.f32.mrf.mxu0
      %v721 = vadd.f32 0.0, %v720
      %722 = vmatmul.bf16.gmra.mxu0 %v684
      %v723 = vpop.f32.mrf.mxu0
      %v724 = vadd.f32 0.0, %v723
      %v725 = vpop.f32.mrf.mxu0
      %v726 = vadd.f32 0.0, %v725
      %727 = vmatmul.bf16.gmra.mxu0 %v687
      %v728 = vpop.f32.mrf.mxu0
      %v729 = vadd.f32 0.0, %v728
      %v730 = vpop.f32.mrf.mxu0
      %v731 = vadd.f32 0.0, %v730
      %732 = vdwg.mxu0
      %v733 = vadd.f32 %v628, %v699
      %v734 = vadd.f32 %v629, %v701
      %v735 = vadd.f32 %v630, %v704
      %v736 = vadd.f32 %v631, %v706
      %v737 = vadd.f32 %v632, %v709
      %v738 = vadd.f32 %v633, %v711
      %v739 = vadd.f32 %v634, %v714
      %v740 = vadd.f32 %v635, %v716
      %v741 = vadd.f32 %v636, %v719
      %v742 = vadd.f32 %v637, %v721
      %v743 = vadd.f32 %v638, %v724
      %v744 = vadd.f32 %v639, %v726
      %v745 = vadd.f32 %v640, %v729
      %v746 = vadd.f32 %v641, %v731
      %v747 = vld [vmem:[%s165 + $0x48] sm:$0xf]
      %v748 = vld [vmem:[%s165 + $0x4c] sm:$0xf]
      %v749 = vld [vmem:[%s165 + $0x50] sm:$0xf]
      %v750 = vld [vmem:[%s165 + $0x54] sm:$0xf]
      %v751 = vld [vmem:[%s165 + $0x58] sm:$0xf]
      %v752 = vld [vmem:[%s165 + $0x5c] sm:$0xf]
      %v753 = vld [vmem:[%s165 + $0x60] sm:$0xf]
      %v754 = vld [vmem:[%s165 + $0x64] sm:$0xf]
      %v755 = vld [vmem:[%s165 + $0x68] sm:$0xf]
      %v756 = vld [vmem:[%s165 + $0x6c] sm:$0xf]
      %v757 = vld [vmem:[%s165 + $0x70] sm:$0xf]
      %v758 = vld [vmem:[%s165 + $0x74] sm:$0xf]
      %v759 = vld [vmem:[%s165 + $0x78] sm:$0xf]
      %v760 = vld [vmem:[%s165 + $0x7c] sm:$0xf]
      %v761 = vld [vmem:[%s1 + $0x40] sm:$0xf]
      %v762 = vld [vmem:[%s1 + $0x44] sm:$0xf]
      %v763 = vld [vmem:[%s1 + $0x48] sm:$0xf]
      %v764 = vld [vmem:[%s1 + $0x4c] sm:$0xf]
      %v779 = vunpack.c.l.b16 %v747
      %v780 = vunpack.c.l.b16 %v748
      %v781 = vunpack.c.l.b16 %v749
      %v782 = vunpack.c.l.b16 %v750
      %v783 = vunpack.c.l.b16 %v751
      %v784 = vunpack.c.l.b16 %v752
      %v785 = vunpack.c.l.b16 %v753
      %v786 = vunpack.c.l.b16 %v754
      %v787 = vunpack.c.l.b16 %v755
      %v788 = vunpack.c.l.b16 %v756
      %v789 = vunpack.c.l.b16 %v757
      %v790 = vunpack.c.l.b16 %v758
      %v791 = vunpack.c.l.b16 %v759
      %v792 = vunpack.c.l.b16 %v760
      %v793 = vpack.c.b16 %v780, %v779
      %v794 = vpack.c.b16 %v782, %v781
      %v795 = vpack.c.b16 %v784, %v783
      %v796 = vpack.c.b16 %v786, %v785
      %v797 = vpack.c.b16 %v788, %v787
      %v798 = vpack.c.b16 %v790, %v789
      %v799 = vpack.c.b16 %v792, %v791
      %v804 = vunpack.c.l.b16 %v761
      %v805 = vunpack.c.l.b16 %v762
      %v806 = vunpack.c.l.b16 %v763
      %v807 = vunpack.c.l.b16 %v764
      %v808 = vpack.c.b16 %v805, %v804
      %v809 = vpack.c.b16 %v807, %v806
      %v813 = vsel %vm255, %v793, 0
      %v816 = vsel %vm255, %v794, 0
      %v819 = vsel %vm255, %v795, 0
      %v822 = vsel %vm255, %v796, 0
      %v825 = vsel %vm255, %v797, 0
      %v828 = vsel %vm255, %v798, 0
      %v831 = vsel %vm255, %v799, 0
      %833 = vmatpush.bf16.msra.mxu0 0
      %834 = vmatpush.bf16.msra.mxu0 0
      %835 = vmatpush.bf16.msra.mxu0 0
      %836 = vmatpush.bf16.msra.mxu0 0
      %837 = vmatpush.bf16.msra.mxu0 0
      %838 = vmatpush.bf16.msra.mxu0 0
      %839 = vmatpush.bf16.msra.mxu0 %v809
      %840 = vmatpush.bf16.msra.mxu0 %v808
      %841 = vmatmul.bf16.gmra.mxu0 %v813
      %v842 = vpop.f32.mrf.mxu0
      %v843 = vadd.f32 0.0, %v842
      %v844 = vpop.f32.mrf.mxu0
      %v845 = vadd.f32 0.0, %v844
      %846 = vmatmul.bf16.gmra.mxu0 %v816
      %v847 = vpop.f32.mrf.mxu0
      %v848 = vadd.f32 0.0, %v847
      %v849 = vpop.f32.mrf.mxu0
      %v850 = vadd.f32 0.0, %v849
      %851 = vmatmul.bf16.gmra.mxu0 %v819
      %v852 = vpop.f32.mrf.mxu0
      %v853 = vadd.f32 0.0, %v852
      %v854 = vpop.f32.mrf.mxu0
      %v855 = vadd.f32 0.0, %v854
      %856 = vmatmul.bf16.gmra.mxu0 %v822
      %v857 = vpop.f32.mrf.mxu0
      %v858 = vadd.f32 0.0, %v857
      %v859 = vpop.f32.mrf.mxu0
      %v860 = vadd.f32 0.0, %v859
      %861 = vmatmul.bf16.gmra.mxu0 %v825
      %v862 = vpop.f32.mrf.mxu0
      %v863 = vadd.f32 0.0, %v862
      %v864 = vpop.f32.mrf.mxu0
      %v865 = vadd.f32 0.0, %v864
      %866 = vmatmul.bf16.gmra.mxu0 %v828
      %v867 = vpop.f32.mrf.mxu0
      %v868 = vadd.f32 0.0, %v867
      %v869 = vpop.f32.mrf.mxu0
      %v870 = vadd.f32 0.0, %v869
      %871 = vmatmul.bf16.gmra.mxu0 %v831
      %v872 = vpop.f32.mrf.mxu0
      %v873 = vadd.f32 0.0, %v872
      %v874 = vpop.f32.mrf.mxu0
      %v875 = vadd.f32 0.0, %v874
      %876 = vdwg.mxu0
      %v877 = vadd.f32 %v733, %v843
      %v878 = vadd.f32 %v734, %v845
      %v879 = vadd.f32 %v735, %v848
      %v880 = vadd.f32 %v736, %v850
      %v881 = vadd.f32 %v737, %v853
      %v882 = vadd.f32 %v738, %v855
      %v883 = vadd.f32 %v739, %v858
      %v884 = vadd.f32 %v740, %v860
      %v885 = vadd.f32 %v741, %v863
      %v886 = vadd.f32 %v742, %v865
      %v887 = vadd.f32 %v743, %v868
      %v888 = vadd.f32 %v744, %v870
      %v889 = vadd.f32 %v745, %v873
      %v890 = vadd.f32 %v746, %v875
      %v891 = vld [vmem:[%s165 + $0x4] sm:$0xf]
      %v892 = vld [vmem:[%s165 + $0x8] sm:$0xf]
      %v893 = vld [vmem:[%s165 + $0xc] sm:$0xf]
      %v894 = vld [vmem:[%s165 + $0x10] sm:$0xf]
      %v895 = vld [vmem:[%s165 + $0x14] sm:$0xf]
      %v896 = vld [vmem:[%s165 + $0x18] sm:$0xf]
      %v897 = vld [vmem:[%s165 + $0x1c] sm:$0xf]
      %v898 = vld [vmem:[%s165 + $0x20] sm:$0xf]
      %v899 = vld [vmem:[%s165 + $0x24] sm:$0xf]
      %v900 = vld [vmem:[%s165 + $0x28] sm:$0xf]
      %v901 = vld [vmem:[%s165 + $0x2c] sm:$0xf]
      %v902 = vld [vmem:[%s165 + $0x30] sm:$0xf]
      %v903 = vld [vmem:[%s165 + $0x34] sm:$0xf]
      %v904 = vld [vmem:[%s165 + $0x38] sm:$0xf]
      %v905 = vld [vmem:[%s165 + $0x3c] sm:$0x1]
      %v906 = vld [vmem:[%s1 + $0x50] sm:$0xf]
      %v907 = vld [vmem:[%s1 + $0x54] sm:$0xf]
      %v908 = vld [vmem:[%s1 + $0x58] sm:$0xf]
      %v909 = vld [vmem:[%s1 + $0x5c] sm:$0xf]
      %v925 = vunpack.c.l.b16 %v891
      %v926 = vunpack.c.l.b16 %v892
      %v927 = vunpack.c.l.b16 %v893
      %v928 = vunpack.c.l.b16 %v894
      %v929 = vunpack.c.l.b16 %v895
      %v930 = vunpack.c.l.b16 %v896
      %v931 = vunpack.c.l.b16 %v897
      %v932 = vunpack.c.l.b16 %v898
      %v933 = vunpack.c.l.b16 %v899
      %v934 = vunpack.c.l.b16 %v900
      %v935 = vunpack.c.l.b16 %v901
      %v936 = vunpack.c.l.b16 %v902
      %v937 = vunpack.c.l.b16 %v903
      %v938 = vunpack.c.l.b16 %v904
      %v939 = vunpack.c.l.b16 %v905
      %v940 = vpack.c.b16 %v926, %v925
      %v941 = vpack.c.b16 %v928, %v927
      %v942 = vpack.c.b16 %v930, %v929
      %v943 = vpack.c.b16 %v932, %v931
      %v944 = vpack.c.b16 %v934, %v933
      %v945 = vpack.c.b16 %v936, %v935
      %v946 = vpack.c.b16 %v938, %v937
      %v947 = vpack.c.b16 %v939, %v939
      %v949 = vshrl.u32 %v940, 16
      %v951 = vshll.u32 %v940, 16
      %v953 = vrot.slane %v951, 1
      %v954 = vor.u32 %v949, %v953
      %v956 = vshll.u32 %v941, 16
      %v958 = vrot.slane %v956, 1
      %v959 = vsel %vm490, %v954, %v958
      %v960 = vshrl.u32 %v941, 16
      %v962 = vor.u32 %v960, %v958
      %v964 = vshll.u32 %v942, 16
      %v966 = vrot.slane %v964, 1
      %v967 = vsel %vm490, %v962, %v966
      %v968 = vshrl.u32 %v942, 16
      %v970 = vor.u32 %v968, %v966
      %v972 = vshll.u32 %v943, 16
      %v974 = vrot.slane %v972, 1
      %v975 = vsel %vm490, %v970, %v974
      %v976 = vshrl.u32 %v943, 16
      %v978 = vor.u32 %v976, %v974
      %v980 = vshll.u32 %v944, 16
      %v982 = vrot.slane %v980, 1
      %v983 = vsel %vm490, %v978, %v982
      %v984 = vshrl.u32 %v944, 16
      %v986 = vor.u32 %v984, %v982
      %v988 = vshll.u32 %v945, 16
      %v990 = vrot.slane %v988, 1
      %v991 = vsel %vm490, %v986, %v990
      %v992 = vshrl.u32 %v945, 16
      %v994 = vor.u32 %v992, %v990
      %v996 = vshll.u32 %v946, 16
      %v998 = vrot.slane %v996, 1
      %v999 = vsel %vm490, %v994, %v998
      %v1000 = vshrl.u32 %v946, 16
      %v1002 = vor.u32 %v1000, %v998
      %v1004 = vshll.u32 %v947, 16
      %v1006 = vrot.slane %v1004, 1
      %v1007 = vsel %vm490, %v1002, %v1006
      %v1012 = vunpack.c.l.b16 %v906
      %v1013 = vunpack.c.l.b16 %v907
      %v1014 = vunpack.c.l.b16 %v908
      %v1015 = vunpack.c.l.b16 %v909
      %v1016 = vpack.c.b16 %v1013, %v1012
      %v1017 = vpack.c.b16 %v1015, %v1014
      %v1021 = vsel %vm255, %v959, 0
      %v1024 = vsel %vm255, %v967, 0
      %v1027 = vsel %vm255, %v975, 0
      %v1030 = vsel %vm255, %v983, 0
      %v1033 = vsel %vm255, %v991, 0
      %v1036 = vsel %vm255, %v999, 0
      %v1039 = vsel %vm255, %v1007, 0
      %1041 = vmatpush.bf16.msra.mxu0 0
      %1042 = vmatpush.bf16.msra.mxu0 0
      %1043 = vmatpush.bf16.msra.mxu0 0
      %1044 = vmatpush.bf16.msra.mxu0 0
      %1045 = vmatpush.bf16.msra.mxu0 0
      %1046 = vmatpush.bf16.msra.mxu0 0
      %1047 = vmatpush.bf16.msra.mxu0 %v1017
      %1048 = vmatpush.bf16.msra.mxu0 %v1016
      %1049 = vmatmul.bf16.gmra.mxu0 %v1021
      %v1050 = vpop.f32.mrf.mxu0
      %v1051 = vadd.f32 0.0, %v1050
      %v1052 = vpop.f32.mrf.mxu0
      %v1053 = vadd.f32 0.0, %v1052
      %1054 = vmatmul.bf16.gmra.mxu0 %v1024
      %v1055 = vpop.f32.mrf.mxu0
      %v1056 = vadd.f32 0.0, %v1055
      %v1057 = vpop.f32.mrf.mxu0
      %v1058 = vadd.f32 0.0, %v1057
      %1059 = vmatmul.bf16.gmra.mxu0 %v1027
      %v1060 = vpop.f32.mrf.mxu0
      %v1061 = vadd.f32 0.0, %v1060
      %v1062 = vpop.f32.mrf.mxu0
      %v1063 = vadd.f32 0.0, %v1062
      %1064 = vmatmul.bf16.gmra.mxu0 %v1030
      %v1065 = vpop.f32.mrf.mxu0
      %v1066 = vadd.f32 0.0, %v1065
      %v1067 = vpop.f32.mrf.mxu0
      %v1068 = vadd.f32 0.0, %v1067
      %1069 = vmatmul.bf16.gmra.mxu0 %v1033
      %v1070 = vpop.f32.mrf.mxu0
      %v1071 = vadd.f32 0.0, %v1070
      %v1072 = vpop.f32.mrf.mxu0
      %v1073 = vadd.f32 0.0, %v1072
      %1074 = vmatmul.bf16.gmra.mxu0 %v1036
      %v1075 = vpop.f32.mrf.mxu0
      %v1076 = vadd.f32 0.0, %v1075
      %v1077 = vpop.f32.mrf.mxu0
      %v1078 = vadd.f32 0.0, %v1077
      %1079 = vmatmul.bf16.gmra.mxu0 %v1039
      %v1080 = vpop.f32.mrf.mxu0
      %v1081 = vadd.f32 0.0, %v1080
      %v1082 = vpop.f32.mrf.mxu0
      %v1083 = vadd.f32 0.0, %v1082
      %1084 = vdwg.mxu0
      %v1085 = vadd.f32 %v877, %v1051
      %v1086 = vadd.f32 %v878, %v1053
      %v1087 = vadd.f32 %v879, %v1056
      %v1088 = vadd.f32 %v880, %v1058
      %v1089 = vadd.f32 %v881, %v1061
      %v1090 = vadd.f32 %v882, %v1063
      %v1091 = vadd.f32 %v883, %v1066
      %v1092 = vadd.f32 %v884, %v1068
      %v1093 = vadd.f32 %v885, %v1071
      %v1094 = vadd.f32 %v886, %v1073
      %v1095 = vadd.f32 %v887, %v1076
      %v1096 = vadd.f32 %v888, %v1078
      %v1097 = vadd.f32 %v889, %v1081
      %v1098 = vadd.f32 %v890, %v1083
      %v1099 = vld [vmem:[%s165 + $0x3c] sm:$0xf]
      %v1100 = vld [vmem:[%s1 + $0x60] sm:$0xf]
      %v1101 = vld [vmem:[%s1 + $0x64] sm:$0xf]
      %v1102 = vld [vmem:[%s1 + $0x68] sm:$0xf]
      %v1103 = vld [vmem:[%s1 + $0x6c] sm:$0xf]
      %v1105 = vunpack.c.l.b16 %v1099
      %v1106 = vpack.c.b16 %v927, %v926
      %v1107 = vpack.c.b16 %v929, %v928
      %v1108 = vpack.c.b16 %v931, %v930
      %v1109 = vpack.c.b16 %v933, %v932
      %v1110 = vpack.c.b16 %v935, %v934
      %v1111 = vpack.c.b16 %v937, %v936
      %v1112 = vpack.c.b16 %v1105, %v938
      %v1117 = vunpack.c.l.b16 %v1100
      %v1118 = vunpack.c.l.b16 %v1101
      %v1119 = vunpack.c.l.b16 %v1102
      %v1120 = vunpack.c.l.b16 %v1103
      %v1121 = vpack.c.b16 %v1118, %v1117
      %v1122 = vpack.c.b16 %v1120, %v1119
      %v1126 = vsel %vm255, %v1106, 0
      %v1129 = vsel %vm255, %v1107, 0
      %v1132 = vsel %vm255, %v1108, 0
      %v1135 = vsel %vm255, %v1109, 0
      %v1138 = vsel %vm255, %v1110, 0
      %v1141 = vsel %vm255, %v1111, 0
      %v1144 = vsel %vm255, %v1112, 0
      %1146 = vmatpush.bf16.msra.mxu0 0
      %1147 = vmatpush.bf16.msra.mxu0 0
      %1148 = vmatpush.bf16.msra.mxu0 0
      %1149 = vmatpush.bf16.msra.mxu0 0
      %1150 = vmatpush.bf16.msra.mxu0 0
      %1151 = vmatpush.bf16.msra.mxu0 0
      %1152 = vmatpush.bf16.msra.mxu0 %v1122
      %1153 = vmatpush.bf16.msra.mxu0 %v1121
      %1154 = vmatmul.bf16.gmra.mxu0 %v1126
      %v1155 = vpop.f32.mrf.mxu0
      %v1156 = vadd.f32 0.0, %v1155
      %v1157 = vpop.f32.mrf.mxu0
      %v1158 = vadd.f32 0.0, %v1157
      %1159 = vmatmul.bf16.gmra.mxu0 %v1129
      %v1160 = vpop.f32.mrf.mxu0
      %v1161 = vadd.f32 0.0, %v1160
      %v1162 = vpop.f32.mrf.mxu0
      %v1163 = vadd.f32 0.0, %v1162
      %1164 = vmatmul.bf16.gmra.mxu0 %v1132
      %v1165 = vpop.f32.mrf.mxu0
      %v1166 = vadd.f32 0.0, %v1165
      %v1167 = vpop.f32.mrf.mxu0
      %v1168 = vadd.f32 0.0, %v1167
      %1169 = vmatmul.bf16.gmra.mxu0 %v1135
      %v1170 = vpop.f32.mrf.mxu0
      %v1171 = vadd.f32 0.0, %v1170
      %v1172 = vpop.f32.mrf.mxu0
      %v1173 = vadd.f32 0.0, %v1172
      %1174 = vmatmul.bf16.gmra.mxu0 %v1138
      %v1175 = vpop.f32.mrf.mxu0
      %v1176 = vadd.f32 0.0, %v1175
      %v1177 = vpop.f32.mrf.mxu0
      %v1178 = vadd.f32 0.0, %v1177
      %1179 = vmatmul.bf16.gmra.mxu0 %v1141
      %v1180 = vpop.f32.mrf.mxu0
      %v1181 = vadd.f32 0.0, %v1180
      %v1182 = vpop.f32.mrf.mxu0
      %v1183 = vadd.f32 0.0, %v1182
      %1184 = vmatmul.bf16.gmra.mxu0 %v1144
      %v1185 = vpop.f32.mrf.mxu0
      %v1186 = vadd.f32 0.0, %v1185
      %v1187 = vpop.f32.mrf.mxu0
      %v1188 = vadd.f32 0.0, %v1187
      %1189 = vdwg.mxu0
      %v1190 = vadd.f32 %v1085, %v1156
      %v1191 = vadd.f32 %v1086, %v1158
      %v1192 = vadd.f32 %v1087, %v1161
      %v1193 = vadd.f32 %v1088, %v1163
      %v1194 = vadd.f32 %v1089, %v1166
      %v1195 = vadd.f32 %v1090, %v1168
      %v1196 = vadd.f32 %v1091, %v1171
      %v1197 = vadd.f32 %v1092, %v1173
      %v1198 = vadd.f32 %v1093, %v1176
      %v1199 = vadd.f32 %v1094, %v1178
      %v1200 = vadd.f32 %v1095, %v1181
      %v1201 = vadd.f32 %v1096, %v1183
      %v1202 = vadd.f32 %v1097, %v1186
      %v1203 = vadd.f32 %v1098, %v1188
      %v1204 = vld [vmem:[%s165 + $0x4c] sm:$0xf]
      %v1205 = vld [vmem:[%s165 + $0x50] sm:$0xf]
      %v1206 = vld [vmem:[%s165 + $0x54] sm:$0xf]
      %v1207 = vld [vmem:[%s165 + $0x58] sm:$0xf]
      %v1208 = vld [vmem:[%s165 + $0x5c] sm:$0xf]
      %v1209 = vld [vmem:[%s165 + $0x60] sm:$0xf]
      %v1210 = vld [vmem:[%s165 + $0x64] sm:$0xf]
      %v1211 = vld [vmem:[%s165 + $0x68] sm:$0xf]
      %v1212 = vld [vmem:[%s165 + $0x6c] sm:$0xf]
      %v1213 = vld [vmem:[%s165 + $0x70] sm:$0xf]
      %v1214 = vld [vmem:[%s165 + $0x74] sm:$0xf]
      %v1215 = vld [vmem:[%s165 + $0x78] sm:$0xf]
      %v1216 = vld [vmem:[%s165 + $0x7c] sm:$0xf]
      %v1217 = vld [vmem:[%s165 + $0x80] sm:$0xf]
      %v1218 = vld [vmem:[%s1 + $0x70] sm:$0xf]
      %v1219 = vld [vmem:[%s1 + $0x74] sm:$0xf]
      %v1220 = vld [vmem:[%s1 + $0x78] sm:$0xf]
      %v1221 = vld [vmem:[%s1 + $0x7c] sm:$0xf]
      %v1236 = vunpack.c.l.b16 %v1204
      %v1237 = vunpack.c.l.b16 %v1205
      %v1238 = vunpack.c.l.b16 %v1206
      %v1239 = vunpack.c.l.b16 %v1207
      %v1240 = vunpack.c.l.b16 %v1208
      %v1241 = vunpack.c.l.b16 %v1209
      %v1242 = vunpack.c.l.b16 %v1210
      %v1243 = vunpack.c.l.b16 %v1211
      %v1244 = vunpack.c.l.b16 %v1212
      %v1245 = vunpack.c.l.b16 %v1213
      %v1246 = vunpack.c.l.b16 %v1214
      %v1247 = vunpack.c.l.b16 %v1215
      %v1248 = vunpack.c.l.b16 %v1216
      %v1249 = vunpack.c.l.b16 %v1217
      %v1250 = vpack.c.b16 %v1237, %v1236
      %v1251 = vpack.c.b16 %v1239, %v1238
      %v1252 = vpack.c.b16 %v1241, %v1240
      %v1253 = vpack.c.b16 %v1243, %v1242
      %v1254 = vpack.c.b16 %v1245, %v1244
      %v1255 = vpack.c.b16 %v1247, %v1246
      %v1256 = vpack.c.b16 %v1249, %v1248
      %v1261 = vunpack.c.l.b16 %v1218
      %v1262 = vunpack.c.l.b16 %v1219
      %v1263 = vunpack.c.l.b16 %v1220
      %v1264 = vunpack.c.l.b16 %v1221
      %v1265 = vpack.c.b16 %v1262, %v1261
      %v1266 = vpack.c.b16 %v1264, %v1263
      %v1270 = vsel %vm255, %v1250, 0
      %v1273 = vsel %vm255, %v1251, 0
      %v1276 = vsel %vm255, %v1252, 0
      %v1279 = vsel %vm255, %v1253, 0
      %v1282 = vsel %vm255, %v1254, 0
      %v1285 = vsel %vm255, %v1255, 0
      %v1288 = vsel %vm255, %v1256, 0
      %1290 = vmatpush.bf16.msra.mxu0 0
      %1291 = vmatpush.bf16.msra.mxu0 0
      %1292 = vmatpush.bf16.msra.mxu0 0
      %1293 = vmatpush.bf16.msra.mxu0 0
      %1294 = vmatpush.bf16.msra.mxu0 0
      %1295 = vmatpush.bf16.msra.mxu0 0
      %1296 = vmatpush.bf16.msra.mxu0 %v1266
      %1297 = vmatpush.bf16.msra.mxu0 %v1265
      %1298 = vmatmul.bf16.gmra.mxu0 %v1270
      %v1299 = vpop.f32.mrf.mxu0
      %v1300 = vadd.f32 0.0, %v1299
      %v1301 = vpop.f32.mrf.mxu0
      %v1302 = vadd.f32 0.0, %v1301
      %1303 = vmatmul.bf16.gmra.mxu0 %v1273
      %v1304 = vpop.f32.mrf.mxu0
      %v1305 = vadd.f32 0.0, %v1304
      %v1306 = vpop.f32.mrf.mxu0
      %v1307 = vadd.f32 0.0, %v1306
      %1308 = vmatmul.bf16.gmra.mxu0 %v1276
      %v1309 = vpop.f32.mrf.mxu0
      %v1310 = vadd.f32 0.0, %v1309
      %v1311 = vpop.f32.mrf.mxu0
      %v1312 = vadd.f32 0.0, %v1311
      %1313 = vmatmul.bf16.gmra.mxu0 %v1279
      %v1314 = vpop.f32.mrf.mxu0
      %v1315 = vadd.f32 0.0, %v1314
      %v1316 = vpop.f32.mrf.mxu0
      %v1317 = vadd.f32 0.0, %v1316
      %1318 = vmatmul.bf16.gmra.mxu0 %v1282
      %v1319 = vpop.f32.mrf.mxu0
      %v1320 = vadd.f32 0.0, %v1319
      %v1321 = vpop.f32.mrf.mxu0
      %v1322 = vadd.f32 0.0, %v1321
      %1323 = vmatmul.bf16.gmra.mxu0 %v1285
      %v1324 = vpop.f32.mrf.mxu0
      %v1325 = vadd.f32 0.0, %v1324
      %v1326 = vpop.f32.mrf.mxu0
      %v1327 = vadd.f32 0.0, %v1326
      %1328 = vmatmul.bf16.gmra.mxu0 %v1288
      %v1329 = vpop.f32.mrf.mxu0
      %v1330 = vadd.f32 0.0, %v1329
      %v1331 = vpop.f32.mrf.mxu0
      %v1332 = vadd.f32 0.0, %v1331
      %1333 = vdwg.mxu0
      %v1334 = vadd.f32 %v1190, %v1300
      %v1335 = vadd.f32 %v1191, %v1302
      %v1336 = vadd.f32 %v1192, %v1305
      %v1337 = vadd.f32 %v1193, %v1307
      %v1338 = vadd.f32 %v1194, %v1310
      %v1339 = vadd.f32 %v1195, %v1312
      %v1340 = vadd.f32 %v1196, %v1315
      %v1341 = vadd.f32 %v1197, %v1317
      %v1342 = vadd.f32 %v1198, %v1320
      %v1343 = vadd.f32 %v1199, %v1322
      %v1344 = vadd.f32 %v1200, %v1325
      %v1345 = vadd.f32 %v1201, %v1327
      %v1346 = vadd.f32 %v1202, %v1330
      %v1347 = vadd.f32 %v1203, %v1332
      %v1348 = vld [vmem:[%s165 + $0x8] sm:$0xf]
      %v1349 = vld [vmem:[%s165 + $0xc] sm:$0xf]
      %v1350 = vld [vmem:[%s165 + $0x10] sm:$0xf]
      %v1351 = vld [vmem:[%s165 + $0x14] sm:$0xf]
      %v1352 = vld [vmem:[%s165 + $0x18] sm:$0xf]
      %v1353 = vld [vmem:[%s165 + $0x1c] sm:$0xf]
      %v1354 = vld [vmem:[%s165 + $0x20] sm:$0xf]
      %v1355 = vld [vmem:[%s165 + $0x24] sm:$0xf]
      %v1356 = vld [vmem:[%s165 + $0x28] sm:$0xf]
      %v1357 = vld [vmem:[%s165 + $0x2c] sm:$0xf]
      %v1358 = vld [vmem:[%s165 + $0x30] sm:$0xf]
      %v1359 = vld [vmem:[%s165 + $0x34] sm:$0xf]
      %v1360 = vld [vmem:[%s165 + $0x38] sm:$0xf]
      %v1361 = vld [vmem:[%s165 + $0x3c] sm:$0xf]
      %v1362 = vld [vmem:[%s165 + $0x40] sm:$0x1]
      %v1363 = vld [vmem:[%s1 + $0x80] sm:$0xf]
      %v1364 = vld [vmem:[%s1 + $0x84] sm:$0xf]
      %v1365 = vld [vmem:[%s1 + $0x88] sm:$0xf]
      %v1366 = vld [vmem:[%s1 + $0x8c] sm:$0xf]
      %v1382 = vunpack.c.l.b16 %v1348
      %v1383 = vunpack.c.l.b16 %v1349
      %v1384 = vunpack.c.l.b16 %v1350
      %v1385 = vunpack.c.l.b16 %v1351
      %v1386 = vunpack.c.l.b16 %v1352
      %v1387 = vunpack.c.l.b16 %v1353
      %v1388 = vunpack.c.l.b16 %v1354
      %v1389 = vunpack.c.l.b16 %v1355
      %v1390 = vunpack.c.l.b16 %v1356
      %v1391 = vunpack.c.l.b16 %v1357
      %v1392 = vunpack.c.l.b16 %v1358
      %v1393 = vunpack.c.l.b16 %v1359
      %v1394 = vunpack.c.l.b16 %v1360
      %v1395 = vunpack.c.l.b16 %v1361
      %v1396 = vunpack.c.l.b16 %v1362
      %v1397 = vpack.c.b16 %v1383, %v1382
      %v1398 = vpack.c.b16 %v1385, %v1384
      %v1399 = vpack.c.b16 %v1387, %v1386
      %v1400 = vpack.c.b16 %v1389, %v1388
      %v1401 = vpack.c.b16 %v1391, %v1390
      %v1402 = vpack.c.b16 %v1393, %v1392
      %v1403 = vpack.c.b16 %v1395, %v1394
      %v1404 = vpack.c.b16 %v1396, %v1396
      %v1406 = vshrl.u32 %v1397, 16
      %v1408 = vshll.u32 %v1397, 16
      %v1410 = vrot.slane %v1408, 1
      %v1411 = vor.u32 %v1406, %v1410
      %v1413 = vshll.u32 %v1398, 16
      %v1415 = vrot.slane %v1413, 1
      %v1416 = vsel %vm490, %v1411, %v1415
      %v1417 = vshrl.u32 %v1398, 16
      %v1419 = vor.u32 %v1417, %v1415
      %v1421 = vshll.u32 %v1399, 16
      %v1423 = vrot.slane %v1421, 1
      %v1424 = vsel %vm490, %v1419, %v1423
      %v1425 = vshrl.u32 %v1399, 16
      %v1427 = vor.u32 %v1425, %v1423
      %v1429 = vshll.u32 %v1400, 16
      %v1431 = vrot.slane %v1429, 1
      %v1432 = vsel %vm490, %v1427, %v1431
      %v1433 = vshrl.u32 %v1400, 16
      %v1435 = vor.u32 %v1433, %v1431
      %v1437 = vshll.u32 %v1401, 16
      %v1439 = vrot.slane %v1437, 1
      %v1440 = vsel %vm490, %v1435, %v1439
      %v1441 = vshrl.u32 %v1401, 16
      %v1443 = vor.u32 %v1441, %v1439
      %v1445 = vshll.u32 %v1402, 16
      %v1447 = vrot.slane %v1445, 1
      %v1448 = vsel %vm490, %v1443, %v1447
      %v1449 = vshrl.u32 %v1402, 16
      %v1451 = vor.u32 %v1449, %v1447
      %v1453 = vshll.u32 %v1403, 16
      %v1455 = vrot.slane %v1453, 1
      %v1456 = vsel %vm490, %v1451, %v1455
      %v1457 = vshrl.u32 %v1403, 16
      %v1459 = vor.u32 %v1457, %v1455
      %v1461 = vshll.u32 %v1404, 16
      %v1463 = vrot.slane %v1461, 1
      %v1464 = vsel %vm490, %v1459, %v1463
      %v1469 = vunpack.c.l.b16 %v1363
      %v1470 = vunpack.c.l.b16 %v1364
      %v1471 = vunpack.c.l.b16 %v1365
      %v1472 = vunpack.c.l.b16 %v1366
      %v1473 = vpack.c.b16 %v1470, %v1469
      %v1474 = vpack.c.b16 %v1472, %v1471
      %v1478 = vsel %vm255, %v1416, 0
      %v1481 = vsel %vm255, %v1424, 0
      %v1484 = vsel %vm255, %v1432, 0
      %v1487 = vsel %vm255, %v1440, 0
      %v1490 = vsel %vm255, %v1448, 0
      %v1493 = vsel %vm255, %v1456, 0
      %v1496 = vsel %vm255, %v1464, 0
      %1498 = vmatpush.bf16.msra.mxu0 0
      %1499 = vmatpush.bf16.msra.mxu0 0
      %1500 = vmatpush.bf16.msra.mxu0 0
      %1501 = vmatpush.bf16.msra.mxu0 0
      %1502 = vmatpush.bf16.msra.mxu0 0
      %1503 = vmatpush.bf16.msra.mxu0 0
      %1504 = vmatpush.bf16.msra.mxu0 %v1474
      %1505 = vmatpush.bf16.msra.mxu0 %v1473
      %1506 = vmatmul.bf16.gmra.mxu0 %v1478
      %v1507 = vpop.f32.mrf.mxu0
      %v1508 = vadd.f32 0.0, %v1507
      %v1509 = vpop.f32.mrf.mxu0
      %v1510 = vadd.f32 0.0, %v1509
      %1511 = vmatmul.bf16.gmra.mxu0 %v1481
      %v1512 = vpop.f32.mrf.mxu0
      %v1513 = vadd.f32 0.0, %v1512
      %v1514 = vpop.f32.mrf.mxu0
      %v1515 = vadd.f32 0.0, %v1514
      %1516 = vmatmul.bf16.gmra.mxu0 %v1484
      %v1517 = vpop.f32.mrf.mxu0
      %v1518 = vadd.f32 0.0, %v1517
      %v1519 = vpop.f32.mrf.mxu0
      %v1520 = vadd.f32 0.0, %v1519
      %1521 = vmatmul.bf16.gmra.mxu0 %v1487
      %v1522 = vpop.f32.mrf.mxu0
      %v1523 = vadd.f32 0.0, %v1522
      %v1524 = vpop.f32.mrf.mxu0
      %v1525 = vadd.f32 0.0, %v1524
      %1526 = vmatmul.bf16.gmra.mxu0 %v1490
      %v1527 = vpop.f32.mrf.mxu0
      %v1528 = vadd.f32 0.0, %v1527
      %v1529 = vpop.f32.mrf.mxu0
      %v1530 = vadd.f32 0.0, %v1529
      %1531 = vmatmul.bf16.gmra.mxu0 %v1493
      %v1532 = vpop.f32.mrf.mxu0
      %v1533 = vadd.f32 0.0, %v1532
      %v1534 = vpop.f32.mrf.mxu0
      %v1535 = vadd.f32 0.0, %v1534
      %1536 = vmatmul.bf16.gmra.mxu0 %v1496
      %v1537 = vpop.f32.mrf.mxu0
      %v1538 = vadd.f32 0.0, %v1537
      %v1539 = vpop.f32.mrf.mxu0
      %v1540 = vadd.f32 0.0, %v1539
      %1541 = vdwg.mxu0
      %v1542 = vadd.f32 %v1334, %v1508
      %v1543 = vadd.f32 %v1335, %v1510
      %v1544 = vadd.f32 %v1336, %v1513
      %v1545 = vadd.f32 %v1337, %v1515
      %v1546 = vadd.f32 %v1338, %v1518
      %v1547 = vadd.f32 %v1339, %v1520
      %v1548 = vadd.f32 %v1340, %v1523
      %v1549 = vadd.f32 %v1341, %v1525
      %v1550 = vadd.f32 %v1342, %v1528
      %v1551 = vadd.f32 %v1343, %v1530
      %v1552 = vadd.f32 %v1344, %v1533
      %v1553 = vadd.f32 %v1345, %v1535
      %v1554 = vadd.f32 %v1346, %v1538
      %v1555 = vadd.f32 %v1347, %v1540
      %v1556 = vld [vmem:[%s2] sm:$0x1]
      %v1558 = vperm.slane %v1556, 0
      %v1560 = vadd.f32 %v1542, %v1558
      %v1561 = vadd.f32 %v1543, %v1558
      %v1562 = vadd.f32 %v1544, %v1558
      %v1563 = vadd.f32 %v1545, %v1558
      %v1564 = vadd.f32 %v1546, %v1558
      %v1565 = vadd.f32 %v1547, %v1558
      %v1566 = vadd.f32 %v1548, %v1558
      %v1567 = vadd.f32 %v1549, %v1558
      %v1568 = vadd.f32 %v1550, %v1558
      %v1569 = vadd.f32 %v1551, %v1558
      %v1570 = vadd.f32 %v1552, %v1558
      %v1571 = vadd.f32 %v1553, %v1558
      %v1572 = vadd.f32 %v1554, %v1558
      %v1573 = vadd.f32 %v1555, %v1558
      %v1574 = vmax.f32 %v1560, 0.0
      %v1575 = vmax.f32 %v1561, 0.0
      %v1576 = vmax.f32 %v1562, 0.0
      %v1577 = vmax.f32 %v1563, 0.0
      %v1578 = vmax.f32 %v1564, 0.0
      %v1579 = vmax.f32 %v1565, 0.0
      %v1580 = vmax.f32 %v1566, 0.0
      %v1581 = vmax.f32 %v1567, 0.0
      %v1582 = vmax.f32 %v1568, 0.0
      %v1583 = vmax.f32 %v1569, 0.0
      %v1584 = vmax.f32 %v1570, 0.0
      %v1585 = vmax.f32 %v1571, 0.0
      %v1586 = vmax.f32 %v1572, 0.0
      %v1587 = vmax.f32 %v1573, 0.0
      %1588 = vmatpush.bf16.msra.mxu0 0
      %1589 = vmatpush.bf16.msra.mxu0 0
      %1590 = vmatpush.bf16.msra.mxu0 0
      %1591 = vmatpush.bf16.msra.mxu0 0
      %1592 = vmatpush.bf16.msra.mxu0 0
      %1593 = vmatpush.bf16.msra.mxu0 0
      %1594 = vmatpush.bf16.msra.mxu0 %v252
      %1595 = vmatpush.bf16.msra.mxu0 %v251
      %1596 = vmatmul.bf16.gmra.mxu0 %v564
      %v1597 = vpop.f32.mrf.mxu0
      %v1598 = vadd.f32 0.0, %v1597
      %v1599 = vpop.f32.mrf.mxu0
      %v1600 = vadd.f32 0.0, %v1599
      %1601 = vmatmul.bf16.gmra.mxu0 %v567
      %v1602 = vpop.f32.mrf.mxu0
      %v1603 = vadd.f32 0.0, %v1602
      %v1604 = vpop.f32.mrf.mxu0
      %v1605 = vadd.f32 0.0, %v1604
      %1606 = vmatmul.bf16.gmra.mxu0 %v570
      %v1607 = vpop.f32.mrf.mxu0
      %v1608 = vadd.f32 0.0, %v1607
      %v1609 = vpop.f32.mrf.mxu0
      %v1610 = vadd.f32 0.0, %v1609
      %1611 = vmatmul.bf16.gmra.mxu0 %v573
      %v1612 = vpop.f32.mrf.mxu0
      %v1613 = vadd.f32 0.0, %v1612
      %v1614 = vpop.f32.mrf.mxu0
      %v1615 = vadd.f32 0.0, %v1614
      %1616 = vmatmul.bf16.gmra.mxu0 %v576
      %v1617 = vpop.f32.mrf.mxu0
      %v1618 = vadd.f32 0.0, %v1617
      %v1619 = vpop.f32.mrf.mxu0
      %v1620 = vadd.f32 0.0, %v1619
      %1621 = vmatmul.bf16.gmra.mxu0 %v579
      %v1622 = vpop.f32.mrf.mxu0
      %v1623 = vadd.f32 0.0, %v1622
      %v1624 = vpop.f32.mrf.mxu0
      %v1625 = vadd.f32 0.0, %v1624
      %1626 = vmatmul.bf16.gmra.mxu0 %v582
      %v1627 = vpop.f32.mrf.mxu0
      %v1628 = vadd.f32 0.0, %v1627
      %v1629 = vpop.f32.mrf.mxu0
      %v1630 = vadd.f32 0.0, %v1629
      %1631 = vdwg.mxu0
      %1632 = vmatpush.bf16.msra.mxu0 0
      %1633 = vmatpush.bf16.msra.mxu0 0
      %1634 = vmatpush.bf16.msra.mxu0 0
      %1635 = vmatpush.bf16.msra.mxu0 0
      %1636 = vmatpush.bf16.msra.mxu0 0
      %1637 = vmatpush.bf16.msra.mxu0 0
      %1638 = vmatpush.bf16.msra.mxu0 %v365
      %1639 = vmatpush.bf16.msra.mxu0 %v364
      %1640 = vmatmul.bf16.gmra.mxu0 %v257
      %v1641 = vpop.f32.mrf.mxu0
      %v1642 = vadd.f32 %v1598, %v1641
      %v1643 = vpop.f32.mrf.mxu0
      %v1644 = vadd.f32 %v1600, %v1643
      %1645 = vmatmul.bf16.gmra.mxu0 %v260
      %v1646 = vpop.f32.mrf.mxu0
      %v1647 = vadd.f32 %v1603, %v1646
      %v1648 = vpop.f32.mrf.mxu0
      %v1649 = vadd.f32 %v1605, %v1648
      %1650 = vmatmul.bf16.gmra.mxu0 %v263
      %v1651 = vpop.f32.mrf.mxu0
      %v1652 = vadd.f32 %v1608, %v1651
      %v1653 = vpop.f32.mrf.mxu0
      %v1654 = vadd.f32 %v1610, %v1653
      %1655 = vmatmul.bf16.gmra.mxu0 %v266
      %v1656 = vpop.f32.mrf.mxu0
      %v1657 = vadd.f32 %v1613, %v1656
      %v1658 = vpop.f32.mrf.mxu0
      %v1659 = vadd.f32 %v1615, %v1658
      %1660 = vmatmul.bf16.gmra.mxu0 %v269
      %v1661 = vpop.f32.mrf.mxu0
      %v1662 = vadd.f32 %v1618, %v1661
      %v1663 = vpop.f32.mrf.mxu0
      %v1664 = vadd.f32 %v1620, %v1663
      %1665 = vmatmul.bf16.gmra.mxu0 %v272
      %v1666 = vpop.f32.mrf.mxu0
      %v1667 = vadd.f32 %v1623, %v1666
      %v1668 = vpop.f32.mrf.mxu0
      %v1669 = vadd.f32 %v1625, %v1668
      %1670 = vmatmul.bf16.gmra.mxu0 %v275
      %v1671 = vpop.f32.mrf.mxu0
      %v1672 = vadd.f32 %v1628, %v1671
      %v1673 = vpop.f32.mrf.mxu0
      %v1674 = vadd.f32 %v1630, %v1673
      %1675 = vdwg.mxu0
      %v1676 = vld [vmem:[%s165 + $0x44] sm:$0xf]
      %v1677 = vld [vmem:[%s165 + $0x7c] sm:$0x1]
      %v1680 = vunpack.c.l.b16 %v1676
      %v1681 = vunpack.c.l.b16 %v1677
      %v1682 = vpack.c.b16 %v779, %v1680
      %v1683 = vpack.c.b16 %v781, %v780
      %v1684 = vpack.c.b16 %v783, %v782
      %v1685 = vpack.c.b16 %v785, %v784
      %v1686 = vpack.c.b16 %v787, %v786
      %v1687 = vpack.c.b16 %v789, %v788
      %v1688 = vpack.c.b16 %v791, %v790
      %v1689 = vpack.c.b16 %v1681, %v1681
      %v1691 = vshrl.u32 %v1682, 16
      %v1693 = vshll.u32 %v1682, 16
      %v1695 = vrot.slane %v1693, 1
      %v1696 = vor.u32 %v1691, %v1695
      %v1698 = vshll.u32 %v1683, 16
      %v1700 = vrot.slane %v1698, 1
      %v1701 = vsel %vm490, %v1696, %v1700
      %v1702 = vshrl.u32 %v1683, 16
      %v1704 = vor.u32 %v1702, %v1700
      %v1706 = vshll.u32 %v1684, 16
      %v1708 = vrot.slane %v1706, 1
      %v1709 = vsel %vm490, %v1704, %v1708
      %v1710 = vshrl.u32 %v1684, 16
      %v1712 = vor.u32 %v1710, %v1708
      %v1714 = vshll.u32 %v1685, 16
      %v1716 = vrot.slane %v1714, 1
      %v1717 = vsel %vm490, %v1712, %v1716
      %v1718 = vshrl.u32 %v1685, 16
      %v1720 = vor.u32 %v1718, %v1716
      %v1722 = vshll.u32 %v1686, 16
      %v1724 = vrot.slane %v1722, 1
      %v1725 = vsel %vm490, %v1720, %v1724
      %v1726 = vshrl.u32 %v1686, 16
      %v1728 = vor.u32 %v1726, %v1724
      %v1730 = vshll.u32 %v1687, 16
      %v1732 = vrot.slane %v1730, 1
      %v1733 = vsel %vm490, %v1728, %v1732
      %v1734 = vshrl.u32 %v1687, 16
      %v1736 = vor.u32 %v1734, %v1732
      %v1738 = vshll.u32 %v1688, 16
      %v1740 = vrot.slane %v1738, 1
      %v1741 = vsel %vm490, %v1736, %v1740
      %v1742 = vshrl.u32 %v1688, 16
      %v1744 = vor.u32 %v1742, %v1740
      %v1746 = vshll.u32 %v1689, 16
      %v1748 = vrot.slane %v1746, 1
      %v1749 = vsel %vm490, %v1744, %v1748
      %v1751 = vsel %vm255, %v1701, 0
      %v1754 = vsel %vm255, %v1709, 0
      %v1757 = vsel %vm255, %v1717, 0
      %v1760 = vsel %vm255, %v1725, 0
      %v1763 = vsel %vm255, %v1733, 0
      %v1766 = vsel %vm255, %v1741, 0
      %v1769 = vsel %vm255, %v1749, 0
      %1771 = vmatpush.bf16.msra.mxu0 0
      %1772 = vmatpush.bf16.msra.mxu0 0
      %1773 = vmatpush.bf16.msra.mxu0 0
      %1774 = vmatpush.bf16.msra.mxu0 0
      %1775 = vmatpush.bf16.msra.mxu0 0
      %1776 = vmatpush.bf16.msra.mxu0 0
      %1777 = vmatpush.bf16.msra.mxu0 %v560
      %1778 = vmatpush.bf16.msra.mxu0 %v559
      %1779 = vmatmul.bf16.gmra.mxu0 %v1751
      %v1780 = vpop.f32.mrf.mxu0
      %v1781 = vadd.f32 0.0, %v1780
      %v1782 = vpop.f32.mrf.mxu0
      %v1783 = vadd.f32 0.0, %v1782
      %1784 = vmatmul.bf16.gmra.mxu0 %v1754
      %v1785 = vpop.f32.mrf.mxu0
      %v1786 = vadd.f32 0.0, %v1785
      %v1787 = vpop.f32.mrf.mxu0
      %v1788 = vadd.f32 0.0, %v1787
      %1789 = vmatmul.bf16.gmra.mxu0 %v1757
      %v1790 = vpop.f32.mrf.mxu0
      %v1791 = vadd.f32 0.0, %v1790
      %v1792 = vpop.f32.mrf.mxu0
      %v1793 = vadd.f32 0.0, %v1792
      %1794 = vmatmul.bf16.gmra.mxu0 %v1760
      %v1795 = vpop.f32.mrf.mxu0
      %v1796 = vadd.f32 0.0, %v1795
      %v1797 = vpop.f32.mrf.mxu0
      %v1798 = vadd.f32 0.0, %v1797
      %1799 = vmatmul.bf16.gmra.mxu0 %v1763
      %v1800 = vpop.f32.mrf.mxu0
      %v1801 = vadd.f32 0.0, %v1800
      %v1802 = vpop.f32.mrf.mxu0
      %v1803 = vadd.f32 0.0, %v1802
      %1804 = vmatmul.bf16.gmra.mxu0 %v1766
      %v1805 = vpop.f32.mrf.mxu0
      %v1806 = vadd.f32 0.0, %v1805
      %v1807 = vpop.f32.mrf.mxu0
      %v1808 = vadd.f32 0.0, %v1807
      %1809 = vmatmul.bf16.gmra.mxu0 %v1769
      %v1810 = vpop.f32.mrf.mxu0
      %v1811 = vadd.f32 0.0, %v1810
      %v1812 = vpop.f32.mrf.mxu0
      %v1813 = vadd.f32 0.0, %v1812
      %1814 = vdwg.mxu0
      %v1815 = vadd.f32 %v1642, %v1781
      %v1816 = vadd.f32 %v1644, %v1783
      %v1817 = vadd.f32 %v1647, %v1786
      %v1818 = vadd.f32 %v1649, %v1788
      %v1819 = vadd.f32 %v1652, %v1791
      %v1820 = vadd.f32 %v1654, %v1793
      %v1821 = vadd.f32 %v1657, %v1796
      %v1822 = vadd.f32 %v1659, %v1798
      %v1823 = vadd.f32 %v1662, %v1801
      %v1824 = vadd.f32 %v1664, %v1803
      %v1825 = vadd.f32 %v1667, %v1806
      %v1826 = vadd.f32 %v1669, %v1808
      %v1827 = vadd.f32 %v1672, %v1811
      %v1828 = vadd.f32 %v1674, %v1813
      %1829 = vmatpush.bf16.msra.mxu0 0
      %1830 = vmatpush.bf16.msra.mxu0 0
      %1831 = vmatpush.bf16.msra.mxu0 0
      %1832 = vmatpush.bf16.msra.mxu0 0
      %1833 = vmatpush.bf16.msra.mxu0 0
      %1834 = vmatpush.bf16.msra.mxu0 0
      %1835 = vmatpush.bf16.msra.mxu0 %v665
      %1836 = vmatpush.bf16.msra.mxu0 %v664
      %1837 = vmatmul.bf16.gmra.mxu0 %v813
      %v1838 = vpop.f32.mrf.mxu0
      %v1839 = vadd.f32 0.0, %v1838
      %v1840 = vpop.f32.mrf.mxu0
      %v1841 = vadd.f32 0.0, %v1840
      %1842 = vmatmul.bf16.gmra.mxu0 %v816
      %v1843 = vpop.f32.mrf.mxu0
      %v1844 = vadd.f32 0.0, %v1843
      %v1845 = vpop.f32.mrf.mxu0
      %v1846 = vadd.f32 0.0, %v1845
      %1847 = vmatmul.bf16.gmra.mxu0 %v819
      %v1848 = vpop.f32.mrf.mxu0
      %v1849 = vadd.f32 0.0, %v1848
      %v1850 = vpop.f32.mrf.mxu0
      %v1851 = vadd.f32 0.0, %v1850
      %1852 = vmatmul.bf16.gmra.mxu0 %v822
      %v1853 = vpop.f32.mrf.mxu0
      %v1854 = vadd.f32 0.0, %v1853
      %v1855 = vpop.f32.mrf.mxu0
      %v1856 = vadd.f32 0.0, %v1855
      %1857 = vmatmul.bf16.gmra.mxu0 %v825
      %v1858 = vpop.f32.mrf.mxu0
      %v1859 = vadd.f32 0.0, %v1858
      %v1860 = vpop.f32.mrf.mxu0
      %v1861 = vadd.f32 0.0, %v1860
      %1862 = vmatmul.bf16.gmra.mxu0 %v828
      %v1863 = vpop.f32.mrf.mxu0
      %v1864 = vadd.f32 0.0, %v1863
      %v1865 = vpop.f32.mrf.mxu0
      %v1866 = vadd.f32 0.0, %v1865
      %1867 = vmatmul.bf16.gmra.mxu0 %v831
      %v1868 = vpop.f32.mrf.mxu0
      %v1869 = vadd.f32 0.0, %v1868
      %v1870 = vpop.f32.mrf.mxu0
      %v1871 = vadd.f32 0.0, %v1870
      %1872 = vdwg.mxu0
      %v1873 = vadd.f32 %v1815, %v1839
      %v1874 = vadd.f32 %v1816, %v1841
      %v1875 = vadd.f32 %v1817, %v1844
      %v1876 = vadd.f32 %v1818, %v1846
      %v1877 = vadd.f32 %v1819, %v1849
      %v1878 = vadd.f32 %v1820, %v1851
      %v1879 = vadd.f32 %v1821, %v1854
      %v1880 = vadd.f32 %v1822, %v1856
      %v1881 = vadd.f32 %v1823, %v1859
      %v1882 = vadd.f32 %v1824, %v1861
      %v1883 = vadd.f32 %v1825, %v1864
      %v1884 = vadd.f32 %v1826, %v1866
      %v1885 = vadd.f32 %v1827, %v1869
      %v1886 = vadd.f32 %v1828, %v1871
      %1887 = vmatpush.bf16.msra.mxu0 0
      %1888 = vmatpush.bf16.msra.mxu0 0
      %1889 = vmatpush.bf16.msra.mxu0 0
      %1890 = vmatpush.bf16.msra.mxu0 0
      %1891 = vmatpush.bf16.msra.mxu0 0
      %1892 = vmatpush.bf16.msra.mxu0 0
      %1893 = vmatpush.bf16.msra.mxu0 %v809
      %1894 = vmatpush.bf16.msra.mxu0 %v808
      %1895 = vmatmul.bf16.gmra.mxu0 %v1021
      %v1896 = vpop.f32.mrf.mxu0
      %v1897 = vadd.f32 0.0, %v1896
      %v1898 = vpop.f32.mrf.mxu0
      %v1899 = vadd.f32 0.0, %v1898
      %1900 = vmatmul.bf16.gmra.mxu0 %v1024
      %v1901 = vpop.f32.mrf.mxu0
      %v1902 = vadd.f32 0.0, %v1901
      %v1903 = vpop.f32.mrf.mxu0
      %v1904 = vadd.f32 0.0, %v1903
      %1905 = vmatmul.bf16.gmra.mxu0 %v1027
      %v1906 = vpop.f32.mrf.mxu0
      %v1907 = vadd.f32 0.0, %v1906
      %v1908 = vpop.f32.mrf.mxu0
      %v1909 = vadd.f32 0.0, %v1908
      %1910 = vmatmul.bf16.gmra.mxu0 %v1030
      %v1911 = vpop.f32.mrf.mxu0
      %v1912 = vadd.f32 0.0, %v1911
      %v1913 = vpop.f32.mrf.mxu0
      %v1914 = vadd.f32 0.0, %v1913
      %1915 = vmatmul.bf16.gmra.mxu0 %v1033
      %v1916 = vpop.f32.mrf.mxu0
      %v1917 = vadd.f32 0.0, %v1916
      %v1918 = vpop.f32.mrf.mxu0
      %v1919 = vadd.f32 0.0, %v1918
      %1920 = vmatmul.bf16.gmra.mxu0 %v1036
      %v1921 = vpop.f32.mrf.mxu0
      %v1922 = vadd.f32 0.0, %v1921
      %v1923 = vpop.f32.mrf.mxu0
      %v1924 = vadd.f32 0.0, %v1923
      %1925 = vmatmul.bf16.gmra.mxu0 %v1039
      %v1926 = vpop.f32.mrf.mxu0
      %v1927 = vadd.f32 0.0, %v1926
      %v1928 = vpop.f32.mrf.mxu0
      %v1929 = vadd.f32 0.0, %v1928
      %1930 = vdwg.mxu0
      %v1931 = vadd.f32 %v1873, %v1897
      %v1932 = vadd.f32 %v1874, %v1899
      %v1933 = vadd.f32 %v1875, %v1902
      %v1934 = vadd.f32 %v1876, %v1904
      %v1935 = vadd.f32 %v1877, %v1907
      %v1936 = vadd.f32 %v1878, %v1909
      %v1937 = vadd.f32 %v1879, %v1912
      %v1938 = vadd.f32 %v1880, %v1914
      %v1939 = vadd.f32 %v1881, %v1917
      %v1940 = vadd.f32 %v1882, %v1919
      %v1941 = vadd.f32 %v1883, %v1922
      %v1942 = vadd.f32 %v1884, %v1924
      %v1943 = vadd.f32 %v1885, %v1927
      %v1944 = vadd.f32 %v1886, %v1929
      %v1945 = vld [vmem:[%s165 + $0x48] sm:$0xf]
      %v1946 = vld [vmem:[%s165 + $0x80] sm:$0x1]
      %v1949 = vunpack.c.l.b16 %v1945
      %v1950 = vunpack.c.l.b16 %v1946
      %v1951 = vpack.c.b16 %v1236, %v1949
      %v1952 = vpack.c.b16 %v1238, %v1237
      %v1953 = vpack.c.b16 %v1240, %v1239
      %v1954 = vpack.c.b16 %v1242, %v1241
      %v1955 = vpack.c.b16 %v1244, %v1243
      %v1956 = vpack.c.b16 %v1246, %v1245
      %v1957 = vpack.c.b16 %v1248, %v1247
      %v1958 = vpack.c.b16 %v1950, %v1950
      %v1960 = vshrl.u32 %v1951, 16
      %v1962 = vshll.u32 %v1951, 16
      %v1964 = vrot.slane %v1962, 1
      %v1965 = vor.u32 %v1960, %v1964
      %v1967 = vshll.u32 %v1952, 16
      %v1969 = vrot.slane %v1967, 1
      %v1970 = vsel %vm490, %v1965, %v1969
      %v1971 = vshrl.u32 %v1952, 16
      %v1973 = vor.u32 %v1971, %v1969
      %v1975 = vshll.u32 %v1953, 16
      %v1977 = vrot.slane %v1975, 1
      %v1978 = vsel %vm490, %v1973, %v1977
      %v1979 = vshrl.u32 %v1953, 16
      %v1981 = vor.u32 %v1979, %v1977
      %v1983 = vshll.u32 %v1954, 16
      %v1985 = vrot.slane %v1983, 1
      %v1986 = vsel %vm490, %v1981, %v1985
      %v1987 = vshrl.u32 %v1954, 16
      %v1989 = vor.u32 %v1987, %v1985
      %v1991 = vshll.u32 %v1955, 16
      %v1993 = vrot.slane %v1991, 1
      %v1994 = vsel %vm490, %v1989, %v1993
      %v1995 = vshrl.u32 %v1955, 16
      %v1997 = vor.u32 %v1995, %v1993
      %v1999 = vshll.u32 %v1956, 16
      %v2001 = vrot.slane %v1999, 1
      %v2002 = vsel %vm490, %v1997, %v2001
      %v2003 = vshrl.u32 %v1956, 16
      %v2005 = vor.u32 %v2003, %v2001
      %v2007 = vshll.u32 %v1957, 16
      %v2009 = vrot.slane %v2007, 1
      %v2010 = vsel %vm490, %v2005, %v2009
      %v2011 = vshrl.u32 %v1957, 16
      %v2013 = vor.u32 %v2011, %v2009
      %v2015 = vshll.u32 %v1958, 16
      %v2017 = vrot.slane %v2015, 1
      %v2018 = vsel %vm490, %v2013, %v2017
      %v2020 = vsel %vm255, %v1970, 0
      %v2023 = vsel %vm255, %v1978, 0
      %v2026 = vsel %vm255, %v1986, 0
      %v2029 = vsel %vm255, %v1994, 0
      %v2032 = vsel %vm255, %v2002, 0
      %v2035 = vsel %vm255, %v2010, 0
      %v2038 = vsel %vm255, %v2018, 0
      %2040 = vmatpush.bf16.msra.mxu0 0
      %2041 = vmatpush.bf16.msra.mxu0 0
      %2042 = vmatpush.bf16.msra.mxu0 0
      %2043 = vmatpush.bf16.msra.mxu0 0
      %2044 = vmatpush.bf16.msra.mxu0 0
      %2045 = vmatpush.bf16.msra.mxu0 0
      %2046 = vmatpush.bf16.msra.mxu0 %v1017
      %2047 = vmatpush.bf16.msra.mxu0 %v1016
      %2048 = vmatmul.bf16.gmra.mxu0 %v2020
      %v2049 = vpop.f32.mrf.mxu0
      %v2050 = vadd.f32 0.0, %v2049
      %v2051 = vpop.f32.mrf.mxu0
      %v2052 = vadd.f32 0.0, %v2051
      %2053 = vmatmul.bf16.gmra.mxu0 %v2023
      %v2054 = vpop.f32.mrf.mxu0
      %v2055 = vadd.f32 0.0, %v2054
      %v2056 = vpop.f32.mrf.mxu0
      %v2057 = vadd.f32 0.0, %v2056
      %2058 = vmatmul.bf16.gmra.mxu0 %v2026
      %v2059 = vpop.f32.mrf.mxu0
      %v2060 = vadd.f32 0.0, %v2059
      %v2061 = vpop.f32.mrf.mxu0
      %v2062 = vadd.f32 0.0, %v2061
      %2063 = vmatmul.bf16.gmra.mxu0 %v2029
      %v2064 = vpop.f32.mrf.mxu0
      %v2065 = vadd.f32 0.0, %v2064
      %v2066 = vpop.f32.mrf.mxu0
      %v2067 = vadd.f32 0.0, %v2066
      %2068 = vmatmul.bf16.gmra.mxu0 %v2032
      %v2069 = vpop.f32.mrf.mxu0
      %v2070 = vadd.f32 0.0, %v2069
      %v2071 = vpop.f32.mrf.mxu0
      %v2072 = vadd.f32 0.0, %v2071
      %2073 = vmatmul.bf16.gmra.mxu0 %v2035
      %v2074 = vpop.f32.mrf.mxu0
      %v2075 = vadd.f32 0.0, %v2074
      %v2076 = vpop.f32.mrf.mxu0
      %v2077 = vadd.f32 0.0, %v2076
      %2078 = vmatmul.bf16.gmra.mxu0 %v2038
      %v2079 = vpop.f32.mrf.mxu0
      %v2080 = vadd.f32 0.0, %v2079
      %v2081 = vpop.f32.mrf.mxu0
      %v2082 = vadd.f32 0.0, %v2081
      %2083 = vdwg.mxu0
      %v2084 = vadd.f32 %v1931, %v2050
      %v2085 = vadd.f32 %v1932, %v2052
      %v2086 = vadd.f32 %v1933, %v2055
      %v2087 = vadd.f32 %v1934, %v2057
      %v2088 = vadd.f32 %v1935, %v2060
      %v2089 = vadd.f32 %v1936, %v2062
      %v2090 = vadd.f32 %v1937, %v2065
      %v2091 = vadd.f32 %v1938, %v2067
      %v2092 = vadd.f32 %v1939, %v2070
      %v2093 = vadd.f32 %v1940, %v2072
      %v2094 = vadd.f32 %v1941, %v2075
      %v2095 = vadd.f32 %v1942, %v2077
      %v2096 = vadd.f32 %v1943, %v2080
      %v2097 = vadd.f32 %v1944, %v2082
      %2098 = vmatpush.bf16.msra.mxu0 0
      %2099 = vmatpush.bf16.msra.mxu0 0
      %2100 = vmatpush.bf16.msra.mxu0 0
      %2101 = vmatpush.bf16.msra.mxu0 0
      %2102 = vmatpush.bf16.msra.mxu0 0
      %2103 = vmatpush.bf16.msra.mxu0 0
      %2104 = vmatpush.bf16.msra.mxu0 %v1122
      %2105 = vmatpush.bf16.msra.mxu0 %v1121
      %2106 = vmatmul.bf16.gmra.mxu0 %v1270
      %v2107 = vpop.f32.mrf.mxu0
      %v2108 = vadd.f32 0.0, %v2107
      %v2109 = vpop.f32.mrf.mxu0
      %v2110 = vadd.f32 0.0, %v2109
      %2111 = vmatmul.bf16.gmra.mxu0 %v1273
      %v2112 = vpop.f32.mrf.mxu0
      %v2113 = vadd.f32 0.0, %v2112
      %v2114 = vpop.f32.mrf.mxu0
      %v2115 = vadd.f32 0.0, %v2114
      %2116 = vmatmul.bf16.gmra.mxu0 %v1276
      %v2117 = vpop.f32.mrf.mxu0
      %v2118 = vadd.f32 0.0, %v2117
      %v2119 = vpop.f32.mrf.mxu0
      %v2120 = vadd.f32 0.0, %v2119
      %2121 = vmatmul.bf16.gmra.mxu0 %v1279
      %v2122 = vpop.f32.mrf.mxu0
      %v2123 = vadd.f32 0.0, %v2122
      %v2124 = vpop.f32.mrf.mxu0
      %v2125 = vadd.f32 0.0, %v2124
      %2126 = vmatmul.bf16.gmra.mxu0 %v1282
      %v2127 = vpop.f32.mrf.mxu0
      %v2128 = vadd.f32 0.0, %v2127
      %v2129 = vpop.f32.mrf.mxu0
      %v2130 = vadd.f32 0.0, %v2129
      %2131 = vmatmul.bf16.gmra.mxu0 %v1285
      %v2132 = vpop.f32.mrf.mxu0
      %v2133 = vadd.f32 0.0, %v2132
      %v2134 = vpop.f32.mrf.mxu0
      %v2135 = vadd.f32 0.0, %v2134
      %2136 = vmatmul.bf16.gmra.mxu0 %v1288
      %v2137 = vpop.f32.mrf.mxu0
      %v2138 = vadd.f32 0.0, %v2137
      %v2139 = vpop.f32.mrf.mxu0
      %v2140 = vadd.f32 0.0, %v2139
      %2141 = vdwg.mxu0
      %v2142 = vadd.f32 %v2084, %v2108
      %v2143 = vadd.f32 %v2085, %v2110
      %v2144 = vadd.f32 %v2086, %v2113
      %v2145 = vadd.f32 %v2087, %v2115
      %v2146 = vadd.f32 %v2088, %v2118
      %v2147 = vadd.f32 %v2089, %v2120
      %v2148 = vadd.f32 %v2090, %v2123
      %v2149 = vadd.f32 %v2091, %v2125
      %v2150 = vadd.f32 %v2092, %v2128
      %v2151 = vadd.f32 %v2093, %v2130
      %v2152 = vadd.f32 %v2094, %v2133
      %v2153 = vadd.f32 %v2095, %v2135
      %v2154 = vadd.f32 %v2096, %v2138
      %v2155 = vadd.f32 %v2097, %v2140
      %2156 = vmatpush.bf16.msra.mxu0 0
      %2157 = vmatpush.bf16.msra.mxu0 0
      %2158 = vmatpush.bf16.msra.mxu0 0
      %2159 = vmatpush.bf16.msra.mxu0 0
      %2160 = vmatpush.bf16.msra.mxu0 0
      %2161 = vmatpush.bf16.msra.mxu0 0
      %2162 = vmatpush.bf16.msra.mxu0 %v1266
      %2163 = vmatpush.bf16.msra.mxu0 %v1265
      %2164 = vmatmul.bf16.gmra.mxu0 %v1478
      %v2165 = vpop.f32.mrf.mxu0
      %v2166 = vadd.f32 0.0, %v2165
      %v2167 = vpop.f32.mrf.mxu0
      %v2168 = vadd.f32 0.0, %v2167
      %2169 = vmatmul.bf16.gmra.mxu0 %v1481
      %v2170 = vpop.f32.mrf.mxu0
      %v2171 = vadd.f32 0.0, %v2170
      %v2172 = vpop.f32.mrf.mxu0
      %v2173 = vadd.f32 0.0, %v2172
      %2174 = vmatmul.bf16.gmra.mxu0 %v1484
      %v2175 = vpop.f32.mrf.mxu0
      %v2176 = vadd.f32 0.0, %v2175
      %v2177 = vpop.f32.mrf.mxu0
      %v2178 = vadd.f32 0.0, %v2177
      %2179 = vmatmul.bf16.gmra.mxu0 %v1487
      %v2180 = vpop.f32.mrf.mxu0
      %v2181 = vadd.f32 0.0, %v2180
      %v2182 = vpop.f32.mrf.mxu0
      %v2183 = vadd.f32 0.0, %v2182
      %2184 = vmatmul.bf16.gmra.mxu0 %v1490
      %v2185 = vpop.f32.mrf.mxu0
      %v2186 = vadd.f32 0.0, %v2185
      %v2187 = vpop.f32.mrf.mxu0
      %v2188 = vadd.f32 0.0, %v2187
      %2189 = vmatmul.bf16.gmra.mxu0 %v1493
      %v2190 = vpop.f32.mrf.mxu0
      %v2191 = vadd.f32 0.0, %v2190
      %v2192 = vpop.f32.mrf.mxu0
      %v2193 = vadd.f32 0.0, %v2192
      %2194 = vmatmul.bf16.gmra.mxu0 %v1496
      %v2195 = vpop.f32.mrf.mxu0
      %v2196 = vadd.f32 0.0, %v2195
      %v2197 = vpop.f32.mrf.mxu0
      %v2198 = vadd.f32 0.0, %v2197
      %2199 = vdwg.mxu0
      %v2200 = vadd.f32 %v2142, %v2166
      %v2201 = vadd.f32 %v2143, %v2168
      %v2202 = vadd.f32 %v2144, %v2171
      %v2203 = vadd.f32 %v2145, %v2173
      %v2204 = vadd.f32 %v2146, %v2176
      %v2205 = vadd.f32 %v2147, %v2178
      %v2206 = vadd.f32 %v2148, %v2181
      %v2207 = vadd.f32 %v2149, %v2183
      %v2208 = vadd.f32 %v2150, %v2186
      %v2209 = vadd.f32 %v2151, %v2188
      %v2210 = vadd.f32 %v2152, %v2191
      %v2211 = vadd.f32 %v2153, %v2193
      %v2212 = vadd.f32 %v2154, %v2196
      %v2213 = vadd.f32 %v2155, %v2198
      %v2214 = vld [vmem:[%s165 + $0x4c] sm:$0xf]
      %v2215 = vld [vmem:[%s165 + $0x50] sm:$0xf]
      %v2216 = vld [vmem:[%s165 + $0x54] sm:$0xf]
      %v2217 = vld [vmem:[%s165 + $0x58] sm:$0xf]
      %v2218 = vld [vmem:[%s165 + $0x5c] sm:$0xf]
      %v2219 = vld [vmem:[%s165 + $0x60] sm:$0xf]
      %v2220 = vld [vmem:[%s165 + $0x64] sm:$0xf]
      %v2221 = vld [vmem:[%s165 + $0x68] sm:$0xf]
      %v2222 = vld [vmem:[%s165 + $0x6c] sm:$0xf]
      %v2223 = vld [vmem:[%s165 + $0x70] sm:$0xf]
      %v2224 = vld [vmem:[%s165 + $0x74] sm:$0xf]
      %v2225 = vld [vmem:[%s165 + $0x78] sm:$0xf]
      %v2226 = vld [vmem:[%s165 + $0x7c] sm:$0xf]
      %v2227 = vld [vmem:[%s165 + $0x80] sm:$0xf]
      %v2228 = vld [vmem:[%s165 + $0x84] sm:$0x1]
      %v2244 = vunpack.c.l.b16 %v2214
      %v2245 = vunpack.c.l.b16 %v2215
      %v2246 = vunpack.c.l.b16 %v2216
      %v2247 = vunpack.c.l.b16 %v2217
      %v2248 = vunpack.c.l.b16 %v2218
      %v2249 = vunpack.c.l.b16 %v2219
      %v2250 = vunpack.c.l.b16 %v2220
      %v2251 = vunpack.c.l.b16 %v2221
      %v2252 = vunpack.c.l.b16 %v2222
      %v2253 = vunpack.c.l.b16 %v2223
      %v2254 = vunpack.c.l.b16 %v2224
      %v2255 = vunpack.c.l.b16 %v2225
      %v2256 = vunpack.c.l.b16 %v2226
      %v2257 = vunpack.c.l.b16 %v2227
      %v2258 = vunpack.c.l.b16 %v2228
      %v2259 = vpack.c.b16 %v2245, %v2244
      %v2260 = vpack.c.b16 %v2247, %v2246
      %v2261 = vpack.c.b16 %v2249, %v2248
      %v2262 = vpack.c.b16 %v2251, %v2250
      %v2263 = vpack.c.b16 %v2253, %v2252
      %v2264 = vpack.c.b16 %v2255, %v2254
      %v2265 = vpack.c.b16 %v2257, %v2256
      %v2266 = vpack.c.b16 %v2258, %v2258
      %v2268 = vshrl.u32 %v2259, 16
      %v2270 = vshll.u32 %v2259, 16
      %v2272 = vrot.slane %v2270, 1
      %v2273 = vor.u32 %v2268, %v2272
      %v2275 = vshll.u32 %v2260, 16
      %v2277 = vrot.slane %v2275, 1
      %v2278 = vsel %vm490, %v2273, %v2277
      %v2279 = vshrl.u32 %v2260, 16
      %v2281 = vor.u32 %v2279, %v2277
      %v2283 = vshll.u32 %v2261, 16
      %v2285 = vrot.slane %v2283, 1
      %v2286 = vsel %vm490, %v2281, %v2285
      %v2287 = vshrl.u32 %v2261, 16
      %v2289 = vor.u32 %v2287, %v2285
      %v2291 = vshll.u32 %v2262, 16
      %v2293 = vrot.slane %v2291, 1
      %v2294 = vsel %vm490, %v2289, %v2293
      %v2295 = vshrl.u32 %v2262, 16
      %v2297 = vor.u32 %v2295, %v2293
      %v2299 = vshll.u32 %v2263, 16
      %v2301 = vrot.slane %v2299, 1
      %v2302 = vsel %vm490, %v2297, %v2301
      %v2303 = vshrl.u32 %v2263, 16
      %v2305 = vor.u32 %v2303, %v2301
      %v2307 = vshll.u32 %v2264, 16
      %v2309 = vrot.slane %v2307, 1
      %v2310 = vsel %vm490, %v2305, %v2309
      %v2311 = vshrl.u32 %v2264, 16
      %v2313 = vor.u32 %v2311, %v2309
      %v2315 = vshll.u32 %v2265, 16
      %v2317 = vrot.slane %v2315, 1
      %v2318 = vsel %vm490, %v2313, %v2317
      %v2319 = vshrl.u32 %v2265, 16
      %v2321 = vor.u32 %v2319, %v2317
      %v2323 = vshll.u32 %v2266, 16
      %v2325 = vrot.slane %v2323, 1
      %v2326 = vsel %vm490, %v2321, %v2325
      %v2328 = vsel %vm255, %v2278, 0
      %v2331 = vsel %vm255, %v2286, 0
      %v2334 = vsel %vm255, %v2294, 0
      %v2337 = vsel %vm255, %v2302, 0
      %v2340 = vsel %vm255, %v2310, 0
      %v2343 = vsel %vm255, %v2318, 0
      %v2346 = vsel %vm255, %v2326, 0
      %2348 = vmatpush.bf16.msra.mxu0 0
      %2349 = vmatpush.bf16.msra.mxu0 0
      %2350 = vmatpush.bf16.msra.mxu0 0
      %2351 = vmatpush.bf16.msra.mxu0 0
      %2352 = vmatpush.bf16.msra.mxu0 0
      %2353 = vmatpush.bf16.msra.mxu0 0
      %2354 = vmatpush.bf16.msra.mxu0 %v1474
      %2355 = vmatpush.bf16.msra.mxu0 %v1473
      %2356 = vmatmul.bf16.gmra.mxu0 %v2328
      %v2357 = vpop.f32.mrf.mxu0
      %v2358 = vadd.f32 0.0, %v2357
      %v2359 = vpop.f32.mrf.mxu0
      %v2360 = vadd.f32 0.0, %v2359
      %2361 = vmatmul.bf16.gmra.mxu0 %v2331
      %v2362 = vpop.f32.mrf.mxu0
      %v2363 = vadd.f32 0.0, %v2362
      %v2364 = vpop.f32.mrf.mxu0
      %v2365 = vadd.f32 0.0, %v2364
      %2366 = vmatmul.bf16.gmra.mxu0 %v2334
      %v2367 = vpop.f32.mrf.mxu0
      %v2368 = vadd.f32 0.0, %v2367
      %v2369 = vpop.f32.mrf.mxu0
      %v2370 = vadd.f32 0.0, %v2369
      %2371 = vmatmul.bf16.gmra.mxu0 %v2337
      %v2372 = vpop.f32.mrf.mxu0
      %v2373 = vadd.f32 0.0, %v2372
      %v2374 = vpop.f32.mrf.mxu0
      %v2375 = vadd.f32 0.0, %v2374
      %2376 = vmatmul.bf16.gmra.mxu0 %v2340
      %v2377 = vpop.f32.mrf.mxu0
      %v2378 = vadd.f32 0.0, %v2377
      %v2379 = vpop.f32.mrf.mxu0
      %v2380 = vadd.f32 0.0, %v2379
      %2381 = vmatmul.bf16.gmra.mxu0 %v2343
      %v2382 = vpop.f32.mrf.mxu0
      %v2383 = vadd.f32 0.0, %v2382
      %v2384 = vpop.f32.mrf.mxu0
      %v2385 = vadd.f32 0.0, %v2384
      %2386 = vmatmul.bf16.gmra.mxu0 %v2346
      %v2387 = vpop.f32.mrf.mxu0
      %v2388 = vadd.f32 0.0, %v2387
      %v2389 = vpop.f32.mrf.mxu0
      %v2390 = vadd.f32 0.0, %v2389
      %2391 = vdwg.mxu0
      %v2392 = vadd.f32 %v2200, %v2358
      %v2393 = vadd.f32 %v2201, %v2360
      %v2394 = vadd.f32 %v2202, %v2363
      %v2395 = vadd.f32 %v2203, %v2365
      %v2396 = vadd.f32 %v2204, %v2368
      %v2397 = vadd.f32 %v2205, %v2370
      %v2398 = vadd.f32 %v2206, %v2373
      %v2399 = vadd.f32 %v2207, %v2375
      %v2400 = vadd.f32 %v2208, %v2378
      %v2401 = vadd.f32 %v2209, %v2380
      %v2402 = vadd.f32 %v2210, %v2383
      %v2403 = vadd.f32 %v2211, %v2385
      %v2404 = vadd.f32 %v2212, %v2388
      %v2405 = vadd.f32 %v2213, %v2390
      %v2406 = vadd.f32 %v2392, %v1558
      %v2407 = vadd.f32 %v2393, %v1558
      %v2408 = vadd.f32 %v2394, %v1558
      %v2409 = vadd.f32 %v2395, %v1558
      %v2410 = vadd.f32 %v2396, %v1558
      %v2411 = vadd.f32 %v2397, %v1558
      %v2412 = vadd.f32 %v2398, %v1558
      %v2413 = vadd.f32 %v2399, %v1558
      %v2414 = vadd.f32 %v2400, %v1558
      %v2415 = vadd.f32 %v2401, %v1558
      %v2416 = vadd.f32 %v2402, %v1558
      %v2417 = vadd.f32 %v2403, %v1558
      %v2418 = vadd.f32 %v2404, %v1558
      %v2419 = vadd.f32 %v2405, %v1558
      %v2420 = vmax.f32 %v2406, 0.0
      %v2421 = vmax.f32 %v2407, 0.0
      %v2422 = vmax.f32 %v2408, 0.0
      %v2423 = vmax.f32 %v2409, 0.0
      %v2424 = vmax.f32 %v2410, 0.0
      %v2425 = vmax.f32 %v2411, 0.0
      %v2426 = vmax.f32 %v2412, 0.0
      %v2427 = vmax.f32 %v2413, 0.0
      %v2428 = vmax.f32 %v2414, 0.0
      %v2429 = vmax.f32 %v2415, 0.0
      %v2430 = vmax.f32 %v2416, 0.0
      %v2431 = vmax.f32 %v2417, 0.0
      %v2432 = vmax.f32 %v2418, 0.0
      %v2433 = vmax.f32 %v2419, 0.0
      %v2434 = vmax.f32 %v1574, %v2420
      %v2435 = vmax.f32 %v1575, %v2421
      %v2436 = vmax.f32 %v1576, %v2422
      %v2437 = vmax.f32 %v1577, %v2423
      %v2438 = vmax.f32 %v1578, %v2424
      %v2439 = vmax.f32 %v1579, %v2425
      %v2440 = vmax.f32 %v1580, %v2426
      %v2441 = vmax.f32 %v1581, %v2427
      %v2442 = vmax.f32 %v1582, %v2428
      %v2443 = vmax.f32 %v1583, %v2429
      %v2444 = vmax.f32 %v1584, %v2430
      %v2445 = vmax.f32 %v1585, %v2431
      %v2446 = vmax.f32 %v1586, %v2432
      %v2447 = vmax.f32 %v1587, %v2433
      %vm2448 = vcmask 523264
      %2449 = vst.msk [vmem:[#allocation2] sm:$0xff] %vm2448, %v2434
      %2450 = vst.msk [vmem:[#allocation2 + $0x8] sm:$0xff] %vm2448, %v2435
      %2451 = vst.msk [vmem:[#allocation2 + $0x10] sm:$0xff] %vm2448, %v2436
      %2452 = vst.msk [vmem:[#allocation2 + $0x18] sm:$0xff] %vm2448, %v2437
      %2453 = vst.msk [vmem:[#allocation2 + $0x20] sm:$0xff] %vm2448, %v2438
      %2454 = vst.msk [vmem:[#allocation2 + $0x28] sm:$0xff] %vm2448, %v2439
      %2455 = vst.msk [vmem:[#allocation2 + $0x30] sm:$0xff] %vm2448, %v2440
      %2456 = vst.msk [vmem:[#allocation2 + $0x38] sm:$0xff] %vm2448, %v2441
      %2457 = vst.msk [vmem:[#allocation2 + $0x40] sm:$0xff] %vm2448, %v2442
      %2458 = vst.msk [vmem:[#allocation2 + $0x48] sm:$0xff] %vm2448, %v2443
      %2459 = vst.msk [vmem:[#allocation2 + $0x50] sm:$0xff] %vm2448, %v2444
      %2460 = vst.msk [vmem:[#allocation2 + $0x58] sm:$0xff] %vm2448, %v2445
      %2461 = vst.msk [vmem:[#allocation2 + $0x60] sm:$0xff] %vm2448, %v2446
      %2462 = vst.msk [vmem:[#allocation2 + $0x68] sm:$0xff] %vm2448, %v2447
      %v2463 = vld [vmem:[#allocation2] sm:$0x7f]
      %v2464 = vld [vmem:[#allocation2 + $0x8] sm:$0x7f]
      %v2465 = vmax.f32 %v2463, %v2464
      %v2466 = vpack.c.bf16 %v2465, %v2465
      %vm2467 = vcmask 519168
      %vm2468 = vsmask.f32 3328
      %vm2469 = vmand %vm2467, %vm2468
      %v2470 = vld [vmem:[%s170] sm:$0xf]
      %v2471 = vsel %vm2469, %v2466, %v2470
      %2472 = vst [vmem:[%s170] sm:$0xf] %v2471
      %v2473 = vld [vmem:[#allocation2 + $0x10] sm:$0x7f]
      %v2474 = vld [vmem:[#allocation2 + $0x18] sm:$0x7f]
      %v2475 = vmax.f32 %v2473, %v2474
      %v2476 = vpack.c.bf16 %v2475, %v2475
      %v2478 = vshll.u32 %v2476, 16
      %v2480 = vrot.slane %v2478, 5
      %v2481 = vshrl.u32 %v2476, 16
      %v2483 = vrot.slane %v2481, 4
      %v2484 = vor.u32 %v2483, %v2480
      %v2485 = vrot.slane %v2484, 4
      %vm2488 = vcmask 519171
      %vm2489 = vsmask.f32 7950
      %vm2490 = vmand %vm2488, %vm2489
      %v2491 = vld [vmem:[%s170] sm:$0x8]
      %v2492 = vsel %vm2490, %v2480, %v2491
      %2493 = vst [vmem:[%s170] sm:$0x8] %v2492
      %vm2494 = vcmask 518144
      %2495 = vst.msk [vmem:[%s170 + $0x4] sm:$0x7] %vm2494, %v2485
      %v2496 = vld [vmem:[#allocation2 + $0x20] sm:$0x7f]
      %v2497 = vld [vmem:[#allocation2 + $0x28] sm:$0x7f]
      %v2498 = vmax.f32 %v2496, %v2497
      %v2499 = vpack.c.bf16 %v2498, %v2498
      %v2501 = vrot.slane %v2499, 5
      %v2502 = vrot.slane %v2501, 4
      %vm2505 = vcmask 519171
      %2506 = vst.msk [vmem:[%s170 + $0x4] sm:$0x8] %vm2505, %v2501
      %vm2507 = vcmask 518144
      %vm2508 = vsmask.f32 2304
      %vm2509 = vmand %vm2507, %vm2508
      %v2510 = vld [vmem:[%s170 + $0x8] sm:$0x7]
      %v2511 = vsel %vm2509, %v2502, %v2510
      %2512 = vst [vmem:[%s170 + $0x8] sm:$0x7] %v2511
      %v2513 = vld [vmem:[#allocation2 + $0x30] sm:$0x7f]
      %v2514 = vld [vmem:[#allocation2 + $0x38] sm:$0x7f]
      %v2515 = vmax.f32 %v2513, %v2514
      %v2516 = vpack.c.bf16 %v2515, %v2515
      %v2518 = vshrl.u32 %v2516, 16
      %v2520 = vrot.slane %v2518, 5
      %v2521 = vshll.u32 %v2516, 16
      %v2523 = vrot.slane %v2521, 6
      %v2524 = vor.u32 %v2520, %v2523
      %v2525 = vrot.slane %v2524, 4
      %vm2528 = vcmask 519170
      %vm2529 = vsmask.f32 7946
      %vm2530 = vmand %vm2528, %vm2529
      %v2531 = vld [vmem:[%s170 + $0x8] sm:$0xc]
      %v2532 = vsel %vm2530, %v2524, %v2531
      %2533 = vst [vmem:[%s170 + $0x8] sm:$0xc] %v2532
      %vm2534 = vcmask 517120
      %2535 = vst.msk [vmem:[%s170 + $0xc] sm:$0x3] %vm2534, %v2525
      %v2536 = vld [vmem:[#allocation2 + $0x40] sm:$0x7f]
      %v2537 = vld [vmem:[#allocation2 + $0x48] sm:$0x7f]
      %v2538 = vmax.f32 %v2536, %v2537
      %v2539 = vpack.c.bf16 %v2538, %v2538
      %v2541 = vrot.slane %v2539, 6
      %v2542 = vrot.slane %v2541, 4
      %vm2545 = vcmask 519170
      %2546 = vst.msk [vmem:[%s170 + $0xc] sm:$0xc] %vm2545, %v2541
      %vm2547 = vcmask 517120
      %vm2548 = vsmask.f32 1280
      %vm2549 = vmand %vm2547, %vm2548
      %v2550 = vld [vmem:[%s170 + $0x10] sm:$0x3]
      %v2551 = vsel %vm2549, %v2542, %v2550
      %2552 = vst [vmem:[%s170 + $0x10] sm:$0x3] %v2551
      %v2553 = vld [vmem:[#allocation2 + $0x50] sm:$0x7f]
      %v2554 = vld [vmem:[#allocation2 + $0x58] sm:$0x7f]
      %v2555 = vmax.f32 %v2553, %v2554
      %v2556 = vpack.c.bf16 %v2555, %v2555
      %v2558 = vshrl.u32 %v2556, 16
      %v2560 = vrot.slane %v2558, 6
      %v2561 = vshll.u32 %v2556, 16
      %v2563 = vrot.slane %v2561, 7
      %v2564 = vor.u32 %v2560, %v2563
      %v2565 = vrot.slane %v2564, 4
      %vm2568 = vcmask 519169
      %vm2569 = vsmask.f32 7942
      %vm2570 = vmand %vm2568, %vm2569
      %v2571 = vld [vmem:[%s170 + $0x10] sm:$0xe]
      %v2572 = vsel %vm2570, %v2564, %v2571
      %2573 = vst [vmem:[%s170 + $0x10] sm:$0xe] %v2572
      %vm2574 = vcmask 516096
      %2575 = vst.msk [vmem:[%s170 + $0x14] sm:$0x1] %vm2574, %v2565
      %v2576 = vld [vmem:[#allocation2 + $0x60] sm:$0x7f]
      %v2577 = vld [vmem:[#allocation2 + $0x68] sm:$0x7f]
      %v2578 = vmax.f32 %v2576, %v2577
      %v2579 = vpack.c.bf16 %v2578, %v2578
      %v2581 = vrot.slane %v2579, 7
      %v2582 = vrot.slane %v2581, 4
      %vm2585 = vcmask 519169
      %2586 = vst.msk [vmem:[%s170 + $0x14] sm:$0xe] %vm2585, %v2581
      %vm2587 = vcmask 516096
      %vm2588 = vsmask.f32 256
      %vm2589 = vmand %vm2587, %vm2588
      %v2590 = vld [vmem:[%s170 + $0x18] sm:$0x1]
      %v2591 = vsel %vm2589, %v2582, %v2590
      %2592 = vst [vmem:[%s170 + $0x18] sm:$0x1] %v2591
      %p2593 = scmp.lt.s32.totalorder %s14, 1
      %s2594 = scalar_select %p2593, %s14, 1
      %s2595 = smul.addr %s2594, 7
      %s2596 = smul.addr %s2595, 4
      %s2597 = scalar_lea.vmem %s3, %s2596
      // Predicated region
      $region33: #{_lambda_.5} parent=31 // pred_check
        %p2598 = pneg %p100
      $region34: #{_lambda_.5} parent=31 // pred_check_branch
        %2600 = sbr.rel (%p2598) target = $region36
      $region35: #{_lambda_.5} parent=31 // pred_region
        _
      $region36: #{_lambda_.5} parent=31 // pred_fallthru
        _
    $region32: #{_lambda_.5} parent=5 // pred_fallthru
      _
    %p2601 = scmp.le.s32.totalorder 2, %s9
    // Predicated region
    $region37: #{_lambda_.5} parent=5 // pred_check
      %p2602 = pneg %p2601
    $region38: #{_lambda_.5} parent=5 // pred_check_branch
      %2604 = sbr.rel (%p2602) target = $region40
    $region39: #{_lambda_.5} parent=5 // pred_region
      %s2605 = ssub.s32 %s9, 2
      // Predicated region
      $region41: #{_lambda_.5} parent=39 // pred_check
        %p2606 = pneg %p106
      $region42: #{_lambda_.5} parent=39 // pred_check_branch
        %2608 = sbr.rel (%p2606) target = $region44
      $region43: #{_lambda_.5} parent=39 // pred_region
        %p2609 = scmp.lt.s32.totalorder %s15, 1
        %s2610 = scalar_select %p2609, %s15, 1
        %s2611 = smul.addr %s2610, 7
        %s2612 = smul.addr %s2611, 4
        %s2613 = scalar_lea.vmem %s3, %s2612
      $region44: #{_lambda_.5} parent=39 // pred_fallthru
        _
    $region40: #{_lambda_.5} parent=5 // pred_fallthru
      _
  $region6: #{_lambda_.5} parent=0 // loop_footer
    %s13 = sadd.s32 1, %s9
  $region7: #{_lambda_.5} parent=0 // loop_footer_branch
    %8 = sbr.rel target = $region3
  $region8: #{_lambda_.5} parent=0 // loop_exit
    _

// kernel: _lambda_.7
$region0: #{_lambda_.7}
  #allocation0 [shape = 'u32[]', space=smem, size = 0x4, offset = 0x4, fixed_abs, tag = 'smem constant byte address 0x4 - core index']
  #allocation1 [shape = 'u32[72,128]{1,0:T(1,128)}', space=vmem, size = 0x9000, scoped, tag = 'internal scratch']
  %s0 = inlined_call_operand.vmem [shape: bf16[2,4032], index: 0, kind: input, shape index: {}]
  %s1 = inlined_call_operand.vmem [shape: bf16[4032,128], index: 1, kind: input, shape index: {}]
  %s2 = inlined_call_operand.vmem [shape: f32[1,128], index: 2, kind: input, shape index: {}]
  %s3 = inlined_call_operand.vmem [shape: bf16[128,9], index: 3, kind: input, shape index: {}]
  %s4 = inlined_call_operand.vmem [shape: f32[1,9], index: 4, kind: input, shape index: {}]
  %s5 = inlined_call_operand.hbm [shape: f32[2,9], index: 5, kind: output, shape index: {}]
  %s6 = sld [smem:[#allocation0]]
  $region30: #{_lambda_.7} parent=0
    _
  %s8 = ssub.s32 1, %s6
  %s9 = scalar_select 0, %s8, %s6
  $region1: #{_lambda_.7} parent=0
    #allocation2 [shape = 'u8[1024]{0}', space=vmem, size = 0x400, scoped, tag = 'output window, operand 0, single buffered']
    #allocation3 [shape = 's32[1]{0}', space=sflag, size = 0x4, scoped, tag = 'scoped memory for _lambda_.7']
    %10 = vsyncpa [#allocation3], 0
    // Predicated region
    $region2: #{_lambda_.7} parent=1 // pred_check
      _
    $region3: #{_lambda_.7} parent=1 // pred_check_branch
      %12 = sbr.rel (0) target = $region5
    $region4: #{_lambda_.7} parent=1 // pred_region
      _
    $region5: #{_lambda_.7} parent=1 // pred_fallthru
      _
    // Predicated region
    $region6: #{_lambda_.7} parent=1 // pred_check
      _
    $region7: #{_lambda_.7} parent=1 // pred_check_branch
      %14 = sbr.rel (0) target = $region9
    $region8: #{_lambda_.7} parent=1 // pred_region
      _
    $region9: #{_lambda_.7} parent=1 // pred_fallthru
      _
    // Predicated region
    $region10: #{_lambda_.7} parent=1 // pred_check
      _
    $region11: #{_lambda_.7} parent=1 // pred_check_branch
      %16 = sbr.rel (0) target = $region13
    $region12: #{_lambda_.7} parent=1 // pred_region
      _
    $region13: #{_lambda_.7} parent=1 // pred_fallthru
      _
    // Predicated region
    $region14: #{_lambda_.7} parent=1 // pred_check
      _
    $region15: #{_lambda_.7} parent=1 // pred_check_branch
      %18 = sbr.rel (0) target = $region17
    $region16: #{_lambda_.7} parent=1 // pred_region
      _
    $region17: #{_lambda_.7} parent=1 // pred_fallthru
      _
    // Predicated region
    $region18: #{_lambda_.7} parent=1 // pred_check
      _
    $region19: #{_lambda_.7} parent=1 // pred_check_branch
      %20 = sbr.rel (0) target = $region21
    $region20: #{_lambda_.7} parent=1 // pred_region
      _
    $region21: #{_lambda_.7} parent=1 // pred_fallthru
      _
    %v22 = vld [vmem:[%s0] sm:$0xff]
    %v23 = vld [vmem:[%s0 + $0x8] sm:$0xff]
    %v24 = vld [vmem:[%s0 + $0x10] sm:$0xff]
    %v25 = vld [vmem:[%s0 + $0x18] sm:$0xff]
    %v26 = vld [vmem:[%s1] sm:$0xf]
    %v27 = vld [vmem:[%s1 + $0x4] sm:$0xf]
    %v28 = vld [vmem:[%s1 + $0x8] sm:$0xf]
    %v29 = vld [vmem:[%s1 + $0xc] sm:$0xf]
    %v30 = vld [vmem:[%s1 + $0x10] sm:$0xf]
    %v31 = vld [vmem:[%s1 + $0x14] sm:$0xf]
    %v32 = vld [vmem:[%s1 + $0x18] sm:$0xf]
    %v33 = vld [vmem:[%s1 + $0x1c] sm:$0xf]
    %v34 = vld [vmem:[%s1 + $0x20] sm:$0xf]
    %v35 = vld [vmem:[%s1 + $0x24] sm:$0xf]
    %v36 = vld [vmem:[%s1 + $0x28] sm:$0xf]
    %v37 = vld [vmem:[%s1 + $0x2c] sm:$0xf]
    %v38 = vld [vmem:[%s1 + $0x30] sm:$0xf]
    %v39 = vld [vmem:[%s1 + $0x34] sm:$0xf]
    %v40 = vld [vmem:[%s1 + $0x38] sm:$0xf]
    %v41 = vld [vmem:[%s1 + $0x3c] sm:$0xf]
    %v42 = vld [vmem:[%s1 + $0x40] sm:$0xf]
    %v43 = vld [vmem:[%s1 + $0x44] sm:$0xf]
    %v44 = vld [vmem:[%s1 + $0x48] sm:$0xf]
    %v45 = vld [vmem:[%s1 + $0x4c] sm:$0xf]
    %v46 = vld [vmem:[%s1 + $0x50] sm:$0xf]
    %v47 = vld [vmem:[%s1 + $0x54] sm:$0xf]
    %v48 = vld [vmem:[%s1 + $0x58] sm:$0xf]
    %v49 = vld [vmem:[%s1 + $0x5c] sm:$0xf]
    %v50 = vld [vmem:[%s1 + $0x60] sm:$0xf]
    %v51 = vld [vmem:[%s1 + $0x64] sm:$0xf]
    %v52 = vld [vmem:[%s1 + $0x68] sm:$0xf]
    %v53 = vld [vmem:[%s1 + $0x6c] sm:$0xf]
    %v54 = vld [vmem:[%s1 + $0x70] sm:$0xf]
    %v55 = vld [vmem:[%s1 + $0x74] sm:$0xf]
    %v56 = vld [vmem:[%s1 + $0x78] sm:$0xf]
    %v57 = vld [vmem:[%s1 + $0x7c] sm:$0xf]
    %v58 = vld [vmem:[%s1 + $0x80] sm:$0xf]
    %v59 = vld [vmem:[%s1 + $0x84] sm:$0xf]
    %v60 = vld [vmem:[%s1 + $0x88] sm:$0xf]
    %v61 = vld [vmem:[%s1 + $0x8c] sm:$0xf]
    %v62 = vld [vmem:[%s1 + $0x90] sm:$0xf]
    %v63 = vld [vmem:[%s1 + $0x94] sm:$0xf]
    %v64 = vld [vmem:[%s1 + $0x98] sm:$0xf]
    %v65 = vld [vmem:[%s1 + $0x9c] sm:$0xf]
    %v66 = vld [vmem:[%s1 + $0xa0] sm:$0xf]
    %v67 = vld [vmem:[%s1 + $0xa4] sm:$0xf]
    %v68 = vld [vmem:[%s1 + $0xa8] sm:$0xf]
    %v69 = vld [vmem:[%s1 + $0xac] sm:$0xf]
    %v70 = vld [vmem:[%s1 + $0xb0] sm:$0xf]
    %v71 = vld [vmem:[%s1 + $0xb4] sm:$0xf]
    %v72 = vld [vmem:[%s1 + $0xb8] sm:$0xf]
    %v73 = vld [vmem:[%s1 + $0xbc] sm:$0xf]
    %v74 = vld [vmem:[%s1 + $0xc0] sm:$0xf]
    %v75 = vld [vmem:[%s1 + $0xc4] sm:$0xf]
    %v76 = vld [vmem:[%s1 + $0xc8] sm:$0xf]
    %v77 = vld [vmem:[%s1 + $0xcc] sm:$0xf]
    %v78 = vld [vmem:[%s1 + $0xd0] sm:$0xf]
    %v79 = vld [vmem:[%s1 + $0xd4] sm:$0xf]
    %v80 = vld [vmem:[%s1 + $0xd8] sm:$0xf]
    %v81 = vld [vmem:[%s1 + $0xdc] sm:$0xf]
    %v82 = vld [vmem:[%s1 + $0xe0] sm:$0xf]
    %v83 = vld [vmem:[%s1 + $0xe4] sm:$0xf]
    %v84 = vld [vmem:[%s1 + $0xe8] sm:$0xf]
    %v85 = vld [vmem:[%s1 + $0xec] sm:$0xf]
    %v86 = vld [vmem:[%s1 + $0xf0] sm:$0xf]
    %v87 = vld [vmem:[%s1 + $0xf4] sm:$0xf]
    %v88 = vld [vmem:[%s1 + $0xf8] sm:$0xf]
    %v89 = vld [vmem:[%s1 + $0xfc] sm:$0xf]
    %v90 = vld [vmem:[%s1 + $0x100] sm:$0xf]
    %v91 = vld [vmem:[%s1 + $0x104] sm:$0xf]
    %v92 = vld [vmem:[%s1 + $0x108] sm:$0xf]
    %v93 = vld [vmem:[%s1 + $0x10c] sm:$0xf]
    %v94 = vld [vmem:[%s1 + $0x110] sm:$0xf]
    %v95 = vld [vmem:[%s1 + $0x114] sm:$0xf]
    %v96 = vld [vmem:[%s1 + $0x118] sm:$0xf]
    %v97 = vld [vmem:[%s1 + $0x11c] sm:$0xf]
    %v98 = vld [vmem:[%s1 + $0x120] sm:$0xf]
    %v99 = vld [vmem:[%s1 + $0x124] sm:$0xf]
    %v100 = vld [vmem:[%s1 + $0x128] sm:$0xf]
    %v101 = vld [vmem:[%s1 + $0x12c] sm:$0xf]
    %v102 = vld [vmem:[%s1 + $0x130] sm:$0xf]
    %v103 = vld [vmem:[%s1 + $0x134] sm:$0xf]
    %v104 = vld [vmem:[%s1 + $0x138] sm:$0xf]
    %v105 = vld [vmem:[%s1 + $0x13c] sm:$0xf]
    %v106 = vld [vmem:[%s1 + $0x140] sm:$0xf]
    %v107 = vld [vmem:[%s1 + $0x144] sm:$0xf]
    %v108 = vld [vmem:[%s1 + $0x148] sm:$0xf]
    %v109 = vld [vmem:[%s1 + $0x14c] sm:$0xf]
    %v110 = vld [vmem:[%s1 + $0x150] sm:$0xf]
    %v111 = vld [vmem:[%s1 + $0x154] sm:$0xf]
    %v112 = vld [vmem:[%s1 + $0x158] sm:$0xf]
    %v113 = vld [vmem:[%s1 + $0x15c] sm:$0xf]
    %v114 = vld [vmem:[%s1 + $0x160] sm:$0xf]
    %v115 = vld [vmem:[%s1 + $0x164] sm:$0xf]
    %v116 = vld [vmem:[%s1 + $0x168] sm:$0xf]
    %v117 = vld [vmem:[%s1 + $0x16c] sm:$0xf]
    %v118 = vld [vmem:[%s1 + $0x170] sm:$0xf]
    %v119 = vld [vmem:[%s1 + $0x174] sm:$0xf]
    %v120 = vld [vmem:[%s1 + $0x178] sm:$0xf]
    %v121 = vld [vmem:[%s1 + $0x17c] sm:$0xf]
    %v122 = vld [vmem:[%s1 + $0x180] sm:$0xf]
    %v123 = vld [vmem:[%s1 + $0x184] sm:$0xf]
    %v124 = vld [vmem:[%s1 + $0x188] sm:$0xf]
    %v125 = vld [vmem:[%s1 + $0x18c] sm:$0xf]
    %v126 = vld [vmem:[%s1 + $0x190] sm:$0xf]
    %v127 = vld [vmem:[%s1 + $0x194] sm:$0xf]
    %v128 = vld [vmem:[%s1 + $0x198] sm:$0xf]
    %v129 = vld [vmem:[%s1 + $0x19c] sm:$0xf]
    %v130 = vld [vmem:[%s1 + $0x1a0] sm:$0xf]
    %v131 = vld [vmem:[%s1 + $0x1a4] sm:$0xf]
    %v132 = vld [vmem:[%s1 + $0x1a8] sm:$0xf]
    %v133 = vld [vmem:[%s1 + $0x1ac] sm:$0xf]
    %v134 = vld [vmem:[%s1 + $0x1b0] sm:$0xf]
    %v135 = vld [vmem:[%s1 + $0x1b4] sm:$0xf]
    %v136 = vld [vmem:[%s1 + $0x1b8] sm:$0xf]
    %v137 = vld [vmem:[%s1 + $0x1bc] sm:$0xf]
    %v138 = vld [vmem:[%s1 + $0x1c0] sm:$0xf]
    %v139 = vld [vmem:[%s1 + $0x1c4] sm:$0xf]
    %v140 = vld [vmem:[%s1 + $0x1c8] sm:$0xf]
    %v141 = vld [vmem:[%s1 + $0x1cc] sm:$0xf]
    %v142 = vld [vmem:[%s1 + $0x1d0] sm:$0xf]
    %v143 = vld [vmem:[%s1 + $0x1d4] sm:$0xf]
    %v144 = vld [vmem:[%s1 + $0x1d8] sm:$0xf]
    %v145 = vld [vmem:[%s1 + $0x1dc] sm:$0xf]
    %v146 = vld [vmem:[%s1 + $0x1e0] sm:$0xf]
    %v147 = vld [vmem:[%s1 + $0x1e4] sm:$0xf]
    %v148 = vld [vmem:[%s1 + $0x1e8] sm:$0xf]
    %v149 = vld [vmem:[%s1 + $0x1ec] sm:$0xf]
    %v150 = vld [vmem:[%s1 + $0x1f0] sm:$0xf]
    %v151 = vld [vmem:[%s1 + $0x1f4] sm:$0xf]
    %v152 = vld [vmem:[%s1 + $0x1f8] sm:$0xf]
    %v153 = vld [vmem:[%s1 + $0x1fc] sm:$0xf]
    %v154 = vld [vmem:[%s1 + $0x200] sm:$0xf]
    %v155 = vld [vmem:[%s1 + $0x204] sm:$0xf]
    %v156 = vld [vmem:[%s1 + $0x208] sm:$0xf]
    %v157 = vld [vmem:[%s1 + $0x20c] sm:$0xf]
    %v158 = vld [vmem:[%s1 + $0x210] sm:$0xf]
    %v159 = vld [vmem:[%s1 + $0x214] sm:$0xf]
    %v160 = vld [vmem:[%s1 + $0x218] sm:$0xf]
    %v161 = vld [vmem:[%s1 + $0x21c] sm:$0xf]
    %v162 = vld [vmem:[%s1 + $0x220] sm:$0xf]
    %v163 = vld [vmem:[%s1 + $0x224] sm:$0xf]
    %v164 = vld [vmem:[%s1 + $0x228] sm:$0xf]
    %v165 = vld [vmem:[%s1 + $0x22c] sm:$0xf]
    %v166 = vld [vmem:[%s1 + $0x230] sm:$0xf]
    %v167 = vld [vmem:[%s1 + $0x234] sm:$0xf]
    %v168 = vld [vmem:[%s1 + $0x238] sm:$0xf]
    %v169 = vld [vmem:[%s1 + $0x23c] sm:$0xf]
    %v170 = vld [vmem:[%s1 + $0x240] sm:$0xf]
    %v171 = vld [vmem:[%s1 + $0x244] sm:$0xf]
    %v172 = vld [vmem:[%s1 + $0x248] sm:$0xf]
    %v173 = vld [vmem:[%s1 + $0x24c] sm:$0xf]
    %v174 = vld [vmem:[%s1 + $0x250] sm:$0xf]
    %v175 = vld [vmem:[%s1 + $0x254] sm:$0xf]
    %v176 = vld [vmem:[%s1 + $0x258] sm:$0xf]
    %v177 = vld [vmem:[%s1 + $0x25c] sm:$0xf]
    %v178 = vld [vmem:[%s1 + $0x260] sm:$0xf]
    %v179 = vld [vmem:[%s1 + $0x264] sm:$0xf]
    %v180 = vld [vmem:[%s1 + $0x268] sm:$0xf]
    %v181 = vld [vmem:[%s1 + $0x26c] sm:$0xf]
    %v182 = vld [vmem:[%s1 + $0x270] sm:$0xf]
    %v183 = vld [vmem:[%s1 + $0x274] sm:$0xf]
    %v184 = vld [vmem:[%s1 + $0x278] sm:$0xf]
    %v185 = vld [vmem:[%s1 + $0x27c] sm:$0xf]
    %v186 = vld [vmem:[%s1 + $0x280] sm:$0xf]
    %v187 = vld [vmem:[%s1 + $0x284] sm:$0xf]
    %v188 = vld [vmem:[%s1 + $0x288] sm:$0xf]
    %v189 = vld [vmem:[%s1 + $0x28c] sm:$0xf]
    %v190 = vld [vmem:[%s1 + $0x290] sm:$0xf]
    %v191 = vld [vmem:[%s1 + $0x294] sm:$0xf]
    %v192 = vld [vmem:[%s1 + $0x298] sm:$0xf]
    %v193 = vld [vmem:[%s1 + $0x29c] sm:$0xf]
    %v194 = vld [vmem:[%s1 + $0x2a0] sm:$0xf]
    %v195 = vld [vmem:[%s1 + $0x2a4] sm:$0xf]
    %v196 = vld [vmem:[%s1 + $0x2a8] sm:$0xf]
    %v197 = vld [vmem:[%s1 + $0x2ac] sm:$0xf]
    %v198 = vld [vmem:[%s1 + $0x2b0] sm:$0xf]
    %v199 = vld [vmem:[%s1 + $0x2b4] sm:$0xf]
    %v200 = vld [vmem:[%s1 + $0x2b8] sm:$0xf]
    %v201 = vld [vmem:[%s1 + $0x2bc] sm:$0xf]
    %v202 = vld [vmem:[%s1 + $0x2c0] sm:$0xf]
    %v203 = vld [vmem:[%s1 + $0x2c4] sm:$0xf]
    %v204 = vld [vmem:[%s1 + $0x2c8] sm:$0xf]
    %v205 = vld [vmem:[%s1 + $0x2cc] sm:$0xf]
    %v206 = vld [vmem:[%s1 + $0x2d0] sm:$0xf]
    %v207 = vld [vmem:[%s1 + $0x2d4] sm:$0xf]
    %v208 = vld [vmem:[%s1 + $0x2d8] sm:$0xf]
    %v209 = vld [vmem:[%s1 + $0x2dc] sm:$0xf]
    %v210 = vld [vmem:[%s1 + $0x2e0] sm:$0xf]
    %v211 = vld [vmem:[%s1 + $0x2e4] sm:$0xf]
    %v212 = vld [vmem:[%s1 + $0x2e8] sm:$0xf]
    %v213 = vld [vmem:[%s1 + $0x2ec] sm:$0xf]
    %v214 = vld [vmem:[%s1 + $0x2f0] sm:$0xf]
    %v215 = vld [vmem:[%s1 + $0x2f4] sm:$0xf]
    %v216 = vld [vmem:[%s1 + $0x2f8] sm:$0xf]
    %v217 = vld [vmem:[%s1 + $0x2fc] sm:$0xf]
    %v218 = vld [vmem:[%s1 + $0x300] sm:$0xf]
    %v219 = vld [vmem:[%s1 + $0x304] sm:$0xf]
    %v220 = vld [vmem:[%s1 + $0x308] sm:$0xf]
    %v221 = vld [vmem:[%s1 + $0x30c] sm:$0xf]
    %v222 = vld [vmem:[%s1 + $0x310] sm:$0xf]
    %v223 = vld [vmem:[%s1 + $0x314] sm:$0xf]
    %v224 = vld [vmem:[%s1 + $0x318] sm:$0xf]
    %v225 = vld [vmem:[%s1 + $0x31c] sm:$0xf]
    %v226 = vld [vmem:[%s1 + $0x320] sm:$0xf]
    %v227 = vld [vmem:[%s1 + $0x324] sm:$0xf]
    %v228 = vld [vmem:[%s1 + $0x328] sm:$0xf]
    %v229 = vld [vmem:[%s1 + $0x32c] sm:$0xf]
    %v230 = vld [vmem:[%s1 + $0x330] sm:$0xf]
    %v231 = vld [vmem:[%s1 + $0x334] sm:$0xf]
    %v232 = vld [vmem:[%s1 + $0x338] sm:$0xf]
    %v233 = vld [vmem:[%s1 + $0x33c] sm:$0xf]
    %v234 = vld [vmem:[%s1 + $0x340] sm:$0xf]
    %v235 = vld [vmem:[%s1 + $0x344] sm:$0xf]
    %v236 = vld [vmem:[%s1 + $0x348] sm:$0xf]
    %v237 = vld [vmem:[%s1 + $0x34c] sm:$0xf]
    %v238 = vld [vmem:[%s1 + $0x350] sm:$0xf]
    %v239 = vld [vmem:[%s1 + $0x354] sm:$0xf]
    %v240 = vld [vmem:[%s1 + $0x358] sm:$0xf]
    %v241 = vld [vmem:[%s1 + $0x35c] sm:$0xf]
    %v242 = vld [vmem:[%s1 + $0x360] sm:$0xf]
    %v243 = vld [vmem:[%s1 + $0x364] sm:$0xf]
    %v244 = vld [vmem:[%s1 + $0x368] sm:$0xf]
    %v245 = vld [vmem:[%s1 + $0x36c] sm:$0xf]
    %v246 = vld [vmem:[%s1 + $0x370] sm:$0xf]
    %v247 = vld [vmem:[%s1 + $0x374] sm:$0xf]
    %v248 = vld [vmem:[%s1 + $0x378] sm:$0xf]
    %v249 = vld [vmem:[%s1 + $0x37c] sm:$0xf]
    %v250 = vld [vmem:[%s1 + $0x380] sm:$0xf]
    %v251 = vld [vmem:[%s1 + $0x384] sm:$0xf]
    %v252 = vld [vmem:[%s1 + $0x388] sm:$0xf]
    %v253 = vld [vmem:[%s1 + $0x38c] sm:$0xf]
    %v254 = vld [vmem:[%s1 + $0x390] sm:$0xf]
    %v255 = vld [vmem:[%s1 + $0x394] sm:$0xf]
    %v256 = vld [vmem:[%s1 + $0x398] sm:$0xf]
    %v257 = vld [vmem:[%s1 + $0x39c] sm:$0xf]
    %v258 = vld [vmem:[%s1 + $0x3a0] sm:$0xf]
    %v259 = vld [vmem:[%s1 + $0x3a4] sm:$0xf]
    %v260 = vld [vmem:[%s1 + $0x3a8] sm:$0xf]
    %v261 = vld [vmem:[%s1 + $0x3ac] sm:$0xf]
    %v262 = vld [vmem:[%s1 + $0x3b0] sm:$0xf]
    %v263 = vld [vmem:[%s1 + $0x3b4] sm:$0xf]
    %v264 = vld [vmem:[%s1 + $0x3b8] sm:$0xf]
    %v265 = vld [vmem:[%s1 + $0x3bc] sm:$0xf]
    %v266 = vld [vmem:[%s1 + $0x3c0] sm:$0xf]
    %v267 = vld [vmem:[%s1 + $0x3c4] sm:$0xf]
    %v268 = vld [vmem:[%s1 + $0x3c8] sm:$0xf]
    %v269 = vld [vmem:[%s1 + $0x3cc] sm:$0xf]
    %v270 = vld [vmem:[%s1 + $0x3d0] sm:$0xf]
    %v271 = vld [vmem:[%s1 + $0x3d4] sm:$0xf]
    %v272 = vld [vmem:[%s1 + $0x3d8] sm:$0xf]
    %v273 = vld [vmem:[%s1 + $0x3dc] sm:$0xf]
    %v274 = vld [vmem:[%s1 + $0x3e0] sm:$0xf]
    %v275 = vld [vmem:[%s1 + $0x3e4] sm:$0xf]
    %v276 = vld [vmem:[%s1 + $0x3e8] sm:$0xf]
    %v277 = vld [vmem:[%s1 + $0x3ec] sm:$0xf]
    %v278 = vld [vmem:[%s1 + $0x3f0] sm:$0xf]
    %v279 = vld [vmem:[%s1 + $0x3f4] sm:$0xf]
    %v280 = vld [vmem:[%s1 + $0x3f8] sm:$0xf]
    %v281 = vld [vmem:[%s1 + $0x3fc] sm:$0xf]
    %v282 = vld [vmem:[%s1 + $0x400] sm:$0xf]
    %v283 = vld [vmem:[%s1 + $0x404] sm:$0xf]
    %v284 = vld [vmem:[%s1 + $0x408] sm:$0xf]
    %v285 = vld [vmem:[%s1 + $0x40c] sm:$0xf]
    %v286 = vld [vmem:[%s1 + $0x410] sm:$0xf]
    %v287 = vld [vmem:[%s1 + $0x414] sm:$0xf]
    %v288 = vld [vmem:[%s1 + $0x418] sm:$0xf]
    %v289 = vld [vmem:[%s1 + $0x41c] sm:$0xf]
    %v290 = vld [vmem:[%s1 + $0x420] sm:$0xf]
    %v291 = vld [vmem:[%s1 + $0x424] sm:$0xf]
    %v292 = vld [vmem:[%s1 + $0x428] sm:$0xf]
    %v293 = vld [vmem:[%s1 + $0x42c] sm:$0xf]
    %v294 = vld [vmem:[%s1 + $0x430] sm:$0xf]
    %v295 = vld [vmem:[%s1 + $0x434] sm:$0xf]
    %v296 = vld [vmem:[%s1 + $0x438] sm:$0xf]
    %v297 = vld [vmem:[%s1 + $0x43c] sm:$0xf]
    %v298 = vld [vmem:[%s1 + $0x440] sm:$0xf]
    %v299 = vld [vmem:[%s1 + $0x444] sm:$0xf]
    %v300 = vld [vmem:[%s1 + $0x448] sm:$0xf]
    %v301 = vld [vmem:[%s1 + $0x44c] sm:$0xf]
    %v302 = vld [vmem:[%s1 + $0x450] sm:$0xf]
    %v303 = vld [vmem:[%s1 + $0x454] sm:$0xf]
    %v304 = vld [vmem:[%s1 + $0x458] sm:$0xf]
    %v305 = vld [vmem:[%s1 + $0x45c] sm:$0xf]
    %v306 = vld [vmem:[%s1 + $0x460] sm:$0xf]
    %v307 = vld [vmem:[%s1 + $0x464] sm:$0xf]
    %v308 = vld [vmem:[%s1 + $0x468] sm:$0xf]
    %v309 = vld [vmem:[%s1 + $0x46c] sm:$0xf]
    %v310 = vld [vmem:[%s1 + $0x470] sm:$0xf]
    %v311 = vld [vmem:[%s1 + $0x474] sm:$0xf]
    %v312 = vld [vmem:[%s1 + $0x478] sm:$0xf]
    %v313 = vld [vmem:[%s1 + $0x47c] sm:$0xf]
    %v314 = vld [vmem:[%s1 + $0x480] sm:$0xf]
    %v315 = vld [vmem:[%s1 + $0x484] sm:$0xf]
    %v316 = vld [vmem:[%s1 + $0x488] sm:$0xf]
    %v317 = vld [vmem:[%s1 + $0x48c] sm:$0xf]
    %v318 = vld [vmem:[%s1 + $0x490] sm:$0xf]
    %v319 = vld [vmem:[%s1 + $0x494] sm:$0xf]
    %v320 = vld [vmem:[%s1 + $0x498] sm:$0xf]
    %v321 = vld [vmem:[%s1 + $0x49c] sm:$0xf]
    %v322 = vld [vmem:[%s1 + $0x4a0] sm:$0xf]
    %v323 = vld [vmem:[%s1 + $0x4a4] sm:$0xf]
    %v324 = vld [vmem:[%s1 + $0x4a8] sm:$0xf]
    %v325 = vld [vmem:[%s1 + $0x4ac] sm:$0xf]
    %v326 = vld [vmem:[%s1 + $0x4b0] sm:$0xf]
    %v327 = vld [vmem:[%s1 + $0x4b4] sm:$0xf]
    %v328 = vld [vmem:[%s1 + $0x4b8] sm:$0xf]
    %v329 = vld [vmem:[%s1 + $0x4bc] sm:$0xf]
    %v330 = vld [vmem:[%s1 + $0x4c0] sm:$0xf]
    %v331 = vld [vmem:[%s1 + $0x4c4] sm:$0xf]
    %v332 = vld [vmem:[%s1 + $0x4c8] sm:$0xf]
    %v333 = vld [vmem:[%s1 + $0x4cc] sm:$0xf]
    %v334 = vld [vmem:[%s1 + $0x4d0] sm:$0xf]
    %v335 = vld [vmem:[%s1 + $0x4d4] sm:$0xf]
    %v336 = vld [vmem:[%s1 + $0x4d8] sm:$0xf]
    %v337 = vld [vmem:[%s1 + $0x4dc] sm:$0xf]
    %v338 = vld [vmem:[%s1 + $0x4e0] sm:$0xf]
    %v339 = vld [vmem:[%s1 + $0x4e4] sm:$0xf]
    %v340 = vld [vmem:[%s1 + $0x4e8] sm:$0xf]
    %v341 = vld [vmem:[%s1 + $0x4ec] sm:$0xf]
    %v342 = vld [vmem:[%s1 + $0x4f0] sm:$0xf]
    %v343 = vld [vmem:[%s1 + $0x4f4] sm:$0xf]
    %v344 = vld [vmem:[%s1 + $0x4f8] sm:$0xf]
    %v345 = vld [vmem:[%s1 + $0x4fc] sm:$0xf]
    %v346 = vld [vmem:[%s1 + $0x500] sm:$0xf]
    %v347 = vld [vmem:[%s1 + $0x504] sm:$0xf]
    %v348 = vld [vmem:[%s1 + $0x508] sm:$0xf]
    %v349 = vld [vmem:[%s1 + $0x50c] sm:$0xf]
    %v350 = vld [vmem:[%s1 + $0x510] sm:$0xf]
    %v351 = vld [vmem:[%s1 + $0x514] sm:$0xf]
    %v352 = vld [vmem:[%s1 + $0x518] sm:$0xf]
    %v353 = vld [vmem:[%s1 + $0x51c] sm:$0xf]
    %v354 = vld [vmem:[%s1 + $0x520] sm:$0xf]
    %v355 = vld [vmem:[%s1 + $0x524] sm:$0xf]
    %v356 = vld [vmem:[%s1 + $0x528] sm:$0xf]
    %v357 = vld [vmem:[%s1 + $0x52c] sm:$0xf]
    %v358 = vld [vmem:[%s1 + $0x530] sm:$0xf]
    %v359 = vld [vmem:[%s1 + $0x534] sm:$0xf]
    %v360 = vld [vmem:[%s1 + $0x538] sm:$0xf]
    %v361 = vld [vmem:[%s1 + $0x53c] sm:$0xf]
    %v362 = vld [vmem:[%s1 + $0x540] sm:$0xf]
    %v363 = vld [vmem:[%s1 + $0x544] sm:$0xf]
    %v364 = vld [vmem:[%s1 + $0x548] sm:$0xf]
    %v365 = vld [vmem:[%s1 + $0x54c] sm:$0xf]
    %v366 = vld [vmem:[%s1 + $0x550] sm:$0xf]
    %v367 = vld [vmem:[%s1 + $0x554] sm:$0xf]
    %v368 = vld [vmem:[%s1 + $0x558] sm:$0xf]
    %v369 = vld [vmem:[%s1 + $0x55c] sm:$0xf]
    %v370 = vld [vmem:[%s1 + $0x560] sm:$0xf]
    %v371 = vld [vmem:[%s1 + $0x564] sm:$0xf]
    %v372 = vld [vmem:[%s1 + $0x568] sm:$0xf]
    %v373 = vld [vmem:[%s1 + $0x56c] sm:$0xf]
    %v374 = vld [vmem:[%s1 + $0x570] sm:$0xf]
    %v375 = vld [vmem:[%s1 + $0x574] sm:$0xf]
    %v376 = vld [vmem:[%s1 + $0x578] sm:$0xf]
    %v377 = vld [vmem:[%s1 + $0x57c] sm:$0xf]
    %v378 = vld [vmem:[%s1 + $0x580] sm:$0xf]
    %v379 = vld [vmem:[%s1 + $0x584] sm:$0xf]
    %v380 = vld [vmem:[%s1 + $0x588] sm:$0xf]
    %v381 = vld [vmem:[%s1 + $0x58c] sm:$0xf]
    %v382 = vld [vmem:[%s1 + $0x590] sm:$0xf]
    %v383 = vld [vmem:[%s1 + $0x594] sm:$0xf]
    %v384 = vld [vmem:[%s1 + $0x598] sm:$0xf]
    %v385 = vld [vmem:[%s1 + $0x59c] sm:$0xf]
    %v386 = vld [vmem:[%s1 + $0x5a0] sm:$0xf]
    %v387 = vld [vmem:[%s1 + $0x5a4] sm:$0xf]
    %v388 = vld [vmem:[%s1 + $0x5a8] sm:$0xf]
    %v389 = vld [vmem:[%s1 + $0x5ac] sm:$0xf]
    %v390 = vld [vmem:[%s1 + $0x5b0] sm:$0xf]
    %v391 = vld [vmem:[%s1 + $0x5b4] sm:$0xf]
    %v392 = vld [vmem:[%s1 + $0x5b8] sm:$0xf]
    %v393 = vld [vmem:[%s1 + $0x5bc] sm:$0xf]
    %v394 = vld [vmem:[%s1 + $0x5c0] sm:$0xf]
    %v395 = vld [vmem:[%s1 + $0x5c4] sm:$0xf]
    %v396 = vld [vmem:[%s1 + $0x5c8] sm:$0xf]
    %v397 = vld [vmem:[%s1 + $0x5cc] sm:$0xf]
    %v398 = vld [vmem:[%s1 + $0x5d0] sm:$0xf]
    %v399 = vld [vmem:[%s1 + $0x5d4] sm:$0xf]
    %v400 = vld [vmem:[%s1 + $0x5d8] sm:$0xf]
    %v401 = vld [vmem:[%s1 + $0x5dc] sm:$0xf]
    %v402 = vld [vmem:[%s1 + $0x5e0] sm:$0xf]
    %v403 = vld [vmem:[%s1 + $0x5e4] sm:$0xf]
    %v404 = vld [vmem:[%s1 + $0x5e8] sm:$0xf]
    %v405 = vld [vmem:[%s1 + $0x5ec] sm:$0xf]
    %v406 = vld [vmem:[%s1 + $0x5f0] sm:$0xf]
    %v407 = vld [vmem:[%s1 + $0x5f4] sm:$0xf]
    %v408 = vld [vmem:[%s1 + $0x5f8] sm:$0xf]
    %v409 = vld [vmem:[%s1 + $0x5fc] sm:$0xf]
    %v410 = vld [vmem:[%s1 + $0x600] sm:$0xf]
    %v411 = vld [vmem:[%s1 + $0x604] sm:$0xf]
    %v412 = vld [vmem:[%s1 + $0x608] sm:$0xf]
    %v413 = vld [vmem:[%s1 + $0x60c] sm:$0xf]
    %v414 = vld [vmem:[%s1 + $0x610] sm:$0xf]
    %v415 = vld [vmem:[%s1 + $0x614] sm:$0xf]
    %v416 = vld [vmem:[%s1 + $0x618] sm:$0xf]
    %v417 = vld [vmem:[%s1 + $0x61c] sm:$0xf]
    %v418 = vld [vmem:[%s1 + $0x620] sm:$0xf]
    %v419 = vld [vmem:[%s1 + $0x624] sm:$0xf]
    %v420 = vld [vmem:[%s1 + $0x628] sm:$0xf]
    %v421 = vld [vmem:[%s1 + $0x62c] sm:$0xf]
    %v422 = vld [vmem:[%s1 + $0x630] sm:$0xf]
    %v423 = vld [vmem:[%s1 + $0x634] sm:$0xf]
    %v424 = vld [vmem:[%s1 + $0x638] sm:$0xf]
    %v425 = vld [vmem:[%s1 + $0x63c] sm:$0xf]
    %v426 = vld [vmem:[%s1 + $0x640] sm:$0xf]
    %v427 = vld [vmem:[%s1 + $0x644] sm:$0xf]
    %v428 = vld [vmem:[%s1 + $0x648] sm:$0xf]
    %v429 = vld [vmem:[%s1 + $0x64c] sm:$0xf]
    %v430 = vld [vmem:[%s1 + $0x650] sm:$0xf]
    %v431 = vld [vmem:[%s1 + $0x654] sm:$0xf]
    %v432 = vld [vmem:[%s1 + $0x658] sm:$0xf]
    %v433 = vld [vmem:[%s1 + $0x65c] sm:$0xf]
    %v434 = vld [vmem:[%s1 + $0x660] sm:$0xf]
    %v435 = vld [vmem:[%s1 + $0x664] sm:$0xf]
    %v436 = vld [vmem:[%s1 + $0x668] sm:$0xf]
    %v437 = vld [vmem:[%s1 + $0x66c] sm:$0xf]
    %v438 = vld [vmem:[%s1 + $0x670] sm:$0xf]
    %v439 = vld [vmem:[%s1 + $0x674] sm:$0xf]
    %v440 = vld [vmem:[%s1 + $0x678] sm:$0xf]
    %v441 = vld [vmem:[%s1 + $0x67c] sm:$0xf]
    %v442 = vld [vmem:[%s1 + $0x680] sm:$0xf]
    %v443 = vld [vmem:[%s1 + $0x684] sm:$0xf]
    %v444 = vld [vmem:[%s1 + $0x688] sm:$0xf]
    %v445 = vld [vmem:[%s1 + $0x68c] sm:$0xf]
    %v446 = vld [vmem:[%s1 + $0x690] sm:$0xf]
    %v447 = vld [vmem:[%s1 + $0x694] sm:$0xf]
    %v448 = vld [vmem:[%s1 + $0x698] sm:$0xf]
    %v449 = vld [vmem:[%s1 + $0x69c] sm:$0xf]
    %v450 = vld [vmem:[%s1 + $0x6a0] sm:$0xf]
    %v451 = vld [vmem:[%s1 + $0x6a4] sm:$0xf]
    %v452 = vld [vmem:[%s1 + $0x6a8] sm:$0xf]
    %v453 = vld [vmem:[%s1 + $0x6ac] sm:$0xf]
    %v454 = vld [vmem:[%s1 + $0x6b0] sm:$0xf]
    %v455 = vld [vmem:[%s1 + $0x6b4] sm:$0xf]
    %v456 = vld [vmem:[%s1 + $0x6b8] sm:$0xf]
    %v457 = vld [vmem:[%s1 + $0x6bc] sm:$0xf]
    %v458 = vld [vmem:[%s1 + $0x6c0] sm:$0xf]
    %v459 = vld [vmem:[%s1 + $0x6c4] sm:$0xf]
    %v460 = vld [vmem:[%s1 + $0x6c8] sm:$0xf]
    %v461 = vld [vmem:[%s1 + $0x6cc] sm:$0xf]
    %v462 = vld [vmem:[%s1 + $0x6d0] sm:$0xf]
    %v463 = vld [vmem:[%s1 + $0x6d4] sm:$0xf]
    %v464 = vld [vmem:[%s1 + $0x6d8] sm:$0xf]
    %v465 = vld [vmem:[%s1 + $0x6dc] sm:$0xf]
    %v466 = vld [vmem:[%s1 + $0x6e0] sm:$0xf]
    %v467 = vld [vmem:[%s1 + $0x6e4] sm:$0xf]
    %v468 = vld [vmem:[%s1 + $0x6e8] sm:$0xf]
    %v469 = vld [vmem:[%s1 + $0x6ec] sm:$0xf]
    %v470 = vld [vmem:[%s1 + $0x6f0] sm:$0xf]
    %v471 = vld [vmem:[%s1 + $0x6f4] sm:$0xf]
    %v472 = vld [vmem:[%s1 + $0x6f8] sm:$0xf]
    %v473 = vld [vmem:[%s1 + $0x6fc] sm:$0xf]
    %v474 = vld [vmem:[%s1 + $0x700] sm:$0xf]
    %v475 = vld [vmem:[%s1 + $0x704] sm:$0xf]
    %v476 = vld [vmem:[%s1 + $0x708] sm:$0xf]
    %v477 = vld [vmem:[%s1 + $0x70c] sm:$0xf]
    %v478 = vld [vmem:[%s1 + $0x710] sm:$0xf]
    %v479 = vld [vmem:[%s1 + $0x714] sm:$0xf]
    %v480 = vld [vmem:[%s1 + $0x718] sm:$0xf]
    %v481 = vld [vmem:[%s1 + $0x71c] sm:$0xf]
    %v482 = vld [vmem:[%s1 + $0x720] sm:$0xf]
    %v483 = vld [vmem:[%s1 + $0x724] sm:$0xf]
    %v484 = vld [vmem:[%s1 + $0x728] sm:$0xf]
    %v485 = vld [vmem:[%s1 + $0x72c] sm:$0xf]
    %v486 = vld [vmem:[%s1 + $0x730] sm:$0xf]
    %v487 = vld [vmem:[%s1 + $0x734] sm:$0xf]
    %v488 = vld [vmem:[%s1 + $0x738] sm:$0xf]
    %v489 = vld [vmem:[%s1 + $0x73c] sm:$0xf]
    %v490 = vld [vmem:[%s1 + $0x740] sm:$0xf]
    %v491 = vld [vmem:[%s1 + $0x744] sm:$0xf]
    %v492 = vld [vmem:[%s1 + $0x748] sm:$0xf]
    %v493 = vld [vmem:[%s1 + $0x74c] sm:$0xf]
    %v494 = vld [vmem:[%s1 + $0x750] sm:$0xf]
    %v495 = vld [vmem:[%s1 + $0x754] sm:$0xf]
    %v496 = vld [vmem:[%s1 + $0x758] sm:$0xf]
    %v497 = vld [vmem:[%s1 + $0x75c] sm:$0xf]
    %v498 = vld [vmem:[%s1 + $0x760] sm:$0xf]
    %v499 = vld [vmem:[%s1 + $0x764] sm:$0xf]
    %v500 = vld [vmem:[%s1 + $0x768] sm:$0xf]
    %v501 = vld [vmem:[%s1 + $0x76c] sm:$0xf]
    %v502 = vld [vmem:[%s1 + $0x770] sm:$0xf]
    %v503 = vld [vmem:[%s1 + $0x774] sm:$0xf]
    %v504 = vld [vmem:[%s1 + $0x778] sm:$0xf]
    %v505 = vld [vmem:[%s1 + $0x77c] sm:$0xf]
    %v506 = vld [vmem:[%s1 + $0x780] sm:$0xf]
    %v507 = vld [vmem:[%s1 + $0x784] sm:$0xf]
    %v508 = vld [vmem:[%s1 + $0x788] sm:$0xf]
    %v509 = vld [vmem:[%s1 + $0x78c] sm:$0xf]
    %v510 = vld [vmem:[%s1 + $0x790] sm:$0xf]
    %v511 = vld [vmem:[%s1 + $0x794] sm:$0xf]
    %v512 = vld [vmem:[%s1 + $0x798] sm:$0xf]
    %v513 = vld [vmem:[%s1 + $0x79c] sm:$0xf]
    %v514 = vld [vmem:[%s1 + $0x7a0] sm:$0xf]
    %v515 = vld [vmem:[%s1 + $0x7a4] sm:$0xf]
    %v516 = vld [vmem:[%s1 + $0x7a8] sm:$0xf]
    %v517 = vld [vmem:[%s1 + $0x7ac] sm:$0xf]
    %v518 = vld [vmem:[%s1 + $0x7b0] sm:$0xf]
    %v519 = vld [vmem:[%s1 + $0x7b4] sm:$0xf]
    %v520 = vld [vmem:[%s1 + $0x7b8] sm:$0xf]
    %v521 = vld [vmem:[%s1 + $0x7bc] sm:$0xf]
    %v522 = vld [vmem:[%s1 + $0x7c0] sm:$0xf]
    %v523 = vld [vmem:[%s1 + $0x7c4] sm:$0xf]
    %v524 = vld [vmem:[%s1 + $0x7c8] sm:$0xf]
    %v525 = vld [vmem:[%s1 + $0x7cc] sm:$0xf]
    %v526 = vld [vmem:[%s1 + $0x7d0] sm:$0xf]
    %v527 = vld [vmem:[%s1 + $0x7d4] sm:$0xf]
    %v528 = vld [vmem:[%s1 + $0x7d8] sm:$0xf]
    %v529 = vld [vmem:[%s1 + $0x7dc] sm:$0xf]
    %v530 = vld [vmem:[%s2] sm:$0x1]
    %v532 = vperm.slane %v530, 0
    %535 = vst [vmem:[#allocation1] ss:$9 sm:$0xff] %v22
    %v536 = vld [vmem:[#allocation1] sm:$0xff]
    %v537 = vld [vmem:[#allocation1 + $0x9] sm:$0xff]
    %v538 = vld [vmem:[#allocation1 + $0x12] sm:$0xff]
    %v539 = vld [vmem:[#allocation1 + $0x1b] sm:$0xff]
    %v540 = vld [vmem:[#allocation1 + $0x24] sm:$0xff]
    %v541 = vld [vmem:[#allocation1 + $0x2d] sm:$0xff]
    %v542 = vld [vmem:[#allocation1 + $0x36] sm:$0xff]
    %v543 = vld [vmem:[#allocation1 + $0x3f] sm:$0xff]
    %545 = vst [vmem:[#allocation1] ss:$9 sm:$0xff] %v23
    %v546 = vld [vmem:[#allocation1] sm:$0xff]
    %v547 = vld [vmem:[#allocation1 + $0x9] sm:$0xff]
    %v548 = vld [vmem:[#allocation1 + $0x12] sm:$0xff]
    %v549 = vld [vmem:[#allocation1 + $0x1b] sm:$0xff]
    %v550 = vld [vmem:[#allocation1 + $0x24] sm:$0xff]
    %v551 = vld [vmem:[#allocation1 + $0x2d] sm:$0xff]
    %v552 = vld [vmem:[#allocation1 + $0x36] sm:$0xff]
    %v553 = vld [vmem:[#allocation1 + $0x3f] sm:$0xff]
    %555 = vst [vmem:[#allocation1] ss:$9 sm:$0xff] %v24
    %v556 = vld [vmem:[#allocation1] sm:$0xff]
    %v557 = vld [vmem:[#allocation1 + $0x9] sm:$0xff]
    %v558 = vld [vmem:[#allocation1 + $0x12] sm:$0xff]
    %v559 = vld [vmem:[#allocation1 + $0x1b] sm:$0xff]
    %v560 = vld [vmem:[#allocation1 + $0x24] sm:$0xff]
    %v561 = vld [vmem:[#allocation1 + $0x2d] sm:$0xff]
    %v562 = vld [vmem:[#allocation1 + $0x36] sm:$0xff]
    %v563 = vld [vmem:[#allocation1 + $0x3f] sm:$0xff]
    %565 = vst [vmem:[#allocation1] ss:$9 sm:$0xff] %v25
    %v566 = vld [vmem:[#allocation1] sm:$0xff]
    %v567 = vld [vmem:[#allocation1 + $0x9] sm:$0xff]
    %v568 = vld [vmem:[#allocation1 + $0x12] sm:$0xff]
    %v569 = vld [vmem:[#allocation1 + $0x1b] sm:$0xff]
    %v570 = vld [vmem:[#allocation1 + $0x24] sm:$0xff]
    %v571 = vld [vmem:[#allocation1 + $0x2d] sm:$0xff]
    %v572 = vld [vmem:[#allocation1 + $0x36] sm:$0xff]
    %v573 = vld [vmem:[#allocation1 + $0x3f] sm:$0xff]
    %v1109 = vunpack.c.l.b16 %v26
    %v1110 = vunpack.c.l.b16 %v27
    %v1111 = vunpack.c.l.b16 %v28
    %v1112 = vunpack.c.l.b16 %v29
    %v1113 = vunpack.c.l.b16 %v30
    %v1114 = vunpack.c.l.b16 %v31
    %v1115 = vunpack.c.l.b16 %v32
    %v1116 = vunpack.c.l.b16 %v33
    %v1117 = vunpack.c.l.b16 %v34
    %v1118 = vunpack.c.l.b16 %v35
    %v1119 = vunpack.c.l.b16 %v36
    %v1120 = vunpack.c.l.b16 %v37
    %v1121 = vunpack.c.l.b16 %v38
    %v1122 = vunpack.c.l.b16 %v39
    %v1123 = vunpack.c.l.b16 %v40
    %v1124 = vunpack.c.l.b16 %v41
    %v1125 = vunpack.c.l.b16 %v42
    %v1126 = vunpack.c.l.b16 %v43
    %v1127 = vunpack.c.l.b16 %v44
    %v1128 = vunpack.c.l.b16 %v45
    %v1129 = vunpack.c.l.b16 %v46
    %v1130 = vunpack.c.l.b16 %v47
    %v1131 = vunpack.c.l.b16 %v48
    %v1132 = vunpack.c.l.b16 %v49
    %v1133 = vunpack.c.l.b16 %v50
    %v1134 = vunpack.c.l.b16 %v51
    %v1135 = vunpack.c.l.b16 %v52
    %v1136 = vunpack.c.l.b16 %v53
    %v1137 = vunpack.c.l.b16 %v54
    %v1138 = vunpack.c.l.b16 %v55
    %v1139 = vunpack.c.l.b16 %v56
    %v1140 = vunpack.c.l.b16 %v57
    %v1141 = vunpack.c.l.b16 %v58
    %v1142 = vunpack.c.l.b16 %v59
    %v1143 = vunpack.c.l.b16 %v60
    %v1144 = vunpack.c.l.b16 %v61
    %v1145 = vunpack.c.l.b16 %v62
    %v1146 = vunpack.c.l.b16 %v63
    %v1147 = vunpack.c.l.b16 %v64
    %v1148 = vunpack.c.l.b16 %v65
    %v1149 = vunpack.c.l.b16 %v66
    %v1150 = vunpack.c.l.b16 %v67
    %v1151 = vunpack.c.l.b16 %v68
    %v1152 = vunpack.c.l.b16 %v69
    %v1153 = vunpack.c.l.b16 %v70
    %v1154 = vunpack.c.l.b16 %v71
    %v1155 = vunpack.c.l.b16 %v72
    %v1156 = vunpack.c.l.b16 %v73
    %v1157 = vunpack.c.l.b16 %v74
    %v1158 = vunpack.c.l.b16 %v75
    %v1159 = vunpack.c.l.b16 %v76
    %v1160 = vunpack.c.l.b16 %v77
    %v1161 = vunpack.c.l.b16 %v78
    %v1162 = vunpack.c.l.b16 %v79
    %v1163 = vunpack.c.l.b16 %v80
    %v1164 = vunpack.c.l.b16 %v81
    %v1165 = vunpack.c.l.b16 %v82
    %v1166 = vunpack.c.l.b16 %v83
    %v1167 = vunpack.c.l.b16 %v84
    %v1168 = vunpack.c.l.b16 %v85
    %v1169 = vunpack.c.l.b16 %v86
    %v1170 = vunpack.c.l.b16 %v87
    %v1171 = vunpack.c.l.b16 %v88
    %v1172 = vunpack.c.l.b16 %v89
    %v1173 = vunpack.c.l.b16 %v90
    %v1174 = vunpack.c.l.b16 %v91
    %v1175 = vunpack.c.l.b16 %v92
    %v1176 = vunpack.c.l.b16 %v93
    %v1177 = vunpack.c.l.b16 %v94
    %v1178 = vunpack.c.l.b16 %v95
    %v1179 = vunpack.c.l.b16 %v96
    %v1180 = vunpack.c.l.b16 %v97
    %v1181 = vunpack.c.l.b16 %v98
    %v1182 = vunpack.c.l.b16 %v99
    %v1183 = vunpack.c.l.b16 %v100
    %v1184 = vunpack.c.l.b16 %v101
    %v1185 = vunpack.c.l.b16 %v102
    %v1186 = vunpack.c.l.b16 %v103
    %v1187 = vunpack.c.l.b16 %v104
    %v1188 = vunpack.c.l.b16 %v105
    %v1189 = vunpack.c.l.b16 %v106
    %v1190 = vunpack.c.l.b16 %v107
    %v1191 = vunpack.c.l.b16 %v108
    %v1192 = vunpack.c.l.b16 %v109
    %v1193 = vunpack.c.l.b16 %v110
    %v1194 = vunpack.c.l.b16 %v111
    %v1195 = vunpack.c.l.b16 %v112
    %v1196 = vunpack.c.l.b16 %v113
    %v1197 = vunpack.c.l.b16 %v114
    %v1198 = vunpack.c.l.b16 %v115
    %v1199 = vunpack.c.l.b16 %v116
    %v1200 = vunpack.c.l.b16 %v117
    %v1201 = vunpack.c.l.b16 %v118
    %v1202 = vunpack.c.l.b16 %v119
    %v1203 = vunpack.c.l.b16 %v120
    %v1204 = vunpack.c.l.b16 %v121
    %v1205 = vunpack.c.l.b16 %v122
    %v1206 = vunpack.c.l.b16 %v123
    %v1207 = vunpack.c.l.b16 %v124
    %v1208 = vunpack.c.l.b16 %v125
    %v1209 = vunpack.c.l.b16 %v126
    %v1210 = vunpack.c.l.b16 %v127
    %v1211 = vunpack.c.l.b16 %v128
    %v1212 = vunpack.c.l.b16 %v129
    %v1213 = vunpack.c.l.b16 %v130
    %v1214 = vunpack.c.l.b16 %v131
    %v1215 = vunpack.c.l.b16 %v132
    %v1216 = vunpack.c.l.b16 %v133
    %v1217 = vunpack.c.l.b16 %v134
    %v1218 = vunpack.c.l.b16 %v135
    %v1219 = vunpack.c.l.b16 %v136
    %v1220 = vunpack.c.l.b16 %v137
    %v1221 = vunpack.c.l.b16 %v138
    %v1222 = vunpack.c.l.b16 %v139
    %v1223 = vunpack.c.l.b16 %v140
    %v1224 = vunpack.c.l.b16 %v141
    %v1225 = vunpack.c.l.b16 %v142
    %v1226 = vunpack.c.l.b16 %v143
    %v1227 = vunpack.c.l.b16 %v144
    %v1228 = vunpack.c.l.b16 %v145
    %v1229 = vunpack.c.l.b16 %v146
    %v1230 = vunpack.c.l.b16 %v147
    %v1231 = vunpack.c.l.b16 %v148
    %v1232 = vunpack.c.l.b16 %v149
    %v1233 = vunpack.c.l.b16 %v150
    %v1234 = vunpack.c.l.b16 %v151
    %v1235 = vunpack.c.l.b16 %v152
    %v1236 = vunpack.c.l.b16 %v153
    %v1237 = vunpack.c.l.b16 %v154
    %v1238 = vunpack.c.l.b16 %v155
    %v1239 = vunpack.c.l.b16 %v156
    %v1240 = vunpack.c.l.b16 %v157
    %v1241 = vunpack.c.l.b16 %v158
    %v1242 = vunpack.c.l.b16 %v159
    %v1243 = vunpack.c.l.b16 %v160
    %v1244 = vunpack.c.l.b16 %v161
    %v1245 = vunpack.c.l.b16 %v162
    %v1246 = vunpack.c.l.b16 %v163
    %v1247 = vunpack.c.l.b16 %v164
    %v1248 = vunpack.c.l.b16 %v165
    %v1249 = vunpack.c.l.b16 %v166
    %v1250 = vunpack.c.l.b16 %v167
    %v1251 = vunpack.c.l.b16 %v168
    %v1252 = vunpack.c.l.b16 %v169
    %v1253 = vunpack.c.l.b16 %v170
    %v1254 = vunpack.c.l.b16 %v171
    %v1255 = vunpack.c.l.b16 %v172
    %v1256 = vunpack.c.l.b16 %v173
    %v1257 = vunpack.c.l.b16 %v174
    %v1258 = vunpack.c.l.b16 %v175
    %v1259 = vunpack.c.l.b16 %v176
    %v1260 = vunpack.c.l.b16 %v177
    %v1261 = vunpack.c.l.b16 %v178
    %v1262 = vunpack.c.l.b16 %v179
    %v1263 = vunpack.c.l.b16 %v180
    %v1264 = vunpack.c.l.b16 %v181
    %v1265 = vunpack.c.l.b16 %v182
    %v1266 = vunpack.c.l.b16 %v183
    %v1267 = vunpack.c.l.b16 %v184
    %v1268 = vunpack.c.l.b16 %v185
    %v1269 = vunpack.c.l.b16 %v186
    %v1270 = vunpack.c.l.b16 %v187
    %v1271 = vunpack.c.l.b16 %v188
    %v1272 = vunpack.c.l.b16 %v189
    %v1273 = vunpack.c.l.b16 %v190
    %v1274 = vunpack.c.l.b16 %v191
    %v1275 = vunpack.c.l.b16 %v192
    %v1276 = vunpack.c.l.b16 %v193
    %v1277 = vunpack.c.l.b16 %v194
    %v1278 = vunpack.c.l.b16 %v195
    %v1279 = vunpack.c.l.b16 %v196
    %v1280 = vunpack.c.l.b16 %v197
    %v1281 = vunpack.c.l.b16 %v198
    %v1282 = vunpack.c.l.b16 %v199
    %v1283 = vunpack.c.l.b16 %v200
    %v1284 = vunpack.c.l.b16 %v201
    %v1285 = vunpack.c.l.b16 %v202
    %v1286 = vunpack.c.l.b16 %v203
    %v1287 = vunpack.c.l.b16 %v204
    %v1288 = vunpack.c.l.b16 %v205
    %v1289 = vunpack.c.l.b16 %v206
    %v1290 = vunpack.c.l.b16 %v207
    %v1291 = vunpack.c.l.b16 %v208
    %v1292 = vunpack.c.l.b16 %v209
    %v1293 = vunpack.c.l.b16 %v210
    %v1294 = vunpack.c.l.b16 %v211
    %v1295 = vunpack.c.l.b16 %v212
    %v1296 = vunpack.c.l.b16 %v213
    %v1297 = vunpack.c.l.b16 %v214
    %v1298 = vunpack.c.l.b16 %v215
    %v1299 = vunpack.c.l.b16 %v216
    %v1300 = vunpack.c.l.b16 %v217
    %v1301 = vunpack.c.l.b16 %v218
    %v1302 = vunpack.c.l.b16 %v219
    %v1303 = vunpack.c.l.b16 %v220
    %v1304 = vunpack.c.l.b16 %v221
    %v1305 = vunpack.c.l.b16 %v222
    %v1306 = vunpack.c.l.b16 %v223
    %v1307 = vunpack.c.l.b16 %v224
    %v1308 = vunpack.c.l.b16 %v225
    %v1309 = vunpack.c.l.b16 %v226
    %v1310 = vunpack.c.l.b16 %v227
    %v1311 = vunpack.c.l.b16 %v228
    %v1312 = vunpack.c.l.b16 %v229
    %v1313 = vunpack.c.l.b16 %v230
    %v1314 = vunpack.c.l.b16 %v231
    %v1315 = vunpack.c.l.b16 %v232
    %v1316 = vunpack.c.l.b16 %v233
    %v1317 = vunpack.c.l.b16 %v234
    %v1318 = vunpack.c.l.b16 %v235
    %v1319 = vunpack.c.l.b16 %v236
    %v1320 = vunpack.c.l.b16 %v237
    %v1321 = vunpack.c.l.b16 %v238
    %v1322 = vunpack.c.l.b16 %v239
    %v1323 = vunpack.c.l.b16 %v240
    %v1324 = vunpack.c.l.b16 %v241
    %v1325 = vunpack.c.l.b16 %v242
    %v1326 = vunpack.c.l.b16 %v243
    %v1327 = vunpack.c.l.b16 %v244
    %v1328 = vunpack.c.l.b16 %v245
    %v1329 = vunpack.c.l.b16 %v246
    %v1330 = vunpack.c.l.b16 %v247
    %v1331 = vunpack.c.l.b16 %v248
    %v1332 = vunpack.c.l.b16 %v249
    %v1333 = vunpack.c.l.b16 %v250
    %v1334 = vunpack.c.l.b16 %v251
    %v1335 = vunpack.c.l.b16 %v252
    %v1336 = vunpack.c.l.b16 %v253
    %v1337 = vunpack.c.l.b16 %v254
    %v1338 = vunpack.c.l.b16 %v255
    %v1339 = vunpack.c.l.b16 %v256
    %v1340 = vunpack.c.l.b16 %v257
    %v1341 = vunpack.c.l.b16 %v258
    %v1342 = vunpack.c.l.b16 %v259
    %v1343 = vunpack.c.l.b16 %v260
    %v1344 = vunpack.c.l.b16 %v261
    %v1345 = vunpack.c.l.b16 %v262
    %v1346 = vunpack.c.l.b16 %v263
    %v1347 = vunpack.c.l.b16 %v264
    %v1348 = vunpack.c.l.b16 %v265
    %v1349 = vunpack.c.l.b16 %v266
    %v1350 = vunpack.c.l.b16 %v267
    %v1351 = vunpack.c.l.b16 %v268
    %v1352 = vunpack.c.l.b16 %v269
    %v1353 = vunpack.c.l.b16 %v270
    %v1354 = vunpack.c.l.b16 %v271
    %v1355 = vunpack.c.l.b16 %v272
    %v1356 = vunpack.c.l.b16 %v273
    %v1357 = vunpack.c.l.b16 %v274
    %v1358 = vunpack.c.l.b16 %v275
    %v1359 = vunpack.c.l.b16 %v276
    %v1360 = vunpack.c.l.b16 %v277
    %v1361 = vunpack.c.l.b16 %v278
    %v1362 = vunpack.c.l.b16 %v279
    %v1363 = vunpack.c.l.b16 %v280
    %v1364 = vunpack.c.l.b16 %v281
    %v1365 = vunpack.c.l.b16 %v282
    %v1366 = vunpack.c.l.b16 %v283
    %v1367 = vunpack.c.l.b16 %v284
    %v1368 = vunpack.c.l.b16 %v285
    %v1369 = vunpack.c.l.b16 %v286
    %v1370 = vunpack.c.l.b16 %v287
    %v1371 = vunpack.c.l.b16 %v288
    %v1372 = vunpack.c.l.b16 %v289
    %v1373 = vunpack.c.l.b16 %v290
    %v1374 = vunpack.c.l.b16 %v291
    %v1375 = vunpack.c.l.b16 %v292
    %v1376 = vunpack.c.l.b16 %v293
    %v1377 = vunpack.c.l.b16 %v294
    %v1378 = vunpack.c.l.b16 %v295
    %v1379 = vunpack.c.l.b16 %v296
    %v1380 = vunpack.c.l.b16 %v297
    %v1381 = vunpack.c.l.b16 %v298
    %v1382 = vunpack.c.l.b16 %v299
    %v1383 = vunpack.c.l.b16 %v300
    %v1384 = vunpack.c.l.b16 %v301
    %v1385 = vunpack.c.l.b16 %v302
    %v1386 = vunpack.c.l.b16 %v303
    %v1387 = vunpack.c.l.b16 %v304
    %v1388 = vunpack.c.l.b16 %v305
    %v1389 = vunpack.c.l.b16 %v306
    %v1390 = vunpack.c.l.b16 %v307
    %v1391 = vunpack.c.l.b16 %v308
    %v1392 = vunpack.c.l.b16 %v309
    %v1393 = vunpack.c.l.b16 %v310
    %v1394 = vunpack.c.l.b16 %v311
    %v1395 = vunpack.c.l.b16 %v312
    %v1396 = vunpack.c.l.b16 %v313
    %v1397 = vunpack.c.l.b16 %v314
    %v1398 = vunpack.c.l.b16 %v315
    %v1399 = vunpack.c.l.b16 %v316
    %v1400 = vunpack.c.l.b16 %v317
    %v1401 = vunpack.c.l.b16 %v318
    %v1402 = vunpack.c.l.b16 %v319
    %v1403 = vunpack.c.l.b16 %v320
    %v1404 = vunpack.c.l.b16 %v321
    %v1405 = vunpack.c.l.b16 %v322
    %v1406 = vunpack.c.l.b16 %v323
    %v1407 = vunpack.c.l.b16 %v324
    %v1408 = vunpack.c.l.b16 %v325
    %v1409 = vunpack.c.l.b16 %v326
    %v1410 = vunpack.c.l.b16 %v327
    %v1411 = vunpack.c.l.b16 %v328
    %v1412 = vunpack.c.l.b16 %v329
    %v1413 = vunpack.c.l.b16 %v330
    %v1414 = vunpack.c.l.b16 %v331
    %v1415 = vunpack.c.l.b16 %v332
    %v1416 = vunpack.c.l.b16 %v333
    %v1417 = vunpack.c.l.b16 %v334
    %v1418 = vunpack.c.l.b16 %v335
    %v1419 = vunpack.c.l.b16 %v336
    %v1420 = vunpack.c.l.b16 %v337
    %v1421 = vunpack.c.l.b16 %v338
    %v1422 = vunpack.c.l.b16 %v339
    %v1423 = vunpack.c.l.b16 %v340
    %v1424 = vunpack.c.l.b16 %v341
    %v1425 = vunpack.c.l.b16 %v342
    %v1426 = vunpack.c.l.b16 %v343
    %v1427 = vunpack.c.l.b16 %v344
    %v1428 = vunpack.c.l.b16 %v345
    %v1429 = vunpack.c.l.b16 %v346
    %v1430 = vunpack.c.l.b16 %v347
    %v1431 = vunpack.c.l.b16 %v348
    %v1432 = vunpack.c.l.b16 %v349
    %v1433 = vunpack.c.l.b16 %v350
    %v1434 = vunpack.c.l.b16 %v351
    %v1435 = vunpack.c.l.b16 %v352
    %v1436 = vunpack.c.l.b16 %v353
    %v1437 = vunpack.c.l.b16 %v354
    %v1438 = vunpack.c.l.b16 %v355
    %v1439 = vunpack.c.l.b16 %v356
    %v1440 = vunpack.c.l.b16 %v357
    %v1441 = vunpack.c.l.b16 %v358
    %v1442 = vunpack.c.l.b16 %v359
    %v1443 = vunpack.c.l.b16 %v360
    %v1444 = vunpack.c.l.b16 %v361
    %v1445 = vunpack.c.l.b16 %v362
    %v1446 = vunpack.c.l.b16 %v363
    %v1447 = vunpack.c.l.b16 %v364
    %v1448 = vunpack.c.l.b16 %v365
    %v1449 = vunpack.c.l.b16 %v366
    %v1450 = vunpack.c.l.b16 %v367
    %v1451 = vunpack.c.l.b16 %v368
    %v1452 = vunpack.c.l.b16 %v369
    %v1453 = vunpack.c.l.b16 %v370
    %v1454 = vunpack.c.l.b16 %v371
    %v1455 = vunpack.c.l.b16 %v372
    %v1456 = vunpack.c.l.b16 %v373
    %v1457 = vunpack.c.l.b16 %v374
    %v1458 = vunpack.c.l.b16 %v375
    %v1459 = vunpack.c.l.b16 %v376
    %v1460 = vunpack.c.l.b16 %v377
    %v1461 = vunpack.c.l.b16 %v378
    %v1462 = vunpack.c.l.b16 %v379
    %v1463 = vunpack.c.l.b16 %v380
    %v1464 = vunpack.c.l.b16 %v381
    %v1465 = vunpack.c.l.b16 %v382
    %v1466 = vunpack.c.l.b16 %v383
    %v1467 = vunpack.c.l.b16 %v384
    %v1468 = vunpack.c.l.b16 %v385
    %v1469 = vunpack.c.l.b16 %v386
    %v1470 = vunpack.c.l.b16 %v387
    %v1471 = vunpack.c.l.b16 %v388
    %v1472 = vunpack.c.l.b16 %v389
    %v1473 = vunpack.c.l.b16 %v390
    %v1474 = vunpack.c.l.b16 %v391
    %v1475 = vunpack.c.l.b16 %v392
    %v1476 = vunpack.c.l.b16 %v393
    %v1477 = vunpack.c.l.b16 %v394
    %v1478 = vunpack.c.l.b16 %v395
    %v1479 = vunpack.c.l.b16 %v396
    %v1480 = vunpack.c.l.b16 %v397
    %v1481 = vunpack.c.l.b16 %v398
    %v1482 = vunpack.c.l.b16 %v399
    %v1483 = vunpack.c.l.b16 %v400
    %v1484 = vunpack.c.l.b16 %v401
    %v1485 = vunpack.c.l.b16 %v402
    %v1486 = vunpack.c.l.b16 %v403
    %v1487 = vunpack.c.l.b16 %v404
    %v1488 = vunpack.c.l.b16 %v405
    %v1489 = vunpack.c.l.b16 %v406
    %v1490 = vunpack.c.l.b16 %v407
    %v1491 = vunpack.c.l.b16 %v408
    %v1492 = vunpack.c.l.b16 %v409
    %v1493 = vunpack.c.l.b16 %v410
    %v1494 = vunpack.c.l.b16 %v411
    %v1495 = vunpack.c.l.b16 %v412
    %v1496 = vunpack.c.l.b16 %v413
    %v1497 = vunpack.c.l.b16 %v414
    %v1498 = vunpack.c.l.b16 %v415
    %v1499 = vunpack.c.l.b16 %v416
    %v1500 = vunpack.c.l.b16 %v417
    %v1501 = vunpack.c.l.b16 %v418
    %v1502 = vunpack.c.l.b16 %v419
    %v1503 = vunpack.c.l.b16 %v420
    %v1504 = vunpack.c.l.b16 %v421
    %v1505 = vunpack.c.l.b16 %v422
    %v1506 = vunpack.c.l.b16 %v423
    %v1507 = vunpack.c.l.b16 %v424
    %v1508 = vunpack.c.l.b16 %v425
    %v1509 = vunpack.c.l.b16 %v426
    %v1510 = vunpack.c.l.b16 %v427
    %v1511 = vunpack.c.l.b16 %v428
    %v1512 = vunpack.c.l.b16 %v429
    %v1513 = vunpack.c.l.b16 %v430
    %v1514 = vunpack.c.l.b16 %v431
    %v1515 = vunpack.c.l.b16 %v432
    %v1516 = vunpack.c.l.b16 %v433
    %v1517 = vunpack.c.l.b16 %v434
    %v1518 = vunpack.c.l.b16 %v435
    %v1519 = vunpack.c.l.b16 %v436
    %v1520 = vunpack.c.l.b16 %v437
    %v1521 = vunpack.c.l.b16 %v438
    %v1522 = vunpack.c.l.b16 %v439
    %v1523 = vunpack.c.l.b16 %v440
    %v1524 = vunpack.c.l.b16 %v441
    %v1525 = vunpack.c.l.b16 %v442
    %v1526 = vunpack.c.l.b16 %v443
    %v1527 = vunpack.c.l.b16 %v444
    %v1528 = vunpack.c.l.b16 %v445
    %v1529 = vunpack.c.l.b16 %v446
    %v1530 = vunpack.c.l.b16 %v447
    %v1531 = vunpack.c.l.b16 %v448
    %v1532 = vunpack.c.l.b16 %v449
    %v1533 = vunpack.c.l.b16 %v450
    %v1534 = vunpack.c.l.b16 %v451
    %v1535 = vunpack.c.l.b16 %v452
    %v1536 = vunpack.c.l.b16 %v453
    %v1537 = vunpack.c.l.b16 %v454
    %v1538 = vunpack.c.l.b16 %v455
    %v1539 = vunpack.c.l.b16 %v456
    %v1540 = vunpack.c.l.b16 %v457
    %v1541 = vunpack.c.l.b16 %v458
    %v1542 = vunpack.c.l.b16 %v459
    %v1543 = vunpack.c.l.b16 %v460
    %v1544 = vunpack.c.l.b16 %v461
    %v1545 = vunpack.c.l.b16 %v462
    %v1546 = vunpack.c.l.b16 %v463
    %v1547 = vunpack.c.l.b16 %v464
    %v1548 = vunpack.c.l.b16 %v465
    %v1549 = vunpack.c.l.b16 %v466
    %v1550 = vunpack.c.l.b16 %v467
    %v1551 = vunpack.c.l.b16 %v468
    %v1552 = vunpack.c.l.b16 %v469
    %v1553 = vunpack.c.l.b16 %v470
    %v1554 = vunpack.c.l.b16 %v471
    %v1555 = vunpack.c.l.b16 %v472
    %v1556 = vunpack.c.l.b16 %v473
    %v1557 = vunpack.c.l.b16 %v474
    %v1558 = vunpack.c.l.b16 %v475
    %v1559 = vunpack.c.l.b16 %v476
    %v1560 = vunpack.c.l.b16 %v477
    %v1561 = vunpack.c.l.b16 %v478
    %v1562 = vunpack.c.l.b16 %v479
    %v1563 = vunpack.c.l.b16 %v480
    %v1564 = vunpack.c.l.b16 %v481
    %v1565 = vunpack.c.l.b16 %v482
    %v1566 = vunpack.c.l.b16 %v483
    %v1567 = vunpack.c.l.b16 %v484
    %v1568 = vunpack.c.l.b16 %v485
    %v1569 = vunpack.c.l.b16 %v486
    %v1570 = vunpack.c.l.b16 %v487
    %v1571 = vunpack.c.l.b16 %v488
    %v1572 = vunpack.c.l.b16 %v489
    %v1573 = vunpack.c.l.b16 %v490
    %v1574 = vunpack.c.l.b16 %v491
    %v1575 = vunpack.c.l.b16 %v492
    %v1576 = vunpack.c.l.b16 %v493
    %v1577 = vunpack.c.l.b16 %v494
    %v1578 = vunpack.c.l.b16 %v495
    %v1579 = vunpack.c.l.b16 %v496
    %v1580 = vunpack.c.l.b16 %v497
    %v1581 = vunpack.c.l.b16 %v498
    %v1582 = vunpack.c.l.b16 %v499
    %v1583 = vunpack.c.l.b16 %v500
    %v1584 = vunpack.c.l.b16 %v501
    %v1585 = vunpack.c.l.b16 %v502
    %v1586 = vunpack.c.l.b16 %v503
    %v1587 = vunpack.c.l.b16 %v504
    %v1588 = vunpack.c.l.b16 %v505
    %v1589 = vunpack.c.l.b16 %v506
    %v1590 = vunpack.c.l.b16 %v507
    %v1591 = vunpack.c.l.b16 %v508
    %v1592 = vunpack.c.l.b16 %v509
    %v1593 = vunpack.c.l.b16 %v510
    %v1594 = vunpack.c.l.b16 %v511
    %v1595 = vunpack.c.l.b16 %v512
    %v1596 = vunpack.c.l.b16 %v513
    %v1597 = vunpack.c.l.b16 %v514
    %v1598 = vunpack.c.l.b16 %v515
    %v1599 = vunpack.c.l.b16 %v516
    %v1600 = vunpack.c.l.b16 %v517
    %v1601 = vunpack.c.l.b16 %v518
    %v1602 = vunpack.c.l.b16 %v519
    %v1603 = vunpack.c.l.b16 %v520
    %v1604 = vunpack.c.l.b16 %v521
    %v1605 = vunpack.c.l.b16 %v522
    %v1606 = vunpack.c.l.b16 %v523
    %v1607 = vunpack.c.l.b16 %v524
    %v1608 = vunpack.c.l.b16 %v525
    %v1609 = vunpack.c.l.b16 %v526
    %v1610 = vunpack.c.l.b16 %v527
    %v1611 = vunpack.c.l.b16 %v528
    %v1612 = vunpack.c.l.b16 %v529
    %v1613 = vpack.c.b16 %v1110, %v1109
    %v1614 = vpack.c.b16 %v1112, %v1111
    %v1615 = vpack.c.b16 %v1114, %v1113
    %v1616 = vpack.c.b16 %v1116, %v1115
    %v1617 = vpack.c.b16 %v1118, %v1117
    %v1618 = vpack.c.b16 %v1120, %v1119
    %v1619 = vpack.c.b16 %v1122, %v1121
    %v1620 = vpack.c.b16 %v1124, %v1123
    %v1621 = vpack.c.b16 %v1126, %v1125
    %v1622 = vpack.c.b16 %v1128, %v1127
    %v1623 = vpack.c.b16 %v1130, %v1129
    %v1624 = vpack.c.b16 %v1132, %v1131
    %v1625 = vpack.c.b16 %v1134, %v1133
    %v1626 = vpack.c.b16 %v1136, %v1135
    %v1627 = vpack.c.b16 %v1138, %v1137
    %v1628 = vpack.c.b16 %v1140, %v1139
    %v1629 = vpack.c.b16 %v1142, %v1141
    %v1630 = vpack.c.b16 %v1144, %v1143
    %v1631 = vpack.c.b16 %v1146, %v1145
    %v1632 = vpack.c.b16 %v1148, %v1147
    %v1633 = vpack.c.b16 %v1150, %v1149
    %v1634 = vpack.c.b16 %v1152, %v1151
    %v1635 = vpack.c.b16 %v1154, %v1153
    %v1636 = vpack.c.b16 %v1156, %v1155
    %v1637 = vpack.c.b16 %v1158, %v1157
    %v1638 = vpack.c.b16 %v1160, %v1159
    %v1639 = vpack.c.b16 %v1162, %v1161
    %v1640 = vpack.c.b16 %v1164, %v1163
    %v1641 = vpack.c.b16 %v1166, %v1165
    %v1642 = vpack.c.b16 %v1168, %v1167
    %v1643 = vpack.c.b16 %v1170, %v1169
    %v1644 = vpack.c.b16 %v1172, %v1171
    %v1645 = vpack.c.b16 %v1174, %v1173
    %v1646 = vpack.c.b16 %v1176, %v1175
    %v1647 = vpack.c.b16 %v1178, %v1177
    %v1648 = vpack.c.b16 %v1180, %v1179
    %v1649 = vpack.c.b16 %v1182, %v1181
    %v1650 = vpack.c.b16 %v1184, %v1183
    %v1651 = vpack.c.b16 %v1186, %v1185
    %v1652 = vpack.c.b16 %v1188, %v1187
    %v1653 = vpack.c.b16 %v1190, %v1189
    %v1654 = vpack.c.b16 %v1192, %v1191
    %v1655 = vpack.c.b16 %v1194, %v1193
    %v1656 = vpack.c.b16 %v1196, %v1195
    %v1657 = vpack.c.b16 %v1198, %v1197
    %v1658 = vpack.c.b16 %v1200, %v1199
    %v1659 = vpack.c.b16 %v1202, %v1201
    %v1660 = vpack.c.b16 %v1204, %v1203
    %v1661 = vpack.c.b16 %v1206, %v1205
    %v1662 = vpack.c.b16 %v1208, %v1207
    %v1663 = vpack.c.b16 %v1210, %v1209
    %v1664 = vpack.c.b16 %v1212, %v1211
    %v1665 = vpack.c.b16 %v1214, %v1213
    %v1666 = vpack.c.b16 %v1216, %v1215
    %v1667 = vpack.c.b16 %v1218, %v1217
    %v1668 = vpack.c.b16 %v1220, %v1219
    %v1669 = vpack.c.b16 %v1222, %v1221
    %v1670 = vpack.c.b16 %v1224, %v1223
    %v1671 = vpack.c.b16 %v1226, %v1225
    %v1672 = vpack.c.b16 %v1228, %v1227
    %v1673 = vpack.c.b16 %v1230, %v1229
    %v1674 = vpack.c.b16 %v1232, %v1231
    %v1675 = vpack.c.b16 %v1234, %v1233
    %v1676 = vpack.c.b16 %v1236, %v1235
    %v1677 = vpack.c.b16 %v1238, %v1237
    %v1678 = vpack.c.b16 %v1240, %v1239
    %v1679 = vpack.c.b16 %v1242, %v1241
    %v1680 = vpack.c.b16 %v1244, %v1243
    %v1681 = vpack.c.b16 %v1246, %v1245
    %v1682 = vpack.c.b16 %v1248, %v1247
    %v1683 = vpack.c.b16 %v1250, %v1249
    %v1684 = vpack.c.b16 %v1252, %v1251
    %v1685 = vpack.c.b16 %v1254, %v1253
    %v1686 = vpack.c.b16 %v1256, %v1255
    %v1687 = vpack.c.b16 %v1258, %v1257
    %v1688 = vpack.c.b16 %v1260, %v1259
    %v1689 = vpack.c.b16 %v1262, %v1261
    %v1690 = vpack.c.b16 %v1264, %v1263
    %v1691 = vpack.c.b16 %v1266, %v1265
    %v1692 = vpack.c.b16 %v1268, %v1267
    %v1693 = vpack.c.b16 %v1270, %v1269
    %v1694 = vpack.c.b16 %v1272, %v1271
    %v1695 = vpack.c.b16 %v1274, %v1273
    %v1696 = vpack.c.b16 %v1276, %v1275
    %v1697 = vpack.c.b16 %v1278, %v1277
    %v1698 = vpack.c.b16 %v1280, %v1279
    %v1699 = vpack.c.b16 %v1282, %v1281
    %v1700 = vpack.c.b16 %v1284, %v1283
    %v1701 = vpack.c.b16 %v1286, %v1285
    %v1702 = vpack.c.b16 %v1288, %v1287
    %v1703 = vpack.c.b16 %v1290, %v1289
    %v1704 = vpack.c.b16 %v1292, %v1291
    %v1705 = vpack.c.b16 %v1294, %v1293
    %v1706 = vpack.c.b16 %v1296, %v1295
    %v1707 = vpack.c.b16 %v1298, %v1297
    %v1708 = vpack.c.b16 %v1300, %v1299
    %v1709 = vpack.c.b16 %v1302, %v1301
    %v1710 = vpack.c.b16 %v1304, %v1303
    %v1711 = vpack.c.b16 %v1306, %v1305
    %v1712 = vpack.c.b16 %v1308, %v1307
    %v1713 = vpack.c.b16 %v1310, %v1309
    %v1714 = vpack.c.b16 %v1312, %v1311
    %v1715 = vpack.c.b16 %v1314, %v1313
    %v1716 = vpack.c.b16 %v1316, %v1315
    %v1717 = vpack.c.b16 %v1318, %v1317
    %v1718 = vpack.c.b16 %v1320, %v1319
    %v1719 = vpack.c.b16 %v1322, %v1321
    %v1720 = vpack.c.b16 %v1324, %v1323
    %v1721 = vpack.c.b16 %v1326, %v1325
    %v1722 = vpack.c.b16 %v1328, %v1327
    %v1723 = vpack.c.b16 %v1330, %v1329
    %v1724 = vpack.c.b16 %v1332, %v1331
    %v1725 = vpack.c.b16 %v1334, %v1333
    %v1726 = vpack.c.b16 %v1336, %v1335
    %v1727 = vpack.c.b16 %v1338, %v1337
    %v1728 = vpack.c.b16 %v1340, %v1339
    %v1729 = vpack.c.b16 %v1342, %v1341
    %v1730 = vpack.c.b16 %v1344, %v1343
    %v1731 = vpack.c.b16 %v1346, %v1345
    %v1732 = vpack.c.b16 %v1348, %v1347
    %v1733 = vpack.c.b16 %v1350, %v1349
    %v1734 = vpack.c.b16 %v1352, %v1351
    %v1735 = vpack.c.b16 %v1354, %v1353
    %v1736 = vpack.c.b16 %v1356, %v1355
    %v1737 = vpack.c.b16 %v1358, %v1357
    %v1738 = vpack.c.b16 %v1360, %v1359
    %v1739 = vpack.c.b16 %v1362, %v1361
    %v1740 = vpack.c.b16 %v1364, %v1363
    %v1741 = vpack.c.b16 %v1366, %v1365
    %v1742 = vpack.c.b16 %v1368, %v1367
    %v1743 = vpack.c.b16 %v1370, %v1369
    %v1744 = vpack.c.b16 %v1372, %v1371
    %v1745 = vpack.c.b16 %v1374, %v1373
    %v1746 = vpack.c.b16 %v1376, %v1375
    %v1747 = vpack.c.b16 %v1378, %v1377
    %v1748 = vpack.c.b16 %v1380, %v1379
    %v1749 = vpack.c.b16 %v1382, %v1381
    %v1750 = vpack.c.b16 %v1384, %v1383
    %v1751 = vpack.c.b16 %v1386, %v1385
    %v1752 = vpack.c.b16 %v1388, %v1387
    %v1753 = vpack.c.b16 %v1390, %v1389
    %v1754 = vpack.c.b16 %v1392, %v1391
    %v1755 = vpack.c.b16 %v1394, %v1393
    %v1756 = vpack.c.b16 %v1396, %v1395
    %v1757 = vpack.c.b16 %v1398, %v1397
    %v1758 = vpack.c.b16 %v1400, %v1399
    %v1759 = vpack.c.b16 %v1402, %v1401
    %v1760 = vpack.c.b16 %v1404, %v1403
    %v1761 = vpack.c.b16 %v1406, %v1405
    %v1762 = vpack.c.b16 %v1408, %v1407
    %v1763 = vpack.c.b16 %v1410, %v1409
    %v1764 = vpack.c.b16 %v1412, %v1411
    %v1765 = vpack.c.b16 %v1414, %v1413
    %v1766 = vpack.c.b16 %v1416, %v1415
    %v1767 = vpack.c.b16 %v1418, %v1417
    %v1768 = vpack.c.b16 %v1420, %v1419
    %v1769 = vpack.c.b16 %v1422, %v1421
    %v1770 = vpack.c.b16 %v1424, %v1423
    %v1771 = vpack.c.b16 %v1426, %v1425
    %v1772 = vpack.c.b16 %v1428, %v1427
    %v1773 = vpack.c.b16 %v1430, %v1429
    %v1774 = vpack.c.b16 %v1432, %v1431
    %v1775 = vpack.c.b16 %v1434, %v1433
    %v1776 = vpack.c.b16 %v1436, %v1435
    %v1777 = vpack.c.b16 %v1438, %v1437
    %v1778 = vpack.c.b16 %v1440, %v1439
    %v1779 = vpack.c.b16 %v1442, %v1441
    %v1780 = vpack.c.b16 %v1444, %v1443
    %v1781 = vpack.c.b16 %v1446, %v1445
    %v1782 = vpack.c.b16 %v1448, %v1447
    %v1783 = vpack.c.b16 %v1450, %v1449
    %v1784 = vpack.c.b16 %v1452, %v1451
    %v1785 = vpack.c.b16 %v1454, %v1453
    %v1786 = vpack.c.b16 %v1456, %v1455
    %v1787 = vpack.c.b16 %v1458, %v1457
    %v1788 = vpack.c.b16 %v1460, %v1459
    %v1789 = vpack.c.b16 %v1462, %v1461
    %v1790 = vpack.c.b16 %v1464, %v1463
    %v1791 = vpack.c.b16 %v1466, %v1465
    %v1792 = vpack.c.b16 %v1468, %v1467
    %v1793 = vpack.c.b16 %v1470, %v1469
    %v1794 = vpack.c.b16 %v1472, %v1471
    %v1795 = vpack.c.b16 %v1474, %v1473
    %v1796 = vpack.c.b16 %v1476, %v1475
    %v1797 = vpack.c.b16 %v1478, %v1477
    %v1798 = vpack.c.b16 %v1480, %v1479
    %v1799 = vpack.c.b16 %v1482, %v1481
    %v1800 = vpack.c.b16 %v1484, %v1483
    %v1801 = vpack.c.b16 %v1486, %v1485
    %v1802 = vpack.c.b16 %v1488, %v1487
    %v1803 = vpack.c.b16 %v1490, %v1489
    %v1804 = vpack.c.b16 %v1492, %v1491
    %v1805 = vpack.c.b16 %v1494, %v1493
    %v1806 = vpack.c.b16 %v1496, %v1495
    %v1807 = vpack.c.b16 %v1498, %v1497
    %v1808 = vpack.c.b16 %v1500, %v1499
    %v1809 = vpack.c.b16 %v1502, %v1501
    %v1810 = vpack.c.b16 %v1504, %v1503
    %v1811 = vpack.c.b16 %v1506, %v1505
    %v1812 = vpack.c.b16 %v1508, %v1507
    %v1813 = vpack.c.b16 %v1510, %v1509
    %v1814 = vpack.c.b16 %v1512, %v1511
    %v1815 = vpack.c.b16 %v1514, %v1513
    %v1816 = vpack.c.b16 %v1516, %v1515
    %v1817 = vpack.c.b16 %v1518, %v1517
    %v1818 = vpack.c.b16 %v1520, %v1519
    %v1819 = vpack.c.b16 %v1522, %v1521
    %v1820 = vpack.c.b16 %v1524, %v1523
    %v1821 = vpack.c.b16 %v1526, %v1525
    %v1822 = vpack.c.b16 %v1528, %v1527
    %v1823 = vpack.c.b16 %v1530, %v1529
    %v1824 = vpack.c.b16 %v1532, %v1531
    %v1825 = vpack.c.b16 %v1534, %v1533
    %v1826 = vpack.c.b16 %v1536, %v1535
    %v1827 = vpack.c.b16 %v1538, %v1537
    %v1828 = vpack.c.b16 %v1540, %v1539
    %v1829 = vpack.c.b16 %v1542, %v1541
    %v1830 = vpack.c.b16 %v1544, %v1543
    %v1831 = vpack.c.b16 %v1546, %v1545
    %v1832 = vpack.c.b16 %v1548, %v1547
    %v1833 = vpack.c.b16 %v1550, %v1549
    %v1834 = vpack.c.b16 %v1552, %v1551
    %v1835 = vpack.c.b16 %v1554, %v1553
    %v1836 = vpack.c.b16 %v1556, %v1555
    %v1837 = vpack.c.b16 %v1558, %v1557
    %v1838 = vpack.c.b16 %v1560, %v1559
    %v1839 = vpack.c.b16 %v1562, %v1561
    %v1840 = vpack.c.b16 %v1564, %v1563
    %v1841 = vpack.c.b16 %v1566, %v1565
    %v1842 = vpack.c.b16 %v1568, %v1567
    %v1843 = vpack.c.b16 %v1570, %v1569
    %v1844 = vpack.c.b16 %v1572, %v1571
    %v1845 = vpack.c.b16 %v1574, %v1573
    %v1846 = vpack.c.b16 %v1576, %v1575
    %v1847 = vpack.c.b16 %v1578, %v1577
    %v1848 = vpack.c.b16 %v1580, %v1579
    %v1849 = vpack.c.b16 %v1582, %v1581
    %v1850 = vpack.c.b16 %v1584, %v1583
    %v1851 = vpack.c.b16 %v1586, %v1585
    %v1852 = vpack.c.b16 %v1588, %v1587
    %v1853 = vpack.c.b16 %v1590, %v1589
    %v1854 = vpack.c.b16 %v1592, %v1591
    %v1855 = vpack.c.b16 %v1594, %v1593
    %v1856 = vpack.c.b16 %v1596, %v1595
    %v1857 = vpack.c.b16 %v1598, %v1597
    %v1858 = vpack.c.b16 %v1600, %v1599
    %v1859 = vpack.c.b16 %v1602, %v1601
    %v1860 = vpack.c.b16 %v1604, %v1603
    %v1861 = vpack.c.b16 %v1606, %v1605
    %v1862 = vpack.c.b16 %v1608, %v1607
    %v1863 = vpack.c.b16 %v1610, %v1609
    %v1864 = vpack.c.b16 %v1612, %v1611
    %vm2117 = vcmask 523264
    %v2118 = vsel %vm2117, %v573, 0
    %2120 = vmatpush.bf16.msra.mxu0 %v1620
    %2121 = vmatpush.bf16.msra.mxu0 %v1619
    %2122 = vmatpush.bf16.msra.mxu0 %v1618
    %2123 = vmatpush.bf16.msra.mxu0 %v1617
    %2124 = vmatpush.bf16.msra.mxu0 %v1616
    %2125 = vmatpush.bf16.msra.mxu0 %v1615
    %2126 = vmatpush.bf16.msra.mxu0 %v1614
    %2127 = vmatpush.bf16.msra.mxu0 %v1613
    %2128 = vmatmul.bf16.gmra.mxu0 %v536
    %v2129 = vpop.f32.mrf.mxu0
    %v2130 = vadd.f32 %v532, %v2129
    %v2131 = vpop.f32.mrf.mxu0
    %2132 = vdwg.mxu0
    %2133 = vmatpush.bf16.msra.mxu0 %v1628
    %2134 = vmatpush.bf16.msra.mxu0 %v1627
    %2135 = vmatpush.bf16.msra.mxu0 %v1626
    %2136 = vmatpush.bf16.msra.mxu0 %v1625
    %2137 = vmatpush.bf16.msra.mxu0 %v1624
    %2138 = vmatpush.bf16.msra.mxu0 %v1623
    %2139 = vmatpush.bf16.msra.mxu0 %v1622
    %2140 = vmatpush.bf16.msra.mxu0 %v1621
    %2141 = vmatmul.bf16.gmra.mxu0 %v537
    %v2142 = vpop.f32.mrf.mxu0
    %v2143 = vadd.f32 %v2130, %v2142
    %v2144 = vpop.f32.mrf.mxu0
    %2145 = vdwg.mxu0
    %2146 = vmatpush.bf16.msra.mxu0 %v1636
    %2147 = vmatpush.bf16.msra.mxu0 %v1635
    %2148 = vmatpush.bf16.msra.mxu0 %v1634
    %2149 = vmatpush.bf16.msra.mxu0 %v1633
    %2150 = vmatpush.bf16.msra.mxu0 %v1632
    %2151 = vmatpush.bf16.msra.mxu0 %v1631
    %2152 = vmatpush.bf16.msra.mxu0 %v1630
    %2153 = vmatpush.bf16.msra.mxu0 %v1629
    %2154 = vmatmul.bf16.gmra.mxu0 %v538
    %v2155 = vpop.f32.mrf.mxu0
    %v2156 = vadd.f32 %v2143, %v2155
    %v2157 = vpop.f32.mrf.mxu0
    %2158 = vdwg.mxu0
    %2159 = vmatpush.bf16.msra.mxu0 %v1644
    %2160 = vmatpush.bf16.msra.mxu0 %v1643
    %2161 = vmatpush.bf16.msra.mxu0 %v1642
    %2162 = vmatpush.bf16.msra.mxu0 %v1641
    %2163 = vmatpush.bf16.msra.mxu0 %v1640
    %2164 = vmatpush.bf16.msra.mxu0 %v1639
    %2165 = vmatpush.bf16.msra.mxu0 %v1638
    %2166 = vmatpush.bf16.msra.mxu0 %v1637
    %2167 = vmatmul.bf16.gmra.mxu0 %v539
    %v2168 = vpop.f32.mrf.mxu0
    %v2169 = vadd.f32 %v2156, %v2168
    %v2170 = vpop.f32.mrf.mxu0
    %2171 = vdwg.mxu0
    %2172 = vmatpush.bf16.msra.mxu0 %v1652
    %2173 = vmatpush.bf16.msra.mxu0 %v1651
    %2174 = vmatpush.bf16.msra.mxu0 %v1650
    %2175 = vmatpush.bf16.msra.mxu0 %v1649
    %2176 = vmatpush.bf16.msra.mxu0 %v1648
    %2177 = vmatpush.bf16.msra.mxu0 %v1647
    %2178 = vmatpush.bf16.msra.mxu0 %v1646
    %2179 = vmatpush.bf16.msra.mxu0 %v1645
    %2180 = vmatmul.bf16.gmra.mxu0 %v540
    %v2181 = vpop.f32.mrf.mxu0
    %v2182 = vadd.f32 %v2169, %v2181
    %v2183 = vpop.f32.mrf.mxu0
    %2184 = vdwg.mxu0
    %2185 = vmatpush.bf16.msra.mxu0 %v1660
    %2186 = vmatpush.bf16.msra.mxu0 %v1659
    %2187 = vmatpush.bf16.msra.mxu0 %v1658
    %2188 = vmatpush.bf16.msra.mxu0 %v1657
    %2189 = vmatpush.bf16.msra.mxu0 %v1656
    %2190 = vmatpush.bf16.msra.mxu0 %v1655
    %2191 = vmatpush.bf16.msra.mxu0 %v1654
    %2192 = vmatpush.bf16.msra.mxu0 %v1653
    %2193 = vmatmul.bf16.gmra.mxu0 %v541
    %v2194 = vpop.f32.mrf.mxu0
    %v2195 = vadd.f32 %v2182, %v2194
    %v2196 = vpop.f32.mrf.mxu0
    %2197 = vdwg.mxu0
    %2198 = vmatpush.bf16.msra.mxu0 %v1668
    %2199 = vmatpush.bf16.msra.mxu0 %v1667
    %2200 = vmatpush.bf16.msra.mxu0 %v1666
    %2201 = vmatpush.bf16.msra.mxu0 %v1665
    %2202 = vmatpush.bf16.msra.mxu0 %v1664
    %2203 = vmatpush.bf16.msra.mxu0 %v1663
    %2204 = vmatpush.bf16.msra.mxu0 %v1662
    %2205 = vmatpush.bf16.msra.mxu0 %v1661
    %2206 = vmatmul.bf16.gmra.mxu0 %v542
    %v2207 = vpop.f32.mrf.mxu0
    %v2208 = vadd.f32 %v2195, %v2207
    %v2209 = vpop.f32.mrf.mxu0
    %2210 = vdwg.mxu0
    %2211 = vmatpush.bf16.msra.mxu0 %v1676
    %2212 = vmatpush.bf16.msra.mxu0 %v1675
    %2213 = vmatpush.bf16.msra.mxu0 %v1674
    %2214 = vmatpush.bf16.msra.mxu0 %v1673
    %2215 = vmatpush.bf16.msra.mxu0 %v1672
    %2216 = vmatpush.bf16.msra.mxu0 %v1671
    %2217 = vmatpush.bf16.msra.mxu0 %v1670
    %2218 = vmatpush.bf16.msra.mxu0 %v1669
    %2219 = vmatmul.bf16.gmra.mxu0 %v543
    %v2220 = vpop.f32.mrf.mxu0
    %v2221 = vadd.f32 %v2208, %v2220
    %v2222 = vpop.f32.mrf.mxu0
    %2223 = vdwg.mxu0
    %2224 = vmatpush.bf16.msra.mxu0 %v1684
    %2225 = vmatpush.bf16.msra.mxu0 %v1683
    %2226 = vmatpush.bf16.msra.mxu0 %v1682
    %2227 = vmatpush.bf16.msra.mxu0 %v1681
    %2228 = vmatpush.bf16.msra.mxu0 %v1680
    %2229 = vmatpush.bf16.msra.mxu0 %v1679
    %2230 = vmatpush.bf16.msra.mxu0 %v1678
    %2231 = vmatpush.bf16.msra.mxu0 %v1677
    %2232 = vmatmul.bf16.gmra.mxu0 %v546
    %v2233 = vpop.f32.mrf.mxu0
    %v2234 = vadd.f32 %v2221, %v2233
    %v2235 = vpop.f32.mrf.mxu0
    %2236 = vdwg.mxu0
    %2237 = vmatpush.bf16.msra.mxu0 %v1692
    %2238 = vmatpush.bf16.msra.mxu0 %v1691
    %2239 = vmatpush.bf16.msra.mxu0 %v1690
    %2240 = vmatpush.bf16.msra.mxu0 %v1689
    %2241 = vmatpush.bf16.msra.mxu0 %v1688
    %2242 = vmatpush.bf16.msra.mxu0 %v1687
    %2243 = vmatpush.bf16.msra.mxu0 %v1686
    %2244 = vmatpush.bf16.msra.mxu0 %v1685
    %2245 = vmatmul.bf16.gmra.mxu0 %v547
    %v2246 = vpop.f32.mrf.mxu0
    %v2247 = vadd.f32 %v2234, %v2246
    %v2248 = vpop.f32.mrf.mxu0
    %2249 = vdwg.mxu0
    %2250 = vmatpush.bf16.msra.mxu0 %v1700
    %2251 = vmatpush.bf16.msra.mxu0 %v1699
    %2252 = vmatpush.bf16.msra.mxu0 %v1698
    %2253 = vmatpush.bf16.msra.mxu0 %v1697
    %2254 = vmatpush.bf16.msra.mxu0 %v1696
    %2255 = vmatpush.bf16.msra.mxu0 %v1695
    %2256 = vmatpush.bf16.msra.mxu0 %v1694
    %2257 = vmatpush.bf16.msra.mxu0 %v1693
    %2258 = vmatmul.bf16.gmra.mxu0 %v548
    %v2259 = vpop.f32.mrf.mxu0
    %v2260 = vadd.f32 %v2247, %v2259
    %v2261 = vpop.f32.mrf.mxu0
    %2262 = vdwg.mxu0
    %2263 = vmatpush.bf16.msra.mxu0 %v1708
    %2264 = vmatpush.bf16.msra.mxu0 %v1707
    %2265 = vmatpush.bf16.msra.mxu0 %v1706
    %2266 = vmatpush.bf16.msra.mxu0 %v1705
    %2267 = vmatpush.bf16.msra.mxu0 %v1704
    %2268 = vmatpush.bf16.msra.mxu0 %v1703
    %2269 = vmatpush.bf16.msra.mxu0 %v1702
    %2270 = vmatpush.bf16.msra.mxu0 %v1701
    %2271 = vmatmul.bf16.gmra.mxu0 %v549
    %v2272 = vpop.f32.mrf.mxu0
    %v2273 = vadd.f32 %v2260, %v2272
    %v2274 = vpop.f32.mrf.mxu0
    %2275 = vdwg.mxu0
    %2276 = vmatpush.bf16.msra.mxu0 %v1716
    %2277 = vmatpush.bf16.msra.mxu0 %v1715
    %2278 = vmatpush.bf16.msra.mxu0 %v1714
    %2279 = vmatpush.bf16.msra.mxu0 %v1713
    %2280 = vmatpush.bf16.msra.mxu0 %v1712
    %2281 = vmatpush.bf16.msra.mxu0 %v1711
    %2282 = vmatpush.bf16.msra.mxu0 %v1710
    %2283 = vmatpush.bf16.msra.mxu0 %v1709
    %2284 = vmatmul.bf16.gmra.mxu0 %v550
    %v2285 = vpop.f32.mrf.mxu0
    %v2286 = vadd.f32 %v2273, %v2285
    %v2287 = vpop.f32.mrf.mxu0
    %2288 = vdwg.mxu0
    %2289 = vmatpush.bf16.msra.mxu0 %v1724
    %2290 = vmatpush.bf16.msra.mxu0 %v1723
    %2291 = vmatpush.bf16.msra.mxu0 %v1722
    %2292 = vmatpush.bf16.msra.mxu0 %v1721
    %2293 = vmatpush.bf16.msra.mxu0 %v1720
    %2294 = vmatpush.bf16.msra.mxu0 %v1719
    %2295 = vmatpush.bf16.msra.mxu0 %v1718
    %2296 = vmatpush.bf16.msra.mxu0 %v1717
    %2297 = vmatmul.bf16.gmra.mxu0 %v551
    %v2298 = vpop.f32.mrf.mxu0
    %v2299 = vadd.f32 %v2286, %v2298
    %v2300 = vpop.f32.mrf.mxu0
    %2301 = vdwg.mxu0
    %2302 = vmatpush.bf16.msra.mxu0 %v1732
    %2303 = vmatpush.bf16.msra.mxu0 %v1731
    %2304 = vmatpush.bf16.msra.mxu0 %v1730
    %2305 = vmatpush.bf16.msra.mxu0 %v1729
    %2306 = vmatpush.bf16.msra.mxu0 %v1728
    %2307 = vmatpush.bf16.msra.mxu0 %v1727
    %2308 = vmatpush.bf16.msra.mxu0 %v1726
    %2309 = vmatpush.bf16.msra.mxu0 %v1725
    %2310 = vmatmul.bf16.gmra.mxu0 %v552
    %v2311 = vpop.f32.mrf.mxu0
    %v2312 = vadd.f32 %v2299, %v2311
    %v2313 = vpop.f32.mrf.mxu0
    %2314 = vdwg.mxu0
    %2315 = vmatpush.bf16.msra.mxu0 %v1740
    %2316 = vmatpush.bf16.msra.mxu0 %v1739
    %2317 = vmatpush.bf16.msra.mxu0 %v1738
    %2318 = vmatpush.bf16.msra.mxu0 %v1737
    %2319 = vmatpush.bf16.msra.mxu0 %v1736
    %2320 = vmatpush.bf16.msra.mxu0 %v1735
    %2321 = vmatpush.bf16.msra.mxu0 %v1734
    %2322 = vmatpush.bf16.msra.mxu0 %v1733
    %2323 = vmatmul.bf16.gmra.mxu0 %v553
    %v2324 = vpop.f32.mrf.mxu0
    %v2325 = vadd.f32 %v2312, %v2324
    %v2326 = vpop.f32.mrf.mxu0
    %2327 = vdwg.mxu0
    %2328 = vmatpush.bf16.msra.mxu0 %v1748
    %2329 = vmatpush.bf16.msra.mxu0 %v1747
    %2330 = vmatpush.bf16.msra.mxu0 %v1746
    %2331 = vmatpush.bf16.msra.mxu0 %v1745
    %2332 = vmatpush.bf16.msra.mxu0 %v1744
    %2333 = vmatpush.bf16.msra.mxu0 %v1743
    %2334 = vmatpush.bf16.msra.mxu0 %v1742
    %2335 = vmatpush.bf16.msra.mxu0 %v1741
    %2336 = vmatmul.bf16.gmra.mxu0 %v556
    %v2337 = vpop.f32.mrf.mxu0
    %v2338 = vadd.f32 %v2325, %v2337
    %v2339 = vpop.f32.mrf.mxu0
    %2340 = vdwg.mxu0
    %2341 = vmatpush.bf16.msra.mxu0 %v1756
    %2342 = vmatpush.bf16.msra.mxu0 %v1755
    %2343 = vmatpush.bf16.msra.mxu0 %v1754
    %2344 = vmatpush.bf16.msra.mxu0 %v1753
    %2345 = vmatpush.bf16.msra.mxu0 %v1752
    %2346 = vmatpush.bf16.msra.mxu0 %v1751
    %2347 = vmatpush.bf16.msra.mxu0 %v1750
    %2348 = vmatpush.bf16.msra.mxu0 %v1749
    %2349 = vmatmul.bf16.gmra.mxu0 %v557
    %v2350 = vpop.f32.mrf.mxu0
    %v2351 = vadd.f32 %v2338, %v2350
    %v2352 = vpop.f32.mrf.mxu0
    %2353 = vdwg.mxu0
    %2354 = vmatpush.bf16.msra.mxu0 %v1764
    %2355 = vmatpush.bf16.msra.mxu0 %v1763
    %2356 = vmatpush.bf16.msra.mxu0 %v1762
    %2357 = vmatpush.bf16.msra.mxu0 %v1761
    %2358 = vmatpush.bf16.msra.mxu0 %v1760
    %2359 = vmatpush.bf16.msra.mxu0 %v1759
    %2360 = vmatpush.bf16.msra.mxu0 %v1758
    %2361 = vmatpush.bf16.msra.mxu0 %v1757
    %2362 = vmatmul.bf16.gmra.mxu0 %v558
    %v2363 = vpop.f32.mrf.mxu0
    %v2364 = vadd.f32 %v2351, %v2363
    %v2365 = vpop.f32.mrf.mxu0
    %2366 = vdwg.mxu0
    %2367 = vmatpush.bf16.msra.mxu0 %v1772
    %2368 = vmatpush.bf16.msra.mxu0 %v1771
    %2369 = vmatpush.bf16.msra.mxu0 %v1770
    %2370 = vmatpush.bf16.msra.mxu0 %v1769
    %2371 = vmatpush.bf16.msra.mxu0 %v1768
    %2372 = vmatpush.bf16.msra.mxu0 %v1767
    %2373 = vmatpush.bf16.msra.mxu0 %v1766
    %2374 = vmatpush.bf16.msra.mxu0 %v1765
    %2375 = vmatmul.bf16.gmra.mxu0 %v559
    %v2376 = vpop.f32.mrf.mxu0
    %v2377 = vadd.f32 %v2364, %v2376
    %v2378 = vpop.f32.mrf.mxu0
    %2379 = vdwg.mxu0
    %2380 = vmatpush.bf16.msra.mxu0 %v1780
    %2381 = vmatpush.bf16.msra.mxu0 %v1779
    %2382 = vmatpush.bf16.msra.mxu0 %v1778
    %2383 = vmatpush.bf16.msra.mxu0 %v1777
    %2384 = vmatpush.bf16.msra.mxu0 %v1776
    %2385 = vmatpush.bf16.msra.mxu0 %v1775
    %2386 = vmatpush.bf16.msra.mxu0 %v1774
    %2387 = vmatpush.bf16.msra.mxu0 %v1773
    %2388 = vmatmul.bf16.gmra.mxu0 %v560
    %v2389 = vpop.f32.mrf.mxu0
    %v2390 = vadd.f32 %v2377, %v2389
    %v2391 = vpop.f32.mrf.mxu0
    %2392 = vdwg.mxu0
    %2393 = vmatpush.bf16.msra.mxu0 %v1788
    %2394 = vmatpush.bf16.msra.mxu0 %v1787
    %2395 = vmatpush.bf16.msra.mxu0 %v1786
    %2396 = vmatpush.bf16.msra.mxu0 %v1785
    %2397 = vmatpush.bf16.msra.mxu0 %v1784
    %2398 = vmatpush.bf16.msra.mxu0 %v1783
    %2399 = vmatpush.bf16.msra.mxu0 %v1782
    %2400 = vmatpush.bf16.msra.mxu0 %v1781
    %2401 = vmatmul.bf16.gmra.mxu0 %v561
    %v2402 = vpop.f32.mrf.mxu0
    %v2403 = vadd.f32 %v2390, %v2402
    %v2404 = vpop.f32.mrf.mxu0
    %2405 = vdwg.mxu0
    %2406 = vmatpush.bf16.msra.mxu0 %v1796
    %2407 = vmatpush.bf16.msra.mxu0 %v1795
    %2408 = vmatpush.bf16.msra.mxu0 %v1794
    %2409 = vmatpush.bf16.msra.mxu0 %v1793
    %2410 = vmatpush.bf16.msra.mxu0 %v1792
    %2411 = vmatpush.bf16.msra.mxu0 %v1791
    %2412 = vmatpush.bf16.msra.mxu0 %v1790
    %2413 = vmatpush.bf16.msra.mxu0 %v1789
    %2414 = vmatmul.bf16.gmra.mxu0 %v562
    %v2415 = vpop.f32.mrf.mxu0
    %v2416 = vadd.f32 %v2403, %v2415
    %v2417 = vpop.f32.mrf.mxu0
    %2418 = vdwg.mxu0
    %2419 = vmatpush.bf16.msra.mxu0 %v1804
    %2420 = vmatpush.bf16.msra.mxu0 %v1803
    %2421 = vmatpush.bf16.msra.mxu0 %v1802
    %2422 = vmatpush.bf16.msra.mxu0 %v1801
    %2423 = vmatpush.bf16.msra.mxu0 %v1800
    %2424 = vmatpush.bf16.msra.mxu0 %v1799
    %2425 = vmatpush.bf16.msra.mxu0 %v1798
    %2426 = vmatpush.bf16.msra.mxu0 %v1797
    %2427 = vmatmul.bf16.gmra.mxu0 %v563
    %v2428 = vpop.f32.mrf.mxu0
    %v2429 = vadd.f32 %v2416, %v2428
    %v2430 = vpop.f32.mrf.mxu0
    %2431 = vdwg.mxu0
    %2432 = vmatpush.bf16.msra.mxu0 %v1812
    %2433 = vmatpush.bf16.msra.mxu0 %v1811
    %2434 = vmatpush.bf16.msra.mxu0 %v1810
    %2435 = vmatpush.bf16.msra.mxu0 %v1809
    %2436 = vmatpush.bf16.msra.mxu0 %v1808
    %2437 = vmatpush.bf16.msra.mxu0 %v1807
    %2438 = vmatpush.bf16.msra.mxu0 %v1806
    %2439 = vmatpush.bf16.msra.mxu0 %v1805
    %2440 = vmatmul.bf16.gmra.mxu0 %v566
    %v2441 = vpop.f32.mrf.mxu0
    %v2442 = vadd.f32 %v2429, %v2441
    %v2443 = vpop.f32.mrf.mxu0
    %2444 = vdwg.mxu0
    %2445 = vmatpush.bf16.msra.mxu0 %v1820
    %2446 = vmatpush.bf16.msra.mxu0 %v1819
    %2447 = vmatpush.bf16.msra.mxu0 %v1818
    %2448 = vmatpush.bf16.msra.mxu0 %v1817
    %2449 = vmatpush.bf16.msra.mxu0 %v1816
    %2450 = vmatpush.bf16.msra.mxu0 %v1815
    %2451 = vmatpush.bf16.msra.mxu0 %v1814
    %2452 = vmatpush.bf16.msra.mxu0 %v1813
    %2453 = vmatmul.bf16.gmra.mxu0 %v567
    %v2454 = vpop.f32.mrf.mxu0
    %v2455 = vadd.f32 %v2442, %v2454
    %v2456 = vpop.f32.mrf.mxu0
    %2457 = vdwg.mxu0
    %2458 = vmatpush.bf16.msra.mxu0 %v1828
    %2459 = vmatpush.bf16.msra.mxu0 %v1827
    %2460 = vmatpush.bf16.msra.mxu0 %v1826
    %2461 = vmatpush.bf16.msra.mxu0 %v1825
    %2462 = vmatpush.bf16.msra.mxu0 %v1824
    %2463 = vmatpush.bf16.msra.mxu0 %v1823
    %2464 = vmatpush.bf16.msra.mxu0 %v1822
    %2465 = vmatpush.bf16.msra.mxu0 %v1821
    %2466 = vmatmul.bf16.gmra.mxu0 %v568
    %v2467 = vpop.f32.mrf.mxu0
    %v2468 = vadd.f32 %v2455, %v2467
    %v2469 = vpop.f32.mrf.mxu0
    %2470 = vdwg.mxu0
    %2471 = vmatpush.bf16.msra.mxu0 %v1836
    %2472 = vmatpush.bf16.msra.mxu0 %v1835
    %2473 = vmatpush.bf16.msra.mxu0 %v1834
    %2474 = vmatpush.bf16.msra.mxu0 %v1833
    %2475 = vmatpush.bf16.msra.mxu0 %v1832
    %2476 = vmatpush.bf16.msra.mxu0 %v1831
    %2477 = vmatpush.bf16.msra.mxu0 %v1830
    %2478 = vmatpush.bf16.msra.mxu0 %v1829
    %2479 = vmatmul.bf16.gmra.mxu0 %v569
    %v2480 = vpop.f32.mrf.mxu0
    %v2481 = vadd.f32 %v2468, %v2480
    %v2482 = vpop.f32.mrf.mxu0
    %2483 = vdwg.mxu0
    %2484 = vmatpush.bf16.msra.mxu0 %v1844
    %2485 = vmatpush.bf16.msra.mxu0 %v1843
    %2486 = vmatpush.bf16.msra.mxu0 %v1842
    %2487 = vmatpush.bf16.msra.mxu0 %v1841
    %2488 = vmatpush.bf16.msra.mxu0 %v1840
    %2489 = vmatpush.bf16.msra.mxu0 %v1839
    %2490 = vmatpush.bf16.msra.mxu0 %v1838
    %2491 = vmatpush.bf16.msra.mxu0 %v1837
    %2492 = vmatmul.bf16.gmra.mxu0 %v570
    %v2493 = vpop.f32.mrf.mxu0
    %v2494 = vadd.f32 %v2481, %v2493
    %v2495 = vpop.f32.mrf.mxu0
    %2496 = vdwg.mxu0
    %2497 = vmatpush.bf16.msra.mxu0 %v1852
    %2498 = vmatpush.bf16.msra.mxu0 %v1851
    %2499 = vmatpush.bf16.msra.mxu0 %v1850
    %2500 = vmatpush.bf16.msra.mxu0 %v1849
    %2501 = vmatpush.bf16.msra.mxu0 %v1848
    %2502 = vmatpush.bf16.msra.mxu0 %v1847
    %2503 = vmatpush.bf16.msra.mxu0 %v1846
    %2504 = vmatpush.bf16.msra.mxu0 %v1845
    %2505 = vmatmul.bf16.gmra.mxu0 %v571
    %v2506 = vpop.f32.mrf.mxu0
    %v2507 = vadd.f32 %v2494, %v2506
    %v2508 = vpop.f32.mrf.mxu0
    %2509 = vdwg.mxu0
    %2510 = vmatpush.bf16.msra.mxu0 %v1860
    %2511 = vmatpush.bf16.msra.mxu0 %v1859
    %2512 = vmatpush.bf16.msra.mxu0 %v1858
    %2513 = vmatpush.bf16.msra.mxu0 %v1857
    %2514 = vmatpush.bf16.msra.mxu0 %v1856
    %2515 = vmatpush.bf16.msra.mxu0 %v1855
    %2516 = vmatpush.bf16.msra.mxu0 %v1854
    %2517 = vmatpush.bf16.msra.mxu0 %v1853
    %2518 = vmatmul.bf16.gmra.mxu0 %v572
    %v2519 = vpop.f32.mrf.mxu0
    %v2520 = vadd.f32 %v2507, %v2519
    %v2521 = vpop.f32.mrf.mxu0
    %2522 = vdwg.mxu0
    %2523 = vmatpush.bf16.msra.mxu0 0
    %2524 = vmatpush.bf16.msra.mxu0 0
    %2525 = vmatpush.bf16.msra.mxu0 0
    %2526 = vmatpush.bf16.msra.mxu0 0
    %2527 = vmatpush.bf16.msra.mxu0 %v1864
    %2528 = vmatpush.bf16.msra.mxu0 %v1863
    %2529 = vmatpush.bf16.msra.mxu0 %v1862
    %2530 = vmatpush.bf16.msra.mxu0 %v1861
    %2531 = vmatmul.bf16.gmra.mxu0 %v2118
    %v2532 = vpop.f32.mrf.mxu0
    %v2533 = vadd.f32 %v2520, %v2532
    %v2534 = vpop.f32.mrf.mxu0
    %2535 = vdwg.mxu0
    %v2536 = vmax.f32 %v2533, 0.0
    %v2537 = vpack.c.bf16 %v2536, %v2536
    %v2538 = vld [vmem:[%s3] sm:$0xf]
    %v2539 = vld [vmem:[%s3 + $0x4] sm:$0xf]
    %v2540 = vld [vmem:[%s3 + $0x8] sm:$0xf]
    %v2541 = vld [vmem:[%s3 + $0xc] sm:$0xf]
    %v2542 = vld [vmem:[%s3 + $0x10] sm:$0xf]
    %v2543 = vld [vmem:[%s3 + $0x14] sm:$0xf]
    %v2544 = vld [vmem:[%s3 + $0x18] sm:$0xf]
    %v2545 = vld [vmem:[%s3 + $0x1c] sm:$0xf]
    %v2546 = vld [vmem:[%s3 + $0x20] sm:$0xf]
    %v2547 = vld [vmem:[%s3 + $0x24] sm:$0xf]
    %v2548 = vld [vmem:[%s3 + $0x28] sm:$0xf]
    %v2549 = vld [vmem:[%s3 + $0x2c] sm:$0xf]
    %v2550 = vld [vmem:[%s3 + $0x30] sm:$0xf]
    %v2551 = vld [vmem:[%s3 + $0x34] sm:$0xf]
    %v2552 = vld [vmem:[%s3 + $0x38] sm:$0xf]
    %v2553 = vld [vmem:[%s3 + $0x3c] sm:$0xf]
    %v2554 = vld [vmem:[%s4] sm:$0x1]
    %v2556 = vperm.slane %v2554, 0
    %v2574 = vunpack.c.l.b16 %v2538
    %v2575 = vunpack.c.l.b16 %v2539
    %v2576 = vunpack.c.l.b16 %v2540
    %v2577 = vunpack.c.l.b16 %v2541
    %v2578 = vunpack.c.l.b16 %v2542
    %v2579 = vunpack.c.l.b16 %v2543
    %v2580 = vunpack.c.l.b16 %v2544
    %v2581 = vunpack.c.l.b16 %v2545
    %v2582 = vunpack.c.l.b16 %v2546
    %v2583 = vunpack.c.l.b16 %v2547
    %v2584 = vunpack.c.l.b16 %v2548
    %v2585 = vunpack.c.l.b16 %v2549
    %v2586 = vunpack.c.l.b16 %v2550
    %v2587 = vunpack.c.l.b16 %v2551
    %v2588 = vunpack.c.l.b16 %v2552
    %v2589 = vunpack.c.l.b16 %v2553
    %v2590 = vpack.c.b16 %v2575, %v2574
    %v2591 = vpack.c.b16 %v2577, %v2576
    %v2592 = vpack.c.b16 %v2579, %v2578
    %v2593 = vpack.c.b16 %v2581, %v2580
    %v2594 = vpack.c.b16 %v2583, %v2582
    %v2595 = vpack.c.b16 %v2585, %v2584
    %v2596 = vpack.c.b16 %v2587, %v2586
    %v2597 = vpack.c.b16 %v2589, %v2588
    %2606 = vmatpush.bf16.msra.mxu0 %v2597
    %2607 = vmatpush.bf16.msra.mxu0 %v2596
    %2608 = vmatpush.bf16.msra.mxu0 %v2595
    %2609 = vmatpush.bf16.msra.mxu0 %v2594
    %2610 = vmatpush.bf16.msra.mxu0 %v2593
    %2611 = vmatpush.bf16.msra.mxu0 %v2592
    %2612 = vmatpush.bf16.msra.mxu0 %v2591
    %2613 = vmatpush.bf16.msra.mxu0 %v2590
    %2614 = vmatmul.bf16.gmra.mxu0 %v2537
    %v2615 = vpop.f32.mrf.mxu0
    %v2616 = vadd.f32 %v2556, %v2615
    %v2617 = vpop.f32.mrf.mxu0
    %2618 = vdwg.mxu0
    %vm2619 = vcmask 66560
    %2620 = vst.msk [vmem:[#allocation2] sm:$0x3] %vm2619, %v2616
    // Predicated region
    $region22: #{_lambda_.7} parent=1 // pred_check
      _
    $region23: #{_lambda_.7} parent=1 // pred_check_branch
      %2622 = sbr.rel (0) target = $region25
    $region24: #{_lambda_.7} parent=1 // pred_region
      %2624 = vsyncadd [#allocation3], 0
      %s2626 = sshll.u32 [#allocation2], 4
      %s2627 = int_to_ptr.vmem [resolvable:$true] %s2626
      %s2628 = sshll.u32 %s5, 4
      %s2629 = int_to_ptr.hbm [resolvable:$true] %s2628
      %2631 = dma.vmem_to_hbm [thread:$0]  %s2627, 32, %s2629, [#allocation3]
    $region25: #{_lambda_.7} parent=1 // pred_fallthru
      _
    // Predicated region
    $region26: #{_lambda_.7} parent=1 // pred_check
      _
    $region27: #{_lambda_.7} parent=1 // pred_check_branch
      %2633 = sbr.rel (0) target = $region29
    $region28: #{_lambda_.7} parent=1 // pred_region
      %2635 = dma.done [#allocation3], 32
    $region29: #{_lambda_.7} parent=1 // pred_fallthru
      _
    %2636 = vsyncpa [#allocation3], 1

</llo_original>
